<compile_context>
chip_gen: v7x
topology: tpu7x:2x2x1
jax: 0.10.0
libtpu: 0.0.40
codegen_flags: <defaults>
</compile_context>

<pallas_src>
import functools

import jax
import jax.numpy as jnp
from jax import lax
from jax.experimental import pallas as pl
from jax.experimental.pallas import tpu as pltpu


def _round_up(x, m):
    return ((x + m - 1) // m) * m


def _vmem_limit_bytes():
    try:
        cap = int(pltpu.get_tpu_info().vmem_capacity_bytes)
        return max(16 * 1024 * 1024, int(cap * 0.8))   # ~52 MiB on v7x, ~102 MiB on v5e/v6e
    except Exception:
        return 48 * 1024 * 1024                        # safe on every generation


def _pick_row_tile(OH, step_bytes_fn, budget):
    """Largest divisor of OH that fits the VMEM budget, <= 8, and leaves >= 2 row tiles."""
    cap = min(8, OH if OH < 2 else max(1, OH // 2))
    best = 1
    for t in range(1, cap + 1):
        if OH % t == 0 and step_bytes_fn(t) <= budget:
            best = t
    return best


# ---------------------------------------------------------------------------
# Kernel A: direct conv (windows assembled in VMEM) + per-(image,row-tile) partial
# BN statistics.  The flattened padded image stays resident across the row-tile axis;
# each output image row is one MXU matmul with contraction K = KH*KW*Cin (fused path)
# or KH*KW accumulated K = Cin dots (fallback path).
# ---------------------------------------------------------------------------
def _conv_stats_kernel(x_ref, w_ref, y_ref, psum_ref, psq_ref, *,
                       KH, KW, W_pad, OW, TOH, stride, fuse_taps):
    # x_ref : (L, Cin)  flattened padded image (resident across row tiles)
    # w_ref : (KH*KW*Cin, Cout_p) if fuse_taps else (KH*KW, Cin, Cout_p)
    # y_ref : (TOH, OW, Cout_p)   conv output tile (lane-dense, compute dtype)
    # psum  : (1, Cout_p) f32     partial sum          (per image, per row tile)
    # psq   : (1, Cout_p) f32     partial sum of squares
    r = pl.program_id(1)
    cout_p = y_ref.shape[-1]
    psum = jnp.zeros((1, cout_p), jnp.float32)
    psq = jnp.zeros((1, cout_p), jnp.float32)
    oh0 = r * TOH
    for i in range(TOH):                                   # static unroll, TOH <= 8
        base = (oh0 + i) * stride * W_pad

        def window(kh, kw):
            start = base + kh * W_pad + kw
            if stride == 1:
                return x_ref[pl.ds(start, OW), :]
            # TODO(synk): stride>1 uses strided sublane loads; a DMA/gather compaction
            # would be faster for real downsample layers.
            return x_ref[pl.ds(start, OW, stride=stride), :]

        if fuse_taps:
            # One large-K matmul: lhs is (OW, KH*KW*Cin).
            lhs = jnp.concatenate(
                [window(kh, kw) for kh in range(KH) for kw in range(KW)], axis=-1)
            acc = jnp.dot(lhs, w_ref[...], preferred_element_type=jnp.float32)
        else:
            acc = jnp.zeros((OW, cout_p), jnp.float32)
            for kh in range(KH):
                for kw in range(KW):
                    acc = acc + jnp.dot(window(kh, kw), w_ref[kh * KW + kw],
                                        preferred_element_type=jnp.float32)

        y_ref[i, :, :] = acc.astype(y_ref.dtype)
        psum = psum + jnp.sum(acc, axis=0, keepdims=True)
        psq = psq + jnp.sum(acc * acc, axis=0, keepdims=True)

    psum_ref[...] = psum
    psq_ref[...] = psq


# ---------------------------------------------------------------------------
# Kernel B: y * scale + shift, LeakyReLU(0.1), and channel un-padding (writes only the
# real Cout channels in NHWC).  scale/shift already fold the batch mean/var + BN affine.
# ---------------------------------------------------------------------------
def _bn_act_kernel(y_ref, scale_ref, shift_ref, o_ref, *, Cout):
    y = y_ref[...].astype(jnp.float32)                    # (TOH, OW, Cout_p)
    scale = scale_ref[...].reshape(1, 1, -1)
    shift = shift_ref[...].reshape(1, 1, -1)
    z = y * scale + shift
    z = jnp.where(z >= 0.0, z, 0.1 * z)
    o_ref[...] = z[:, :, :Cout]


@functools.partial(jax.jit,
                   static_argnames=("stride", "padding", "eps", "fuse_taps", "compute_dtype"))
def conv_bn_leakyrelu(x_nchw, weight, gamma, beta, *, stride, padding, eps=1e-5,
                      fuse_taps=True, compute_dtype=jnp.bfloat16):
    """x_nchw: (N, Cin, H, W); weight: (Cout, Cin, KH, KW) — PyTorch convention."""
    x_nchw = x_nchw.astype(jnp.float32)
    weight = weight.astype(jnp.float32)
    N, Cin, H, W = x_nchw.shape
    Cout, _, KH, KW = weight.shape
    H_pad, W_pad = H + 2 * padding, W + 2 * padding
    OH = (H_pad - KH) // stride + 1
    OW = (W_pad - KW) // stride + 1

    cout_p = _round_up(Cout, 128)          # lane-dense MXU N dim (VMEM only)
    K_all = KH * KW * Cin
    L = H_pad * W_pad
    bpe = jnp.dtype(compute_dtype).itemsize

    vmem_limit = _vmem_limit_bytes()

    def step_bytes(toh):
        x_b = L * Cin * bpe
        w_b = K_all * cout_p * bpe
        y_b = toh * OW * cout_p * bpe
        tmp = OW * cout_p * 4 + OW * K_all * bpe + 2 * cout_p * 4
        return 2 * (x_b + w_b + y_b) + tmp          # inputs/outputs double-buffered

    # TODO(synk): for very large images the flattened image itself should also be
    # halo-row-tiled via manual DMA instead of staying whole-image resident.
    TOH = _pick_row_tile(OH, step_bytes, vmem_limit // 2)
    R = OH // TOH

    # ---- host glue: NCHW -> flattened padded NHWC (no KH*KW HBM im2col blow-up) ----
    x_nhwc = jnp.transpose(x_nchw, (0, 2, 3, 1))
    x_sp = jnp.pad(x_nhwc, ((0, 0), (padding, padding), (padding, padding), (0, 0)))
    x_flat = x_sp.reshape(N, L, Cin).astype(compute_dtype)

    # weights: (Cout, Cin, KH, KW) -> (KH, KW, Cin, Cout) -> (KH*KW*Cin, Cout_p)
    w_hwio = jnp.transpose(weight, (2, 3, 1, 0)).reshape(K_all, Cout)
    w_mat = jnp.pad(w_hwio, ((0, 0), (0, cout_p - Cout))).astype(compute_dtype)
    if fuse_taps:
        w_oper = w_mat                                            # (K_all, Cout_p)
        w_spec = pl.BlockSpec((K_all, cout_p), lambda n, r: (0, 0))
    else:
        w_oper = w_mat.reshape(KH * KW, Cin, cout_p)              # per-tap layout
        w_spec = pl.BlockSpec((KH * KW, Cin, cout_p), lambda n, r: (0, 0, 0))

    kernel_a = functools.partial(_conv_stats_kernel, KH=KH, KW=KW, W_pad=W_pad,
                                 OW=OW, TOH=TOH, stride=stride, fuse_taps=fuse_taps)
    y_conv, psum, psq = pl.pallas_call(
        kernel_a,
        out_shape=(
            jax.ShapeDtypeStruct((N, OH, OW, cout_p), compute_dtype),   # bf16 intermediate
            jax.ShapeDtypeStruct((N * R, 1, cout_p), jnp.float32),
            jax.ShapeDtypeStruct((N * R, 1, cout_p), jnp.float32),
        ),
        grid=(N, R),
        in_specs=[
            pl.BlockSpec((None, L, Cin), lambda n, r: (n, 0, 0)),   # image resident over r
            w_spec,                                                  # weights resident
        ],
        out_specs=(
            pl.BlockSpec((None, TOH, OW, cout_p), lambda n, r: (n, r, 0, 0)),
            pl.BlockSpec((None, 1, cout_p), lambda n, r: (n * R + r, 0, 0)),
            pl.BlockSpec((None, 1, cout_p), lambda n, r: (n * R + r, 0, 0)),
        ),
        compiler_params=pltpu.CompilerParams(
            dimension_semantics=("parallel", "parallel"),
            vmem_limit_bytes=vmem_limit),
    )(x_flat, w_oper)

    # ---- batch stats -> per-channel scale/shift (tiny f32 wrapper op) ----
    count = jnp.float32(N * OH * OW)
    ch_sum = jnp.sum(psum, axis=0)                    # (1, Cout_p)
    ch_sq = jnp.sum(psq, axis=0)
    mean = ch_sum / count
    # TODO(synk): single-pass E[y^2]-mean^2 can lose precision for very large
    # activations; a shifted / Welford-style combine of the partials would be safer.
    var = jnp.maximum(ch_sq / count - mean * mean, 0.0)
    gamma_p = jnp.pad(gamma.astype(jnp.float32).reshape(1, Cout),
                      ((0, 0), (0, cout_p - Cout)))
    beta_p = jnp.pad(beta.astype(jnp.float32).reshape(1, Cout),
                     ((0, 0), (0, cout_p - Cout)))
    scale = gamma_p * lax.rsqrt(var + eps)
    shift = beta_p - mean * scale

    # ---- Kernel B: normalize + affine + LeakyReLU, channel un-padding fused ----
    kernel_b = functools.partial(_bn_act_kernel, Cout=Cout)
    out_nhwc = pl.pallas_call(
        kernel_b,
        out_shape=jax.ShapeDtypeStruct((N, OH, OW, Cout), jnp.float32),
        grid=(N, R),
        in_specs=[
            pl.BlockSpec((None, TOH, OW, cout_p), lambda n, r: (n, r, 0, 0)),
            pl.BlockSpec((1, cout_p), lambda n, r: (0, 0)),
            pl.BlockSpec((1, cout_p), lambda n, r: (0, 0)),
        ],
        out_specs=pl.BlockSpec((None, TOH, OW, Cout), lambda n, r: (n, r, 0, 0)),
        compiler_params=pltpu.CompilerParams(
            dimension_semantics=("parallel", "parallel"),
            vmem_limit_bytes=vmem_limit),
    )(y_conv, scale, shift)

    # TODO(synk): the NHWC->NCHW transpose is left to XLA; it could be folded into
    # kernel B's out_spec at the cost of narrow masked stores along W for small Cout.
    return jnp.transpose(out_nhwc, (0, 3, 1, 2))


def reference(x_nchw, weight, gamma, beta, *, stride, padding, eps=1e-5,
              quantize_dtype=None):
    """Pure-JAX reference: conv (f32, HIGHEST precision) + training BN + leaky_relu(0.1).

    If quantize_dtype is given, inputs/weights are first rounded to that dtype so the
    reference matches the kernel's bf16-operand / f32-accumulate MXU path."""
    x = x_nchw.astype(jnp.float32)
    w = weight.astype(jnp.float32)
    if quantize_dtype is not None:
        x = x.astype(quantize_dtype).astype(jnp.float32)
        w = w.astype(quantize_dtype).astype(jnp.float32)
    y = lax.conv_general_dilated(
        x, w, window_strides=(stride, stride),
        padding=[(padding, padding), (padding, padding)],
        dimension_numbers=("NCHW", "OIHW", "NCHW"),
        precision=lax.Precision.HIGHEST)
    mean = jnp.mean(y, axis=(0, 2, 3), keepdims=True)
    var = jnp.mean((y - mean) ** 2, axis=(0, 2, 3), keepdims=True)
    z = (y - mean) * lax.rsqrt(var + eps) * gamma.reshape(1, -1, 1, 1) \
        + beta.reshape(1, -1, 1, 1)
    return jnp.where(z >= 0.0, z, 0.1 * z)


if __name__ == "__main__":
    # ConvBN(in_channels=4, out_channels=8, kernel_size=3, stride=1, padding=1)
    N, Cin, H, W = 2, 4, 16, 16
    Cout, KH, KW = 8, 3, 3
    stride, padding = 1, 1

    key = jax.random.PRNGKey(0)
    kx, kw_ = jax.random.split(key)
    x = jax.random.normal(kx, (N, Cin, H, W), dtype=jnp.float32)

    # kaiming_normal_(mode='fan_in', nonlinearity='leaky_relu') with torch default a=0.01
    fan_in = Cin * KH * KW
    gain = (2.0 / (1.0 + 0.01 ** 2)) ** 0.5
    std = gain / (fan_in ** 0.5)
    weight = std * jax.random.normal(kw_, (Cout, Cin, KH, KW), dtype=jnp.float32)

    # BatchNorm2d init: weight=1, bias=0
    gamma = jnp.ones((Cout,), jnp.float32)
    beta = jnp.zeros((Cout,), jnp.float32)

    fused_ok = True
    try:
        out = jax.block_until_ready(
            conv_bn_leakyrelu(x, weight, gamma, beta, stride=stride, padding=padding,
                              fuse_taps=True))
    except Exception:
        # Fallback: per-tap K=Cin dots with f32 operands (most conservative lowering).
        fused_ok = False
        out = jax.block_until_ready(
            conv_bn_leakyrelu(x, weight, gamma, beta, stride=stride, padding=padding,
                              fuse_taps=False, compute_dtype=jnp.float32))
    assert out.shape == (N, Cout, H, W)

    # Loose check vs the full-f32 module semantics (covers bf16 operand/intermediate
    # rounding on the fused path).
    ref_f32 = reference(x, weight, gamma, beta, stride=stride, padding=padding)
    assert jnp.allclose(out, ref_f32, atol=5e-2, rtol=5e-2), \
        float(jnp.max(jnp.abs(out - ref_f32)))

    if fused_ok:
        # Tighter check vs a reference fed the same bf16-rounded operands.
        ref_q = reference(x, weight, gamma, beta, stride=stride, padding=padding,
                          quantize_dtype=jnp.bfloat16)
        assert jnp.allclose(out, ref_q, atol=1e-2, rtol=1e-2), \
            float(jnp.max(jnp.abs(out - ref_q)))

    print("KERNEL_OK")
</pallas_src>

<mosaic_0001>
module attributes {stable_mosaic.version = 11 : i64} {
  func.func @_conv_stats_kernel(%arg0: i32, %arg1: i32, %arg2: memref<1x324x4xbf16, #tpu.memory_space<vmem>>, %arg3: memref<36x128xbf16, #tpu.memory_space<vmem>>, %arg4: memref<1x8x16x128xbf16, #tpu.memory_space<vmem>>, %arg5: memref<1x1x128xf32, #tpu.memory_space<vmem>>, %arg6: memref<1x1x128xf32, #tpu.memory_space<vmem>>) attributes {dimension_semantics = [#tpu.dimension_semantics<parallel>, #tpu.dimension_semantics<parallel>], iteration_bounds = array<i64: 2, 2>, scalar_prefetch = 0 : i64, scratch_operands = 0 : i64, tpu.core_type = #tpu.core_type<tc>, window_params = [{transform_indices = @transform_0, window_bounds = array<i64: 1, 324, 4>}, {pipeline_mode = #tpu.pipeline_mode<synchronous>, transform_indices = @transform_1, window_bounds = array<i64: 36, 128>}, {transform_indices = @transform_2, window_bounds = array<i64: 1, 8, 16, 128>}, {transform_indices = @transform_3, window_bounds = array<i64: 1, 1, 128>}, {transform_indices = @transform_4, window_bounds = array<i64: 1, 1, 128>}]} {
    %cst = arith.constant 0.000000e+00 : f32
    %0 = vector.broadcast %cst : f32 to vector<1x128xf32>
    %cst_0 = arith.constant 0.000000e+00 : f32
    %1 = vector.broadcast %cst_0 : f32 to vector<1x128xf32>
    %c8_i32 = arith.constant 8 : i32
    %2 = arith.muli %arg1, %c8_i32 : i32
    %c0_i32 = arith.constant 0 : i32
    %3 = arith.addi %2, %c0_i32 : i32
    %c1_i32 = arith.constant 1 : i32
    %4 = arith.muli %3, %c1_i32 : i32
    %c18_i32 = arith.constant 18 : i32
    %5 = arith.muli %4, %c18_i32 : i32
    %c0_i32_1 = arith.constant 0 : i32
    %6 = arith.addi %5, %c0_i32_1 : i32
    %c0_i32_2 = arith.constant 0 : i32
    %7 = arith.addi %6, %c0_i32_2 : i32
    %c0 = arith.constant 0 : index
    %8 = arith.index_cast %7 : i32 to index
    %c0_3 = arith.constant 0 : index
    %9 = vector.load %arg2[%c0, %8, %c0_3] : memref<1x324x4xbf16, #tpu.memory_space<vmem>>, vector<1x16x4xbf16>
    %10 = vector.shape_cast %9 : vector<1x16x4xbf16> to vector<16x4xbf16>
    %c0_i32_4 = arith.constant 0 : i32
    %11 = arith.addi %5, %c0_i32_4 : i32
    %c1_i32_5 = arith.constant 1 : i32
    %12 = arith.addi %11, %c1_i32_5 : i32
    %c0_6 = arith.constant 0 : index
    %13 = arith.index_cast %12 : i32 to index
    %c0_7 = arith.constant 0 : index
    %14 = vector.load %arg2[%c0_6, %13, %c0_7] : memref<1x324x4xbf16, #tpu.memory_space<vmem>>, vector<1x16x4xbf16>
    %15 = vector.shape_cast %14 : vector<1x16x4xbf16> to vector<16x4xbf16>
    %c0_i32_8 = arith.constant 0 : i32
    %16 = arith.addi %5, %c0_i32_8 : i32
    %c2_i32 = arith.constant 2 : i32
    %17 = arith.addi %16, %c2_i32 : i32
    %c0_9 = arith.constant 0 : index
    %18 = arith.index_cast %17 : i32 to index
    %c0_10 = arith.constant 0 : index
    %19 = vector.load %arg2[%c0_9, %18, %c0_10] : memref<1x324x4xbf16, #tpu.memory_space<vmem>>, vector<1x16x4xbf16>
    %20 = vector.shape_cast %19 : vector<1x16x4xbf16> to vector<16x4xbf16>
    %c18_i32_11 = arith.constant 18 : i32
    %21 = arith.addi %5, %c18_i32_11 : i32
    %c0_i32_12 = arith.constant 0 : i32
    %22 = arith.addi %21, %c0_i32_12 : i32
    %c0_13 = arith.constant 0 : index
    %23 = arith.index_cast %22 : i32 to index
    %c0_14 = arith.constant 0 : index
    %24 = vector.load %arg2[%c0_13, %23, %c0_14] : memref<1x324x4xbf16, #tpu.memory_space<vmem>>, vector<1x16x4xbf16>
    %25 = vector.shape_cast %24 : vector<1x16x4xbf16> to vector<16x4xbf16>
    %c18_i32_15 = arith.constant 18 : i32
    %26 = arith.addi %5, %c18_i32_15 : i32
    %c1_i32_16 = arith.constant 1 : i32
    %27 = arith.addi %26, %c1_i32_16 : i32
    %c0_17 = arith.constant 0 : index
    %28 = arith.index_cast %27 : i32 to index
    %c0_18 = arith.constant 0 : index
    %29 = vector.load %arg2[%c0_17, %28, %c0_18] : memref<1x324x4xbf16, #tpu.memory_space<vmem>>, vector<1x16x4xbf16>
    %30 = vector.shape_cast %29 : vector<1x16x4xbf16> to vector<16x4xbf16>
    %c18_i32_19 = arith.constant 18 : i32
    %31 = arith.addi %5, %c18_i32_19 : i32
    %c2_i32_20 = arith.constant 2 : i32
    %32 = arith.addi %31, %c2_i32_20 : i32
    %c0_21 = arith.constant 0 : index
    %33 = arith.index_cast %32 : i32 to index
    %c0_22 = arith.constant 0 : index
    %34 = vector.load %arg2[%c0_21, %33, %c0_22] : memref<1x324x4xbf16, #tpu.memory_space<vmem>>, vector<1x16x4xbf16>
    %35 = vector.shape_cast %34 : vector<1x16x4xbf16> to vector<16x4xbf16>
    %c36_i32 = arith.constant 36 : i32
    %36 = arith.addi %5, %c36_i32 : i32
    %c0_i32_23 = arith.constant 0 : i32
    %37 = arith.addi %36, %c0_i32_23 : i32
    %c0_24 = arith.constant 0 : index
    %38 = arith.index_cast %37 : i32 to index
    %c0_25 = arith.constant 0 : index
    %39 = vector.load %arg2[%c0_24, %38, %c0_25] : memref<1x324x4xbf16, #tpu.memory_space<vmem>>, vector<1x16x4xbf16>
    %40 = vector.shape_cast %39 : vector<1x16x4xbf16> to vector<16x4xbf16>
    %c36_i32_26 = arith.constant 36 : i32
    %41 = arith.addi %5, %c36_i32_26 : i32
    %c1_i32_27 = arith.constant 1 : i32
    %42 = arith.addi %41, %c1_i32_27 : i32
    %c0_28 = arith.constant 0 : index
    %43 = arith.index_cast %42 : i32 to index
    %c0_29 = arith.constant 0 : index
    %44 = vector.load %arg2[%c0_28, %43, %c0_29] : memref<1x324x4xbf16, #tpu.memory_space<vmem>>, vector<1x16x4xbf16>
    %45 = vector.shape_cast %44 : vector<1x16x4xbf16> to vector<16x4xbf16>
    %c36_i32_30 = arith.constant 36 : i32
    %46 = arith.addi %5, %c36_i32_30 : i32
    %c2_i32_31 = arith.constant 2 : i32
    %47 = arith.addi %46, %c2_i32_31 : i32
    %c0_32 = arith.constant 0 : index
    %48 = arith.index_cast %47 : i32 to index
    %c0_33 = arith.constant 0 : index
    %49 = vector.load %arg2[%c0_32, %48, %c0_33] : memref<1x324x4xbf16, #tpu.memory_space<vmem>>, vector<1x16x4xbf16>
    %50 = vector.shape_cast %49 : vector<1x16x4xbf16> to vector<16x4xbf16>
    %51 = tpu.concatenate %10, %15, %20, %25, %30, %35, %40, %45, %50 in 1 : vector<16x4xbf16>, vector<16x4xbf16>, vector<16x4xbf16>, vector<16x4xbf16>, vector<16x4xbf16>, vector<16x4xbf16>, vector<16x4xbf16>, vector<16x4xbf16>, vector<16x4xbf16> -> vector<16x36xbf16>
    %c0_34 = arith.constant 0 : index
    %c0_35 = arith.constant 0 : index
    %52 = vector.load %arg3[%c0_34, %c0_35] : memref<36x128xbf16, #tpu.memory_space<vmem>>, vector<36x128xbf16>
    %cst_36 = arith.constant dense<0.000000e+00> : vector<16x128xf32>
    %53 = tpu.matmul %51, %52, %cst_36 {dimension_numbers = #tpu.dot_dimension_numbers<[1], [0], [0], [1], [0, 0, 1, 1], [], []>} : vector<16x36xbf16>, vector<36x128xbf16>, vector<16x128xf32> -> vector<16x128xf32>
    %54 = arith.truncf %53 : vector<16x128xf32> to vector<16x128xbf16>
    %c0_37 = arith.constant 0 : index
    %c0_38 = arith.constant 0 : index
    %c0_39 = arith.constant 0 : index
    %c0_40 = arith.constant 0 : index
    %55 = vector.load %arg4[%c0_37, %c0_38, %c0_39, %c0_40] : memref<1x8x16x128xbf16, #tpu.memory_space<vmem>>, vector<1x1x16x128xbf16>
    %56 = vector.shape_cast %55 : vector<1x1x16x128xbf16> to vector<16x128xbf16>
    %57 = vector.shape_cast %54 : vector<16x128xbf16> to vector<1x1x16x128xbf16>
    tpu.vector_store %arg4[%c0_37, %c0_38, %c0_39, %c0_40], %57 {strides = array<i32>} : memref<1x8x16x128xbf16, #tpu.memory_space<vmem>>, vector<1x1x16x128xbf16>,
    %cst_41 = arith.constant dense<0.000000e+00> : vector<128xf32>
    %58 = vector.multi_reduction <add>, %53, %cst_41 [0] : vector<16x128xf32> to vector<128xf32>
    %59 = vector.shape_cast %58 : vector<128xf32> to vector<1x128xf32>
    %60 = arith.addf %0, %59 : vector<1x128xf32>
    %61 = arith.mulf %53, %53 : vector<16x128xf32>
    %cst_42 = arith.constant dense<0.000000e+00> : vector<128xf32>
    %62 = vector.multi_reduction <add>, %61, %cst_42 [0] : vector<16x128xf32> to vector<128xf32>
    %63 = vector.shape_cast %62 : vector<128xf32> to vector<1x128xf32>
    %64 = arith.addf %1, %63 : vector<1x128xf32>
    %c1_i32_43 = arith.constant 1 : i32
    %65 = arith.addi %2, %c1_i32_43 : i32
    %c1_i32_44 = arith.constant 1 : i32
    %66 = arith.muli %65, %c1_i32_44 : i32
    %c18_i32_45 = arith.constant 18 : i32
    %67 = arith.muli %66, %c18_i32_45 : i32
    %c0_i32_46 = arith.constant 0 : i32
    %68 = arith.addi %67, %c0_i32_46 : i32
    %c0_i32_47 = arith.constant 0 : i32
    %69 = arith.addi %68, %c0_i32_47 : i32
    %c0_48 = arith.constant 0 : index
    %70 = arith.index_cast %69 : i32 to index
    %c0_49 = arith.constant 0 : index
    %71 = vector.load %arg2[%c0_48, %70, %c0_49] : memref<1x324x4xbf16, #tpu.memory_space<vmem>>, vector<1x16x4xbf16>
    %72 = vector.shape_cast %71 : vector<1x16x4xbf16> to vector<16x4xbf16>
    %c0_i32_50 = arith.constant 0 : i32
    %73 = arith.addi %67, %c0_i32_50 : i32
    %c1_i32_51 = arith.constant 1 : i32
    %74 = arith.addi %73, %c1_i32_51 : i32
    %c0_52 = arith.constant 0 : index
    %75 = arith.index_cast %74 : i32 to index
    %c0_53 = arith.constant 0 : index
    %76 = vector.load %arg2[%c0_52, %75, %c0_53] : memref<1x324x4xbf16, #tpu.memory_space<vmem>>, vector<1x16x4xbf16>
    %77 = vector.shape_cast %76 : vector<1x16x4xbf16> to vector<16x4xbf16>
    %c0_i32_54 = arith.constant 0 : i32
    %78 = arith.addi %67, %c0_i32_54 : i32
    %c2_i32_55 = arith.constant 2 : i32
    %79 = arith.addi %78, %c2_i32_55 : i32
    %c0_56 = arith.constant 0 : index
    %80 = arith.index_cast %79 : i32 to index
    %c0_57 = arith.constant 0 : index
    %81 = vector.load %arg2[%c0_56, %80, %c0_57] : memref<1x324x4xbf16, #tpu.memory_space<vmem>>, vector<1x16x4xbf16>
    %82 = vector.shape_cast %81 : vector<1x16x4xbf16> to vector<16x4xbf16>
    %c18_i32_58 = arith.constant 18 : i32
    %83 = arith.addi %67, %c18_i32_58 : i32
    %c0_i32_59 = arith.constant 0 : i32
    %84 = arith.addi %83, %c0_i32_59 : i32
    %c0_60 = arith.constant 0 : index
    %85 = arith.index_cast %84 : i32 to index
    %c0_61 = arith.constant 0 : index
    %86 = vector.load %arg2[%c0_60, %85, %c0_61] : memref<1x324x4xbf16, #tpu.memory_space<vmem>>, vector<1x16x4xbf16>
    %87 = vector.shape_cast %86 : vector<1x16x4xbf16> to vector<16x4xbf16>
    %c18_i32_62 = arith.constant 18 : i32
    %88 = arith.addi %67, %c18_i32_62 : i32
    %c1_i32_63 = arith.constant 1 : i32
    %89 = arith.addi %88, %c1_i32_63 : i32
    %c0_64 = arith.constant 0 : index
    %90 = arith.index_cast %89 : i32 to index
    %c0_65 = arith.constant 0 : index
    %91 = vector.load %arg2[%c0_64, %90, %c0_65] : memref<1x324x4xbf16, #tpu.memory_space<vmem>>, vector<1x16x4xbf16>
    %92 = vector.shape_cast %91 : vector<1x16x4xbf16> to vector<16x4xbf16>
    %c18_i32_66 = arith.constant 18 : i32
    %93 = arith.addi %67, %c18_i32_66 : i32
    %c2_i32_67 = arith.constant 2 : i32
    %94 = arith.addi %93, %c2_i32_67 : i32
    %c0_68 = arith.constant 0 : index
    %95 = arith.index_cast %94 : i32 to index
    %c0_69 = arith.constant 0 : index
    %96 = vector.load %arg2[%c0_68, %95, %c0_69] : memref<1x324x4xbf16, #tpu.memory_space<vmem>>, vector<1x16x4xbf16>
    %97 = vector.shape_cast %96 : vector<1x16x4xbf16> to vector<16x4xbf16>
    %c36_i32_70 = arith.constant 36 : i32
    %98 = arith.addi %67, %c36_i32_70 : i32
    %c0_i32_71 = arith.constant 0 : i32
    %99 = arith.addi %98, %c0_i32_71 : i32
    %c0_72 = arith.constant 0 : index
    %100 = arith.index_cast %99 : i32 to index
    %c0_73 = arith.constant 0 : index
    %101 = vector.load %arg2[%c0_72, %100, %c0_73] : memref<1x324x4xbf16, #tpu.memory_space<vmem>>, vector<1x16x4xbf16>
    %102 = vector.shape_cast %101 : vector<1x16x4xbf16> to vector<16x4xbf16>
    %c36_i32_74 = arith.constant 36 : i32
    %103 = arith.addi %67, %c36_i32_74 : i32
    %c1_i32_75 = arith.constant 1 : i32
    %104 = arith.addi %103, %c1_i32_75 : i32
    %c0_76 = arith.constant 0 : index
    %105 = arith.index_cast %104 : i32 to index
    %c0_77 = arith.constant 0 : index
    %106 = vector.load %arg2[%c0_76, %105, %c0_77] : memref<1x324x4xbf16, #tpu.memory_space<vmem>>, vector<1x16x4xbf16>
    %107 = vector.shape_cast %106 : vector<1x16x4xbf16> to vector<16x4xbf16>
    %c36_i32_78 = arith.constant 36 : i32
    %108 = arith.addi %67, %c36_i32_78 : i32
    %c2_i32_79 = arith.constant 2 : i32
    %109 = arith.addi %108, %c2_i32_79 : i32
    %c0_80 = arith.constant 0 : index
    %110 = arith.index_cast %109 : i32 to index
    %c0_81 = arith.constant 0 : index
    %111 = vector.load %arg2[%c0_80, %110, %c0_81] : memref<1x324x4xbf16, #tpu.memory_space<vmem>>, vector<1x16x4xbf16>
    %112 = vector.shape_cast %111 : vector<1x16x4xbf16> to vector<16x4xbf16>
    %113 = tpu.concatenate %72, %77, %82, %87, %92, %97, %102, %107, %112 in 1 : vector<16x4xbf16>, vector<16x4xbf16>, vector<16x4xbf16>, vector<16x4xbf16>, vector<16x4xbf16>, vector<16x4xbf16>, vector<16x4xbf16>, vector<16x4xbf16>, vector<16x4xbf16> -> vector<16x36xbf16>
    %c0_82 = arith.constant 0 : index
    %c0_83 = arith.constant 0 : index
    %114 = vector.load %arg3[%c0_82, %c0_83] : memref<36x128xbf16, #tpu.memory_space<vmem>>, vector<36x128xbf16>
    %cst_84 = arith.constant dense<0.000000e+00> : vector<16x128xf32>
    %115 = tpu.matmul %113, %114, %cst_84 {dimension_numbers = #tpu.dot_dimension_numbers<[1], [0], [0], [1], [0, 0, 1, 1], [], []>} : vector<16x36xbf16>, vector<36x128xbf16>, vector<16x128xf32> -> vector<16x128xf32>
    %116 = arith.truncf %115 : vector<16x128xf32> to vector<16x128xbf16>
    %c0_85 = arith.constant 0 : index
    %c1 = arith.constant 1 : index
    %c0_86 = arith.constant 0 : index
    %c0_87 = arith.constant 0 : index
    %117 = vector.load %arg4[%c0_85, %c1, %c0_86, %c0_87] : memref<1x8x16x128xbf16, #tpu.memory_space<vmem>>, vector<1x1x16x128xbf16>
    %118 = vector.shape_cast %117 : vector<1x1x16x128xbf16> to vector<16x128xbf16>
    %119 = vector.shape_cast %116 : vector<16x128xbf16> to vector<1x1x16x128xbf16>
    tpu.vector_store %arg4[%c0_85, %c1, %c0_86, %c0_87], %119 {strides = array<i32>} : memref<1x8x16x128xbf16, #tpu.memory_space<vmem>>, vector<1x1x16x128xbf16>,
    %cst_88 = arith.constant dense<0.000000e+00> : vector<128xf32>
    %120 = vector.multi_reduction <add>, %115, %cst_88 [0] : vector<16x128xf32> to vector<128xf32>
    %121 = vector.shape_cast %120 : vector<128xf32> to vector<1x128xf32>
    %122 = arith.addf %60, %121 : vector<1x128xf32>
    %123 = arith.mulf %115, %115 : vector<16x128xf32>
    %cst_89 = arith.constant dense<0.000000e+00> : vector<128xf32>
    %124 = vector.multi_reduction <add>, %123, %cst_89 [0] : vector<16x128xf32> to vector<128xf32>
    %125 = vector.shape_cast %124 : vector<128xf32> to vector<1x128xf32>
    %126 = arith.addf %64, %125 : vector<1x128xf32>
    %c2_i32_90 = arith.constant 2 : i32
    %127 = arith.addi %2, %c2_i32_90 : i32
    %c1_i32_91 = arith.constant 1 : i32
    %128 = arith.muli %127, %c1_i32_91 : i32
    %c18_i32_92 = arith.constant 18 : i32
    %129 = arith.muli %128, %c18_i32_92 : i32
    %c0_i32_93 = arith.constant 0 : i32
    %130 = arith.addi %129, %c0_i32_93 : i32
    %c0_i32_94 = arith.constant 0 : i32
    %131 = arith.addi %130, %c0_i32_94 : i32
    %c0_95 = arith.constant 0 : index
    %132 = arith.index_cast %131 : i32 to index
    %c0_96 = arith.constant 0 : index
    %133 = vector.load %arg2[%c0_95, %132, %c0_96] : memref<1x324x4xbf16, #tpu.memory_space<vmem>>, vector<1x16x4xbf16>
    %134 = vector.shape_cast %133 : vector<1x16x4xbf16> to vector<16x4xbf16>
    %c0_i32_97 = arith.constant 0 : i32
    %135 = arith.addi %129, %c0_i32_97 : i32
    %c1_i32_98 = arith.constant 1 : i32
    %136 = arith.addi %135, %c1_i32_98 : i32
    %c0_99 = arith.constant 0 : index
    %137 = arith.index_cast %136 : i32 to index
    %c0_100 = arith.constant 0 : index
    %138 = vector.load %arg2[%c0_99, %137, %c0_100] : memref<1x324x4xbf16, #tpu.memory_space<vmem>>, vector<1x16x4xbf16>
    %139 = vector.shape_cast %138 : vector<1x16x4xbf16> to vector<16x4xbf16>
    %c0_i32_101 = arith.constant 0 : i32
    %140 = arith.addi %129, %c0_i32_101 : i32
    %c2_i32_102 = arith.constant 2 : i32
    %141 = arith.addi %140, %c2_i32_102 : i32
    %c0_103 = arith.constant 0 : index
    %142 = arith.index_cast %141 : i32 to index
    %c0_104 = arith.constant 0 : index
    %143 = vector.load %arg2[%c0_103, %142, %c0_104] : memref<1x324x4xbf16, #tpu.memory_space<vmem>>, vector<1x16x4xbf16>
    %144 = vector.shape_cast %143 : vector<1x16x4xbf16> to vector<16x4xbf16>
    %c18_i32_105 = arith.constant 18 : i32
    %145 = arith.addi %129, %c18_i32_105 : i32
    %c0_i32_106 = arith.constant 0 : i32
    %146 = arith.addi %145, %c0_i32_106 : i32
    %c0_107 = arith.constant 0 : index
    %147 = arith.index_cast %146 : i32 to index
    %c0_108 = arith.constant 0 : index
    %148 = vector.load %arg2[%c0_107, %147, %c0_108] : memref<1x324x4xbf16, #tpu.memory_space<vmem>>, vector<1x16x4xbf16>
    %149 = vector.shape_cast %148 : vector<1x16x4xbf16> to vector<16x4xbf16>
    %c18_i32_109 = arith.constant 18 : i32
    %150 = arith.addi %129, %c18_i32_109 : i32
    %c1_i32_110 = arith.constant 1 : i32
    %151 = arith.addi %150, %c1_i32_110 : i32
    %c0_111 = arith.constant 0 : index
    %152 = arith.index_cast %151 : i32 to index
    %c0_112 = arith.constant 0 : index
    %153 = vector.load %arg2[%c0_111, %152, %c0_112] : memref<1x324x4xbf16, #tpu.memory_space<vmem>>, vector<1x16x4xbf16>
    %154 = vector.shape_cast %153 : vector<1x16x4xbf16> to vector<16x4xbf16>
    %c18_i32_113 = arith.constant 18 : i32
    %155 = arith.addi %129, %c18_i32_113 : i32
    %c2_i32_114 = arith.constant 2 : i32
    %156 = arith.addi %155, %c2_i32_114 : i32
    %c0_115 = arith.constant 0 : index
    %157 = arith.index_cast %156 : i32 to index
    %c0_116 = arith.constant 0 : index
    %158 = vector.load %arg2[%c0_115, %157, %c0_116] : memref<1x324x4xbf16, #tpu.memory_space<vmem>>, vector<1x16x4xbf16>
    %159 = vector.shape_cast %158 : vector<1x16x4xbf16> to vector<16x4xbf16>
    %c36_i32_117 = arith.constant 36 : i32
    %160 = arith.addi %129, %c36_i32_117 : i32
    %c0_i32_118 = arith.constant 0 : i32
    %161 = arith.addi %160, %c0_i32_118 : i32
    %c0_119 = arith.constant 0 : index
    %162 = arith.index_cast %161 : i32 to index
    %c0_120 = arith.constant 0 : index
    %163 = vector.load %arg2[%c0_119, %162, %c0_120] : memref<1x324x4xbf16, #tpu.memory_space<vmem>>, vector<1x16x4xbf16>
    %164 = vector.shape_cast %163 : vector<1x16x4xbf16> to vector<16x4xbf16>
    %c36_i32_121 = arith.constant 36 : i32
    %165 = arith.addi %129, %c36_i32_121 : i32
    %c1_i32_122 = arith.constant 1 : i32
    %166 = arith.addi %165, %c1_i32_122 : i32
    %c0_123 = arith.constant 0 : index
    %167 = arith.index_cast %166 : i32 to index
    %c0_124 = arith.constant 0 : index
    %168 = vector.load %arg2[%c0_123, %167, %c0_124] : memref<1x324x4xbf16, #tpu.memory_space<vmem>>, vector<1x16x4xbf16>
    %169 = vector.shape_cast %168 : vector<1x16x4xbf16> to vector<16x4xbf16>
    %c36_i32_125 = arith.constant 36 : i32
    %170 = arith.addi %129, %c36_i32_125 : i32
    %c2_i32_126 = arith.constant 2 : i32
    %171 = arith.addi %170, %c2_i32_126 : i32
    %c0_127 = arith.constant 0 : index
    %172 = arith.index_cast %171 : i32 to index
    %c0_128 = arith.constant 0 : index
    %173 = vector.load %arg2[%c0_127, %172, %c0_128] : memref<1x324x4xbf16, #tpu.memory_space<vmem>>, vector<1x16x4xbf16>
    %174 = vector.shape_cast %173 : vector<1x16x4xbf16> to vector<16x4xbf16>
    %175 = tpu.concatenate %134, %139, %144, %149, %154, %159, %164, %169, %174 in 1 : vector<16x4xbf16>, vector<16x4xbf16>, vector<16x4xbf16>, vector<16x4xbf16>, vector<16x4xbf16>, vector<16x4xbf16>, vector<16x4xbf16>, vector<16x4xbf16>, vector<16x4xbf16> -> vector<16x36xbf16>
    %c0_129 = arith.constant 0 : index
    %c0_130 = arith.constant 0 : index
    %176 = vector.load %arg3[%c0_129, %c0_130] : memref<36x128xbf16, #tpu.memory_space<vmem>>, vector<36x128xbf16>
    %cst_131 = arith.constant dense<0.000000e+00> : vector<16x128xf32>
    %177 = tpu.matmul %175, %176, %cst_131 {dimension_numbers = #tpu.dot_dimension_numbers<[1], [0], [0], [1], [0, 0, 1, 1], [], []>} : vector<16x36xbf16>, vector<36x128xbf16>, vector<16x128xf32> -> vector<16x128xf32>
    %178 = arith.truncf %177 : vector<16x128xf32> to vector<16x128xbf16>
    %c0_132 = arith.constant 0 : index
    %c2 = arith.constant 2 : index
    %c0_133 = arith.constant 0 : index
    %c0_134 = arith.constant 0 : index
    %179 = vector.load %arg4[%c0_132, %c2, %c0_133, %c0_134] : memref<1x8x16x128xbf16, #tpu.memory_space<vmem>>, vector<1x1x16x128xbf16>
    %180 = vector.shape_cast %179 : vector<1x1x16x128xbf16> to vector<16x128xbf16>
    %181 = vector.shape_cast %178 : vector<16x128xbf16> to vector<1x1x16x128xbf16>
    tpu.vector_store %arg4[%c0_132, %c2, %c0_133, %c0_134], %181 {strides = array<i32>} : memref<1x8x16x128xbf16, #tpu.memory_space<vmem>>, vector<1x1x16x128xbf16>,
    %cst_135 = arith.constant dense<0.000000e+00> : vector<128xf32>
    %182 = vector.multi_reduction <add>, %177, %cst_135 [0] : vector<16x128xf32> to vector<128xf32>
    %183 = vector.shape_cast %182 : vector<128xf32> to vector<1x128xf32>
    %184 = arith.addf %122, %183 : vector<1x128xf32>
    %185 = arith.mulf %177, %177 : vector<16x128xf32>
    %cst_136 = arith.constant dense<0.000000e+00> : vector<128xf32>
    %186 = vector.multi_reduction <add>, %185, %cst_136 [0] : vector<16x128xf32> to vector<128xf32>
    %187 = vector.shape_cast %186 : vector<128xf32> to vector<1x128xf32>
    %188 = arith.addf %126, %187 : vector<1x128xf32>
    %c3_i32 = arith.constant 3 : i32
    %189 = arith.addi %2, %c3_i32 : i32
    %c1_i32_137 = arith.constant 1 : i32
    %190 = arith.muli %189, %c1_i32_137 : i32
    %c18_i32_138 = arith.constant 18 : i32
    %191 = arith.muli %190, %c18_i32_138 : i32
    %c0_i32_139 = arith.constant 0 : i32
    %192 = arith.addi %191, %c0_i32_139 : i32
    %c0_i32_140 = arith.constant 0 : i32
    %193 = arith.addi %192, %c0_i32_140 : i32
    %c0_141 = arith.constant 0 : index
    %194 = arith.index_cast %193 : i32 to index
    %c0_142 = arith.constant 0 : index
    %195 = vector.load %arg2[%c0_141, %194, %c0_142] : memref<1x324x4xbf16, #tpu.memory_space<vmem>>, vector<1x16x4xbf16>
    %196 = vector.shape_cast %195 : vector<1x16x4xbf16> to vector<16x4xbf16>
    %c0_i32_143 = arith.constant 0 : i32
    %197 = arith.addi %191, %c0_i32_143 : i32
    %c1_i32_144 = arith.constant 1 : i32
    %198 = arith.addi %197, %c1_i32_144 : i32
    %c0_145 = arith.constant 0 : index
    %199 = arith.index_cast %198 : i32 to index
    %c0_146 = arith.constant 0 : index
    %200 = vector.load %arg2[%c0_145, %199, %c0_146] : memref<1x324x4xbf16, #tpu.memory_space<vmem>>, vector<1x16x4xbf16>
    %201 = vector.shape_cast %200 : vector<1x16x4xbf16> to vector<16x4xbf16>
    %c0_i32_147 = arith.constant 0 : i32
    %202 = arith.addi %191, %c0_i32_147 : i32
    %c2_i32_148 = arith.constant 2 : i32
    %203 = arith.addi %202, %c2_i32_148 : i32
    %c0_149 = arith.constant 0 : index
    %204 = arith.index_cast %203 : i32 to index
    %c0_150 = arith.constant 0 : index
    %205 = vector.load %arg2[%c0_149, %204, %c0_150] : memref<1x324x4xbf16, #tpu.memory_space<vmem>>, vector<1x16x4xbf16>
    %206 = vector.shape_cast %205 : vector<1x16x4xbf16> to vector<16x4xbf16>
    %c18_i32_151 = arith.constant 18 : i32
    %207 = arith.addi %191, %c18_i32_151 : i32
    %c0_i32_152 = arith.constant 0 : i32
    %208 = arith.addi %207, %c0_i32_152 : i32
    %c0_153 = arith.constant 0 : index
    %209 = arith.index_cast %208 : i32 to index
    %c0_154 = arith.constant 0 : index
    %210 = vector.load %arg2[%c0_153, %209, %c0_154] : memref<1x324x4xbf16, #tpu.memory_space<vmem>>, vector<1x16x4xbf16>
    %211 = vector.shape_cast %210 : vector<1x16x4xbf16> to vector<16x4xbf16>
    %c18_i32_155 = arith.constant 18 : i32
    %212 = arith.addi %191, %c18_i32_155 : i32
    %c1_i32_156 = arith.constant 1 : i32
    %213 = arith.addi %212, %c1_i32_156 : i32
    %c0_157 = arith.constant 0 : index
    %214 = arith.index_cast %213 : i32 to index
    %c0_158 = arith.constant 0 : index
    %215 = vector.load %arg2[%c0_157, %214, %c0_158] : memref<1x324x4xbf16, #tpu.memory_space<vmem>>, vector<1x16x4xbf16>
    %216 = vector.shape_cast %215 : vector<1x16x4xbf16> to vector<16x4xbf16>
    %c18_i32_159 = arith.constant 18 : i32
    %217 = arith.addi %191, %c18_i32_159 : i32
    %c2_i32_160 = arith.constant 2 : i32
    %218 = arith.addi %217, %c2_i32_160 : i32
    %c0_161 = arith.constant 0 : index
    %219 = arith.index_cast %218 : i32 to index
    %c0_162 = arith.constant 0 : index
    %220 = vector.load %arg2[%c0_161, %219, %c0_162] : memref<1x324x4xbf16, #tpu.memory_space<vmem>>, vector<1x16x4xbf16>
    %221 = vector.shape_cast %220 : vector<1x16x4xbf16> to vector<16x4xbf16>
    %c36_i32_163 = arith.constant 36 : i32
    %222 = arith.addi %191, %c36_i32_163 : i32
    %c0_i32_164 = arith.constant 0 : i32
    %223 = arith.addi %222, %c0_i32_164 : i32
    %c0_165 = arith.constant 0 : index
    %224 = arith.index_cast %223 : i32 to index
    %c0_166 = arith.constant 0 : index
    %225 = vector.load %arg2[%c0_165, %224, %c0_166] : memref<1x324x4xbf16, #tpu.memory_space<vmem>>, vector<1x16x4xbf16>
    %226 = vector.shape_cast %225 : vector<1x16x4xbf16> to vector<16x4xbf16>
    %c36_i32_167 = arith.constant 36 : i32
    %227 = arith.addi %191, %c36_i32_167 : i32
    %c1_i32_168 = arith.constant 1 : i32
    %228 = arith.addi %227, %c1_i32_168 : i32
    %c0_169 = arith.constant 0 : index
    %229 = arith.index_cast %228 : i32 to index
    %c0_170 = arith.constant 0 : index
    %230 = vector.load %arg2[%c0_169, %229, %c0_170] : memref<1x324x4xbf16, #tpu.memory_space<vmem>>, vector<1x16x4xbf16>
    %231 = vector.shape_cast %230 : vector<1x16x4xbf16> to vector<16x4xbf16>
    %c36_i32_171 = arith.constant 36 : i32
    %232 = arith.addi %191, %c36_i32_171 : i32
    %c2_i32_172 = arith.constant 2 : i32
    %233 = arith.addi %232, %c2_i32_172 : i32
    %c0_173 = arith.constant 0 : index
    %234 = arith.index_cast %233 : i32 to index
    %c0_174 = arith.constant 0 : index
    %235 = vector.load %arg2[%c0_173, %234, %c0_174] : memref<1x324x4xbf16, #tpu.memory_space<vmem>>, vector<1x16x4xbf16>
    %236 = vector.shape_cast %235 : vector<1x16x4xbf16> to vector<16x4xbf16>
    %237 = tpu.concatenate %196, %201, %206, %211, %216, %221, %226, %231, %236 in 1 : vector<16x4xbf16>, vector<16x4xbf16>, vector<16x4xbf16>, vector<16x4xbf16>, vector<16x4xbf16>, vector<16x4xbf16>, vector<16x4xbf16>, vector<16x4xbf16>, vector<16x4xbf16> -> vector<16x36xbf16>
    %c0_175 = arith.constant 0 : index
    %c0_176 = arith.constant 0 : index
    %238 = vector.load %arg3[%c0_175, %c0_176] : memref<36x128xbf16, #tpu.memory_space<vmem>>, vector<36x128xbf16>
    %cst_177 = arith.constant dense<0.000000e+00> : vector<16x128xf32>
    %239 = tpu.matmul %237, %238, %cst_177 {dimension_numbers = #tpu.dot_dimension_numbers<[1], [0], [0], [1], [0, 0, 1, 1], [], []>} : vector<16x36xbf16>, vector<36x128xbf16>, vector<16x128xf32> -> vector<16x128xf32>
    %240 = arith.truncf %239 : vector<16x128xf32> to vector<16x128xbf16>
    %c0_178 = arith.constant 0 : index
    %c3 = arith.constant 3 : index
    %c0_179 = arith.constant 0 : index
    %c0_180 = arith.constant 0 : index
    %241 = vector.load %arg4[%c0_178, %c3, %c0_179, %c0_180] : memref<1x8x16x128xbf16, #tpu.memory_space<vmem>>, vector<1x1x16x128xbf16>
    %242 = vector.shape_cast %241 : vector<1x1x16x128xbf16> to vector<16x128xbf16>
    %243 = vector.shape_cast %240 : vector<16x128xbf16> to vector<1x1x16x128xbf16>
    tpu.vector_store %arg4[%c0_178, %c3, %c0_179, %c0_180], %243 {strides = array<i32>} : memref<1x8x16x128xbf16, #tpu.memory_space<vmem>>, vector<1x1x16x128xbf16>,
    %cst_181 = arith.constant dense<0.000000e+00> : vector<128xf32>
    %244 = vector.multi_reduction <add>, %239, %cst_181 [0] : vector<16x128xf32> to vector<128xf32>
    %245 = vector.shape_cast %244 : vector<128xf32> to vector<1x128xf32>
    %246 = arith.addf %184, %245 : vector<1x128xf32>
    %247 = arith.mulf %239, %239 : vector<16x128xf32>
    %cst_182 = arith.constant dense<0.000000e+00> : vector<128xf32>
    %248 = vector.multi_reduction <add>, %247, %cst_182 [0] : vector<16x128xf32> to vector<128xf32>
    %249 = vector.shape_cast %248 : vector<128xf32> to vector<1x128xf32>
    %250 = arith.addf %188, %249 : vector<1x128xf32>
    %c4_i32 = arith.constant 4 : i32
    %251 = arith.addi %2, %c4_i32 : i32
    %c1_i32_183 = arith.constant 1 : i32
    %252 = arith.muli %251, %c1_i32_183 : i32
    %c18_i32_184 = arith.constant 18 : i32
    %253 = arith.muli %252, %c18_i32_184 : i32
    %c0_i32_185 = arith.constant 0 : i32
    %254 = arith.addi %253, %c0_i32_185 : i32
    %c0_i32_186 = arith.constant 0 : i32
    %255 = arith.addi %254, %c0_i32_186 : i32
    %c0_187 = arith.constant 0 : index
    %256 = arith.index_cast %255 : i32 to index
    %c0_188 = arith.constant 0 : index
    %257 = vector.load %arg2[%c0_187, %256, %c0_188] : memref<1x324x4xbf16, #tpu.memory_space<vmem>>, vector<1x16x4xbf16>
    %258 = vector.shape_cast %257 : vector<1x16x4xbf16> to vector<16x4xbf16>
    %c0_i32_189 = arith.constant 0 : i32
    %259 = arith.addi %253, %c0_i32_189 : i32
    %c1_i32_190 = arith.constant 1 : i32
    %260 = arith.addi %259, %c1_i32_190 : i32
    %c0_191 = arith.constant 0 : index
    %261 = arith.index_cast %260 : i32 to index
    %c0_192 = arith.constant 0 : index
    %262 = vector.load %arg2[%c0_191, %261, %c0_192] : memref<1x324x4xbf16, #tpu.memory_space<vmem>>, vector<1x16x4xbf16>
    %263 = vector.shape_cast %262 : vector<1x16x4xbf16> to vector<16x4xbf16>
    %c0_i32_193 = arith.constant 0 : i32
    %264 = arith.addi %253, %c0_i32_193 : i32
    %c2_i32_194 = arith.constant 2 : i32
    %265 = arith.addi %264, %c2_i32_194 : i32
    %c0_195 = arith.constant 0 : index
    %266 = arith.index_cast %265 : i32 to index
    %c0_196 = arith.constant 0 : index
    %267 = vector.load %arg2[%c0_195, %266, %c0_196] : memref<1x324x4xbf16, #tpu.memory_space<vmem>>, vector<1x16x4xbf16>
    %268 = vector.shape_cast %267 : vector<1x16x4xbf16> to vector<16x4xbf16>
    %c18_i32_197 = arith.constant 18 : i32
    %269 = arith.addi %253, %c18_i32_197 : i32
    %c0_i32_198 = arith.constant 0 : i32
    %270 = arith.addi %269, %c0_i32_198 : i32
    %c0_199 = arith.constant 0 : index
    %271 = arith.index_cast %270 : i32 to index
    %c0_200 = arith.constant 0 : index
    %272 = vector.load %arg2[%c0_199, %271, %c0_200] : memref<1x324x4xbf16, #tpu.memory_space<vmem>>, vector<1x16x4xbf16>
    %273 = vector.shape_cast %272 : vector<1x16x4xbf16> to vector<16x4xbf16>
    %c18_i32_201 = arith.constant 18 : i32
    %274 = arith.addi %253, %c18_i32_201 : i32
    %c1_i32_202 = arith.constant 1 : i32
    %275 = arith.addi %274, %c1_i32_202 : i32
    %c0_203 = arith.constant 0 : index
    %276 = arith.index_cast %275 : i32 to index
    %c0_204 = arith.constant 0 : index
    %277 = vector.load %arg2[%c0_203, %276, %c0_204] : memref<1x324x4xbf16, #tpu.memory_space<vmem>>, vector<1x16x4xbf16>
    %278 = vector.shape_cast %277 : vector<1x16x4xbf16> to vector<16x4xbf16>
    %c18_i32_205 = arith.constant 18 : i32
    %279 = arith.addi %253, %c18_i32_205 : i32
    %c2_i32_206 = arith.constant 2 : i32
    %280 = arith.addi %279, %c2_i32_206 : i32
    %c0_207 = arith.constant 0 : index
    %281 = arith.index_cast %280 : i32 to index
    %c0_208 = arith.constant 0 : index
    %282 = vector.load %arg2[%c0_207, %281, %c0_208] : memref<1x324x4xbf16, #tpu.memory_space<vmem>>, vector<1x16x4xbf16>
    %283 = vector.shape_cast %282 : vector<1x16x4xbf16> to vector<16x4xbf16>
    %c36_i32_209 = arith.constant 36 : i32
    %284 = arith.addi %253, %c36_i32_209 : i32
    %c0_i32_210 = arith.constant 0 : i32
    %285 = arith.addi %284, %c0_i32_210 : i32
    %c0_211 = arith.constant 0 : index
    %286 = arith.index_cast %285 : i32 to index
    %c0_212 = arith.constant 0 : index
    %287 = vector.load %arg2[%c0_211, %286, %c0_212] : memref<1x324x4xbf16, #tpu.memory_space<vmem>>, vector<1x16x4xbf16>
    %288 = vector.shape_cast %287 : vector<1x16x4xbf16> to vector<16x4xbf16>
    %c36_i32_213 = arith.constant 36 : i32
    %289 = arith.addi %253, %c36_i32_213 : i32
    %c1_i32_214 = arith.constant 1 : i32
    %290 = arith.addi %289, %c1_i32_214 : i32
    %c0_215 = arith.constant 0 : index
    %291 = arith.index_cast %290 : i32 to index
    %c0_216 = arith.constant 0 : index
    %292 = vector.load %arg2[%c0_215, %291, %c0_216] : memref<1x324x4xbf16, #tpu.memory_space<vmem>>, vector<1x16x4xbf16>
    %293 = vector.shape_cast %292 : vector<1x16x4xbf16> to vector<16x4xbf16>
    %c36_i32_217 = arith.constant 36 : i32
    %294 = arith.addi %253, %c36_i32_217 : i32
    %c2_i32_218 = arith.constant 2 : i32
    %295 = arith.addi %294, %c2_i32_218 : i32
    %c0_219 = arith.constant 0 : index
    %296 = arith.index_cast %295 : i32 to index
    %c0_220 = arith.constant 0 : index
    %297 = vector.load %arg2[%c0_219, %296, %c0_220] : memref<1x324x4xbf16, #tpu.memory_space<vmem>>, vector<1x16x4xbf16>
    %298 = vector.shape_cast %297 : vector<1x16x4xbf16> to vector<16x4xbf16>
    %299 = tpu.concatenate %258, %263, %268, %273, %278, %283, %288, %293, %298 in 1 : vector<16x4xbf16>, vector<16x4xbf16>, vector<16x4xbf16>, vector<16x4xbf16>, vector<16x4xbf16>, vector<16x4xbf16>, vector<16x4xbf16>, vector<16x4xbf16>, vector<16x4xbf16> -> vector<16x36xbf16>
    %c0_221 = arith.constant 0 : index
    %c0_222 = arith.constant 0 : index
    %300 = vector.load %arg3[%c0_221, %c0_222] : memref<36x128xbf16, #tpu.memory_space<vmem>>, vector<36x128xbf16>
    %cst_223 = arith.constant dense<0.000000e+00> : vector<16x128xf32>
    %301 = tpu.matmul %299, %300, %cst_223 {dimension_numbers = #tpu.dot_dimension_numbers<[1], [0], [0], [1], [0, 0, 1, 1], [], []>} : vector<16x36xbf16>, vector<36x128xbf16>, vector<16x128xf32> -> vector<16x128xf32>
    %302 = arith.truncf %301 : vector<16x128xf32> to vector<16x128xbf16>
    %c0_224 = arith.constant 0 : index
    %c4 = arith.constant 4 : index
    %c0_225 = arith.constant 0 : index
    %c0_226 = arith.constant 0 : index
    %303 = vector.load %arg4[%c0_224, %c4, %c0_225, %c0_226] : memref<1x8x16x128xbf16, #tpu.memory_space<vmem>>, vector<1x1x16x128xbf16>
    %304 = vector.shape_cast %303 : vector<1x1x16x128xbf16> to vector<16x128xbf16>
    %305 = vector.shape_cast %302 : vector<16x128xbf16> to vector<1x1x16x128xbf16>
    tpu.vector_store %arg4[%c0_224, %c4, %c0_225, %c0_226], %305 {strides = array<i32>} : memref<1x8x16x128xbf16, #tpu.memory_space<vmem>>, vector<1x1x16x128xbf16>,
    %cst_227 = arith.constant dense<0.000000e+00> : vector<128xf32>
    %306 = vector.multi_reduction <add>, %301, %cst_227 [0] : vector<16x128xf32> to vector<128xf32>
    %307 = vector.shape_cast %306 : vector<128xf32> to vector<1x128xf32>
    %308 = arith.addf %246, %307 : vector<1x128xf32>
    %309 = arith.mulf %301, %301 : vector<16x128xf32>
    %cst_228 = arith.constant dense<0.000000e+00> : vector<128xf32>
    %310 = vector.multi_reduction <add>, %309, %cst_228 [0] : vector<16x128xf32> to vector<128xf32>
    %311 = vector.shape_cast %310 : vector<128xf32> to vector<1x128xf32>
    %312 = arith.addf %250, %311 : vector<1x128xf32>
    %c5_i32 = arith.constant 5 : i32
    %313 = arith.addi %2, %c5_i32 : i32
    %c1_i32_229 = arith.constant 1 : i32
    %314 = arith.muli %313, %c1_i32_229 : i32
    %c18_i32_230 = arith.constant 18 : i32
    %315 = arith.muli %314, %c18_i32_230 : i32
    %c0_i32_231 = arith.constant 0 : i32
    %316 = arith.addi %315, %c0_i32_231 : i32
    %c0_i32_232 = arith.constant 0 : i32
    %317 = arith.addi %316, %c0_i32_232 : i32
    %c0_233 = arith.constant 0 : index
    %318 = arith.index_cast %317 : i32 to index
    %c0_234 = arith.constant 0 : index
    %319 = vector.load %arg2[%c0_233, %318, %c0_234] : memref<1x324x4xbf16, #tpu.memory_space<vmem>>, vector<1x16x4xbf16>
    %320 = vector.shape_cast %319 : vector<1x16x4xbf16> to vector<16x4xbf16>
    %c0_i32_235 = arith.constant 0 : i32
    %321 = arith.addi %315, %c0_i32_235 : i32
    %c1_i32_236 = arith.constant 1 : i32
    %322 = arith.addi %321, %c1_i32_236 : i32
    %c0_237 = arith.constant 0 : index
    %323 = arith.index_cast %322 : i32 to index
    %c0_238 = arith.constant 0 : index
    %324 = vector.load %arg2[%c0_237, %323, %c0_238] : memref<1x324x4xbf16, #tpu.memory_space<vmem>>, vector<1x16x4xbf16>
    %325 = vector.shape_cast %324 : vector<1x16x4xbf16> to vector<16x4xbf16>
    %c0_i32_239 = arith.constant 0 : i32
    %326 = arith.addi %315, %c0_i32_239 : i32
    %c2_i32_240 = arith.constant 2 : i32
    %327 = arith.addi %326, %c2_i32_240 : i32
    %c0_241 = arith.constant 0 : index
    %328 = arith.index_cast %327 : i32 to index
    %c0_242 = arith.constant 0 : index
    %329 = vector.load %arg2[%c0_241, %328, %c0_242] : memref<1x324x4xbf16, #tpu.memory_space<vmem>>, vector<1x16x4xbf16>
    %330 = vector.shape_cast %329 : vector<1x16x4xbf16> to vector<16x4xbf16>
    %c18_i32_243 = arith.constant 18 : i32
    %331 = arith.addi %315, %c18_i32_243 : i32
    %c0_i32_244 = arith.constant 0 : i32
    %332 = arith.addi %331, %c0_i32_244 : i32
    %c0_245 = arith.constant 0 : index
    %333 = arith.index_cast %332 : i32 to index
    %c0_246 = arith.constant 0 : index
    %334 = vector.load %arg2[%c0_245, %333, %c0_246] : memref<1x324x4xbf16, #tpu.memory_space<vmem>>, vector<1x16x4xbf16>
    %335 = vector.shape_cast %334 : vector<1x16x4xbf16> to vector<16x4xbf16>
    %c18_i32_247 = arith.constant 18 : i32
    %336 = arith.addi %315, %c18_i32_247 : i32
    %c1_i32_248 = arith.constant 1 : i32
    %337 = arith.addi %336, %c1_i32_248 : i32
    %c0_249 = arith.constant 0 : index
    %338 = arith.index_cast %337 : i32 to index
    %c0_250 = arith.constant 0 : index
    %339 = vector.load %arg2[%c0_249, %338, %c0_250] : memref<1x324x4xbf16, #tpu.memory_space<vmem>>, vector<1x16x4xbf16>
    %340 = vector.shape_cast %339 : vector<1x16x4xbf16> to vector<16x4xbf16>
    %c18_i32_251 = arith.constant 18 : i32
    %341 = arith.addi %315, %c18_i32_251 : i32
    %c2_i32_252 = arith.constant 2 : i32
    %342 = arith.addi %341, %c2_i32_252 : i32
    %c0_253 = arith.constant 0 : index
    %343 = arith.index_cast %342 : i32 to index
    %c0_254 = arith.constant 0 : index
    %344 = vector.load %arg2[%c0_253, %343, %c0_254] : memref<1x324x4xbf16, #tpu.memory_space<vmem>>, vector<1x16x4xbf16>
    %345 = vector.shape_cast %344 : vector<1x16x4xbf16> to vector<16x4xbf16>
    %c36_i32_255 = arith.constant 36 : i32
    %346 = arith.addi %315, %c36_i32_255 : i32
    %c0_i32_256 = arith.constant 0 : i32
    %347 = arith.addi %346, %c0_i32_256 : i32
    %c0_257 = arith.constant 0 : index
    %348 = arith.index_cast %347 : i32 to index
    %c0_258 = arith.constant 0 : index
    %349 = vector.load %arg2[%c0_257, %348, %c0_258] : memref<1x324x4xbf16, #tpu.memory_space<vmem>>, vector<1x16x4xbf16>
    %350 = vector.shape_cast %349 : vector<1x16x4xbf16> to vector<16x4xbf16>
    %c36_i32_259 = arith.constant 36 : i32
    %351 = arith.addi %315, %c36_i32_259 : i32
    %c1_i32_260 = arith.constant 1 : i32
    %352 = arith.addi %351, %c1_i32_260 : i32
    %c0_261 = arith.constant 0 : index
    %353 = arith.index_cast %352 : i32 to index
    %c0_262 = arith.constant 0 : index
    %354 = vector.load %arg2[%c0_261, %353, %c0_262] : memref<1x324x4xbf16, #tpu.memory_space<vmem>>, vector<1x16x4xbf16>
    %355 = vector.shape_cast %354 : vector<1x16x4xbf16> to vector<16x4xbf16>
    %c36_i32_263 = arith.constant 36 : i32
    %356 = arith.addi %315, %c36_i32_263 : i32
    %c2_i32_264 = arith.constant 2 : i32
    %357 = arith.addi %356, %c2_i32_264 : i32
    %c0_265 = arith.constant 0 : index
    %358 = arith.index_cast %357 : i32 to index
    %c0_266 = arith.constant 0 : index
    %359 = vector.load %arg2[%c0_265, %358, %c0_266] : memref<1x324x4xbf16, #tpu.memory_space<vmem>>, vector<1x16x4xbf16>
    %360 = vector.shape_cast %359 : vector<1x16x4xbf16> to vector<16x4xbf16>
    %361 = tpu.concatenate %320, %325, %330, %335, %340, %345, %350, %355, %360 in 1 : vector<16x4xbf16>, vector<16x4xbf16>, vector<16x4xbf16>, vector<16x4xbf16>, vector<16x4xbf16>, vector<16x4xbf16>, vector<16x4xbf16>, vector<16x4xbf16>, vector<16x4xbf16> -> vector<16x36xbf16>
    %c0_267 = arith.constant 0 : index
    %c0_268 = arith.constant 0 : index
    %362 = vector.load %arg3[%c0_267, %c0_268] : memref<36x128xbf16, #tpu.memory_space<vmem>>, vector<36x128xbf16>
    %cst_269 = arith.constant dense<0.000000e+00> : vector<16x128xf32>
    %363 = tpu.matmul %361, %362, %cst_269 {dimension_numbers = #tpu.dot_dimension_numbers<[1], [0], [0], [1], [0, 0, 1, 1], [], []>} : vector<16x36xbf16>, vector<36x128xbf16>, vector<16x128xf32> -> vector<16x128xf32>
    %364 = arith.truncf %363 : vector<16x128xf32> to vector<16x128xbf16>
    %c0_270 = arith.constant 0 : index
    %c5 = arith.constant 5 : index
    %c0_271 = arith.constant 0 : index
    %c0_272 = arith.constant 0 : index
    %365 = vector.load %arg4[%c0_270, %c5, %c0_271, %c0_272] : memref<1x8x16x128xbf16, #tpu.memory_space<vmem>>, vector<1x1x16x128xbf16>
    %366 = vector.shape_cast %365 : vector<1x1x16x128xbf16> to vector<16x128xbf16>
    %367 = vector.shape_cast %364 : vector<16x128xbf16> to vector<1x1x16x128xbf16>
    tpu.vector_store %arg4[%c0_270, %c5, %c0_271, %c0_272], %367 {strides = array<i32>} : memref<1x8x16x128xbf16, #tpu.memory_space<vmem>>, vector<1x1x16x128xbf16>,
    %cst_273 = arith.constant dense<0.000000e+00> : vector<128xf32>
    %368 = vector.multi_reduction <add>, %363, %cst_273 [0] : vector<16x128xf32> to vector<128xf32>
    %369 = vector.shape_cast %368 : vector<128xf32> to vector<1x128xf32>
    %370 = arith.addf %308, %369 : vector<1x128xf32>
    %371 = arith.mulf %363, %363 : vector<16x128xf32>
    %cst_274 = arith.constant dense<0.000000e+00> : vector<128xf32>
    %372 = vector.multi_reduction <add>, %371, %cst_274 [0] : vector<16x128xf32> to vector<128xf32>
    %373 = vector.shape_cast %372 : vector<128xf32> to vector<1x128xf32>
    %374 = arith.addf %312, %373 : vector<1x128xf32>
    %c6_i32 = arith.constant 6 : i32
    %375 = arith.addi %2, %c6_i32 : i32
    %c1_i32_275 = arith.constant 1 : i32
    %376 = arith.muli %375, %c1_i32_275 : i32
    %c18_i32_276 = arith.constant 18 : i32
    %377 = arith.muli %376, %c18_i32_276 : i32
    %c0_i32_277 = arith.constant 0 : i32
    %378 = arith.addi %377, %c0_i32_277 : i32
    %c0_i32_278 = arith.constant 0 : i32
    %379 = arith.addi %378, %c0_i32_278 : i32
    %c0_279 = arith.constant 0 : index
    %380 = arith.index_cast %379 : i32 to index
    %c0_280 = arith.constant 0 : index
    %381 = vector.load %arg2[%c0_279, %380, %c0_280] : memref<1x324x4xbf16, #tpu.memory_space<vmem>>, vector<1x16x4xbf16>
    %382 = vector.shape_cast %381 : vector<1x16x4xbf16> to vector<16x4xbf16>
    %c0_i32_281 = arith.constant 0 : i32
    %383 = arith.addi %377, %c0_i32_281 : i32
    %c1_i32_282 = arith.constant 1 : i32
    %384 = arith.addi %383, %c1_i32_282 : i32
    %c0_283 = arith.constant 0 : index
    %385 = arith.index_cast %384 : i32 to index
    %c0_284 = arith.constant 0 : index
    %386 = vector.load %arg2[%c0_283, %385, %c0_284] : memref<1x324x4xbf16, #tpu.memory_space<vmem>>, vector<1x16x4xbf16>
    %387 = vector.shape_cast %386 : vector<1x16x4xbf16> to vector<16x4xbf16>
    %c0_i32_285 = arith.constant 0 : i32
    %388 = arith.addi %377, %c0_i32_285 : i32
    %c2_i32_286 = arith.constant 2 : i32
    %389 = arith.addi %388, %c2_i32_286 : i32
    %c0_287 = arith.constant 0 : index
    %390 = arith.index_cast %389 : i32 to index
    %c0_288 = arith.constant 0 : index
    %391 = vector.load %arg2[%c0_287, %390, %c0_288] : memref<1x324x4xbf16, #tpu.memory_space<vmem>>, vector<1x16x4xbf16>
    %392 = vector.shape_cast %391 : vector<1x16x4xbf16> to vector<16x4xbf16>
    %c18_i32_289 = arith.constant 18 : i32
    %393 = arith.addi %377, %c18_i32_289 : i32
    %c0_i32_290 = arith.constant 0 : i32
    %394 = arith.addi %393, %c0_i32_290 : i32
    %c0_291 = arith.constant 0 : index
    %395 = arith.index_cast %394 : i32 to index
    %c0_292 = arith.constant 0 : index
    %396 = vector.load %arg2[%c0_291, %395, %c0_292] : memref<1x324x4xbf16, #tpu.memory_space<vmem>>, vector<1x16x4xbf16>
    %397 = vector.shape_cast %396 : vector<1x16x4xbf16> to vector<16x4xbf16>
    %c18_i32_293 = arith.constant 18 : i32
    %398 = arith.addi %377, %c18_i32_293 : i32
    %c1_i32_294 = arith.constant 1 : i32
    %399 = arith.addi %398, %c1_i32_294 : i32
    %c0_295 = arith.constant 0 : index
    %400 = arith.index_cast %399 : i32 to index
    %c0_296 = arith.constant 0 : index
    %401 = vector.load %arg2[%c0_295, %400, %c0_296] : memref<1x324x4xbf16, #tpu.memory_space<vmem>>, vector<1x16x4xbf16>
    %402 = vector.shape_cast %401 : vector<1x16x4xbf16> to vector<16x4xbf16>
    %c18_i32_297 = arith.constant 18 : i32
    %403 = arith.addi %377, %c18_i32_297 : i32
    %c2_i32_298 = arith.constant 2 : i32
    %404 = arith.addi %403, %c2_i32_298 : i32
    %c0_299 = arith.constant 0 : index
    %405 = arith.index_cast %404 : i32 to index
    %c0_300 = arith.constant 0 : index
    %406 = vector.load %arg2[%c0_299, %405, %c0_300] : memref<1x324x4xbf16, #tpu.memory_space<vmem>>, vector<1x16x4xbf16>
    %407 = vector.shape_cast %406 : vector<1x16x4xbf16> to vector<16x4xbf16>
    %c36_i32_301 = arith.constant 36 : i32
    %408 = arith.addi %377, %c36_i32_301 : i32
    %c0_i32_302 = arith.constant 0 : i32
    %409 = arith.addi %408, %c0_i32_302 : i32
    %c0_303 = arith.constant 0 : index
    %410 = arith.index_cast %409 : i32 to index
    %c0_304 = arith.constant 0 : index
    %411 = vector.load %arg2[%c0_303, %410, %c0_304] : memref<1x324x4xbf16, #tpu.memory_space<vmem>>, vector<1x16x4xbf16>
    %412 = vector.shape_cast %411 : vector<1x16x4xbf16> to vector<16x4xbf16>
    %c36_i32_305 = arith.constant 36 : i32
    %413 = arith.addi %377, %c36_i32_305 : i32
    %c1_i32_306 = arith.constant 1 : i32
    %414 = arith.addi %413, %c1_i32_306 : i32
    %c0_307 = arith.constant 0 : index
    %415 = arith.index_cast %414 : i32 to index
    %c0_308 = arith.constant 0 : index
    %416 = vector.load %arg2[%c0_307, %415, %c0_308] : memref<1x324x4xbf16, #tpu.memory_space<vmem>>, vector<1x16x4xbf16>
    %417 = vector.shape_cast %416 : vector<1x16x4xbf16> to vector<16x4xbf16>
    %c36_i32_309 = arith.constant 36 : i32
    %418 = arith.addi %377, %c36_i32_309 : i32
    %c2_i32_310 = arith.constant 2 : i32
    %419 = arith.addi %418, %c2_i32_310 : i32
    %c0_311 = arith.constant 0 : index
    %420 = arith.index_cast %419 : i32 to index
    %c0_312 = arith.constant 0 : index
    %421 = vector.load %arg2[%c0_311, %420, %c0_312] : memref<1x324x4xbf16, #tpu.memory_space<vmem>>, vector<1x16x4xbf16>
    %422 = vector.shape_cast %421 : vector<1x16x4xbf16> to vector<16x4xbf16>
    %423 = tpu.concatenate %382, %387, %392, %397, %402, %407, %412, %417, %422 in 1 : vector<16x4xbf16>, vector<16x4xbf16>, vector<16x4xbf16>, vector<16x4xbf16>, vector<16x4xbf16>, vector<16x4xbf16>, vector<16x4xbf16>, vector<16x4xbf16>, vector<16x4xbf16> -> vector<16x36xbf16>
    %c0_313 = arith.constant 0 : index
    %c0_314 = arith.constant 0 : index
    %424 = vector.load %arg3[%c0_313, %c0_314] : memref<36x128xbf16, #tpu.memory_space<vmem>>, vector<36x128xbf16>
    %cst_315 = arith.constant dense<0.000000e+00> : vector<16x128xf32>
    %425 = tpu.matmul %423, %424, %cst_315 {dimension_numbers = #tpu.dot_dimension_numbers<[1], [0], [0], [1], [0, 0, 1, 1], [], []>} : vector<16x36xbf16>, vector<36x128xbf16>, vector<16x128xf32> -> vector<16x128xf32>
    %426 = arith.truncf %425 : vector<16x128xf32> to vector<16x128xbf16>
    %c0_316 = arith.constant 0 : index
    %c6 = arith.constant 6 : index
    %c0_317 = arith.constant 0 : index
    %c0_318 = arith.constant 0 : index
    %427 = vector.load %arg4[%c0_316, %c6, %c0_317, %c0_318] : memref<1x8x16x128xbf16, #tpu.memory_space<vmem>>, vector<1x1x16x128xbf16>
    %428 = vector.shape_cast %427 : vector<1x1x16x128xbf16> to vector<16x128xbf16>
    %429 = vector.shape_cast %426 : vector<16x128xbf16> to vector<1x1x16x128xbf16>
    tpu.vector_store %arg4[%c0_316, %c6, %c0_317, %c0_318], %429 {strides = array<i32>} : memref<1x8x16x128xbf16, #tpu.memory_space<vmem>>, vector<1x1x16x128xbf16>,
    %cst_319 = arith.constant dense<0.000000e+00> : vector<128xf32>
    %430 = vector.multi_reduction <add>, %425, %cst_319 [0] : vector<16x128xf32> to vector<128xf32>
    %431 = vector.shape_cast %430 : vector<128xf32> to vector<1x128xf32>
    %432 = arith.addf %370, %431 : vector<1x128xf32>
    %433 = arith.mulf %425, %425 : vector<16x128xf32>
    %cst_320 = arith.constant dense<0.000000e+00> : vector<128xf32>
    %434 = vector.multi_reduction <add>, %433, %cst_320 [0] : vector<16x128xf32> to vector<128xf32>
    %435 = vector.shape_cast %434 : vector<128xf32> to vector<1x128xf32>
    %436 = arith.addf %374, %435 : vector<1x128xf32>
    %c7_i32 = arith.constant 7 : i32
    %437 = arith.addi %2, %c7_i32 : i32
    %c1_i32_321 = arith.constant 1 : i32
    %438 = arith.muli %437, %c1_i32_321 : i32
    %c18_i32_322 = arith.constant 18 : i32
    %439 = arith.muli %438, %c18_i32_322 : i32
    %c0_i32_323 = arith.constant 0 : i32
    %440 = arith.addi %439, %c0_i32_323 : i32
    %c0_i32_324 = arith.constant 0 : i32
    %441 = arith.addi %440, %c0_i32_324 : i32
    %c0_325 = arith.constant 0 : index
    %442 = arith.index_cast %441 : i32 to index
    %c0_326 = arith.constant 0 : index
    %443 = vector.load %arg2[%c0_325, %442, %c0_326] : memref<1x324x4xbf16, #tpu.memory_space<vmem>>, vector<1x16x4xbf16>
    %444 = vector.shape_cast %443 : vector<1x16x4xbf16> to vector<16x4xbf16>
    %c0_i32_327 = arith.constant 0 : i32
    %445 = arith.addi %439, %c0_i32_327 : i32
    %c1_i32_328 = arith.constant 1 : i32
    %446 = arith.addi %445, %c1_i32_328 : i32
    %c0_329 = arith.constant 0 : index
    %447 = arith.index_cast %446 : i32 to index
    %c0_330 = arith.constant 0 : index
    %448 = vector.load %arg2[%c0_329, %447, %c0_330] : memref<1x324x4xbf16, #tpu.memory_space<vmem>>, vector<1x16x4xbf16>
    %449 = vector.shape_cast %448 : vector<1x16x4xbf16> to vector<16x4xbf16>
    %c0_i32_331 = arith.constant 0 : i32
    %450 = arith.addi %439, %c0_i32_331 : i32
    %c2_i32_332 = arith.constant 2 : i32
    %451 = arith.addi %450, %c2_i32_332 : i32
    %c0_333 = arith.constant 0 : index
    %452 = arith.index_cast %451 : i32 to index
    %c0_334 = arith.constant 0 : index
    %453 = vector.load %arg2[%c0_333, %452, %c0_334] : memref<1x324x4xbf16, #tpu.memory_space<vmem>>, vector<1x16x4xbf16>
    %454 = vector.shape_cast %453 : vector<1x16x4xbf16> to vector<16x4xbf16>
    %c18_i32_335 = arith.constant 18 : i32
    %455 = arith.addi %439, %c18_i32_335 : i32
    %c0_i32_336 = arith.constant 0 : i32
    %456 = arith.addi %455, %c0_i32_336 : i32
    %c0_337 = arith.constant 0 : index
    %457 = arith.index_cast %456 : i32 to index
    %c0_338 = arith.constant 0 : index
    %458 = vector.load %arg2[%c0_337, %457, %c0_338] : memref<1x324x4xbf16, #tpu.memory_space<vmem>>, vector<1x16x4xbf16>
    %459 = vector.shape_cast %458 : vector<1x16x4xbf16> to vector<16x4xbf16>
    %c18_i32_339 = arith.constant 18 : i32
    %460 = arith.addi %439, %c18_i32_339 : i32
    %c1_i32_340 = arith.constant 1 : i32
    %461 = arith.addi %460, %c1_i32_340 : i32
    %c0_341 = arith.constant 0 : index
    %462 = arith.index_cast %461 : i32 to index
    %c0_342 = arith.constant 0 : index
    %463 = vector.load %arg2[%c0_341, %462, %c0_342] : memref<1x324x4xbf16, #tpu.memory_space<vmem>>, vector<1x16x4xbf16>
    %464 = vector.shape_cast %463 : vector<1x16x4xbf16> to vector<16x4xbf16>
    %c18_i32_343 = arith.constant 18 : i32
    %465 = arith.addi %439, %c18_i32_343 : i32
    %c2_i32_344 = arith.constant 2 : i32
    %466 = arith.addi %465, %c2_i32_344 : i32
    %c0_345 = arith.constant 0 : index
    %467 = arith.index_cast %466 : i32 to index
    %c0_346 = arith.constant 0 : index
    %468 = vector.load %arg2[%c0_345, %467, %c0_346] : memref<1x324x4xbf16, #tpu.memory_space<vmem>>, vector<1x16x4xbf16>
    %469 = vector.shape_cast %468 : vector<1x16x4xbf16> to vector<16x4xbf16>
    %c36_i32_347 = arith.constant 36 : i32
    %470 = arith.addi %439, %c36_i32_347 : i32
    %c0_i32_348 = arith.constant 0 : i32
    %471 = arith.addi %470, %c0_i32_348 : i32
    %c0_349 = arith.constant 0 : index
    %472 = arith.index_cast %471 : i32 to index
    %c0_350 = arith.constant 0 : index
    %473 = vector.load %arg2[%c0_349, %472, %c0_350] : memref<1x324x4xbf16, #tpu.memory_space<vmem>>, vector<1x16x4xbf16>
    %474 = vector.shape_cast %473 : vector<1x16x4xbf16> to vector<16x4xbf16>
    %c36_i32_351 = arith.constant 36 : i32
    %475 = arith.addi %439, %c36_i32_351 : i32
    %c1_i32_352 = arith.constant 1 : i32
    %476 = arith.addi %475, %c1_i32_352 : i32
    %c0_353 = arith.constant 0 : index
    %477 = arith.index_cast %476 : i32 to index
    %c0_354 = arith.constant 0 : index
    %478 = vector.load %arg2[%c0_353, %477, %c0_354] : memref<1x324x4xbf16, #tpu.memory_space<vmem>>, vector<1x16x4xbf16>
    %479 = vector.shape_cast %478 : vector<1x16x4xbf16> to vector<16x4xbf16>
    %c36_i32_355 = arith.constant 36 : i32
    %480 = arith.addi %439, %c36_i32_355 : i32
    %c2_i32_356 = arith.constant 2 : i32
    %481 = arith.addi %480, %c2_i32_356 : i32
    %c0_357 = arith.constant 0 : index
    %482 = arith.index_cast %481 : i32 to index
    %c0_358 = arith.constant 0 : index
    %483 = vector.load %arg2[%c0_357, %482, %c0_358] : memref<1x324x4xbf16, #tpu.memory_space<vmem>>, vector<1x16x4xbf16>
    %484 = vector.shape_cast %483 : vector<1x16x4xbf16> to vector<16x4xbf16>
    %485 = tpu.concatenate %444, %449, %454, %459, %464, %469, %474, %479, %484 in 1 : vector<16x4xbf16>, vector<16x4xbf16>, vector<16x4xbf16>, vector<16x4xbf16>, vector<16x4xbf16>, vector<16x4xbf16>, vector<16x4xbf16>, vector<16x4xbf16>, vector<16x4xbf16> -> vector<16x36xbf16>
    %c0_359 = arith.constant 0 : index
    %c0_360 = arith.constant 0 : index
    %486 = vector.load %arg3[%c0_359, %c0_360] : memref<36x128xbf16, #tpu.memory_space<vmem>>, vector<36x128xbf16>
    %cst_361 = arith.constant dense<0.000000e+00> : vector<16x128xf32>
    %487 = tpu.matmul %485, %486, %cst_361 {dimension_numbers = #tpu.dot_dimension_numbers<[1], [0], [0], [1], [0, 0, 1, 1], [], []>} : vector<16x36xbf16>, vector<36x128xbf16>, vector<16x128xf32> -> vector<16x128xf32>
    %488 = arith.truncf %487 : vector<16x128xf32> to vector<16x128xbf16>
    %c0_362 = arith.constant 0 : index
    %c7 = arith.constant 7 : index
    %c0_363 = arith.constant 0 : index
    %c0_364 = arith.constant 0 : index
    %489 = vector.load %arg4[%c0_362, %c7, %c0_363, %c0_364] : memref<1x8x16x128xbf16, #tpu.memory_space<vmem>>, vector<1x1x16x128xbf16>
    %490 = vector.shape_cast %489 : vector<1x1x16x128xbf16> to vector<16x128xbf16>
    %491 = vector.shape_cast %488 : vector<16x128xbf16> to vector<1x1x16x128xbf16>
    tpu.vector_store %arg4[%c0_362, %c7, %c0_363, %c0_364], %491 {strides = array<i32>} : memref<1x8x16x128xbf16, #tpu.memory_space<vmem>>, vector<1x1x16x128xbf16>,
    %cst_365 = arith.constant dense<0.000000e+00> : vector<128xf32>
    %492 = vector.multi_reduction <add>, %487, %cst_365 [0] : vector<16x128xf32> to vector<128xf32>
    %493 = vector.shape_cast %492 : vector<128xf32> to vector<1x128xf32>
    %494 = arith.addf %432, %493 : vector<1x128xf32>
    %495 = arith.mulf %487, %487 : vector<16x128xf32>
    %cst_366 = arith.constant dense<0.000000e+00> : vector<128xf32>
    %496 = vector.multi_reduction <add>, %495, %cst_366 [0] : vector<16x128xf32> to vector<128xf32>
    %497 = vector.shape_cast %496 : vector<128xf32> to vector<1x128xf32>
    %498 = arith.addf %436, %497 : vector<1x128xf32>
    %c0_367 = arith.constant 0 : index
    %c0_368 = arith.constant 0 : index
    %c0_369 = arith.constant 0 : index
    %499 = vector.load %arg5[%c0_367, %c0_368, %c0_369] : memref<1x1x128xf32, #tpu.memory_space<vmem>>, vector<1x1x128xf32>
    %500 = vector.shape_cast %499 : vector<1x1x128xf32> to vector<1x128xf32>
    %501 = vector.shape_cast %494 : vector<1x128xf32> to vector<1x1x128xf32>
    tpu.vector_store %arg5[%c0_367, %c0_368, %c0_369], %501 {strides = array<i32>} : memref<1x1x128xf32, #tpu.memory_space<vmem>>, vector<1x1x128xf32>,
    %c0_370 = arith.constant 0 : index
    %c0_371 = arith.constant 0 : index
    %c0_372 = arith.constant 0 : index
    %502 = vector.load %arg6[%c0_370, %c0_371, %c0_372] : memref<1x1x128xf32, #tpu.memory_space<vmem>>, vector<1x1x128xf32>
    %503 = vector.shape_cast %502 : vector<1x1x128xf32> to vector<1x128xf32>
    %504 = vector.shape_cast %498 : vector<1x128xf32> to vector<1x1x128xf32>
    tpu.vector_store %arg6[%c0_370, %c0_371, %c0_372], %504 {strides = array<i32>} : memref<1x1x128xf32, #tpu.memory_space<vmem>>, vector<1x1x128xf32>,
    return
  }
  func.func @transform_0(%arg0: i32, %arg1: i32) -> (i32, i32, i32) {
    %c0_i32 = arith.constant 0 : i32
    %c0_i32_0 = arith.constant 0 : i32
    %c0_i32_1 = arith.constant 0 : i32
    return %arg0, %c0_i32, %c0_i32_0 : i32, i32, i32
  }
  func.func @transform_1(%arg0: i32, %arg1: i32) -> (i32, i32) {
    %c0_i32 = arith.constant 0 : i32
    %c0_i32_0 = arith.constant 0 : i32
    %c0_i32_1 = arith.constant 0 : i32
    return %c0_i32, %c0_i32_0 : i32, i32
  }
  func.func @transform_2(%arg0: i32, %arg1: i32) -> (i32, i32, i32, i32) {
    %c0_i32 = arith.constant 0 : i32
    %c0_i32_0 = arith.constant 0 : i32
    %c0_i32_1 = arith.constant 0 : i32
    return %arg0, %arg1, %c0_i32, %c0_i32_0 : i32, i32, i32, i32
  }
  func.func @transform_3(%arg0: i32, %arg1: i32) -> (i32, i32, i32) {
    %c2_i32 = arith.constant 2 : i32
    %0 = arith.muli %arg0, %c2_i32 : i32
    %1 = arith.addi %0, %arg1 : i32
    %c0_i32 = arith.constant 0 : i32
    %c0_i32_0 = arith.constant 0 : i32
    %c0_i32_1 = arith.constant 0 : i32
    return %1, %c0_i32, %c0_i32_0 : i32, i32, i32
  }
  func.func @transform_4(%arg0: i32, %arg1: i32) -> (i32, i32, i32) {
    %c2_i32 = arith.constant 2 : i32
    %0 = arith.muli %arg0, %c2_i32 : i32
    %1 = arith.addi %0, %arg1 : i32
    %c0_i32 = arith.constant 0 : i32
    %c0_i32_0 = arith.constant 0 : i32
    %c0_i32_1 = arith.constant 0 : i32
    return %1, %c0_i32, %c0_i32_0 : i32, i32, i32
  }
}

module attributes {stable_mosaic.version = 11 : i64} {
  func.func @_bn_act_kernel(%arg0: i32, %arg1: i32, %arg2: memref<1x8x16x128xbf16, #tpu.memory_space<vmem>>, %arg3: memref<1x128xf32, #tpu.memory_space<vmem>>, %arg4: memref<1x128xf32, #tpu.memory_space<vmem>>, %arg5: memref<1x8x16x8xf32, #tpu.memory_space<vmem>>) attributes {dimension_semantics = [#tpu.dimension_semantics<parallel>, #tpu.dimension_semantics<parallel>], iteration_bounds = array<i64: 2, 2>, scalar_prefetch = 0 : i64, scratch_operands = 0 : i64, tpu.core_type = #tpu.core_type<tc>, window_params = [{transform_indices = @transform_0, window_bounds = array<i64: 1, 8, 16, 128>}, {pipeline_mode = #tpu.pipeline_mode<synchronous>, transform_indices = @transform_1, window_bounds = array<i64: 1, 128>}, {pipeline_mode = #tpu.pipeline_mode<synchronous>, transform_indices = @transform_2, window_bounds = array<i64: 1, 128>}, {transform_indices = @transform_3, window_bounds = array<i64: 1, 8, 16, 8>}]} {
    %c0 = arith.constant 0 : index
    %c0_0 = arith.constant 0 : index
    %c0_1 = arith.constant 0 : index
    %c0_2 = arith.constant 0 : index
    %0 = vector.load %arg2[%c0, %c0_0, %c0_1, %c0_2] : memref<1x8x16x128xbf16, #tpu.memory_space<vmem>>, vector<1x8x16x128xbf16>
    %1 = vector.shape_cast %0 : vector<1x8x16x128xbf16> to vector<8x16x128xbf16>
    %2 = arith.extf %1 : vector<8x16x128xbf16> to vector<8x16x128xf32>
    %c0_3 = arith.constant 0 : index
    %c0_4 = arith.constant 0 : index
    %3 = vector.load %arg3[%c0_3, %c0_4] : memref<1x128xf32, #tpu.memory_space<vmem>>, vector<1x128xf32>
    %4 = vector.shape_cast %3 : vector<1x128xf32> to vector<1x1x128xf32>
    %c0_5 = arith.constant 0 : index
    %c0_6 = arith.constant 0 : index
    %5 = vector.load %arg4[%c0_5, %c0_6] : memref<1x128xf32, #tpu.memory_space<vmem>>, vector<1x128xf32>
    %6 = vector.shape_cast %5 : vector<1x128xf32> to vector<1x1x128xf32>
    %7 = vector.broadcast %4 : vector<1x1x128xf32> to vector<8x16x128xf32>
    %8 = arith.mulf %2, %7 : vector<8x16x128xf32>
    %9 = vector.broadcast %6 : vector<1x1x128xf32> to vector<8x16x128xf32>
    %10 = arith.addf %8, %9 : vector<8x16x128xf32>
    %cst = arith.constant 0.000000e+00 : f32
    %11 = vector.broadcast %cst : f32 to vector<8x16x128xf32>
    %12 = arith.cmpf oge, %10, %11 : vector<8x16x128xf32>
    %cst_7 = arith.constant 1.000000e-01 : f32
    %13 = vector.broadcast %cst_7 : f32 to vector<8x16x128xf32>
    %14 = arith.mulf %13, %10 : vector<8x16x128xf32>
    %15 = arith.select %12, %10, %14 : vector<8x16x128xi1>, vector<8x16x128xf32>
    %16 = vector.extract_strided_slice %15 {offsets = [0, 0, 0], sizes = [8, 16, 8], strides = [1, 1, 1]} : vector<8x16x128xf32> to vector<8x16x8xf32>
    %c0_8 = arith.constant 0 : index
    %c0_9 = arith.constant 0 : index
    %c0_10 = arith.constant 0 : index
    %c0_11 = arith.constant 0 : index
    %17 = vector.load %arg5[%c0_8, %c0_9, %c0_10, %c0_11] : memref<1x8x16x8xf32, #tpu.memory_space<vmem>>, vector<1x8x16x8xf32>
    %18 = vector.shape_cast %17 : vector<1x8x16x8xf32> to vector<8x16x8xf32>
    %19 = vector.shape_cast %16 : vector<8x16x8xf32> to vector<1x8x16x8xf32>
    tpu.vector_store %arg5[%c0_8, %c0_9, %c0_10, %c0_11], %19 {strides = array<i32>} : memref<1x8x16x8xf32, #tpu.memory_space<vmem>>, vector<1x8x16x8xf32>,
    return
  }
  func.func @transform_0(%arg0: i32, %arg1: i32) -> (i32, i32, i32, i32) {
    %c0_i32 = arith.constant 0 : i32
    %c0_i32_0 = arith.constant 0 : i32
    %c0_i32_1 = arith.constant 0 : i32
    return %arg0, %arg1, %c0_i32, %c0_i32_0 : i32, i32, i32, i32
  }
  func.func @transform_1(%arg0: i32, %arg1: i32) -> (i32, i32) {
    %c0_i32 = arith.constant 0 : i32
    %c0_i32_0 = arith.constant 0 : i32
    %c0_i32_1 = arith.constant 0 : i32
    return %c0_i32, %c0_i32_0 : i32, i32
  }
  func.func @transform_2(%arg0: i32, %arg1: i32) -> (i32, i32) {
    %c0_i32 = arith.constant 0 : i32
    %c0_i32_0 = arith.constant 0 : i32
    %c0_i32_1 = arith.constant 0 : i32
    return %c0_i32, %c0_i32_0 : i32, i32
  }
  func.func @transform_3(%arg0: i32, %arg1: i32) -> (i32, i32, i32, i32) {
    %c0_i32 = arith.constant 0 : i32
    %c0_i32_0 = arith.constant 0 : i32
    %c0_i32_1 = arith.constant 0 : i32
    return %arg0, %arg1, %c0_i32, %c0_i32_0 : i32, i32, i32, i32
  }
}

module attributes {stable_mosaic.version = 11 : i64} {
  func.func @_bn_act_kernel(%arg0: i32, %arg1: i32, %arg2: memref<1x8x16x128xf32, #tpu.memory_space<vmem>>, %arg3: memref<1x128xf32, #tpu.memory_space<vmem>>, %arg4: memref<1x128xf32, #tpu.memory_space<vmem>>, %arg5: memref<1x8x16x8xf32, #tpu.memory_space<vmem>>) attributes {dimension_semantics = [#tpu.dimension_semantics<parallel>, #tpu.dimension_semantics<parallel>], iteration_bounds = array<i64: 2, 2>, scalar_prefetch = 0 : i64, scratch_operands = 0 : i64, tpu.core_type = #tpu.core_type<tc>, window_params = [{transform_indices = @transform_0, window_bounds = array<i64: 1, 8, 16, 128>}, {pipeline_mode = #tpu.pipeline_mode<synchronous>, transform_indices = @transform_1, window_bounds = array<i64: 1, 128>}, {pipeline_mode = #tpu.pipeline_mode<synchronous>, transform_indices = @transform_2, window_bounds = array<i64: 1, 128>}, {transform_indices = @transform_3, window_bounds = array<i64: 1, 8, 16, 8>}]} {
    %c0 = arith.constant 0 : index
    %c0_0 = arith.constant 0 : index
    %c0_1 = arith.constant 0 : index
    %c0_2 = arith.constant 0 : index
    %0 = vector.load %arg2[%c0, %c0_0, %c0_1, %c0_2] : memref<1x8x16x128xf32, #tpu.memory_space<vmem>>, vector<1x8x16x128xf32>
    %1 = vector.shape_cast %0 : vector<1x8x16x128xf32> to vector<8x16x128xf32>
    %c0_3 = arith.constant 0 : index
    %c0_4 = arith.constant 0 : index
    %2 = vector.load %arg3[%c0_3, %c0_4] : memref<1x128xf32, #tpu.memory_space<vmem>>, vector<1x128xf32>
    %3 = vector.shape_cast %2 : vector<1x128xf32> to vector<1x1x128xf32>
    %c0_5 = arith.constant 0 : index
    %c0_6 = arith.constant 0 : index
    %4 = vector.load %arg4[%c0_5, %c0_6] : memref<1x128xf32, #tpu.memory_space<vmem>>, vector<1x128xf32>
    %5 = vector.shape_cast %4 : vector<1x128xf32> to vector<1x1x128xf32>
    %6 = vector.broadcast %3 : vector<1x1x128xf32> to vector<8x16x128xf32>
    %7 = arith.mulf %1, %6 : vector<8x16x128xf32>
    %8 = vector.broadcast %5 : vector<1x1x128xf32> to vector<8x16x128xf32>
    %9 = arith.addf %7, %8 : vector<8x16x128xf32>
    %cst = arith.constant 0.000000e+00 : f32
    %10 = vector.broadcast %cst : f32 to vector<8x16x128xf32>
    %11 = arith.cmpf oge, %9, %10 : vector<8x16x128xf32>
    %cst_7 = arith.constant 1.000000e-01 : f32
    %12 = vector.broadcast %cst_7 : f32 to vector<8x16x128xf32>
    %13 = arith.mulf %12, %9 : vector<8x16x128xf32>
    %14 = arith.select %11, %9, %13 : vector<8x16x128xi1>, vector<8x16x128xf32>
    %15 = vector.extract_strided_slice %14 {offsets = [0, 0, 0], sizes = [8, 16, 8], strides = [1, 1, 1]} : vector<8x16x128xf32> to vector<8x16x8xf32>
    %c0_8 = arith.constant 0 : index
    %c0_9 = arith.constant 0 : index
    %c0_10 = arith.constant 0 : index
    %c0_11 = arith.constant 0 : index
    %16 = vector.load %arg5[%c0_8, %c0_9, %c0_10, %c0_11] : memref<1x8x16x8xf32, #tpu.memory_space<vmem>>, vector<1x8x16x8xf32>
    %17 = vector.shape_cast %16 : vector<1x8x16x8xf32> to vector<8x16x8xf32>
    %18 = vector.shape_cast %15 : vector<8x16x8xf32> to vector<1x8x16x8xf32>
    tpu.vector_store %arg5[%c0_8, %c0_9, %c0_10, %c0_11], %18 {strides = array<i32>} : memref<1x8x16x8xf32, #tpu.memory_space<vmem>>, vector<1x8x16x8xf32>,
    return
  }
  func.func @transform_0(%arg0: i32, %arg1: i32) -> (i32, i32, i32, i32) {
    %c0_i32 = arith.constant 0 : i32
    %c0_i32_0 = arith.constant 0 : i32
    %c0_i32_1 = arith.constant 0 : i32
    return %arg0, %arg1, %c0_i32, %c0_i32_0 : i32, i32, i32, i32
  }
  func.func @transform_1(%arg0: i32, %arg1: i32) -> (i32, i32) {
    %c0_i32 = arith.constant 0 : i32
    %c0_i32_0 = arith.constant 0 : i32
    %c0_i32_1 = arith.constant 0 : i32
    return %c0_i32, %c0_i32_0 : i32, i32
  }
  func.func @transform_2(%arg0: i32, %arg1: i32) -> (i32, i32) {
    %c0_i32 = arith.constant 0 : i32
    %c0_i32_0 = arith.constant 0 : i32
    %c0_i32_1 = arith.constant 0 : i32
    return %c0_i32, %c0_i32_0 : i32, i32
  }
  func.func @transform_3(%arg0: i32, %arg1: i32) -> (i32, i32, i32, i32) {
    %c0_i32 = arith.constant 0 : i32
    %c0_i32_0 = arith.constant 0 : i32
    %c0_i32_1 = arith.constant 0 : i32
    return %arg0, %arg1, %c0_i32, %c0_i32_0 : i32, i32, i32, i32
  }
}

module attributes {stable_mosaic.version = 11 : i64} {
  func.func @_conv_stats_kernel(%arg0: i32, %arg1: i32, %arg2: memref<1x324x4xf32, #tpu.memory_space<vmem>>, %arg3: memref<9x4x128xf32, #tpu.memory_space<vmem>>, %arg4: memref<1x8x16x128xf32, #tpu.memory_space<vmem>>, %arg5: memref<1x1x128xf32, #tpu.memory_space<vmem>>, %arg6: memref<1x1x128xf32, #tpu.memory_space<vmem>>) attributes {dimension_semantics = [#tpu.dimension_semantics<parallel>, #tpu.dimension_semantics<parallel>], iteration_bounds = array<i64: 2, 2>, scalar_prefetch = 0 : i64, scratch_operands = 0 : i64, tpu.core_type = #tpu.core_type<tc>, window_params = [{transform_indices = @transform_0, window_bounds = array<i64: 1, 324, 4>}, {pipeline_mode = #tpu.pipeline_mode<synchronous>, transform_indices = @transform_1, window_bounds = array<i64: 9, 4, 128>}, {transform_indices = @transform_2, window_bounds = array<i64: 1, 8, 16, 128>}, {transform_indices = @transform_3, window_bounds = array<i64: 1, 1, 128>}, {transform_indices = @transform_4, window_bounds = array<i64: 1, 1, 128>}]} {
    %cst = arith.constant 0.000000e+00 : f32
    %0 = vector.broadcast %cst : f32 to vector<1x128xf32>
    %cst_0 = arith.constant 0.000000e+00 : f32
    %1 = vector.broadcast %cst_0 : f32 to vector<1x128xf32>
    %c8_i32 = arith.constant 8 : i32
    %2 = arith.muli %arg1, %c8_i32 : i32
    %c0_i32 = arith.constant 0 : i32
    %3 = arith.addi %2, %c0_i32 : i32
    %c1_i32 = arith.constant 1 : i32
    %4 = arith.muli %3, %c1_i32 : i32
    %c18_i32 = arith.constant 18 : i32
    %5 = arith.muli %4, %c18_i32 : i32
    %cst_1 = arith.constant 0.000000e+00 : f32
    %6 = vector.broadcast %cst_1 : f32 to vector<16x128xf32>
    %c0_i32_2 = arith.constant 0 : i32
    %7 = arith.addi %5, %c0_i32_2 : i32
    %c0_i32_3 = arith.constant 0 : i32
    %8 = arith.addi %7, %c0_i32_3 : i32
    %c0 = arith.constant 0 : index
    %9 = arith.index_cast %8 : i32 to index
    %c0_4 = arith.constant 0 : index
    %10 = vector.load %arg2[%c0, %9, %c0_4] : memref<1x324x4xf32, #tpu.memory_space<vmem>>, vector<1x16x4xf32>
    %11 = vector.shape_cast %10 : vector<1x16x4xf32> to vector<16x4xf32>
    %c0_5 = arith.constant 0 : index
    %c0_6 = arith.constant 0 : index
    %c0_7 = arith.constant 0 : index
    %12 = vector.load %arg3[%c0_5, %c0_6, %c0_7] : memref<9x4x128xf32, #tpu.memory_space<vmem>>, vector<1x4x128xf32>
    %13 = vector.shape_cast %12 : vector<1x4x128xf32> to vector<4x128xf32>
    %cst_8 = arith.constant dense<0.000000e+00> : vector<16x128xf32>
    %14 = tpu.matmul %11, %13, %cst_8 {dimension_numbers = #tpu.dot_dimension_numbers<[1], [0], [0], [1], [0, 0, 1, 1], [], []>} : vector<16x4xf32>, vector<4x128xf32>, vector<16x128xf32> -> vector<16x128xf32>
    %15 = arith.addf %6, %14 : vector<16x128xf32>
    %c0_i32_9 = arith.constant 0 : i32
    %16 = arith.addi %5, %c0_i32_9 : i32
    %c1_i32_10 = arith.constant 1 : i32
    %17 = arith.addi %16, %c1_i32_10 : i32
    %c0_11 = arith.constant 0 : index
    %18 = arith.index_cast %17 : i32 to index
    %c0_12 = arith.constant 0 : index
    %19 = vector.load %arg2[%c0_11, %18, %c0_12] : memref<1x324x4xf32, #tpu.memory_space<vmem>>, vector<1x16x4xf32>
    %20 = vector.shape_cast %19 : vector<1x16x4xf32> to vector<16x4xf32>
    %c1 = arith.constant 1 : index
    %c0_13 = arith.constant 0 : index
    %c0_14 = arith.constant 0 : index
    %21 = vector.load %arg3[%c1, %c0_13, %c0_14] : memref<9x4x128xf32, #tpu.memory_space<vmem>>, vector<1x4x128xf32>
    %22 = vector.shape_cast %21 : vector<1x4x128xf32> to vector<4x128xf32>
    %cst_15 = arith.constant dense<0.000000e+00> : vector<16x128xf32>
    %23 = tpu.matmul %20, %22, %cst_15 {dimension_numbers = #tpu.dot_dimension_numbers<[1], [0], [0], [1], [0, 0, 1, 1], [], []>} : vector<16x4xf32>, vector<4x128xf32>, vector<16x128xf32> -> vector<16x128xf32>
    %24 = arith.addf %15, %23 : vector<16x128xf32>
    %c0_i32_16 = arith.constant 0 : i32
    %25 = arith.addi %5, %c0_i32_16 : i32
    %c2_i32 = arith.constant 2 : i32
    %26 = arith.addi %25, %c2_i32 : i32
    %c0_17 = arith.constant 0 : index
    %27 = arith.index_cast %26 : i32 to index
    %c0_18 = arith.constant 0 : index
    %28 = vector.load %arg2[%c0_17, %27, %c0_18] : memref<1x324x4xf32, #tpu.memory_space<vmem>>, vector<1x16x4xf32>
    %29 = vector.shape_cast %28 : vector<1x16x4xf32> to vector<16x4xf32>
    %c2 = arith.constant 2 : index
    %c0_19 = arith.constant 0 : index
    %c0_20 = arith.constant 0 : index
    %30 = vector.load %arg3[%c2, %c0_19, %c0_20] : memref<9x4x128xf32, #tpu.memory_space<vmem>>, vector<1x4x128xf32>
    %31 = vector.shape_cast %30 : vector<1x4x128xf32> to vector<4x128xf32>
    %cst_21 = arith.constant dense<0.000000e+00> : vector<16x128xf32>
    %32 = tpu.matmul %29, %31, %cst_21 {dimension_numbers = #tpu.dot_dimension_numbers<[1], [0], [0], [1], [0, 0, 1, 1], [], []>} : vector<16x4xf32>, vector<4x128xf32>, vector<16x128xf32> -> vector<16x128xf32>
    %33 = arith.addf %24, %32 : vector<16x128xf32>
    %c18_i32_22 = arith.constant 18 : i32
    %34 = arith.addi %5, %c18_i32_22 : i32
    %c0_i32_23 = arith.constant 0 : i32
    %35 = arith.addi %34, %c0_i32_23 : i32
    %c0_24 = arith.constant 0 : index
    %36 = arith.index_cast %35 : i32 to index
    %c0_25 = arith.constant 0 : index
    %37 = vector.load %arg2[%c0_24, %36, %c0_25] : memref<1x324x4xf32, #tpu.memory_space<vmem>>, vector<1x16x4xf32>
    %38 = vector.shape_cast %37 : vector<1x16x4xf32> to vector<16x4xf32>
    %c3 = arith.constant 3 : index
    %c0_26 = arith.constant 0 : index
    %c0_27 = arith.constant 0 : index
    %39 = vector.load %arg3[%c3, %c0_26, %c0_27] : memref<9x4x128xf32, #tpu.memory_space<vmem>>, vector<1x4x128xf32>
    %40 = vector.shape_cast %39 : vector<1x4x128xf32> to vector<4x128xf32>
    %cst_28 = arith.constant dense<0.000000e+00> : vector<16x128xf32>
    %41 = tpu.matmul %38, %40, %cst_28 {dimension_numbers = #tpu.dot_dimension_numbers<[1], [0], [0], [1], [0, 0, 1, 1], [], []>} : vector<16x4xf32>, vector<4x128xf32>, vector<16x128xf32> -> vector<16x128xf32>
    %42 = arith.addf %33, %41 : vector<16x128xf32>
    %c18_i32_29 = arith.constant 18 : i32
    %43 = arith.addi %5, %c18_i32_29 : i32
    %c1_i32_30 = arith.constant 1 : i32
    %44 = arith.addi %43, %c1_i32_30 : i32
    %c0_31 = arith.constant 0 : index
    %45 = arith.index_cast %44 : i32 to index
    %c0_32 = arith.constant 0 : index
    %46 = vector.load %arg2[%c0_31, %45, %c0_32] : memref<1x324x4xf32, #tpu.memory_space<vmem>>, vector<1x16x4xf32>
    %47 = vector.shape_cast %46 : vector<1x16x4xf32> to vector<16x4xf32>
    %c4 = arith.constant 4 : index
    %c0_33 = arith.constant 0 : index
    %c0_34 = arith.constant 0 : index
    %48 = vector.load %arg3[%c4, %c0_33, %c0_34] : memref<9x4x128xf32, #tpu.memory_space<vmem>>, vector<1x4x128xf32>
    %49 = vector.shape_cast %48 : vector<1x4x128xf32> to vector<4x128xf32>
    %cst_35 = arith.constant dense<0.000000e+00> : vector<16x128xf32>
    %50 = tpu.matmul %47, %49, %cst_35 {dimension_numbers = #tpu.dot_dimension_numbers<[1], [0], [0], [1], [0, 0, 1, 1], [], []>} : vector<16x4xf32>, vector<4x128xf32>, vector<16x128xf32> -> vector<16x128xf32>
    %51 = arith.addf %42, %50 : vector<16x128xf32>
    %c18_i32_36 = arith.constant 18 : i32
    %52 = arith.addi %5, %c18_i32_36 : i32
    %c2_i32_37 = arith.constant 2 : i32
    %53 = arith.addi %52, %c2_i32_37 : i32
    %c0_38 = arith.constant 0 : index
    %54 = arith.index_cast %53 : i32 to index
    %c0_39 = arith.constant 0 : index
    %55 = vector.load %arg2[%c0_38, %54, %c0_39] : memref<1x324x4xf32, #tpu.memory_space<vmem>>, vector<1x16x4xf32>
    %56 = vector.shape_cast %55 : vector<1x16x4xf32> to vector<16x4xf32>
    %c5 = arith.constant 5 : index
    %c0_40 = arith.constant 0 : index
    %c0_41 = arith.constant 0 : index
    %57 = vector.load %arg3[%c5, %c0_40, %c0_41] : memref<9x4x128xf32, #tpu.memory_space<vmem>>, vector<1x4x128xf32>
    %58 = vector.shape_cast %57 : vector<1x4x128xf32> to vector<4x128xf32>
    %cst_42 = arith.constant dense<0.000000e+00> : vector<16x128xf32>
    %59 = tpu.matmul %56, %58, %cst_42 {dimension_numbers = #tpu.dot_dimension_numbers<[1], [0], [0], [1], [0, 0, 1, 1], [], []>} : vector<16x4xf32>, vector<4x128xf32>, vector<16x128xf32> -> vector<16x128xf32>
    %60 = arith.addf %51, %59 : vector<16x128xf32>
    %c36_i32 = arith.constant 36 : i32
    %61 = arith.addi %5, %c36_i32 : i32
    %c0_i32_43 = arith.constant 0 : i32
    %62 = arith.addi %61, %c0_i32_43 : i32
    %c0_44 = arith.constant 0 : index
    %63 = arith.index_cast %62 : i32 to index
    %c0_45 = arith.constant 0 : index
    %64 = vector.load %arg2[%c0_44, %63, %c0_45] : memref<1x324x4xf32, #tpu.memory_space<vmem>>, vector<1x16x4xf32>
    %65 = vector.shape_cast %64 : vector<1x16x4xf32> to vector<16x4xf32>
    %c6 = arith.constant 6 : index
    %c0_46 = arith.constant 0 : index
    %c0_47 = arith.constant 0 : index
    %66 = vector.load %arg3[%c6, %c0_46, %c0_47] : memref<9x4x128xf32, #tpu.memory_space<vmem>>, vector<1x4x128xf32>
    %67 = vector.shape_cast %66 : vector<1x4x128xf32> to vector<4x128xf32>
    %cst_48 = arith.constant dense<0.000000e+00> : vector<16x128xf32>
    %68 = tpu.matmul %65, %67, %cst_48 {dimension_numbers = #tpu.dot_dimension_numbers<[1], [0], [0], [1], [0, 0, 1, 1], [], []>} : vector<16x4xf32>, vector<4x128xf32>, vector<16x128xf32> -> vector<16x128xf32>
    %69 = arith.addf %60, %68 : vector<16x128xf32>
    %c36_i32_49 = arith.constant 36 : i32
    %70 = arith.addi %5, %c36_i32_49 : i32
    %c1_i32_50 = arith.constant 1 : i32
    %71 = arith.addi %70, %c1_i32_50 : i32
    %c0_51 = arith.constant 0 : index
    %72 = arith.index_cast %71 : i32 to index
    %c0_52 = arith.constant 0 : index
    %73 = vector.load %arg2[%c0_51, %72, %c0_52] : memref<1x324x4xf32, #tpu.memory_space<vmem>>, vector<1x16x4xf32>
    %74 = vector.shape_cast %73 : vector<1x16x4xf32> to vector<16x4xf32>
    %c7 = arith.constant 7 : index
    %c0_53 = arith.constant 0 : index
    %c0_54 = arith.constant 0 : index
    %75 = vector.load %arg3[%c7, %c0_53, %c0_54] : memref<9x4x128xf32, #tpu.memory_space<vmem>>, vector<1x4x128xf32>
    %76 = vector.shape_cast %75 : vector<1x4x128xf32> to vector<4x128xf32>
    %cst_55 = arith.constant dense<0.000000e+00> : vector<16x128xf32>
    %77 = tpu.matmul %74, %76, %cst_55 {dimension_numbers = #tpu.dot_dimension_numbers<[1], [0], [0], [1], [0, 0, 1, 1], [], []>} : vector<16x4xf32>, vector<4x128xf32>, vector<16x128xf32> -> vector<16x128xf32>
    %78 = arith.addf %69, %77 : vector<16x128xf32>
    %c36_i32_56 = arith.constant 36 : i32
    %79 = arith.addi %5, %c36_i32_56 : i32
    %c2_i32_57 = arith.constant 2 : i32
    %80 = arith.addi %79, %c2_i32_57 : i32
    %c0_58 = arith.constant 0 : index
    %81 = arith.index_cast %80 : i32 to index
    %c0_59 = arith.constant 0 : index
    %82 = vector.load %arg2[%c0_58, %81, %c0_59] : memref<1x324x4xf32, #tpu.memory_space<vmem>>, vector<1x16x4xf32>
    %83 = vector.shape_cast %82 : vector<1x16x4xf32> to vector<16x4xf32>
    %c8 = arith.constant 8 : index
    %c0_60 = arith.constant 0 : index
    %c0_61 = arith.constant 0 : index
    %84 = vector.load %arg3[%c8, %c0_60, %c0_61] : memref<9x4x128xf32, #tpu.memory_space<vmem>>, vector<1x4x128xf32>
    %85 = vector.shape_cast %84 : vector<1x4x128xf32> to vector<4x128xf32>
    %cst_62 = arith.constant dense<0.000000e+00> : vector<16x128xf32>
    %86 = tpu.matmul %83, %85, %cst_62 {dimension_numbers = #tpu.dot_dimension_numbers<[1], [0], [0], [1], [0, 0, 1, 1], [], []>} : vector<16x4xf32>, vector<4x128xf32>, vector<16x128xf32> -> vector<16x128xf32>
    %87 = arith.addf %78, %86 : vector<16x128xf32>
    %c0_63 = arith.constant 0 : index
    %c0_64 = arith.constant 0 : index
    %c0_65 = arith.constant 0 : index
    %c0_66 = arith.constant 0 : index
    %88 = vector.load %arg4[%c0_63, %c0_64, %c0_65, %c0_66] : memref<1x8x16x128xf32, #tpu.memory_space<vmem>>, vector<1x1x16x128xf32>
    %89 = vector.shape_cast %88 : vector<1x1x16x128xf32> to vector<16x128xf32>
    %90 = vector.shape_cast %87 : vector<16x128xf32> to vector<1x1x16x128xf32>
    tpu.vector_store %arg4[%c0_63, %c0_64, %c0_65, %c0_66], %90 {strides = array<i32>} : memref<1x8x16x128xf32, #tpu.memory_space<vmem>>, vector<1x1x16x128xf32>,
    %cst_67 = arith.constant dense<0.000000e+00> : vector<128xf32>
    %91 = vector.multi_reduction <add>, %87, %cst_67 [0] : vector<16x128xf32> to vector<128xf32>
    %92 = vector.shape_cast %91 : vector<128xf32> to vector<1x128xf32>
    %93 = arith.addf %0, %92 : vector<1x128xf32>
    %94 = arith.mulf %87, %87 : vector<16x128xf32>
    %cst_68 = arith.constant dense<0.000000e+00> : vector<128xf32>
    %95 = vector.multi_reduction <add>, %94, %cst_68 [0] : vector<16x128xf32> to vector<128xf32>
    %96 = vector.shape_cast %95 : vector<128xf32> to vector<1x128xf32>
    %97 = arith.addf %1, %96 : vector<1x128xf32>
    %c1_i32_69 = arith.constant 1 : i32
    %98 = arith.addi %2, %c1_i32_69 : i32
    %c1_i32_70 = arith.constant 1 : i32
    %99 = arith.muli %98, %c1_i32_70 : i32
    %c18_i32_71 = arith.constant 18 : i32
    %100 = arith.muli %99, %c18_i32_71 : i32
    %cst_72 = arith.constant 0.000000e+00 : f32
    %101 = vector.broadcast %cst_72 : f32 to vector<16x128xf32>
    %c0_i32_73 = arith.constant 0 : i32
    %102 = arith.addi %100, %c0_i32_73 : i32
    %c0_i32_74 = arith.constant 0 : i32
    %103 = arith.addi %102, %c0_i32_74 : i32
    %c0_75 = arith.constant 0 : index
    %104 = arith.index_cast %103 : i32 to index
    %c0_76 = arith.constant 0 : index
    %105 = vector.load %arg2[%c0_75, %104, %c0_76] : memref<1x324x4xf32, #tpu.memory_space<vmem>>, vector<1x16x4xf32>
    %106 = vector.shape_cast %105 : vector<1x16x4xf32> to vector<16x4xf32>
    %c0_77 = arith.constant 0 : index
    %c0_78 = arith.constant 0 : index
    %c0_79 = arith.constant 0 : index
    %107 = vector.load %arg3[%c0_77, %c0_78, %c0_79] : memref<9x4x128xf32, #tpu.memory_space<vmem>>, vector<1x4x128xf32>
    %108 = vector.shape_cast %107 : vector<1x4x128xf32> to vector<4x128xf32>
    %cst_80 = arith.constant dense<0.000000e+00> : vector<16x128xf32>
    %109 = tpu.matmul %106, %108, %cst_80 {dimension_numbers = #tpu.dot_dimension_numbers<[1], [0], [0], [1], [0, 0, 1, 1], [], []>} : vector<16x4xf32>, vector<4x128xf32>, vector<16x128xf32> -> vector<16x128xf32>
    %110 = arith.addf %101, %109 : vector<16x128xf32>
    %c0_i32_81 = arith.constant 0 : i32
    %111 = arith.addi %100, %c0_i32_81 : i32
    %c1_i32_82 = arith.constant 1 : i32
    %112 = arith.addi %111, %c1_i32_82 : i32
    %c0_83 = arith.constant 0 : index
    %113 = arith.index_cast %112 : i32 to index
    %c0_84 = arith.constant 0 : index
    %114 = vector.load %arg2[%c0_83, %113, %c0_84] : memref<1x324x4xf32, #tpu.memory_space<vmem>>, vector<1x16x4xf32>
    %115 = vector.shape_cast %114 : vector<1x16x4xf32> to vector<16x4xf32>
    %c1_85 = arith.constant 1 : index
    %c0_86 = arith.constant 0 : index
    %c0_87 = arith.constant 0 : index
    %116 = vector.load %arg3[%c1_85, %c0_86, %c0_87] : memref<9x4x128xf32, #tpu.memory_space<vmem>>, vector<1x4x128xf32>
    %117 = vector.shape_cast %116 : vector<1x4x128xf32> to vector<4x128xf32>
    %cst_88 = arith.constant dense<0.000000e+00> : vector<16x128xf32>
    %118 = tpu.matmul %115, %117, %cst_88 {dimension_numbers = #tpu.dot_dimension_numbers<[1], [0], [0], [1], [0, 0, 1, 1], [], []>} : vector<16x4xf32>, vector<4x128xf32>, vector<16x128xf32> -> vector<16x128xf32>
    %119 = arith.addf %110, %118 : vector<16x128xf32>
    %c0_i32_89 = arith.constant 0 : i32
    %120 = arith.addi %100, %c0_i32_89 : i32
    %c2_i32_90 = arith.constant 2 : i32
    %121 = arith.addi %120, %c2_i32_90 : i32
    %c0_91 = arith.constant 0 : index
    %122 = arith.index_cast %121 : i32 to index
    %c0_92 = arith.constant 0 : index
    %123 = vector.load %arg2[%c0_91, %122, %c0_92] : memref<1x324x4xf32, #tpu.memory_space<vmem>>, vector<1x16x4xf32>
    %124 = vector.shape_cast %123 : vector<1x16x4xf32> to vector<16x4xf32>
    %c2_93 = arith.constant 2 : index
    %c0_94 = arith.constant 0 : index
    %c0_95 = arith.constant 0 : index
    %125 = vector.load %arg3[%c2_93, %c0_94, %c0_95] : memref<9x4x128xf32, #tpu.memory_space<vmem>>, vector<1x4x128xf32>
    %126 = vector.shape_cast %125 : vector<1x4x128xf32> to vector<4x128xf32>
    %cst_96 = arith.constant dense<0.000000e+00> : vector<16x128xf32>
    %127 = tpu.matmul %124, %126, %cst_96 {dimension_numbers = #tpu.dot_dimension_numbers<[1], [0], [0], [1], [0, 0, 1, 1], [], []>} : vector<16x4xf32>, vector<4x128xf32>, vector<16x128xf32> -> vector<16x128xf32>
    %128 = arith.addf %119, %127 : vector<16x128xf32>
    %c18_i32_97 = arith.constant 18 : i32
    %129 = arith.addi %100, %c18_i32_97 : i32
    %c0_i32_98 = arith.constant 0 : i32
    %130 = arith.addi %129, %c0_i32_98 : i32
    %c0_99 = arith.constant 0 : index
    %131 = arith.index_cast %130 : i32 to index
    %c0_100 = arith.constant 0 : index
    %132 = vector.load %arg2[%c0_99, %131, %c0_100] : memref<1x324x4xf32, #tpu.memory_space<vmem>>, vector<1x16x4xf32>
    %133 = vector.shape_cast %132 : vector<1x16x4xf32> to vector<16x4xf32>
    %c3_101 = arith.constant 3 : index
    %c0_102 = arith.constant 0 : index
    %c0_103 = arith.constant 0 : index
    %134 = vector.load %arg3[%c3_101, %c0_102, %c0_103] : memref<9x4x128xf32, #tpu.memory_space<vmem>>, vector<1x4x128xf32>
    %135 = vector.shape_cast %134 : vector<1x4x128xf32> to vector<4x128xf32>
    %cst_104 = arith.constant dense<0.000000e+00> : vector<16x128xf32>
    %136 = tpu.matmul %133, %135, %cst_104 {dimension_numbers = #tpu.dot_dimension_numbers<[1], [0], [0], [1], [0, 0, 1, 1], [], []>} : vector<16x4xf32>, vector<4x128xf32>, vector<16x128xf32> -> vector<16x128xf32>
    %137 = arith.addf %128, %136 : vector<16x128xf32>
    %c18_i32_105 = arith.constant 18 : i32
    %138 = arith.addi %100, %c18_i32_105 : i32
    %c1_i32_106 = arith.constant 1 : i32
    %139 = arith.addi %138, %c1_i32_106 : i32
    %c0_107 = arith.constant 0 : index
    %140 = arith.index_cast %139 : i32 to index
    %c0_108 = arith.constant 0 : index
    %141 = vector.load %arg2[%c0_107, %140, %c0_108] : memref<1x324x4xf32, #tpu.memory_space<vmem>>, vector<1x16x4xf32>
    %142 = vector.shape_cast %141 : vector<1x16x4xf32> to vector<16x4xf32>
    %c4_109 = arith.constant 4 : index
    %c0_110 = arith.constant 0 : index
    %c0_111 = arith.constant 0 : index
    %143 = vector.load %arg3[%c4_109, %c0_110, %c0_111] : memref<9x4x128xf32, #tpu.memory_space<vmem>>, vector<1x4x128xf32>
    %144 = vector.shape_cast %143 : vector<1x4x128xf32> to vector<4x128xf32>
    %cst_112 = arith.constant dense<0.000000e+00> : vector<16x128xf32>
    %145 = tpu.matmul %142, %144, %cst_112 {dimension_numbers = #tpu.dot_dimension_numbers<[1], [0], [0], [1], [0, 0, 1, 1], [], []>} : vector<16x4xf32>, vector<4x128xf32>, vector<16x128xf32> -> vector<16x128xf32>
    %146 = arith.addf %137, %145 : vector<16x128xf32>
    %c18_i32_113 = arith.constant 18 : i32
    %147 = arith.addi %100, %c18_i32_113 : i32
    %c2_i32_114 = arith.constant 2 : i32
    %148 = arith.addi %147, %c2_i32_114 : i32
    %c0_115 = arith.constant 0 : index
    %149 = arith.index_cast %148 : i32 to index
    %c0_116 = arith.constant 0 : index
    %150 = vector.load %arg2[%c0_115, %149, %c0_116] : memref<1x324x4xf32, #tpu.memory_space<vmem>>, vector<1x16x4xf32>
    %151 = vector.shape_cast %150 : vector<1x16x4xf32> to vector<16x4xf32>
    %c5_117 = arith.constant 5 : index
    %c0_118 = arith.constant 0 : index
    %c0_119 = arith.constant 0 : index
    %152 = vector.load %arg3[%c5_117, %c0_118, %c0_119] : memref<9x4x128xf32, #tpu.memory_space<vmem>>, vector<1x4x128xf32>
    %153 = vector.shape_cast %152 : vector<1x4x128xf32> to vector<4x128xf32>
    %cst_120 = arith.constant dense<0.000000e+00> : vector<16x128xf32>
    %154 = tpu.matmul %151, %153, %cst_120 {dimension_numbers = #tpu.dot_dimension_numbers<[1], [0], [0], [1], [0, 0, 1, 1], [], []>} : vector<16x4xf32>, vector<4x128xf32>, vector<16x128xf32> -> vector<16x128xf32>
    %155 = arith.addf %146, %154 : vector<16x128xf32>
    %c36_i32_121 = arith.constant 36 : i32
    %156 = arith.addi %100, %c36_i32_121 : i32
    %c0_i32_122 = arith.constant 0 : i32
    %157 = arith.addi %156, %c0_i32_122 : i32
    %c0_123 = arith.constant 0 : index
    %158 = arith.index_cast %157 : i32 to index
    %c0_124 = arith.constant 0 : index
    %159 = vector.load %arg2[%c0_123, %158, %c0_124] : memref<1x324x4xf32, #tpu.memory_space<vmem>>, vector<1x16x4xf32>
    %160 = vector.shape_cast %159 : vector<1x16x4xf32> to vector<16x4xf32>
    %c6_125 = arith.constant 6 : index
    %c0_126 = arith.constant 0 : index
    %c0_127 = arith.constant 0 : index
    %161 = vector.load %arg3[%c6_125, %c0_126, %c0_127] : memref<9x4x128xf32, #tpu.memory_space<vmem>>, vector<1x4x128xf32>
    %162 = vector.shape_cast %161 : vector<1x4x128xf32> to vector<4x128xf32>
    %cst_128 = arith.constant dense<0.000000e+00> : vector<16x128xf32>
    %163 = tpu.matmul %160, %162, %cst_128 {dimension_numbers = #tpu.dot_dimension_numbers<[1], [0], [0], [1], [0, 0, 1, 1], [], []>} : vector<16x4xf32>, vector<4x128xf32>, vector<16x128xf32> -> vector<16x128xf32>
    %164 = arith.addf %155, %163 : vector<16x128xf32>
    %c36_i32_129 = arith.constant 36 : i32
    %165 = arith.addi %100, %c36_i32_129 : i32
    %c1_i32_130 = arith.constant 1 : i32
    %166 = arith.addi %165, %c1_i32_130 : i32
    %c0_131 = arith.constant 0 : index
    %167 = arith.index_cast %166 : i32 to index
    %c0_132 = arith.constant 0 : index
    %168 = vector.load %arg2[%c0_131, %167, %c0_132] : memref<1x324x4xf32, #tpu.memory_space<vmem>>, vector<1x16x4xf32>
    %169 = vector.shape_cast %168 : vector<1x16x4xf32> to vector<16x4xf32>
    %c7_133 = arith.constant 7 : index
    %c0_134 = arith.constant 0 : index
    %c0_135 = arith.constant 0 : index
    %170 = vector.load %arg3[%c7_133, %c0_134, %c0_135] : memref<9x4x128xf32, #tpu.memory_space<vmem>>, vector<1x4x128xf32>
    %171 = vector.shape_cast %170 : vector<1x4x128xf32> to vector<4x128xf32>
    %cst_136 = arith.constant dense<0.000000e+00> : vector<16x128xf32>
    %172 = tpu.matmul %169, %171, %cst_136 {dimension_numbers = #tpu.dot_dimension_numbers<[1], [0], [0], [1], [0, 0, 1, 1], [], []>} : vector<16x4xf32>, vector<4x128xf32>, vector<16x128xf32> -> vector<16x128xf32>
    %173 = arith.addf %164, %172 : vector<16x128xf32>
    %c36_i32_137 = arith.constant 36 : i32
    %174 = arith.addi %100, %c36_i32_137 : i32
    %c2_i32_138 = arith.constant 2 : i32
    %175 = arith.addi %174, %c2_i32_138 : i32
    %c0_139 = arith.constant 0 : index
    %176 = arith.index_cast %175 : i32 to index
    %c0_140 = arith.constant 0 : index
    %177 = vector.load %arg2[%c0_139, %176, %c0_140] : memref<1x324x4xf32, #tpu.memory_space<vmem>>, vector<1x16x4xf32>
    %178 = vector.shape_cast %177 : vector<1x16x4xf32> to vector<16x4xf32>
    %c8_141 = arith.constant 8 : index
    %c0_142 = arith.constant 0 : index
    %c0_143 = arith.constant 0 : index
    %179 = vector.load %arg3[%c8_141, %c0_142, %c0_143] : memref<9x4x128xf32, #tpu.memory_space<vmem>>, vector<1x4x128xf32>
    %180 = vector.shape_cast %179 : vector<1x4x128xf32> to vector<4x128xf32>
    %cst_144 = arith.constant dense<0.000000e+00> : vector<16x128xf32>
    %181 = tpu.matmul %178, %180, %cst_144 {dimension_numbers = #tpu.dot_dimension_numbers<[1], [0], [0], [1], [0, 0, 1, 1], [], []>} : vector<16x4xf32>, vector<4x128xf32>, vector<16x128xf32> -> vector<16x128xf32>
    %182 = arith.addf %173, %181 : vector<16x128xf32>
    %c0_145 = arith.constant 0 : index
    %c1_146 = arith.constant 1 : index
    %c0_147 = arith.constant 0 : index
    %c0_148 = arith.constant 0 : index
    %183 = vector.load %arg4[%c0_145, %c1_146, %c0_147, %c0_148] : memref<1x8x16x128xf32, #tpu.memory_space<vmem>>, vector<1x1x16x128xf32>
    %184 = vector.shape_cast %183 : vector<1x1x16x128xf32> to vector<16x128xf32>
    %185 = vector.shape_cast %182 : vector<16x128xf32> to vector<1x1x16x128xf32>
    tpu.vector_store %arg4[%c0_145, %c1_146, %c0_147, %c0_148], %185 {strides = array<i32>} : memref<1x8x16x128xf32, #tpu.memory_space<vmem>>, vector<1x1x16x128xf32>,
    %cst_149 = arith.constant dense<0.000000e+00> : vector<128xf32>
    %186 = vector.multi_reduction <add>, %182, %cst_149 [0] : vector<16x128xf32> to vector<128xf32>
    %187 = vector.shape_cast %186 : vector<128xf32> to vector<1x128xf32>
    %188 = arith.addf %93, %187 : vector<1x128xf32>
    %189 = arith.mulf %182, %182 : vector<16x128xf32>
    %cst_150 = arith.constant dense<0.000000e+00> : vector<128xf32>
    %190 = vector.multi_reduction <add>, %189, %cst_150 [0] : vector<16x128xf32> to vector<128xf32>
    %191 = vector.shape_cast %190 : vector<128xf32> to vector<1x128xf32>
    %192 = arith.addf %97, %191 : vector<1x128xf32>
    %c2_i32_151 = arith.constant 2 : i32
    %193 = arith.addi %2, %c2_i32_151 : i32
    %c1_i32_152 = arith.constant 1 : i32
    %194 = arith.muli %193, %c1_i32_152 : i32
    %c18_i32_153 = arith.constant 18 : i32
    %195 = arith.muli %194, %c18_i32_153 : i32
    %cst_154 = arith.constant 0.000000e+00 : f32
    %196 = vector.broadcast %cst_154 : f32 to vector<16x128xf32>
    %c0_i32_155 = arith.constant 0 : i32
    %197 = arith.addi %195, %c0_i32_155 : i32
    %c0_i32_156 = arith.constant 0 : i32
    %198 = arith.addi %197, %c0_i32_156 : i32
    %c0_157 = arith.constant 0 : index
    %199 = arith.index_cast %198 : i32 to index
    %c0_158 = arith.constant 0 : index
    %200 = vector.load %arg2[%c0_157, %199, %c0_158] : memref<1x324x4xf32, #tpu.memory_space<vmem>>, vector<1x16x4xf32>
    %201 = vector.shape_cast %200 : vector<1x16x4xf32> to vector<16x4xf32>
    %c0_159 = arith.constant 0 : index
    %c0_160 = arith.constant 0 : index
    %c0_161 = arith.constant 0 : index
    %202 = vector.load %arg3[%c0_159, %c0_160, %c0_161] : memref<9x4x128xf32, #tpu.memory_space<vmem>>, vector<1x4x128xf32>
    %203 = vector.shape_cast %202 : vector<1x4x128xf32> to vector<4x128xf32>
    %cst_162 = arith.constant dense<0.000000e+00> : vector<16x128xf32>
    %204 = tpu.matmul %201, %203, %cst_162 {dimension_numbers = #tpu.dot_dimension_numbers<[1], [0], [0], [1], [0, 0, 1, 1], [], []>} : vector<16x4xf32>, vector<4x128xf32>, vector<16x128xf32> -> vector<16x128xf32>
    %205 = arith.addf %196, %204 : vector<16x128xf32>
    %c0_i32_163 = arith.constant 0 : i32
    %206 = arith.addi %195, %c0_i32_163 : i32
    %c1_i32_164 = arith.constant 1 : i32
    %207 = arith.addi %206, %c1_i32_164 : i32
    %c0_165 = arith.constant 0 : index
    %208 = arith.index_cast %207 : i32 to index
    %c0_166 = arith.constant 0 : index
    %209 = vector.load %arg2[%c0_165, %208, %c0_166] : memref<1x324x4xf32, #tpu.memory_space<vmem>>, vector<1x16x4xf32>
    %210 = vector.shape_cast %209 : vector<1x16x4xf32> to vector<16x4xf32>
    %c1_167 = arith.constant 1 : index
    %c0_168 = arith.constant 0 : index
    %c0_169 = arith.constant 0 : index
    %211 = vector.load %arg3[%c1_167, %c0_168, %c0_169] : memref<9x4x128xf32, #tpu.memory_space<vmem>>, vector<1x4x128xf32>
    %212 = vector.shape_cast %211 : vector<1x4x128xf32> to vector<4x128xf32>
    %cst_170 = arith.constant dense<0.000000e+00> : vector<16x128xf32>
    %213 = tpu.matmul %210, %212, %cst_170 {dimension_numbers = #tpu.dot_dimension_numbers<[1], [0], [0], [1], [0, 0, 1, 1], [], []>} : vector<16x4xf32>, vector<4x128xf32>, vector<16x128xf32> -> vector<16x128xf32>
    %214 = arith.addf %205, %213 : vector<16x128xf32>
    %c0_i32_171 = arith.constant 0 : i32
    %215 = arith.addi %195, %c0_i32_171 : i32
    %c2_i32_172 = arith.constant 2 : i32
    %216 = arith.addi %215, %c2_i32_172 : i32
    %c0_173 = arith.constant 0 : index
    %217 = arith.index_cast %216 : i32 to index
    %c0_174 = arith.constant 0 : index
    %218 = vector.load %arg2[%c0_173, %217, %c0_174] : memref<1x324x4xf32, #tpu.memory_space<vmem>>, vector<1x16x4xf32>
    %219 = vector.shape_cast %218 : vector<1x16x4xf32> to vector<16x4xf32>
    %c2_175 = arith.constant 2 : index
    %c0_176 = arith.constant 0 : index
    %c0_177 = arith.constant 0 : index
    %220 = vector.load %arg3[%c2_175, %c0_176, %c0_177] : memref<9x4x128xf32, #tpu.memory_space<vmem>>, vector<1x4x128xf32>
    %221 = vector.shape_cast %220 : vector<1x4x128xf32> to vector<4x128xf32>
    %cst_178 = arith.constant dense<0.000000e+00> : vector<16x128xf32>
    %222 = tpu.matmul %219, %221, %cst_178 {dimension_numbers = #tpu.dot_dimension_numbers<[1], [0], [0], [1], [0, 0, 1, 1], [], []>} : vector<16x4xf32>, vector<4x128xf32>, vector<16x128xf32> -> vector<16x128xf32>
    %223 = arith.addf %214, %222 : vector<16x128xf32>
    %c18_i32_179 = arith.constant 18 : i32
    %224 = arith.addi %195, %c18_i32_179 : i32
    %c0_i32_180 = arith.constant 0 : i32
    %225 = arith.addi %224, %c0_i32_180 : i32
    %c0_181 = arith.constant 0 : index
    %226 = arith.index_cast %225 : i32 to index
    %c0_182 = arith.constant 0 : index
    %227 = vector.load %arg2[%c0_181, %226, %c0_182] : memref<1x324x4xf32, #tpu.memory_space<vmem>>, vector<1x16x4xf32>
    %228 = vector.shape_cast %227 : vector<1x16x4xf32> to vector<16x4xf32>
    %c3_183 = arith.constant 3 : index
    %c0_184 = arith.constant 0 : index
    %c0_185 = arith.constant 0 : index
    %229 = vector.load %arg3[%c3_183, %c0_184, %c0_185] : memref<9x4x128xf32, #tpu.memory_space<vmem>>, vector<1x4x128xf32>
    %230 = vector.shape_cast %229 : vector<1x4x128xf32> to vector<4x128xf32>
    %cst_186 = arith.constant dense<0.000000e+00> : vector<16x128xf32>
    %231 = tpu.matmul %228, %230, %cst_186 {dimension_numbers = #tpu.dot_dimension_numbers<[1], [0], [0], [1], [0, 0, 1, 1], [], []>} : vector<16x4xf32>, vector<4x128xf32>, vector<16x128xf32> -> vector<16x128xf32>
    %232 = arith.addf %223, %231 : vector<16x128xf32>
    %c18_i32_187 = arith.constant 18 : i32
    %233 = arith.addi %195, %c18_i32_187 : i32
    %c1_i32_188 = arith.constant 1 : i32
    %234 = arith.addi %233, %c1_i32_188 : i32
    %c0_189 = arith.constant 0 : index
    %235 = arith.index_cast %234 : i32 to index
    %c0_190 = arith.constant 0 : index
    %236 = vector.load %arg2[%c0_189, %235, %c0_190] : memref<1x324x4xf32, #tpu.memory_space<vmem>>, vector<1x16x4xf32>
    %237 = vector.shape_cast %236 : vector<1x16x4xf32> to vector<16x4xf32>
    %c4_191 = arith.constant 4 : index
    %c0_192 = arith.constant 0 : index
    %c0_193 = arith.constant 0 : index
    %238 = vector.load %arg3[%c4_191, %c0_192, %c0_193] : memref<9x4x128xf32, #tpu.memory_space<vmem>>, vector<1x4x128xf32>
    %239 = vector.shape_cast %238 : vector<1x4x128xf32> to vector<4x128xf32>
    %cst_194 = arith.constant dense<0.000000e+00> : vector<16x128xf32>
    %240 = tpu.matmul %237, %239, %cst_194 {dimension_numbers = #tpu.dot_dimension_numbers<[1], [0], [0], [1], [0, 0, 1, 1], [], []>} : vector<16x4xf32>, vector<4x128xf32>, vector<16x128xf32> -> vector<16x128xf32>
    %241 = arith.addf %232, %240 : vector<16x128xf32>
    %c18_i32_195 = arith.constant 18 : i32
    %242 = arith.addi %195, %c18_i32_195 : i32
    %c2_i32_196 = arith.constant 2 : i32
    %243 = arith.addi %242, %c2_i32_196 : i32
    %c0_197 = arith.constant 0 : index
    %244 = arith.index_cast %243 : i32 to index
    %c0_198 = arith.constant 0 : index
    %245 = vector.load %arg2[%c0_197, %244, %c0_198] : memref<1x324x4xf32, #tpu.memory_space<vmem>>, vector<1x16x4xf32>
    %246 = vector.shape_cast %245 : vector<1x16x4xf32> to vector<16x4xf32>
    %c5_199 = arith.constant 5 : index
    %c0_200 = arith.constant 0 : index
    %c0_201 = arith.constant 0 : index
    %247 = vector.load %arg3[%c5_199, %c0_200, %c0_201] : memref<9x4x128xf32, #tpu.memory_space<vmem>>, vector<1x4x128xf32>
    %248 = vector.shape_cast %247 : vector<1x4x128xf32> to vector<4x128xf32>
    %cst_202 = arith.constant dense<0.000000e+00> : vector<16x128xf32>
    %249 = tpu.matmul %246, %248, %cst_202 {dimension_numbers = #tpu.dot_dimension_numbers<[1], [0], [0], [1], [0, 0, 1, 1], [], []>} : vector<16x4xf32>, vector<4x128xf32>, vector<16x128xf32> -> vector<16x128xf32>
    %250 = arith.addf %241, %249 : vector<16x128xf32>
    %c36_i32_203 = arith.constant 36 : i32
    %251 = arith.addi %195, %c36_i32_203 : i32
    %c0_i32_204 = arith.constant 0 : i32
    %252 = arith.addi %251, %c0_i32_204 : i32
    %c0_205 = arith.constant 0 : index
    %253 = arith.index_cast %252 : i32 to index
    %c0_206 = arith.constant 0 : index
    %254 = vector.load %arg2[%c0_205, %253, %c0_206] : memref<1x324x4xf32, #tpu.memory_space<vmem>>, vector<1x16x4xf32>
    %255 = vector.shape_cast %254 : vector<1x16x4xf32> to vector<16x4xf32>
    %c6_207 = arith.constant 6 : index
    %c0_208 = arith.constant 0 : index
    %c0_209 = arith.constant 0 : index
    %256 = vector.load %arg3[%c6_207, %c0_208, %c0_209] : memref<9x4x128xf32, #tpu.memory_space<vmem>>, vector<1x4x128xf32>
    %257 = vector.shape_cast %256 : vector<1x4x128xf32> to vector<4x128xf32>
    %cst_210 = arith.constant dense<0.000000e+00> : vector<16x128xf32>
    %258 = tpu.matmul %255, %257, %cst_210 {dimension_numbers = #tpu.dot_dimension_numbers<[1], [0], [0], [1], [0, 0, 1, 1], [], []>} : vector<16x4xf32>, vector<4x128xf32>, vector<16x128xf32> -> vector<16x128xf32>
    %259 = arith.addf %250, %258 : vector<16x128xf32>
    %c36_i32_211 = arith.constant 36 : i32
    %260 = arith.addi %195, %c36_i32_211 : i32
    %c1_i32_212 = arith.constant 1 : i32
    %261 = arith.addi %260, %c1_i32_212 : i32
    %c0_213 = arith.constant 0 : index
    %262 = arith.index_cast %261 : i32 to index
    %c0_214 = arith.constant 0 : index
    %263 = vector.load %arg2[%c0_213, %262, %c0_214] : memref<1x324x4xf32, #tpu.memory_space<vmem>>, vector<1x16x4xf32>
    %264 = vector.shape_cast %263 : vector<1x16x4xf32> to vector<16x4xf32>
    %c7_215 = arith.constant 7 : index
    %c0_216 = arith.constant 0 : index
    %c0_217 = arith.constant 0 : index
    %265 = vector.load %arg3[%c7_215, %c0_216, %c0_217] : memref<9x4x128xf32, #tpu.memory_space<vmem>>, vector<1x4x128xf32>
    %266 = vector.shape_cast %265 : vector<1x4x128xf32> to vector<4x128xf32>
    %cst_218 = arith.constant dense<0.000000e+00> : vector<16x128xf32>
    %267 = tpu.matmul %264, %266, %cst_218 {dimension_numbers = #tpu.dot_dimension_numbers<[1], [0], [0], [1], [0, 0, 1, 1], [], []>} : vector<16x4xf32>, vector<4x128xf32>, vector<16x128xf32> -> vector<16x128xf32>
    %268 = arith.addf %259, %267 : vector<16x128xf32>
    %c36_i32_219 = arith.constant 36 : i32
    %269 = arith.addi %195, %c36_i32_219 : i32
    %c2_i32_220 = arith.constant 2 : i32
    %270 = arith.addi %269, %c2_i32_220 : i32
    %c0_221 = arith.constant 0 : index
    %271 = arith.index_cast %270 : i32 to index
    %c0_222 = arith.constant 0 : index
    %272 = vector.load %arg2[%c0_221, %271, %c0_222] : memref<1x324x4xf32, #tpu.memory_space<vmem>>, vector<1x16x4xf32>
    %273 = vector.shape_cast %272 : vector<1x16x4xf32> to vector<16x4xf32>
    %c8_223 = arith.constant 8 : index
    %c0_224 = arith.constant 0 : index
    %c0_225 = arith.constant 0 : index
    %274 = vector.load %arg3[%c8_223, %c0_224, %c0_225] : memref<9x4x128xf32, #tpu.memory_space<vmem>>, vector<1x4x128xf32>
    %275 = vector.shape_cast %274 : vector<1x4x128xf32> to vector<4x128xf32>
    %cst_226 = arith.constant dense<0.000000e+00> : vector<16x128xf32>
    %276 = tpu.matmul %273, %275, %cst_226 {dimension_numbers = #tpu.dot_dimension_numbers<[1], [0], [0], [1], [0, 0, 1, 1], [], []>} : vector<16x4xf32>, vector<4x128xf32>, vector<16x128xf32> -> vector<16x128xf32>
    %277 = arith.addf %268, %276 : vector<16x128xf32>
    %c0_227 = arith.constant 0 : index
    %c2_228 = arith.constant 2 : index
    %c0_229 = arith.constant 0 : index
    %c0_230 = arith.constant 0 : index
    %278 = vector.load %arg4[%c0_227, %c2_228, %c0_229, %c0_230] : memref<1x8x16x128xf32, #tpu.memory_space<vmem>>, vector<1x1x16x128xf32>
    %279 = vector.shape_cast %278 : vector<1x1x16x128xf32> to vector<16x128xf32>
    %280 = vector.shape_cast %277 : vector<16x128xf32> to vector<1x1x16x128xf32>
    tpu.vector_store %arg4[%c0_227, %c2_228, %c0_229, %c0_230], %280 {strides = array<i32>} : memref<1x8x16x128xf32, #tpu.memory_space<vmem>>, vector<1x1x16x128xf32>,
    %cst_231 = arith.constant dense<0.000000e+00> : vector<128xf32>
    %281 = vector.multi_reduction <add>, %277, %cst_231 [0] : vector<16x128xf32> to vector<128xf32>
    %282 = vector.shape_cast %281 : vector<128xf32> to vector<1x128xf32>
    %283 = arith.addf %188, %282 : vector<1x128xf32>
    %284 = arith.mulf %277, %277 : vector<16x128xf32>
    %cst_232 = arith.constant dense<0.000000e+00> : vector<128xf32>
    %285 = vector.multi_reduction <add>, %284, %cst_232 [0] : vector<16x128xf32> to vector<128xf32>
    %286 = vector.shape_cast %285 : vector<128xf32> to vector<1x128xf32>
    %287 = arith.addf %192, %286 : vector<1x128xf32>
    %c3_i32 = arith.constant 3 : i32
    %288 = arith.addi %2, %c3_i32 : i32
    %c1_i32_233 = arith.constant 1 : i32
    %289 = arith.muli %288, %c1_i32_233 : i32
    %c18_i32_234 = arith.constant 18 : i32
    %290 = arith.muli %289, %c18_i32_234 : i32
    %cst_235 = arith.constant 0.000000e+00 : f32
    %291 = vector.broadcast %cst_235 : f32 to vector<16x128xf32>
    %c0_i32_236 = arith.constant 0 : i32
    %292 = arith.addi %290, %c0_i32_236 : i32
    %c0_i32_237 = arith.constant 0 : i32
    %293 = arith.addi %292, %c0_i32_237 : i32
    %c0_238 = arith.constant 0 : index
    %294 = arith.index_cast %293 : i32 to index
    %c0_239 = arith.constant 0 : index
    %295 = vector.load %arg2[%c0_238, %294, %c0_239] : memref<1x324x4xf32, #tpu.memory_space<vmem>>, vector<1x16x4xf32>
    %296 = vector.shape_cast %295 : vector<1x16x4xf32> to vector<16x4xf32>
    %c0_240 = arith.constant 0 : index
    %c0_241 = arith.constant 0 : index
    %c0_242 = arith.constant 0 : index
    %297 = vector.load %arg3[%c0_240, %c0_241, %c0_242] : memref<9x4x128xf32, #tpu.memory_space<vmem>>, vector<1x4x128xf32>
    %298 = vector.shape_cast %297 : vector<1x4x128xf32> to vector<4x128xf32>
    %cst_243 = arith.constant dense<0.000000e+00> : vector<16x128xf32>
    %299 = tpu.matmul %296, %298, %cst_243 {dimension_numbers = #tpu.dot_dimension_numbers<[1], [0], [0], [1], [0, 0, 1, 1], [], []>} : vector<16x4xf32>, vector<4x128xf32>, vector<16x128xf32> -> vector<16x128xf32>
    %300 = arith.addf %291, %299 : vector<16x128xf32>
    %c0_i32_244 = arith.constant 0 : i32
    %301 = arith.addi %290, %c0_i32_244 : i32
    %c1_i32_245 = arith.constant 1 : i32
    %302 = arith.addi %301, %c1_i32_245 : i32
    %c0_246 = arith.constant 0 : index
    %303 = arith.index_cast %302 : i32 to index
    %c0_247 = arith.constant 0 : index
    %304 = vector.load %arg2[%c0_246, %303, %c0_247] : memref<1x324x4xf32, #tpu.memory_space<vmem>>, vector<1x16x4xf32>
    %305 = vector.shape_cast %304 : vector<1x16x4xf32> to vector<16x4xf32>
    %c1_248 = arith.constant 1 : index
    %c0_249 = arith.constant 0 : index
    %c0_250 = arith.constant 0 : index
    %306 = vector.load %arg3[%c1_248, %c0_249, %c0_250] : memref<9x4x128xf32, #tpu.memory_space<vmem>>, vector<1x4x128xf32>
    %307 = vector.shape_cast %306 : vector<1x4x128xf32> to vector<4x128xf32>
    %cst_251 = arith.constant dense<0.000000e+00> : vector<16x128xf32>
    %308 = tpu.matmul %305, %307, %cst_251 {dimension_numbers = #tpu.dot_dimension_numbers<[1], [0], [0], [1], [0, 0, 1, 1], [], []>} : vector<16x4xf32>, vector<4x128xf32>, vector<16x128xf32> -> vector<16x128xf32>
    %309 = arith.addf %300, %308 : vector<16x128xf32>
    %c0_i32_252 = arith.constant 0 : i32
    %310 = arith.addi %290, %c0_i32_252 : i32
    %c2_i32_253 = arith.constant 2 : i32
    %311 = arith.addi %310, %c2_i32_253 : i32
    %c0_254 = arith.constant 0 : index
    %312 = arith.index_cast %311 : i32 to index
    %c0_255 = arith.constant 0 : index
    %313 = vector.load %arg2[%c0_254, %312, %c0_255] : memref<1x324x4xf32, #tpu.memory_space<vmem>>, vector<1x16x4xf32>
    %314 = vector.shape_cast %313 : vector<1x16x4xf32> to vector<16x4xf32>
    %c2_256 = arith.constant 2 : index
    %c0_257 = arith.constant 0 : index
    %c0_258 = arith.constant 0 : index
    %315 = vector.load %arg3[%c2_256, %c0_257, %c0_258] : memref<9x4x128xf32, #tpu.memory_space<vmem>>, vector<1x4x128xf32>
    %316 = vector.shape_cast %315 : vector<1x4x128xf32> to vector<4x128xf32>
    %cst_259 = arith.constant dense<0.000000e+00> : vector<16x128xf32>
    %317 = tpu.matmul %314, %316, %cst_259 {dimension_numbers = #tpu.dot_dimension_numbers<[1], [0], [0], [1], [0, 0, 1, 1], [], []>} : vector<16x4xf32>, vector<4x128xf32>, vector<16x128xf32> -> vector<16x128xf32>
    %318 = arith.addf %309, %317 : vector<16x128xf32>
    %c18_i32_260 = arith.constant 18 : i32
    %319 = arith.addi %290, %c18_i32_260 : i32
    %c0_i32_261 = arith.constant 0 : i32
    %320 = arith.addi %319, %c0_i32_261 : i32
    %c0_262 = arith.constant 0 : index
    %321 = arith.index_cast %320 : i32 to index
    %c0_263 = arith.constant 0 : index
    %322 = vector.load %arg2[%c0_262, %321, %c0_263] : memref<1x324x4xf32, #tpu.memory_space<vmem>>, vector<1x16x4xf32>
    %323 = vector.shape_cast %322 : vector<1x16x4xf32> to vector<16x4xf32>
    %c3_264 = arith.constant 3 : index
    %c0_265 = arith.constant 0 : index
    %c0_266 = arith.constant 0 : index
    %324 = vector.load %arg3[%c3_264, %c0_265, %c0_266] : memref<9x4x128xf32, #tpu.memory_space<vmem>>, vector<1x4x128xf32>
    %325 = vector.shape_cast %324 : vector<1x4x128xf32> to vector<4x128xf32>
    %cst_267 = arith.constant dense<0.000000e+00> : vector<16x128xf32>
    %326 = tpu.matmul %323, %325, %cst_267 {dimension_numbers = #tpu.dot_dimension_numbers<[1], [0], [0], [1], [0, 0, 1, 1], [], []>} : vector<16x4xf32>, vector<4x128xf32>, vector<16x128xf32> -> vector<16x128xf32>
    %327 = arith.addf %318, %326 : vector<16x128xf32>
    %c18_i32_268 = arith.constant 18 : i32
    %328 = arith.addi %290, %c18_i32_268 : i32
    %c1_i32_269 = arith.constant 1 : i32
    %329 = arith.addi %328, %c1_i32_269 : i32
    %c0_270 = arith.constant 0 : index
    %330 = arith.index_cast %329 : i32 to index
    %c0_271 = arith.constant 0 : index
    %331 = vector.load %arg2[%c0_270, %330, %c0_271] : memref<1x324x4xf32, #tpu.memory_space<vmem>>, vector<1x16x4xf32>
    %332 = vector.shape_cast %331 : vector<1x16x4xf32> to vector<16x4xf32>
    %c4_272 = arith.constant 4 : index
    %c0_273 = arith.constant 0 : index
    %c0_274 = arith.constant 0 : index
    %333 = vector.load %arg3[%c4_272, %c0_273, %c0_274] : memref<9x4x128xf32, #tpu.memory_space<vmem>>, vector<1x4x128xf32>
    %334 = vector.shape_cast %333 : vector<1x4x128xf32> to vector<4x128xf32>
    %cst_275 = arith.constant dense<0.000000e+00> : vector<16x128xf32>
    %335 = tpu.matmul %332, %334, %cst_275 {dimension_numbers = #tpu.dot_dimension_numbers<[1], [0], [0], [1], [0, 0, 1, 1], [], []>} : vector<16x4xf32>, vector<4x128xf32>, vector<16x128xf32> -> vector<16x128xf32>
    %336 = arith.addf %327, %335 : vector<16x128xf32>
    %c18_i32_276 = arith.constant 18 : i32
    %337 = arith.addi %290, %c18_i32_276 : i32
    %c2_i32_277 = arith.constant 2 : i32
    %338 = arith.addi %337, %c2_i32_277 : i32
    %c0_278 = arith.constant 0 : index
    %339 = arith.index_cast %338 : i32 to index
    %c0_279 = arith.constant 0 : index
    %340 = vector.load %arg2[%c0_278, %339, %c0_279] : memref<1x324x4xf32, #tpu.memory_space<vmem>>, vector<1x16x4xf32>
    %341 = vector.shape_cast %340 : vector<1x16x4xf32> to vector<16x4xf32>
    %c5_280 = arith.constant 5 : index
    %c0_281 = arith.constant 0 : index
    %c0_282 = arith.constant 0 : index
    %342 = vector.load %arg3[%c5_280, %c0_281, %c0_282] : memref<9x4x128xf32, #tpu.memory_space<vmem>>, vector<1x4x128xf32>
    %343 = vector.shape_cast %342 : vector<1x4x128xf32> to vector<4x128xf32>
    %cst_283 = arith.constant dense<0.000000e+00> : vector<16x128xf32>
    %344 = tpu.matmul %341, %343, %cst_283 {dimension_numbers = #tpu.dot_dimension_numbers<[1], [0], [0], [1], [0, 0, 1, 1], [], []>} : vector<16x4xf32>, vector<4x128xf32>, vector<16x128xf32> -> vector<16x128xf32>
    %345 = arith.addf %336, %344 : vector<16x128xf32>
    %c36_i32_284 = arith.constant 36 : i32
    %346 = arith.addi %290, %c36_i32_284 : i32
    %c0_i32_285 = arith.constant 0 : i32
    %347 = arith.addi %346, %c0_i32_285 : i32
    %c0_286 = arith.constant 0 : index
    %348 = arith.index_cast %347 : i32 to index
    %c0_287 = arith.constant 0 : index
    %349 = vector.load %arg2[%c0_286, %348, %c0_287] : memref<1x324x4xf32, #tpu.memory_space<vmem>>, vector<1x16x4xf32>
    %350 = vector.shape_cast %349 : vector<1x16x4xf32> to vector<16x4xf32>
    %c6_288 = arith.constant 6 : index
    %c0_289 = arith.constant 0 : index
    %c0_290 = arith.constant 0 : index
    %351 = vector.load %arg3[%c6_288, %c0_289, %c0_290] : memref<9x4x128xf32, #tpu.memory_space<vmem>>, vector<1x4x128xf32>
    %352 = vector.shape_cast %351 : vector<1x4x128xf32> to vector<4x128xf32>
    %cst_291 = arith.constant dense<0.000000e+00> : vector<16x128xf32>
    %353 = tpu.matmul %350, %352, %cst_291 {dimension_numbers = #tpu.dot_dimension_numbers<[1], [0], [0], [1], [0, 0, 1, 1], [], []>} : vector<16x4xf32>, vector<4x128xf32>, vector<16x128xf32> -> vector<16x128xf32>
    %354 = arith.addf %345, %353 : vector<16x128xf32>
    %c36_i32_292 = arith.constant 36 : i32
    %355 = arith.addi %290, %c36_i32_292 : i32
    %c1_i32_293 = arith.constant 1 : i32
    %356 = arith.addi %355, %c1_i32_293 : i32
    %c0_294 = arith.constant 0 : index
    %357 = arith.index_cast %356 : i32 to index
    %c0_295 = arith.constant 0 : index
    %358 = vector.load %arg2[%c0_294, %357, %c0_295] : memref<1x324x4xf32, #tpu.memory_space<vmem>>, vector<1x16x4xf32>
    %359 = vector.shape_cast %358 : vector<1x16x4xf32> to vector<16x4xf32>
    %c7_296 = arith.constant 7 : index
    %c0_297 = arith.constant 0 : index
    %c0_298 = arith.constant 0 : index
    %360 = vector.load %arg3[%c7_296, %c0_297, %c0_298] : memref<9x4x128xf32, #tpu.memory_space<vmem>>, vector<1x4x128xf32>
    %361 = vector.shape_cast %360 : vector<1x4x128xf32> to vector<4x128xf32>
    %cst_299 = arith.constant dense<0.000000e+00> : vector<16x128xf32>
    %362 = tpu.matmul %359, %361, %cst_299 {dimension_numbers = #tpu.dot_dimension_numbers<[1], [0], [0], [1], [0, 0, 1, 1], [], []>} : vector<16x4xf32>, vector<4x128xf32>, vector<16x128xf32> -> vector<16x128xf32>
    %363 = arith.addf %354, %362 : vector<16x128xf32>
    %c36_i32_300 = arith.constant 36 : i32
    %364 = arith.addi %290, %c36_i32_300 : i32
    %c2_i32_301 = arith.constant 2 : i32
    %365 = arith.addi %364, %c2_i32_301 : i32
    %c0_302 = arith.constant 0 : index
    %366 = arith.index_cast %365 : i32 to index
    %c0_303 = arith.constant 0 : index
    %367 = vector.load %arg2[%c0_302, %366, %c0_303] : memref<1x324x4xf32, #tpu.memory_space<vmem>>, vector<1x16x4xf32>
    %368 = vector.shape_cast %367 : vector<1x16x4xf32> to vector<16x4xf32>
    %c8_304 = arith.constant 8 : index
    %c0_305 = arith.constant 0 : index
    %c0_306 = arith.constant 0 : index
    %369 = vector.load %arg3[%c8_304, %c0_305, %c0_306] : memref<9x4x128xf32, #tpu.memory_space<vmem>>, vector<1x4x128xf32>
    %370 = vector.shape_cast %369 : vector<1x4x128xf32> to vector<4x128xf32>
    %cst_307 = arith.constant dense<0.000000e+00> : vector<16x128xf32>
    %371 = tpu.matmul %368, %370, %cst_307 {dimension_numbers = #tpu.dot_dimension_numbers<[1], [0], [0], [1], [0, 0, 1, 1], [], []>} : vector<16x4xf32>, vector<4x128xf32>, vector<16x128xf32> -> vector<16x128xf32>
    %372 = arith.addf %363, %371 : vector<16x128xf32>
    %c0_308 = arith.constant 0 : index
    %c3_309 = arith.constant 3 : index
    %c0_310 = arith.constant 0 : index
    %c0_311 = arith.constant 0 : index
    %373 = vector.load %arg4[%c0_308, %c3_309, %c0_310, %c0_311] : memref<1x8x16x128xf32, #tpu.memory_space<vmem>>, vector<1x1x16x128xf32>
    %374 = vector.shape_cast %373 : vector<1x1x16x128xf32> to vector<16x128xf32>
    %375 = vector.shape_cast %372 : vector<16x128xf32> to vector<1x1x16x128xf32>
    tpu.vector_store %arg4[%c0_308, %c3_309, %c0_310, %c0_311], %375 {strides = array<i32>} : memref<1x8x16x128xf32, #tpu.memory_space<vmem>>, vector<1x1x16x128xf32>,
    %cst_312 = arith.constant dense<0.000000e+00> : vector<128xf32>
    %376 = vector.multi_reduction <add>, %372, %cst_312 [0] : vector<16x128xf32> to vector<128xf32>
    %377 = vector.shape_cast %376 : vector<128xf32> to vector<1x128xf32>
    %378 = arith.addf %283, %377 : vector<1x128xf32>
    %379 = arith.mulf %372, %372 : vector<16x128xf32>
    %cst_313 = arith.constant dense<0.000000e+00> : vector<128xf32>
    %380 = vector.multi_reduction <add>, %379, %cst_313 [0] : vector<16x128xf32> to vector<128xf32>
    %381 = vector.shape_cast %380 : vector<128xf32> to vector<1x128xf32>
    %382 = arith.addf %287, %381 : vector<1x128xf32>
    %c4_i32 = arith.constant 4 : i32
    %383 = arith.addi %2, %c4_i32 : i32
    %c1_i32_314 = arith.constant 1 : i32
    %384 = arith.muli %383, %c1_i32_314 : i32
    %c18_i32_315 = arith.constant 18 : i32
    %385 = arith.muli %384, %c18_i32_315 : i32
    %cst_316 = arith.constant 0.000000e+00 : f32
    %386 = vector.broadcast %cst_316 : f32 to vector<16x128xf32>
    %c0_i32_317 = arith.constant 0 : i32
    %387 = arith.addi %385, %c0_i32_317 : i32
    %c0_i32_318 = arith.constant 0 : i32
    %388 = arith.addi %387, %c0_i32_318 : i32
    %c0_319 = arith.constant 0 : index
    %389 = arith.index_cast %388 : i32 to index
    %c0_320 = arith.constant 0 : index
    %390 = vector.load %arg2[%c0_319, %389, %c0_320] : memref<1x324x4xf32, #tpu.memory_space<vmem>>, vector<1x16x4xf32>
    %391 = vector.shape_cast %390 : vector<1x16x4xf32> to vector<16x4xf32>
    %c0_321 = arith.constant 0 : index
    %c0_322 = arith.constant 0 : index
    %c0_323 = arith.constant 0 : index
    %392 = vector.load %arg3[%c0_321, %c0_322, %c0_323] : memref<9x4x128xf32, #tpu.memory_space<vmem>>, vector<1x4x128xf32>
    %393 = vector.shape_cast %392 : vector<1x4x128xf32> to vector<4x128xf32>
    %cst_324 = arith.constant dense<0.000000e+00> : vector<16x128xf32>
    %394 = tpu.matmul %391, %393, %cst_324 {dimension_numbers = #tpu.dot_dimension_numbers<[1], [0], [0], [1], [0, 0, 1, 1], [], []>} : vector<16x4xf32>, vector<4x128xf32>, vector<16x128xf32> -> vector<16x128xf32>
    %395 = arith.addf %386, %394 : vector<16x128xf32>
    %c0_i32_325 = arith.constant 0 : i32
    %396 = arith.addi %385, %c0_i32_325 : i32
    %c1_i32_326 = arith.constant 1 : i32
    %397 = arith.addi %396, %c1_i32_326 : i32
    %c0_327 = arith.constant 0 : index
    %398 = arith.index_cast %397 : i32 to index
    %c0_328 = arith.constant 0 : index
    %399 = vector.load %arg2[%c0_327, %398, %c0_328] : memref<1x324x4xf32, #tpu.memory_space<vmem>>, vector<1x16x4xf32>
    %400 = vector.shape_cast %399 : vector<1x16x4xf32> to vector<16x4xf32>
    %c1_329 = arith.constant 1 : index
    %c0_330 = arith.constant 0 : index
    %c0_331 = arith.constant 0 : index
    %401 = vector.load %arg3[%c1_329, %c0_330, %c0_331] : memref<9x4x128xf32, #tpu.memory_space<vmem>>, vector<1x4x128xf32>
    %402 = vector.shape_cast %401 : vector<1x4x128xf32> to vector<4x128xf32>
    %cst_332 = arith.constant dense<0.000000e+00> : vector<16x128xf32>
    %403 = tpu.matmul %400, %402, %cst_332 {dimension_numbers = #tpu.dot_dimension_numbers<[1], [0], [0], [1], [0, 0, 1, 1], [], []>} : vector<16x4xf32>, vector<4x128xf32>, vector<16x128xf32> -> vector<16x128xf32>
    %404 = arith.addf %395, %403 : vector<16x128xf32>
    %c0_i32_333 = arith.constant 0 : i32
    %405 = arith.addi %385, %c0_i32_333 : i32
    %c2_i32_334 = arith.constant 2 : i32
    %406 = arith.addi %405, %c2_i32_334 : i32
    %c0_335 = arith.constant 0 : index
    %407 = arith.index_cast %406 : i32 to index
    %c0_336 = arith.constant 0 : index
    %408 = vector.load %arg2[%c0_335, %407, %c0_336] : memref<1x324x4xf32, #tpu.memory_space<vmem>>, vector<1x16x4xf32>
    %409 = vector.shape_cast %408 : vector<1x16x4xf32> to vector<16x4xf32>
    %c2_337 = arith.constant 2 : index
    %c0_338 = arith.constant 0 : index
    %c0_339 = arith.constant 0 : index
    %410 = vector.load %arg3[%c2_337, %c0_338, %c0_339] : memref<9x4x128xf32, #tpu.memory_space<vmem>>, vector<1x4x128xf32>
    %411 = vector.shape_cast %410 : vector<1x4x128xf32> to vector<4x128xf32>
    %cst_340 = arith.constant dense<0.000000e+00> : vector<16x128xf32>
    %412 = tpu.matmul %409, %411, %cst_340 {dimension_numbers = #tpu.dot_dimension_numbers<[1], [0], [0], [1], [0, 0, 1, 1], [], []>} : vector<16x4xf32>, vector<4x128xf32>, vector<16x128xf32> -> vector<16x128xf32>
    %413 = arith.addf %404, %412 : vector<16x128xf32>
    %c18_i32_341 = arith.constant 18 : i32
    %414 = arith.addi %385, %c18_i32_341 : i32
    %c0_i32_342 = arith.constant 0 : i32
    %415 = arith.addi %414, %c0_i32_342 : i32
    %c0_343 = arith.constant 0 : index
    %416 = arith.index_cast %415 : i32 to index
    %c0_344 = arith.constant 0 : index
    %417 = vector.load %arg2[%c0_343, %416, %c0_344] : memref<1x324x4xf32, #tpu.memory_space<vmem>>, vector<1x16x4xf32>
    %418 = vector.shape_cast %417 : vector<1x16x4xf32> to vector<16x4xf32>
    %c3_345 = arith.constant 3 : index
    %c0_346 = arith.constant 0 : index
    %c0_347 = arith.constant 0 : index
    %419 = vector.load %arg3[%c3_345, %c0_346, %c0_347] : memref<9x4x128xf32, #tpu.memory_space<vmem>>, vector<1x4x128xf32>
    %420 = vector.shape_cast %419 : vector<1x4x128xf32> to vector<4x128xf32>
    %cst_348 = arith.constant dense<0.000000e+00> : vector<16x128xf32>
    %421 = tpu.matmul %418, %420, %cst_348 {dimension_numbers = #tpu.dot_dimension_numbers<[1], [0], [0], [1], [0, 0, 1, 1], [], []>} : vector<16x4xf32>, vector<4x128xf32>, vector<16x128xf32> -> vector<16x128xf32>
    %422 = arith.addf %413, %421 : vector<16x128xf32>
    %c18_i32_349 = arith.constant 18 : i32
    %423 = arith.addi %385, %c18_i32_349 : i32
    %c1_i32_350 = arith.constant 1 : i32
    %424 = arith.addi %423, %c1_i32_350 : i32
    %c0_351 = arith.constant 0 : index
    %425 = arith.index_cast %424 : i32 to index
    %c0_352 = arith.constant 0 : index
    %426 = vector.load %arg2[%c0_351, %425, %c0_352] : memref<1x324x4xf32, #tpu.memory_space<vmem>>, vector<1x16x4xf32>
    %427 = vector.shape_cast %426 : vector<1x16x4xf32> to vector<16x4xf32>
    %c4_353 = arith.constant 4 : index
    %c0_354 = arith.constant 0 : index
    %c0_355 = arith.constant 0 : index
    %428 = vector.load %arg3[%c4_353, %c0_354, %c0_355] : memref<9x4x128xf32, #tpu.memory_space<vmem>>, vector<1x4x128xf32>
    %429 = vector.shape_cast %428 : vector<1x4x128xf32> to vector<4x128xf32>
    %cst_356 = arith.constant dense<0.000000e+00> : vector<16x128xf32>
    %430 = tpu.matmul %427, %429, %cst_356 {dimension_numbers = #tpu.dot_dimension_numbers<[1], [0], [0], [1], [0, 0, 1, 1], [], []>} : vector<16x4xf32>, vector<4x128xf32>, vector<16x128xf32> -> vector<16x128xf32>
    %431 = arith.addf %422, %430 : vector<16x128xf32>
    %c18_i32_357 = arith.constant 18 : i32
    %432 = arith.addi %385, %c18_i32_357 : i32
    %c2_i32_358 = arith.constant 2 : i32
    %433 = arith.addi %432, %c2_i32_358 : i32
    %c0_359 = arith.constant 0 : index
    %434 = arith.index_cast %433 : i32 to index
    %c0_360 = arith.constant 0 : index
    %435 = vector.load %arg2[%c0_359, %434, %c0_360] : memref<1x324x4xf32, #tpu.memory_space<vmem>>, vector<1x16x4xf32>
    %436 = vector.shape_cast %435 : vector<1x16x4xf32> to vector<16x4xf32>
    %c5_361 = arith.constant 5 : index
    %c0_362 = arith.constant 0 : index
    %c0_363 = arith.constant 0 : index
    %437 = vector.load %arg3[%c5_361, %c0_362, %c0_363] : memref<9x4x128xf32, #tpu.memory_space<vmem>>, vector<1x4x128xf32>
    %438 = vector.shape_cast %437 : vector<1x4x128xf32> to vector<4x128xf32>
    %cst_364 = arith.constant dense<0.000000e+00> : vector<16x128xf32>
    %439 = tpu.matmul %436, %438, %cst_364 {dimension_numbers = #tpu.dot_dimension_numbers<[1], [0], [0], [1], [0, 0, 1, 1], [], []>} : vector<16x4xf32>, vector<4x128xf32>, vector<16x128xf32> -> vector<16x128xf32>
    %440 = arith.addf %431, %439 : vector<16x128xf32>
    %c36_i32_365 = arith.constant 36 : i32
    %441 = arith.addi %385, %c36_i32_365 : i32
    %c0_i32_366 = arith.constant 0 : i32
    %442 = arith.addi %441, %c0_i32_366 : i32
    %c0_367 = arith.constant 0 : index
    %443 = arith.index_cast %442 : i32 to index
    %c0_368 = arith.constant 0 : index
    %444 = vector.load %arg2[%c0_367, %443, %c0_368] : memref<1x324x4xf32, #tpu.memory_space<vmem>>, vector<1x16x4xf32>
    %445 = vector.shape_cast %444 : vector<1x16x4xf32> to vector<16x4xf32>
    %c6_369 = arith.constant 6 : index
    %c0_370 = arith.constant 0 : index
    %c0_371 = arith.constant 0 : index
    %446 = vector.load %arg3[%c6_369, %c0_370, %c0_371] : memref<9x4x128xf32, #tpu.memory_space<vmem>>, vector<1x4x128xf32>
    %447 = vector.shape_cast %446 : vector<1x4x128xf32> to vector<4x128xf32>
    %cst_372 = arith.constant dense<0.000000e+00> : vector<16x128xf32>
    %448 = tpu.matmul %445, %447, %cst_372 {dimension_numbers = #tpu.dot_dimension_numbers<[1], [0], [0], [1], [0, 0, 1, 1], [], []>} : vector<16x4xf32>, vector<4x128xf32>, vector<16x128xf32> -> vector<16x128xf32>
    %449 = arith.addf %440, %448 : vector<16x128xf32>
    %c36_i32_373 = arith.constant 36 : i32
    %450 = arith.addi %385, %c36_i32_373 : i32
    %c1_i32_374 = arith.constant 1 : i32
    %451 = arith.addi %450, %c1_i32_374 : i32
    %c0_375 = arith.constant 0 : index
    %452 = arith.index_cast %451 : i32 to index
    %c0_376 = arith.constant 0 : index
    %453 = vector.load %arg2[%c0_375, %452, %c0_376] : memref<1x324x4xf32, #tpu.memory_space<vmem>>, vector<1x16x4xf32>
    %454 = vector.shape_cast %453 : vector<1x16x4xf32> to vector<16x4xf32>
    %c7_377 = arith.constant 7 : index
    %c0_378 = arith.constant 0 : index
    %c0_379 = arith.constant 0 : index
    %455 = vector.load %arg3[%c7_377, %c0_378, %c0_379] : memref<9x4x128xf32, #tpu.memory_space<vmem>>, vector<1x4x128xf32>
    %456 = vector.shape_cast %455 : vector<1x4x128xf32> to vector<4x128xf32>
    %cst_380 = arith.constant dense<0.000000e+00> : vector<16x128xf32>
    %457 = tpu.matmul %454, %456, %cst_380 {dimension_numbers = #tpu.dot_dimension_numbers<[1], [0], [0], [1], [0, 0, 1, 1], [], []>} : vector<16x4xf32>, vector<4x128xf32>, vector<16x128xf32> -> vector<16x128xf32>
    %458 = arith.addf %449, %457 : vector<16x128xf32>
    %c36_i32_381 = arith.constant 36 : i32
    %459 = arith.addi %385, %c36_i32_381 : i32
    %c2_i32_382 = arith.constant 2 : i32
    %460 = arith.addi %459, %c2_i32_382 : i32
    %c0_383 = arith.constant 0 : index
    %461 = arith.index_cast %460 : i32 to index
    %c0_384 = arith.constant 0 : index
    %462 = vector.load %arg2[%c0_383, %461, %c0_384] : memref<1x324x4xf32, #tpu.memory_space<vmem>>, vector<1x16x4xf32>
    %463 = vector.shape_cast %462 : vector<1x16x4xf32> to vector<16x4xf32>
    %c8_385 = arith.constant 8 : index
    %c0_386 = arith.constant 0 : index
    %c0_387 = arith.constant 0 : index
    %464 = vector.load %arg3[%c8_385, %c0_386, %c0_387] : memref<9x4x128xf32, #tpu.memory_space<vmem>>, vector<1x4x128xf32>
    %465 = vector.shape_cast %464 : vector<1x4x128xf32> to vector<4x128xf32>
    %cst_388 = arith.constant dense<0.000000e+00> : vector<16x128xf32>
    %466 = tpu.matmul %463, %465, %cst_388 {dimension_numbers = #tpu.dot_dimension_numbers<[1], [0], [0], [1], [0, 0, 1, 1], [], []>} : vector<16x4xf32>, vector<4x128xf32>, vector<16x128xf32> -> vector<16x128xf32>
    %467 = arith.addf %458, %466 : vector<16x128xf32>
    %c0_389 = arith.constant 0 : index
    %c4_390 = arith.constant 4 : index
    %c0_391 = arith.constant 0 : index
    %c0_392 = arith.constant 0 : index
    %468 = vector.load %arg4[%c0_389, %c4_390, %c0_391, %c0_392] : memref<1x8x16x128xf32, #tpu.memory_space<vmem>>, vector<1x1x16x128xf32>
    %469 = vector.shape_cast %468 : vector<1x1x16x128xf32> to vector<16x128xf32>
    %470 = vector.shape_cast %467 : vector<16x128xf32> to vector<1x1x16x128xf32>
    tpu.vector_store %arg4[%c0_389, %c4_390, %c0_391, %c0_392], %470 {strides = array<i32>} : memref<1x8x16x128xf32, #tpu.memory_space<vmem>>, vector<1x1x16x128xf32>,
    %cst_393 = arith.constant dense<0.000000e+00> : vector<128xf32>
    %471 = vector.multi_reduction <add>, %467, %cst_393 [0] : vector<16x128xf32> to vector<128xf32>
    %472 = vector.shape_cast %471 : vector<128xf32> to vector<1x128xf32>
    %473 = arith.addf %378, %472 : vector<1x128xf32>
    %474 = arith.mulf %467, %467 : vector<16x128xf32>
    %cst_394 = arith.constant dense<0.000000e+00> : vector<128xf32>
    %475 = vector.multi_reduction <add>, %474, %cst_394 [0] : vector<16x128xf32> to vector<128xf32>
    %476 = vector.shape_cast %475 : vector<128xf32> to vector<1x128xf32>
    %477 = arith.addf %382, %476 : vector<1x128xf32>
    %c5_i32 = arith.constant 5 : i32
    %478 = arith.addi %2, %c5_i32 : i32
    %c1_i32_395 = arith.constant 1 : i32
    %479 = arith.muli %478, %c1_i32_395 : i32
    %c18_i32_396 = arith.constant 18 : i32
    %480 = arith.muli %479, %c18_i32_396 : i32
    %cst_397 = arith.constant 0.000000e+00 : f32
    %481 = vector.broadcast %cst_397 : f32 to vector<16x128xf32>
    %c0_i32_398 = arith.constant 0 : i32
    %482 = arith.addi %480, %c0_i32_398 : i32
    %c0_i32_399 = arith.constant 0 : i32
    %483 = arith.addi %482, %c0_i32_399 : i32
    %c0_400 = arith.constant 0 : index
    %484 = arith.index_cast %483 : i32 to index
    %c0_401 = arith.constant 0 : index
    %485 = vector.load %arg2[%c0_400, %484, %c0_401] : memref<1x324x4xf32, #tpu.memory_space<vmem>>, vector<1x16x4xf32>
    %486 = vector.shape_cast %485 : vector<1x16x4xf32> to vector<16x4xf32>
    %c0_402 = arith.constant 0 : index
    %c0_403 = arith.constant 0 : index
    %c0_404 = arith.constant 0 : index
    %487 = vector.load %arg3[%c0_402, %c0_403, %c0_404] : memref<9x4x128xf32, #tpu.memory_space<vmem>>, vector<1x4x128xf32>
    %488 = vector.shape_cast %487 : vector<1x4x128xf32> to vector<4x128xf32>
    %cst_405 = arith.constant dense<0.000000e+00> : vector<16x128xf32>
    %489 = tpu.matmul %486, %488, %cst_405 {dimension_numbers = #tpu.dot_dimension_numbers<[1], [0], [0], [1], [0, 0, 1, 1], [], []>} : vector<16x4xf32>, vector<4x128xf32>, vector<16x128xf32> -> vector<16x128xf32>
    %490 = arith.addf %481, %489 : vector<16x128xf32>
    %c0_i32_406 = arith.constant 0 : i32
    %491 = arith.addi %480, %c0_i32_406 : i32
    %c1_i32_407 = arith.constant 1 : i32
    %492 = arith.addi %491, %c1_i32_407 : i32
    %c0_408 = arith.constant 0 : index
    %493 = arith.index_cast %492 : i32 to index
    %c0_409 = arith.constant 0 : index
    %494 = vector.load %arg2[%c0_408, %493, %c0_409] : memref<1x324x4xf32, #tpu.memory_space<vmem>>, vector<1x16x4xf32>
    %495 = vector.shape_cast %494 : vector<1x16x4xf32> to vector<16x4xf32>
    %c1_410 = arith.constant 1 : index
    %c0_411 = arith.constant 0 : index
    %c0_412 = arith.constant 0 : index
    %496 = vector.load %arg3[%c1_410, %c0_411, %c0_412] : memref<9x4x128xf32, #tpu.memory_space<vmem>>, vector<1x4x128xf32>
    %497 = vector.shape_cast %496 : vector<1x4x128xf32> to vector<4x128xf32>
    %cst_413 = arith.constant dense<0.000000e+00> : vector<16x128xf32>
    %498 = tpu.matmul %495, %497, %cst_413 {dimension_numbers = #tpu.dot_dimension_numbers<[1], [0], [0], [1], [0, 0, 1, 1], [], []>} : vector<16x4xf32>, vector<4x128xf32>, vector<16x128xf32> -> vector<16x128xf32>
    %499 = arith.addf %490, %498 : vector<16x128xf32>
    %c0_i32_414 = arith.constant 0 : i32
    %500 = arith.addi %480, %c0_i32_414 : i32
    %c2_i32_415 = arith.constant 2 : i32
    %501 = arith.addi %500, %c2_i32_415 : i32
    %c0_416 = arith.constant 0 : index
    %502 = arith.index_cast %501 : i32 to index
    %c0_417 = arith.constant 0 : index
    %503 = vector.load %arg2[%c0_416, %502, %c0_417] : memref<1x324x4xf32, #tpu.memory_space<vmem>>, vector<1x16x4xf32>
    %504 = vector.shape_cast %503 : vector<1x16x4xf32> to vector<16x4xf32>
    %c2_418 = arith.constant 2 : index
    %c0_419 = arith.constant 0 : index
    %c0_420 = arith.constant 0 : index
    %505 = vector.load %arg3[%c2_418, %c0_419, %c0_420] : memref<9x4x128xf32, #tpu.memory_space<vmem>>, vector<1x4x128xf32>
    %506 = vector.shape_cast %505 : vector<1x4x128xf32> to vector<4x128xf32>
    %cst_421 = arith.constant dense<0.000000e+00> : vector<16x128xf32>
    %507 = tpu.matmul %504, %506, %cst_421 {dimension_numbers = #tpu.dot_dimension_numbers<[1], [0], [0], [1], [0, 0, 1, 1], [], []>} : vector<16x4xf32>, vector<4x128xf32>, vector<16x128xf32> -> vector<16x128xf32>
    %508 = arith.addf %499, %507 : vector<16x128xf32>
    %c18_i32_422 = arith.constant 18 : i32
    %509 = arith.addi %480, %c18_i32_422 : i32
    %c0_i32_423 = arith.constant 0 : i32
    %510 = arith.addi %509, %c0_i32_423 : i32
    %c0_424 = arith.constant 0 : index
    %511 = arith.index_cast %510 : i32 to index
    %c0_425 = arith.constant 0 : index
    %512 = vector.load %arg2[%c0_424, %511, %c0_425] : memref<1x324x4xf32, #tpu.memory_space<vmem>>, vector<1x16x4xf32>
    %513 = vector.shape_cast %512 : vector<1x16x4xf32> to vector<16x4xf32>
    %c3_426 = arith.constant 3 : index
    %c0_427 = arith.constant 0 : index
    %c0_428 = arith.constant 0 : index
    %514 = vector.load %arg3[%c3_426, %c0_427, %c0_428] : memref<9x4x128xf32, #tpu.memory_space<vmem>>, vector<1x4x128xf32>
    %515 = vector.shape_cast %514 : vector<1x4x128xf32> to vector<4x128xf32>
    %cst_429 = arith.constant dense<0.000000e+00> : vector<16x128xf32>
    %516 = tpu.matmul %513, %515, %cst_429 {dimension_numbers = #tpu.dot_dimension_numbers<[1], [0], [0], [1], [0, 0, 1, 1], [], []>} : vector<16x4xf32>, vector<4x128xf32>, vector<16x128xf32> -> vector<16x128xf32>
    %517 = arith.addf %508, %516 : vector<16x128xf32>
    %c18_i32_430 = arith.constant 18 : i32
    %518 = arith.addi %480, %c18_i32_430 : i32
    %c1_i32_431 = arith.constant 1 : i32
    %519 = arith.addi %518, %c1_i32_431 : i32
    %c0_432 = arith.constant 0 : index
    %520 = arith.index_cast %519 : i32 to index
    %c0_433 = arith.constant 0 : index
    %521 = vector.load %arg2[%c0_432, %520, %c0_433] : memref<1x324x4xf32, #tpu.memory_space<vmem>>, vector<1x16x4xf32>
    %522 = vector.shape_cast %521 : vector<1x16x4xf32> to vector<16x4xf32>
    %c4_434 = arith.constant 4 : index
    %c0_435 = arith.constant 0 : index
    %c0_436 = arith.constant 0 : index
    %523 = vector.load %arg3[%c4_434, %c0_435, %c0_436] : memref<9x4x128xf32, #tpu.memory_space<vmem>>, vector<1x4x128xf32>
    %524 = vector.shape_cast %523 : vector<1x4x128xf32> to vector<4x128xf32>
    %cst_437 = arith.constant dense<0.000000e+00> : vector<16x128xf32>
    %525 = tpu.matmul %522, %524, %cst_437 {dimension_numbers = #tpu.dot_dimension_numbers<[1], [0], [0], [1], [0, 0, 1, 1], [], []>} : vector<16x4xf32>, vector<4x128xf32>, vector<16x128xf32> -> vector<16x128xf32>
    %526 = arith.addf %517, %525 : vector<16x128xf32>
    %c18_i32_438 = arith.constant 18 : i32
    %527 = arith.addi %480, %c18_i32_438 : i32
    %c2_i32_439 = arith.constant 2 : i32
    %528 = arith.addi %527, %c2_i32_439 : i32
    %c0_440 = arith.constant 0 : index
    %529 = arith.index_cast %528 : i32 to index
    %c0_441 = arith.constant 0 : index
    %530 = vector.load %arg2[%c0_440, %529, %c0_441] : memref<1x324x4xf32, #tpu.memory_space<vmem>>, vector<1x16x4xf32>
    %531 = vector.shape_cast %530 : vector<1x16x4xf32> to vector<16x4xf32>
    %c5_442 = arith.constant 5 : index
    %c0_443 = arith.constant 0 : index
    %c0_444 = arith.constant 0 : index
    %532 = vector.load %arg3[%c5_442, %c0_443, %c0_444] : memref<9x4x128xf32, #tpu.memory_space<vmem>>, vector<1x4x128xf32>
    %533 = vector.shape_cast %532 : vector<1x4x128xf32> to vector<4x128xf32>
    %cst_445 = arith.constant dense<0.000000e+00> : vector<16x128xf32>
    %534 = tpu.matmul %531, %533, %cst_445 {dimension_numbers = #tpu.dot_dimension_numbers<[1], [0], [0], [1], [0, 0, 1, 1], [], []>} : vector<16x4xf32>, vector<4x128xf32>, vector<16x128xf32> -> vector<16x128xf32>
    %535 = arith.addf %526, %534 : vector<16x128xf32>
    %c36_i32_446 = arith.constant 36 : i32
    %536 = arith.addi %480, %c36_i32_446 : i32
    %c0_i32_447 = arith.constant 0 : i32
    %537 = arith.addi %536, %c0_i32_447 : i32
    %c0_448 = arith.constant 0 : index
    %538 = arith.index_cast %537 : i32 to index
    %c0_449 = arith.constant 0 : index
    %539 = vector.load %arg2[%c0_448, %538, %c0_449] : memref<1x324x4xf32, #tpu.memory_space<vmem>>, vector<1x16x4xf32>
    %540 = vector.shape_cast %539 : vector<1x16x4xf32> to vector<16x4xf32>
    %c6_450 = arith.constant 6 : index
    %c0_451 = arith.constant 0 : index
    %c0_452 = arith.constant 0 : index
    %541 = vector.load %arg3[%c6_450, %c0_451, %c0_452] : memref<9x4x128xf32, #tpu.memory_space<vmem>>, vector<1x4x128xf32>
    %542 = vector.shape_cast %541 : vector<1x4x128xf32> to vector<4x128xf32>
    %cst_453 = arith.constant dense<0.000000e+00> : vector<16x128xf32>
    %543 = tpu.matmul %540, %542, %cst_453 {dimension_numbers = #tpu.dot_dimension_numbers<[1], [0], [0], [1], [0, 0, 1, 1], [], []>} : vector<16x4xf32>, vector<4x128xf32>, vector<16x128xf32> -> vector<16x128xf32>
    %544 = arith.addf %535, %543 : vector<16x128xf32>
    %c36_i32_454 = arith.constant 36 : i32
    %545 = arith.addi %480, %c36_i32_454 : i32
    %c1_i32_455 = arith.constant 1 : i32
    %546 = arith.addi %545, %c1_i32_455 : i32
    %c0_456 = arith.constant 0 : index
    %547 = arith.index_cast %546 : i32 to index
    %c0_457 = arith.constant 0 : index
    %548 = vector.load %arg2[%c0_456, %547, %c0_457] : memref<1x324x4xf32, #tpu.memory_space<vmem>>, vector<1x16x4xf32>
    %549 = vector.shape_cast %548 : vector<1x16x4xf32> to vector<16x4xf32>
    %c7_458 = arith.constant 7 : index
    %c0_459 = arith.constant 0 : index
    %c0_460 = arith.constant 0 : index
    %550 = vector.load %arg3[%c7_458, %c0_459, %c0_460] : memref<9x4x128xf32, #tpu.memory_space<vmem>>, vector<1x4x128xf32>
    %551 = vector.shape_cast %550 : vector<1x4x128xf32> to vector<4x128xf32>
    %cst_461 = arith.constant dense<0.000000e+00> : vector<16x128xf32>
    %552 = tpu.matmul %549, %551, %cst_461 {dimension_numbers = #tpu.dot_dimension_numbers<[1], [0], [0], [1], [0, 0, 1, 1], [], []>} : vector<16x4xf32>, vector<4x128xf32>, vector<16x128xf32> -> vector<16x128xf32>
    %553 = arith.addf %544, %552 : vector<16x128xf32>
    %c36_i32_462 = arith.constant 36 : i32
    %554 = arith.addi %480, %c36_i32_462 : i32
    %c2_i32_463 = arith.constant 2 : i32
    %555 = arith.addi %554, %c2_i32_463 : i32
    %c0_464 = arith.constant 0 : index
    %556 = arith.index_cast %555 : i32 to index
    %c0_465 = arith.constant 0 : index
    %557 = vector.load %arg2[%c0_464, %556, %c0_465] : memref<1x324x4xf32, #tpu.memory_space<vmem>>, vector<1x16x4xf32>
    %558 = vector.shape_cast %557 : vector<1x16x4xf32> to vector<16x4xf32>
    %c8_466 = arith.constant 8 : index
    %c0_467 = arith.constant 0 : index
    %c0_468 = arith.constant 0 : index
    %559 = vector.load %arg3[%c8_466, %c0_467, %c0_468] : memref<9x4x128xf32, #tpu.memory_space<vmem>>, vector<1x4x128xf32>
    %560 = vector.shape_cast %559 : vector<1x4x128xf32> to vector<4x128xf32>
    %cst_469 = arith.constant dense<0.000000e+00> : vector<16x128xf32>
    %561 = tpu.matmul %558, %560, %cst_469 {dimension_numbers = #tpu.dot_dimension_numbers<[1], [0], [0], [1], [0, 0, 1, 1], [], []>} : vector<16x4xf32>, vector<4x128xf32>, vector<16x128xf32> -> vector<16x128xf32>
    %562 = arith.addf %553, %561 : vector<16x128xf32>
    %c0_470 = arith.constant 0 : index
    %c5_471 = arith.constant 5 : index
    %c0_472 = arith.constant 0 : index
    %c0_473 = arith.constant 0 : index
    %563 = vector.load %arg4[%c0_470, %c5_471, %c0_472, %c0_473] : memref<1x8x16x128xf32, #tpu.memory_space<vmem>>, vector<1x1x16x128xf32>
    %564 = vector.shape_cast %563 : vector<1x1x16x128xf32> to vector<16x128xf32>
    %565 = vector.shape_cast %562 : vector<16x128xf32> to vector<1x1x16x128xf32>
    tpu.vector_store %arg4[%c0_470, %c5_471, %c0_472, %c0_473], %565 {strides = array<i32>} : memref<1x8x16x128xf32, #tpu.memory_space<vmem>>, vector<1x1x16x128xf32>,
    %cst_474 = arith.constant dense<0.000000e+00> : vector<128xf32>
    %566 = vector.multi_reduction <add>, %562, %cst_474 [0] : vector<16x128xf32> to vector<128xf32>
    %567 = vector.shape_cast %566 : vector<128xf32> to vector<1x128xf32>
    %568 = arith.addf %473, %567 : vector<1x128xf32>
    %569 = arith.mulf %562, %562 : vector<16x128xf32>
    %cst_475 = arith.constant dense<0.000000e+00> : vector<128xf32>
    %570 = vector.multi_reduction <add>, %569, %cst_475 [0] : vector<16x128xf32> to vector<128xf32>
    %571 = vector.shape_cast %570 : vector<128xf32> to vector<1x128xf32>
    %572 = arith.addf %477, %571 : vector<1x128xf32>
    %c6_i32 = arith.constant 6 : i32
    %573 = arith.addi %2, %c6_i32 : i32
    %c1_i32_476 = arith.constant 1 : i32
    %574 = arith.muli %573, %c1_i32_476 : i32
    %c18_i32_477 = arith.constant 18 : i32
    %575 = arith.muli %574, %c18_i32_477 : i32
    %cst_478 = arith.constant 0.000000e+00 : f32
    %576 = vector.broadcast %cst_478 : f32 to vector<16x128xf32>
    %c0_i32_479 = arith.constant 0 : i32
    %577 = arith.addi %575, %c0_i32_479 : i32
    %c0_i32_480 = arith.constant 0 : i32
    %578 = arith.addi %577, %c0_i32_480 : i32
    %c0_481 = arith.constant 0 : index
    %579 = arith.index_cast %578 : i32 to index
    %c0_482 = arith.constant 0 : index
    %580 = vector.load %arg2[%c0_481, %579, %c0_482] : memref<1x324x4xf32, #tpu.memory_space<vmem>>, vector<1x16x4xf32>
    %581 = vector.shape_cast %580 : vector<1x16x4xf32> to vector<16x4xf32>
    %c0_483 = arith.constant 0 : index
    %c0_484 = arith.constant 0 : index
    %c0_485 = arith.constant 0 : index
    %582 = vector.load %arg3[%c0_483, %c0_484, %c0_485] : memref<9x4x128xf32, #tpu.memory_space<vmem>>, vector<1x4x128xf32>
    %583 = vector.shape_cast %582 : vector<1x4x128xf32> to vector<4x128xf32>
    %cst_486 = arith.constant dense<0.000000e+00> : vector<16x128xf32>
    %584 = tpu.matmul %581, %583, %cst_486 {dimension_numbers = #tpu.dot_dimension_numbers<[1], [0], [0], [1], [0, 0, 1, 1], [], []>} : vector<16x4xf32>, vector<4x128xf32>, vector<16x128xf32> -> vector<16x128xf32>
    %585 = arith.addf %576, %584 : vector<16x128xf32>
    %c0_i32_487 = arith.constant 0 : i32
    %586 = arith.addi %575, %c0_i32_487 : i32
    %c1_i32_488 = arith.constant 1 : i32
    %587 = arith.addi %586, %c1_i32_488 : i32
    %c0_489 = arith.constant 0 : index
    %588 = arith.index_cast %587 : i32 to index
    %c0_490 = arith.constant 0 : index
    %589 = vector.load %arg2[%c0_489, %588, %c0_490] : memref<1x324x4xf32, #tpu.memory_space<vmem>>, vector<1x16x4xf32>
    %590 = vector.shape_cast %589 : vector<1x16x4xf32> to vector<16x4xf32>
    %c1_491 = arith.constant 1 : index
    %c0_492 = arith.constant 0 : index
    %c0_493 = arith.constant 0 : index
    %591 = vector.load %arg3[%c1_491, %c0_492, %c0_493] : memref<9x4x128xf32, #tpu.memory_space<vmem>>, vector<1x4x128xf32>
    %592 = vector.shape_cast %591 : vector<1x4x128xf32> to vector<4x128xf32>
    %cst_494 = arith.constant dense<0.000000e+00> : vector<16x128xf32>
    %593 = tpu.matmul %590, %592, %cst_494 {dimension_numbers = #tpu.dot_dimension_numbers<[1], [0], [0], [1], [0, 0, 1, 1], [], []>} : vector<16x4xf32>, vector<4x128xf32>, vector<16x128xf32> -> vector<16x128xf32>
    %594 = arith.addf %585, %593 : vector<16x128xf32>
    %c0_i32_495 = arith.constant 0 : i32
    %595 = arith.addi %575, %c0_i32_495 : i32
    %c2_i32_496 = arith.constant 2 : i32
    %596 = arith.addi %595, %c2_i32_496 : i32
    %c0_497 = arith.constant 0 : index
    %597 = arith.index_cast %596 : i32 to index
    %c0_498 = arith.constant 0 : index
    %598 = vector.load %arg2[%c0_497, %597, %c0_498] : memref<1x324x4xf32, #tpu.memory_space<vmem>>, vector<1x16x4xf32>
    %599 = vector.shape_cast %598 : vector<1x16x4xf32> to vector<16x4xf32>
    %c2_499 = arith.constant 2 : index
    %c0_500 = arith.constant 0 : index
    %c0_501 = arith.constant 0 : index
    %600 = vector.load %arg3[%c2_499, %c0_500, %c0_501] : memref<9x4x128xf32, #tpu.memory_space<vmem>>, vector<1x4x128xf32>
    %601 = vector.shape_cast %600 : vector<1x4x128xf32> to vector<4x128xf32>
    %cst_502 = arith.constant dense<0.000000e+00> : vector<16x128xf32>
    %602 = tpu.matmul %599, %601, %cst_502 {dimension_numbers = #tpu.dot_dimension_numbers<[1], [0], [0], [1], [0, 0, 1, 1], [], []>} : vector<16x4xf32>, vector<4x128xf32>, vector<16x128xf32> -> vector<16x128xf32>
    %603 = arith.addf %594, %602 : vector<16x128xf32>
    %c18_i32_503 = arith.constant 18 : i32
    %604 = arith.addi %575, %c18_i32_503 : i32
    %c0_i32_504 = arith.constant 0 : i32
    %605 = arith.addi %604, %c0_i32_504 : i32
    %c0_505 = arith.constant 0 : index
    %606 = arith.index_cast %605 : i32 to index
    %c0_506 = arith.constant 0 : index
    %607 = vector.load %arg2[%c0_505, %606, %c0_506] : memref<1x324x4xf32, #tpu.memory_space<vmem>>, vector<1x16x4xf32>
    %608 = vector.shape_cast %607 : vector<1x16x4xf32> to vector<16x4xf32>
    %c3_507 = arith.constant 3 : index
    %c0_508 = arith.constant 0 : index
    %c0_509 = arith.constant 0 : index
    %609 = vector.load %arg3[%c3_507, %c0_508, %c0_509] : memref<9x4x128xf32, #tpu.memory_space<vmem>>, vector<1x4x128xf32>
    %610 = vector.shape_cast %609 : vector<1x4x128xf32> to vector<4x128xf32>
    %cst_510 = arith.constant dense<0.000000e+00> : vector<16x128xf32>
    %611 = tpu.matmul %608, %610, %cst_510 {dimension_numbers = #tpu.dot_dimension_numbers<[1], [0], [0], [1], [0, 0, 1, 1], [], []>} : vector<16x4xf32>, vector<4x128xf32>, vector<16x128xf32> -> vector<16x128xf32>
    %612 = arith.addf %603, %611 : vector<16x128xf32>
    %c18_i32_511 = arith.constant 18 : i32
    %613 = arith.addi %575, %c18_i32_511 : i32
    %c1_i32_512 = arith.constant 1 : i32
    %614 = arith.addi %613, %c1_i32_512 : i32
    %c0_513 = arith.constant 0 : index
    %615 = arith.index_cast %614 : i32 to index
    %c0_514 = arith.constant 0 : index
    %616 = vector.load %arg2[%c0_513, %615, %c0_514] : memref<1x324x4xf32, #tpu.memory_space<vmem>>, vector<1x16x4xf32>
    %617 = vector.shape_cast %616 : vector<1x16x4xf32> to vector<16x4xf32>
    %c4_515 = arith.constant 4 : index
    %c0_516 = arith.constant 0 : index
    %c0_517 = arith.constant 0 : index
    %618 = vector.load %arg3[%c4_515, %c0_516, %c0_517] : memref<9x4x128xf32, #tpu.memory_space<vmem>>, vector<1x4x128xf32>
    %619 = vector.shape_cast %618 : vector<1x4x128xf32> to vector<4x128xf32>
    %cst_518 = arith.constant dense<0.000000e+00> : vector<16x128xf32>
    %620 = tpu.matmul %617, %619, %cst_518 {dimension_numbers = #tpu.dot_dimension_numbers<[1], [0], [0], [1], [0, 0, 1, 1], [], []>} : vector<16x4xf32>, vector<4x128xf32>, vector<16x128xf32> -> vector<16x128xf32>
    %621 = arith.addf %612, %620 : vector<16x128xf32>
    %c18_i32_519 = arith.constant 18 : i32
    %622 = arith.addi %575, %c18_i32_519 : i32
    %c2_i32_520 = arith.constant 2 : i32
    %623 = arith.addi %622, %c2_i32_520 : i32
    %c0_521 = arith.constant 0 : index
    %624 = arith.index_cast %623 : i32 to index
    %c0_522 = arith.constant 0 : index
    %625 = vector.load %arg2[%c0_521, %624, %c0_522] : memref<1x324x4xf32, #tpu.memory_space<vmem>>, vector<1x16x4xf32>
    %626 = vector.shape_cast %625 : vector<1x16x4xf32> to vector<16x4xf32>
    %c5_523 = arith.constant 5 : index
    %c0_524 = arith.constant 0 : index
    %c0_525 = arith.constant 0 : index
    %627 = vector.load %arg3[%c5_523, %c0_524, %c0_525] : memref<9x4x128xf32, #tpu.memory_space<vmem>>, vector<1x4x128xf32>
    %628 = vector.shape_cast %627 : vector<1x4x128xf32> to vector<4x128xf32>
    %cst_526 = arith.constant dense<0.000000e+00> : vector<16x128xf32>
    %629 = tpu.matmul %626, %628, %cst_526 {dimension_numbers = #tpu.dot_dimension_numbers<[1], [0], [0], [1], [0, 0, 1, 1], [], []>} : vector<16x4xf32>, vector<4x128xf32>, vector<16x128xf32> -> vector<16x128xf32>
    %630 = arith.addf %621, %629 : vector<16x128xf32>
    %c36_i32_527 = arith.constant 36 : i32
    %631 = arith.addi %575, %c36_i32_527 : i32
    %c0_i32_528 = arith.constant 0 : i32
    %632 = arith.addi %631, %c0_i32_528 : i32
    %c0_529 = arith.constant 0 : index
    %633 = arith.index_cast %632 : i32 to index
    %c0_530 = arith.constant 0 : index
    %634 = vector.load %arg2[%c0_529, %633, %c0_530] : memref<1x324x4xf32, #tpu.memory_space<vmem>>, vector<1x16x4xf32>
    %635 = vector.shape_cast %634 : vector<1x16x4xf32> to vector<16x4xf32>
    %c6_531 = arith.constant 6 : index
    %c0_532 = arith.constant 0 : index
    %c0_533 = arith.constant 0 : index
    %636 = vector.load %arg3[%c6_531, %c0_532, %c0_533] : memref<9x4x128xf32, #tpu.memory_space<vmem>>, vector<1x4x128xf32>
    %637 = vector.shape_cast %636 : vector<1x4x128xf32> to vector<4x128xf32>
    %cst_534 = arith.constant dense<0.000000e+00> : vector<16x128xf32>
    %638 = tpu.matmul %635, %637, %cst_534 {dimension_numbers = #tpu.dot_dimension_numbers<[1], [0], [0], [1], [0, 0, 1, 1], [], []>} : vector<16x4xf32>, vector<4x128xf32>, vector<16x128xf32> -> vector<16x128xf32>
    %639 = arith.addf %630, %638 : vector<16x128xf32>
    %c36_i32_535 = arith.constant 36 : i32
    %640 = arith.addi %575, %c36_i32_535 : i32
    %c1_i32_536 = arith.constant 1 : i32
    %641 = arith.addi %640, %c1_i32_536 : i32
    %c0_537 = arith.constant 0 : index
    %642 = arith.index_cast %641 : i32 to index
    %c0_538 = arith.constant 0 : index
    %643 = vector.load %arg2[%c0_537, %642, %c0_538] : memref<1x324x4xf32, #tpu.memory_space<vmem>>, vector<1x16x4xf32>
    %644 = vector.shape_cast %643 : vector<1x16x4xf32> to vector<16x4xf32>
    %c7_539 = arith.constant 7 : index
    %c0_540 = arith.constant 0 : index
    %c0_541 = arith.constant 0 : index
    %645 = vector.load %arg3[%c7_539, %c0_540, %c0_541] : memref<9x4x128xf32, #tpu.memory_space<vmem>>, vector<1x4x128xf32>
    %646 = vector.shape_cast %645 : vector<1x4x128xf32> to vector<4x128xf32>
    %cst_542 = arith.constant dense<0.000000e+00> : vector<16x128xf32>
    %647 = tpu.matmul %644, %646, %cst_542 {dimension_numbers = #tpu.dot_dimension_numbers<[1], [0], [0], [1], [0, 0, 1, 1], [], []>} : vector<16x4xf32>, vector<4x128xf32>, vector<16x128xf32> -> vector<16x128xf32>
    %648 = arith.addf %639, %647 : vector<16x128xf32>
    %c36_i32_543 = arith.constant 36 : i32
    %649 = arith.addi %575, %c36_i32_543 : i32
    %c2_i32_544 = arith.constant 2 : i32
    %650 = arith.addi %649, %c2_i32_544 : i32
    %c0_545 = arith.constant 0 : index
    %651 = arith.index_cast %650 : i32 to index
    %c0_546 = arith.constant 0 : index
    %652 = vector.load %arg2[%c0_545, %651, %c0_546] : memref<1x324x4xf32, #tpu.memory_space<vmem>>, vector<1x16x4xf32>
    %653 = vector.shape_cast %652 : vector<1x16x4xf32> to vector<16x4xf32>
    %c8_547 = arith.constant 8 : index
    %c0_548 = arith.constant 0 : index
    %c0_549 = arith.constant 0 : index
    %654 = vector.load %arg3[%c8_547, %c0_548, %c0_549] : memref<9x4x128xf32, #tpu.memory_space<vmem>>, vector<1x4x128xf32>
    %655 = vector.shape_cast %654 : vector<1x4x128xf32> to vector<4x128xf32>
    %cst_550 = arith.constant dense<0.000000e+00> : vector<16x128xf32>
    %656 = tpu.matmul %653, %655, %cst_550 {dimension_numbers = #tpu.dot_dimension_numbers<[1], [0], [0], [1], [0, 0, 1, 1], [], []>} : vector<16x4xf32>, vector<4x128xf32>, vector<16x128xf32> -> vector<16x128xf32>
    %657 = arith.addf %648, %656 : vector<16x128xf32>
    %c0_551 = arith.constant 0 : index
    %c6_552 = arith.constant 6 : index
    %c0_553 = arith.constant 0 : index
    %c0_554 = arith.constant 0 : index
    %658 = vector.load %arg4[%c0_551, %c6_552, %c0_553, %c0_554] : memref<1x8x16x128xf32, #tpu.memory_space<vmem>>, vector<1x1x16x128xf32>
    %659 = vector.shape_cast %658 : vector<1x1x16x128xf32> to vector<16x128xf32>
    %660 = vector.shape_cast %657 : vector<16x128xf32> to vector<1x1x16x128xf32>
    tpu.vector_store %arg4[%c0_551, %c6_552, %c0_553, %c0_554], %660 {strides = array<i32>} : memref<1x8x16x128xf32, #tpu.memory_space<vmem>>, vector<1x1x16x128xf32>,
    %cst_555 = arith.constant dense<0.000000e+00> : vector<128xf32>
    %661 = vector.multi_reduction <add>, %657, %cst_555 [0] : vector<16x128xf32> to vector<128xf32>
    %662 = vector.shape_cast %661 : vector<128xf32> to vector<1x128xf32>
    %663 = arith.addf %568, %662 : vector<1x128xf32>
    %664 = arith.mulf %657, %657 : vector<16x128xf32>
    %cst_556 = arith.constant dense<0.000000e+00> : vector<128xf32>
    %665 = vector.multi_reduction <add>, %664, %cst_556 [0] : vector<16x128xf32> to vector<128xf32>
    %666 = vector.shape_cast %665 : vector<128xf32> to vector<1x128xf32>
    %667 = arith.addf %572, %666 : vector<1x128xf32>
    %c7_i32 = arith.constant 7 : i32
    %668 = arith.addi %2, %c7_i32 : i32
    %c1_i32_557 = arith.constant 1 : i32
    %669 = arith.muli %668, %c1_i32_557 : i32
    %c18_i32_558 = arith.constant 18 : i32
    %670 = arith.muli %669, %c18_i32_558 : i32
    %cst_559 = arith.constant 0.000000e+00 : f32
    %671 = vector.broadcast %cst_559 : f32 to vector<16x128xf32>
    %c0_i32_560 = arith.constant 0 : i32
    %672 = arith.addi %670, %c0_i32_560 : i32
    %c0_i32_561 = arith.constant 0 : i32
    %673 = arith.addi %672, %c0_i32_561 : i32
    %c0_562 = arith.constant 0 : index
    %674 = arith.index_cast %673 : i32 to index
    %c0_563 = arith.constant 0 : index
    %675 = vector.load %arg2[%c0_562, %674, %c0_563] : memref<1x324x4xf32, #tpu.memory_space<vmem>>, vector<1x16x4xf32>
    %676 = vector.shape_cast %675 : vector<1x16x4xf32> to vector<16x4xf32>
    %c0_564 = arith.constant 0 : index
    %c0_565 = arith.constant 0 : index
    %c0_566 = arith.constant 0 : index
    %677 = vector.load %arg3[%c0_564, %c0_565, %c0_566] : memref<9x4x128xf32, #tpu.memory_space<vmem>>, vector<1x4x128xf32>
    %678 = vector.shape_cast %677 : vector<1x4x128xf32> to vector<4x128xf32>
    %cst_567 = arith.constant dense<0.000000e+00> : vector<16x128xf32>
    %679 = tpu.matmul %676, %678, %cst_567 {dimension_numbers = #tpu.dot_dimension_numbers<[1], [0], [0], [1], [0, 0, 1, 1], [], []>} : vector<16x4xf32>, vector<4x128xf32>, vector<16x128xf32> -> vector<16x128xf32>
    %680 = arith.addf %671, %679 : vector<16x128xf32>
    %c0_i32_568 = arith.constant 0 : i32
    %681 = arith.addi %670, %c0_i32_568 : i32
    %c1_i32_569 = arith.constant 1 : i32
    %682 = arith.addi %681, %c1_i32_569 : i32
    %c0_570 = arith.constant 0 : index
    %683 = arith.index_cast %682 : i32 to index
    %c0_571 = arith.constant 0 : index
    %684 = vector.load %arg2[%c0_570, %683, %c0_571] : memref<1x324x4xf32, #tpu.memory_space<vmem>>, vector<1x16x4xf32>
    %685 = vector.shape_cast %684 : vector<1x16x4xf32> to vector<16x4xf32>
    %c1_572 = arith.constant 1 : index
    %c0_573 = arith.constant 0 : index
    %c0_574 = arith.constant 0 : index
    %686 = vector.load %arg3[%c1_572, %c0_573, %c0_574] : memref<9x4x128xf32, #tpu.memory_space<vmem>>, vector<1x4x128xf32>
    %687 = vector.shape_cast %686 : vector<1x4x128xf32> to vector<4x128xf32>
    %cst_575 = arith.constant dense<0.000000e+00> : vector<16x128xf32>
    %688 = tpu.matmul %685, %687, %cst_575 {dimension_numbers = #tpu.dot_dimension_numbers<[1], [0], [0], [1], [0, 0, 1, 1], [], []>} : vector<16x4xf32>, vector<4x128xf32>, vector<16x128xf32> -> vector<16x128xf32>
    %689 = arith.addf %680, %688 : vector<16x128xf32>
    %c0_i32_576 = arith.constant 0 : i32
    %690 = arith.addi %670, %c0_i32_576 : i32
    %c2_i32_577 = arith.constant 2 : i32
    %691 = arith.addi %690, %c2_i32_577 : i32
    %c0_578 = arith.constant 0 : index
    %692 = arith.index_cast %691 : i32 to index
    %c0_579 = arith.constant 0 : index
    %693 = vector.load %arg2[%c0_578, %692, %c0_579] : memref<1x324x4xf32, #tpu.memory_space<vmem>>, vector<1x16x4xf32>
    %694 = vector.shape_cast %693 : vector<1x16x4xf32> to vector<16x4xf32>
    %c2_580 = arith.constant 2 : index
    %c0_581 = arith.constant 0 : index
    %c0_582 = arith.constant 0 : index
    %695 = vector.load %arg3[%c2_580, %c0_581, %c0_582] : memref<9x4x128xf32, #tpu.memory_space<vmem>>, vector<1x4x128xf32>
    %696 = vector.shape_cast %695 : vector<1x4x128xf32> to vector<4x128xf32>
    %cst_583 = arith.constant dense<0.000000e+00> : vector<16x128xf32>
    %697 = tpu.matmul %694, %696, %cst_583 {dimension_numbers = #tpu.dot_dimension_numbers<[1], [0], [0], [1], [0, 0, 1, 1], [], []>} : vector<16x4xf32>, vector<4x128xf32>, vector<16x128xf32> -> vector<16x128xf32>
    %698 = arith.addf %689, %697 : vector<16x128xf32>
    %c18_i32_584 = arith.constant 18 : i32
    %699 = arith.addi %670, %c18_i32_584 : i32
    %c0_i32_585 = arith.constant 0 : i32
    %700 = arith.addi %699, %c0_i32_585 : i32
    %c0_586 = arith.constant 0 : index
    %701 = arith.index_cast %700 : i32 to index
    %c0_587 = arith.constant 0 : index
    %702 = vector.load %arg2[%c0_586, %701, %c0_587] : memref<1x324x4xf32, #tpu.memory_space<vmem>>, vector<1x16x4xf32>
    %703 = vector.shape_cast %702 : vector<1x16x4xf32> to vector<16x4xf32>
    %c3_588 = arith.constant 3 : index
    %c0_589 = arith.constant 0 : index
    %c0_590 = arith.constant 0 : index
    %704 = vector.load %arg3[%c3_588, %c0_589, %c0_590] : memref<9x4x128xf32, #tpu.memory_space<vmem>>, vector<1x4x128xf32>
    %705 = vector.shape_cast %704 : vector<1x4x128xf32> to vector<4x128xf32>
    %cst_591 = arith.constant dense<0.000000e+00> : vector<16x128xf32>
    %706 = tpu.matmul %703, %705, %cst_591 {dimension_numbers = #tpu.dot_dimension_numbers<[1], [0], [0], [1], [0, 0, 1, 1], [], []>} : vector<16x4xf32>, vector<4x128xf32>, vector<16x128xf32> -> vector<16x128xf32>
    %707 = arith.addf %698, %706 : vector<16x128xf32>
    %c18_i32_592 = arith.constant 18 : i32
    %708 = arith.addi %670, %c18_i32_592 : i32
    %c1_i32_593 = arith.constant 1 : i32
    %709 = arith.addi %708, %c1_i32_593 : i32
    %c0_594 = arith.constant 0 : index
    %710 = arith.index_cast %709 : i32 to index
    %c0_595 = arith.constant 0 : index
    %711 = vector.load %arg2[%c0_594, %710, %c0_595] : memref<1x324x4xf32, #tpu.memory_space<vmem>>, vector<1x16x4xf32>
    %712 = vector.shape_cast %711 : vector<1x16x4xf32> to vector<16x4xf32>
    %c4_596 = arith.constant 4 : index
    %c0_597 = arith.constant 0 : index
    %c0_598 = arith.constant 0 : index
    %713 = vector.load %arg3[%c4_596, %c0_597, %c0_598] : memref<9x4x128xf32, #tpu.memory_space<vmem>>, vector<1x4x128xf32>
    %714 = vector.shape_cast %713 : vector<1x4x128xf32> to vector<4x128xf32>
    %cst_599 = arith.constant dense<0.000000e+00> : vector<16x128xf32>
    %715 = tpu.matmul %712, %714, %cst_599 {dimension_numbers = #tpu.dot_dimension_numbers<[1], [0], [0], [1], [0, 0, 1, 1], [], []>} : vector<16x4xf32>, vector<4x128xf32>, vector<16x128xf32> -> vector<16x128xf32>
    %716 = arith.addf %707, %715 : vector<16x128xf32>
    %c18_i32_600 = arith.constant 18 : i32
    %717 = arith.addi %670, %c18_i32_600 : i32
    %c2_i32_601 = arith.constant 2 : i32
    %718 = arith.addi %717, %c2_i32_601 : i32
    %c0_602 = arith.constant 0 : index
    %719 = arith.index_cast %718 : i32 to index
    %c0_603 = arith.constant 0 : index
    %720 = vector.load %arg2[%c0_602, %719, %c0_603] : memref<1x324x4xf32, #tpu.memory_space<vmem>>, vector<1x16x4xf32>
    %721 = vector.shape_cast %720 : vector<1x16x4xf32> to vector<16x4xf32>
    %c5_604 = arith.constant 5 : index
    %c0_605 = arith.constant 0 : index
    %c0_606 = arith.constant 0 : index
    %722 = vector.load %arg3[%c5_604, %c0_605, %c0_606] : memref<9x4x128xf32, #tpu.memory_space<vmem>>, vector<1x4x128xf32>
    %723 = vector.shape_cast %722 : vector<1x4x128xf32> to vector<4x128xf32>
    %cst_607 = arith.constant dense<0.000000e+00> : vector<16x128xf32>
    %724 = tpu.matmul %721, %723, %cst_607 {dimension_numbers = #tpu.dot_dimension_numbers<[1], [0], [0], [1], [0, 0, 1, 1], [], []>} : vector<16x4xf32>, vector<4x128xf32>, vector<16x128xf32> -> vector<16x128xf32>
    %725 = arith.addf %716, %724 : vector<16x128xf32>
    %c36_i32_608 = arith.constant 36 : i32
    %726 = arith.addi %670, %c36_i32_608 : i32
    %c0_i32_609 = arith.constant 0 : i32
    %727 = arith.addi %726, %c0_i32_609 : i32
    %c0_610 = arith.constant 0 : index
    %728 = arith.index_cast %727 : i32 to index
    %c0_611 = arith.constant 0 : index
    %729 = vector.load %arg2[%c0_610, %728, %c0_611] : memref<1x324x4xf32, #tpu.memory_space<vmem>>, vector<1x16x4xf32>
    %730 = vector.shape_cast %729 : vector<1x16x4xf32> to vector<16x4xf32>
    %c6_612 = arith.constant 6 : index
    %c0_613 = arith.constant 0 : index
    %c0_614 = arith.constant 0 : index
    %731 = vector.load %arg3[%c6_612, %c0_613, %c0_614] : memref<9x4x128xf32, #tpu.memory_space<vmem>>, vector<1x4x128xf32>
    %732 = vector.shape_cast %731 : vector<1x4x128xf32> to vector<4x128xf32>
    %cst_615 = arith.constant dense<0.000000e+00> : vector<16x128xf32>
    %733 = tpu.matmul %730, %732, %cst_615 {dimension_numbers = #tpu.dot_dimension_numbers<[1], [0], [0], [1], [0, 0, 1, 1], [], []>} : vector<16x4xf32>, vector<4x128xf32>, vector<16x128xf32> -> vector<16x128xf32>
    %734 = arith.addf %725, %733 : vector<16x128xf32>
    %c36_i32_616 = arith.constant 36 : i32
    %735 = arith.addi %670, %c36_i32_616 : i32
    %c1_i32_617 = arith.constant 1 : i32
    %736 = arith.addi %735, %c1_i32_617 : i32
    %c0_618 = arith.constant 0 : index
    %737 = arith.index_cast %736 : i32 to index
    %c0_619 = arith.constant 0 : index
    %738 = vector.load %arg2[%c0_618, %737, %c0_619] : memref<1x324x4xf32, #tpu.memory_space<vmem>>, vector<1x16x4xf32>
    %739 = vector.shape_cast %738 : vector<1x16x4xf32> to vector<16x4xf32>
    %c7_620 = arith.constant 7 : index
    %c0_621 = arith.constant 0 : index
    %c0_622 = arith.constant 0 : index
    %740 = vector.load %arg3[%c7_620, %c0_621, %c0_622] : memref<9x4x128xf32, #tpu.memory_space<vmem>>, vector<1x4x128xf32>
    %741 = vector.shape_cast %740 : vector<1x4x128xf32> to vector<4x128xf32>
    %cst_623 = arith.constant dense<0.000000e+00> : vector<16x128xf32>
    %742 = tpu.matmul %739, %741, %cst_623 {dimension_numbers = #tpu.dot_dimension_numbers<[1], [0], [0], [1], [0, 0, 1, 1], [], []>} : vector<16x4xf32>, vector<4x128xf32>, vector<16x128xf32> -> vector<16x128xf32>
    %743 = arith.addf %734, %742 : vector<16x128xf32>
    %c36_i32_624 = arith.constant 36 : i32
    %744 = arith.addi %670, %c36_i32_624 : i32
    %c2_i32_625 = arith.constant 2 : i32
    %745 = arith.addi %744, %c2_i32_625 : i32
    %c0_626 = arith.constant 0 : index
    %746 = arith.index_cast %745 : i32 to index
    %c0_627 = arith.constant 0 : index
    %747 = vector.load %arg2[%c0_626, %746, %c0_627] : memref<1x324x4xf32, #tpu.memory_space<vmem>>, vector<1x16x4xf32>
    %748 = vector.shape_cast %747 : vector<1x16x4xf32> to vector<16x4xf32>
    %c8_628 = arith.constant 8 : index
    %c0_629 = arith.constant 0 : index
    %c0_630 = arith.constant 0 : index
    %749 = vector.load %arg3[%c8_628, %c0_629, %c0_630] : memref<9x4x128xf32, #tpu.memory_space<vmem>>, vector<1x4x128xf32>
    %750 = vector.shape_cast %749 : vector<1x4x128xf32> to vector<4x128xf32>
    %cst_631 = arith.constant dense<0.000000e+00> : vector<16x128xf32>
    %751 = tpu.matmul %748, %750, %cst_631 {dimension_numbers = #tpu.dot_dimension_numbers<[1], [0], [0], [1], [0, 0, 1, 1], [], []>} : vector<16x4xf32>, vector<4x128xf32>, vector<16x128xf32> -> vector<16x128xf32>
    %752 = arith.addf %743, %751 : vector<16x128xf32>
    %c0_632 = arith.constant 0 : index
    %c7_633 = arith.constant 7 : index
    %c0_634 = arith.constant 0 : index
    %c0_635 = arith.constant 0 : index
    %753 = vector.load %arg4[%c0_632, %c7_633, %c0_634, %c0_635] : memref<1x8x16x128xf32, #tpu.memory_space<vmem>>, vector<1x1x16x128xf32>
    %754 = vector.shape_cast %753 : vector<1x1x16x128xf32> to vector<16x128xf32>
    %755 = vector.shape_cast %752 : vector<16x128xf32> to vector<1x1x16x128xf32>
    tpu.vector_store %arg4[%c0_632, %c7_633, %c0_634, %c0_635], %755 {strides = array<i32>} : memref<1x8x16x128xf32, #tpu.memory_space<vmem>>, vector<1x1x16x128xf32>,
    %cst_636 = arith.constant dense<0.000000e+00> : vector<128xf32>
    %756 = vector.multi_reduction <add>, %752, %cst_636 [0] : vector<16x128xf32> to vector<128xf32>
    %757 = vector.shape_cast %756 : vector<128xf32> to vector<1x128xf32>
    %758 = arith.addf %663, %757 : vector<1x128xf32>
    %759 = arith.mulf %752, %752 : vector<16x128xf32>
    %cst_637 = arith.constant dense<0.000000e+00> : vector<128xf32>
    %760 = vector.multi_reduction <add>, %759, %cst_637 [0] : vector<16x128xf32> to vector<128xf32>
    %761 = vector.shape_cast %760 : vector<128xf32> to vector<1x128xf32>
    %762 = arith.addf %667, %761 : vector<1x128xf32>
    %c0_638 = arith.constant 0 : index
    %c0_639 = arith.constant 0 : index
    %c0_640 = arith.constant 0 : index
    %763 = vector.load %arg5[%c0_638, %c0_639, %c0_640] : memref<1x1x128xf32, #tpu.memory_space<vmem>>, vector<1x1x128xf32>
    %764 = vector.shape_cast %763 : vector<1x1x128xf32> to vector<1x128xf32>
    %765 = vector.shape_cast %758 : vector<1x128xf32> to vector<1x1x128xf32>
    tpu.vector_store %arg5[%c0_638, %c0_639, %c0_640], %765 {strides = array<i32>} : memref<1x1x128xf32, #tpu.memory_space<vmem>>, vector<1x1x128xf32>,
    %c0_641 = arith.constant 0 : index
    %c0_642 = arith.constant 0 : index
    %c0_643 = arith.constant 0 : index
    %766 = vector.load %arg6[%c0_641, %c0_642, %c0_643] : memref<1x1x128xf32, #tpu.memory_space<vmem>>, vector<1x1x128xf32>
    %767 = vector.shape_cast %766 : vector<1x1x128xf32> to vector<1x128xf32>
    %768 = vector.shape_cast %762 : vector<1x128xf32> to vector<1x1x128xf32>
    tpu.vector_store %arg6[%c0_641, %c0_642, %c0_643], %768 {strides = array<i32>} : memref<1x1x128xf32, #tpu.memory_space<vmem>>, vector<1x1x128xf32>,
    return
  }
  func.func @transform_0(%arg0: i32, %arg1: i32) -> (i32, i32, i32) {
    %c0_i32 = arith.constant 0 : i32
    %c0_i32_0 = arith.constant 0 : i32
    %c0_i32_1 = arith.constant 0 : i32
    return %arg0, %c0_i32, %c0_i32_0 : i32, i32, i32
  }
  func.func @transform_1(%arg0: i32, %arg1: i32) -> (i32, i32, i32) {
    %c0_i32 = arith.constant 0 : i32
    %c0_i32_0 = arith.constant 0 : i32
    %c0_i32_1 = arith.constant 0 : i32
    %c0_i32_2 = arith.constant 0 : i32
    return %c0_i32, %c0_i32_0, %c0_i32_1 : i32, i32, i32
  }
  func.func @transform_2(%arg0: i32, %arg1: i32) -> (i32, i32, i32, i32) {
    %c0_i32 = arith.constant 0 : i32
    %c0_i32_0 = arith.constant 0 : i32
    %c0_i32_1 = arith.constant 0 : i32
    return %arg0, %arg1, %c0_i32, %c0_i32_0 : i32, i32, i32, i32
  }
  func.func @transform_3(%arg0: i32, %arg1: i32) -> (i32, i32, i32) {
    %c2_i32 = arith.constant 2 : i32
    %0 = arith.muli %arg0, %c2_i32 : i32
    %1 = arith.addi %0, %arg1 : i32
    %c0_i32 = arith.constant 0 : i32
    %c0_i32_0 = arith.constant 0 : i32
    %c0_i32_1 = arith.constant 0 : i32
    return %1, %c0_i32, %c0_i32_0 : i32, i32, i32
  }
  func.func @transform_4(%arg0: i32, %arg1: i32) -> (i32, i32, i32) {
    %c2_i32 = arith.constant 2 : i32
    %0 = arith.muli %arg0, %c2_i32 : i32
    %1 = arith.addi %0, %arg1 : i32
    %c0_i32 = arith.constant 0 : i32
    %c0_i32_0 = arith.constant 0 : i32
    %c0_i32_1 = arith.constant 0 : i32
    return %1, %c0_i32, %c0_i32_0 : i32, i32, i32
  }
}

</mosaic_0001>

<llo_original>
// kernel: conv_bn_leakyrelu.3
$region0: #{conv_bn_leakyrelu.3}
  #allocation0 [shape = 'u32[]', space=smem, size = 0x4, offset = 0x4, fixed_abs, tag = 'smem constant byte address 0x4 - core index']
  #allocation1 [shape = 'u32[144,128]{1,0:T(1,128)}', space=vmem, size = 0x12000, scoped, tag = 'internal scratch']
  %s0 = inlined_call_operand.vmem [shape: bf16[2,16,16,128], index: 0, kind: input, shape index: {}]
  %s1 = inlined_call_operand.vmem [shape: f32[1,128], index: 1, kind: input, shape index: {}]
  %s2 = inlined_call_operand.vmem [shape: f32[1,128], index: 2, kind: input, shape index: {}]
  %s3 = inlined_call_operand.vmem [shape: f32[2,16,16,8], index: 3, kind: output, shape index: {}]
  %s4 = sld [smem:[#allocation0]]
  $region45: #{conv_bn_leakyrelu.3} parent=0
    _
  %s6 = ssub.s32 1, %s4
  %s7 = scalar_select 0, %s6, %s4
  loop: start=0, step=1, limit=6
  $region2: #{conv_bn_leakyrelu.3} parent=0 // loop_pre_header
    _
  $region3: #{conv_bn_leakyrelu.3} parent=0 // loop_header
    %s9 = sphi 0, %s13
    %p10 = scmp.ge.s32.totalorder %s9, 6
    %s16 = sphi 0, %s28
    %s17 = sphi 0, %s24
    %s18 = sphi 0, %s16
    %s19 = sphi 0, %s17
    %s20 = sphi 0, %s18
    %s21 = sphi 0, %s19
    %s33 = sphi 0, %s35
    %s36 = sphi 0, %s33
    %s37 = sphi 0, %s36
    %s53 = sphi 0, %s37
    %s57 = sphi 0, %s57
    %s59 = sphi 0, %s57
    %s60 = sphi 0, %s59
    %s74 = sphi 0, %s60
    %s78 = sphi 0, %s78
    %s80 = sphi 0, %s78
    %s81 = sphi 0, %s80
    %s95 = sphi 0, %s81
    %s103 = sphi 0, %s105
    %s106 = sphi 0, %s103
    %s107 = sphi 0, %s106
    %s123 = sphi 0, %s107
  $region4: #{conv_bn_leakyrelu.3} parent=0 // loop_header_branch
    %12 = sbr.rel (%p10) target = $region8
  $region5: #{conv_bn_leakyrelu.3} parent=0 // loop_body
    %s14 = ssub.s32 %s9, 1
    %s15 = ssub.s32 %s9, 2
    %s22 = sadd.s32 1, %s17
    %p23 = scmp.ge.s32.totalorder %s22, 2
    %s24 = scalar_select %p23, 0, %s22
    %s25 = sadd.s32 1, %s16
    %s26 = scalar_select %p23, %s25, %s16
    %p27 = scmp.ge.s32.totalorder %s26, 2
    %s28 = scalar_select %p27, 0, %s26
    %s29 = ssub.s32 %s16, %s28
    %s30 = ssub.s32 %s17, %s24
    %s31 = sor.u32 %s29, %s30
    %p32 = scmp.eq.s32.totalorder %s31, 0
    %s34 = sadd.s32 %s33, 1
    %s35 = scalar_select %p32, %s33, %s34
    %p38 = pneg %p32
    %p39 = scmp.eq.s32.totalorder %s9, 3
    %p40 = por %p38, %p39
    %p41 = scmp.ne.s32.totalorder %s33, %s36
    %p42 = scmp.eq.s32.totalorder %s9, 0
    %p43 = por %p41, %p42
    %p44 = scmp.ne.s32.totalorder %s33, %s36
    %p45 = scmp.eq.s32.totalorder %s14, 3
    %p46 = por %p44, %p45
    %p47 = scmp.ne.s32.totalorder %s36, %s37
    %p48 = scmp.eq.s32.totalorder %s14, 0
    %p49 = por %p47, %p48
    %p50 = scmp.ne.s32.totalorder %s36, %s37
    %p51 = scmp.eq.s32.totalorder %s15, 3
    %p52 = por %p50, %p51
    %p54 = scmp.ne.s32.totalorder %s37, %s53
    %p55 = scmp.eq.s32.totalorder %s15, 0
    %p56 = por %p54, %p55
    %s58 = sadd.s32 %s57, 1
    %p61 = scmp.eq.s32.totalorder %s9, 3
    %p62 = scmp.ne.s32.totalorder %s57, %s59
    %p63 = scmp.eq.s32.totalorder %s9, 0
    %p64 = por %p62, %p63
    %p65 = scmp.ne.s32.totalorder %s57, %s59
    %p66 = scmp.eq.s32.totalorder %s14, 3
    %p67 = por %p65, %p66
    %p68 = scmp.ne.s32.totalorder %s59, %s60
    %p69 = scmp.eq.s32.totalorder %s14, 0
    %p70 = por %p68, %p69
    %p71 = scmp.ne.s32.totalorder %s59, %s60
    %p72 = scmp.eq.s32.totalorder %s15, 3
    %p73 = por %p71, %p72
    %p75 = scmp.ne.s32.totalorder %s60, %s74
    %p76 = scmp.eq.s32.totalorder %s15, 0
    %p77 = por %p75, %p76
    %s79 = sadd.s32 %s78, 1
    %p82 = scmp.eq.s32.totalorder %s9, 3
    %p83 = scmp.ne.s32.totalorder %s78, %s80
    %p84 = scmp.eq.s32.totalorder %s9, 0
    %p85 = por %p83, %p84
    %p86 = scmp.ne.s32.totalorder %s78, %s80
    %p87 = scmp.eq.s32.totalorder %s14, 3
    %p88 = por %p86, %p87
    %p89 = scmp.ne.s32.totalorder %s80, %s81
    %p90 = scmp.eq.s32.totalorder %s14, 0
    %p91 = por %p89, %p90
    %p92 = scmp.ne.s32.totalorder %s80, %s81
    %p93 = scmp.eq.s32.totalorder %s15, 3
    %p94 = por %p92, %p93
    %p96 = scmp.ne.s32.totalorder %s81, %s95
    %p97 = scmp.eq.s32.totalorder %s15, 0
    %p98 = por %p96, %p97
    %s99 = ssub.s32 %s16, %s28
    %s100 = ssub.s32 %s17, %s24
    %s101 = sor.u32 %s99, %s100
    %p102 = scmp.eq.s32.totalorder %s101, 0
    %s104 = sadd.s32 %s103, 1
    %s105 = scalar_select %p102, %s103, %s104
    %p108 = pneg %p102
    %p109 = scmp.eq.s32.totalorder %s9, 3
    %p110 = por %p108, %p109
    %p111 = scmp.ne.s32.totalorder %s103, %s106
    %p112 = scmp.eq.s32.totalorder %s9, 0
    %p113 = por %p111, %p112
    %p114 = scmp.ne.s32.totalorder %s103, %s106
    %p115 = scmp.eq.s32.totalorder %s14, 3
    %p116 = por %p114, %p115
    %p117 = scmp.ne.s32.totalorder %s106, %s107
    %p118 = scmp.eq.s32.totalorder %s14, 0
    %p119 = por %p117, %p118
    %p120 = scmp.ne.s32.totalorder %s106, %s107
    %p121 = scmp.eq.s32.totalorder %s15, 3
    %p122 = por %p120, %p121
    %p124 = scmp.ne.s32.totalorder %s107, %s123
    %p125 = scmp.eq.s32.totalorder %s15, 0
    %p126 = por %p124, %p125
    %p127 = scmp.le.s32.totalorder 1, %s9
    %p128 = scmp.lt.s32.totalorder %s9, 5
    %p129 = pnand %p127, %p128
    %p130 = pneg %p129
    // Predicated region
    $region9: #{conv_bn_leakyrelu.3} parent=5 // pred_check
      _
    $region10: #{conv_bn_leakyrelu.3} parent=5 // pred_check_branch
      %132 = sbr.rel (%p129) target = $region12
    $region11: #{conv_bn_leakyrelu.3} parent=5 // pred_region
      %s133 = ssub.s32 %s9, 1
      // Predicated region
      $region13: #{conv_bn_leakyrelu.3} parent=11 // pred_check
        %p134 = pneg %p70
      $region14: #{conv_bn_leakyrelu.3} parent=11 // pred_check_branch
        %136 = sbr.rel (%p134) target = $region16
      $region15: #{conv_bn_leakyrelu.3} parent=11 // pred_region
        _
      $region16: #{conv_bn_leakyrelu.3} parent=11 // pred_fallthru
        _
      // Predicated region
      $region17: #{conv_bn_leakyrelu.3} parent=11 // pred_check
        %p137 = pneg %p91
      $region18: #{conv_bn_leakyrelu.3} parent=11 // pred_check_branch
        %139 = sbr.rel (%p137) target = $region20
      $region19: #{conv_bn_leakyrelu.3} parent=11 // pred_region
        _
      $region20: #{conv_bn_leakyrelu.3} parent=11 // pred_fallthru
        _
    $region12: #{conv_bn_leakyrelu.3} parent=5 // pred_fallthru
      _
    %p140 = scmp.lt.s32.totalorder %s9, 4
    // Predicated region
    $region21: #{conv_bn_leakyrelu.3} parent=5 // pred_check
      %p141 = pneg %p140
    $region22: #{conv_bn_leakyrelu.3} parent=5 // pred_check_branch
      %143 = sbr.rel (%p141) target = $region24
    $region23: #{conv_bn_leakyrelu.3} parent=5 // pred_region
      // Predicated region
      $region25: #{conv_bn_leakyrelu.3} parent=23 // pred_check
        %p144 = pneg %p43
      $region26: #{conv_bn_leakyrelu.3} parent=23 // pred_check_branch
        %146 = sbr.rel (%p144) target = $region28
      $region27: #{conv_bn_leakyrelu.3} parent=23 // pred_region
        %s147 = smul.u32 8, %s17
        %p148 = scmp.lt.s32.totalorder %s16, 1
        %s149 = scalar_select %p148, %s16, 1
        %p150 = scmp.lt.s32.totalorder %s147, 15
        %s151 = scalar_select %p150, %s147, 15
        %s152 = smul.addr %s151, 2
        %s153 = smul.addr %s149, 32
        %s154 = sadd.s32 %s152, %s153
        %s155 = smul.addr %s154, 4
        %s156 = scalar_lea.vmem %s0, %s155
        %s157 = smul.u32 8, %s17
      $region28: #{conv_bn_leakyrelu.3} parent=23 // pred_fallthru
        _
    $region24: #{conv_bn_leakyrelu.3} parent=5 // pred_fallthru
      _
    %p158 = scmp.le.s32.totalorder 1, %s9
    %p159 = scmp.lt.s32.totalorder %s9, 5
    %p160 = pnand %p158, %p159
    %p161 = pneg %p160
    // Predicated region
    $region29: #{conv_bn_leakyrelu.3} parent=5 // pred_check
      _
    $region30: #{conv_bn_leakyrelu.3} parent=5 // pred_check_branch
      %163 = sbr.rel (%p160) target = $region32
    $region31: #{conv_bn_leakyrelu.3} parent=5 // pred_region
      %s164 = ssub.s32 %s9, 1
      %s165 = smul.u32 8, %s19
      %p166 = scmp.lt.s32.totalorder %s18, 1
      %s167 = scalar_select %p166, %s18, 1
      %p168 = scmp.lt.s32.totalorder %s165, 15
      %s169 = scalar_select %p168, %s165, 15
      %s170 = smul.addr %s169, 2
      %s171 = smul.addr %s167, 32
      %s172 = sadd.s32 %s170, %s171
      %s173 = smul.addr %s172, 4
      %s174 = scalar_lea.vmem %s0, %s173
      %p175 = pneg %p49
      %p176 = pneg %p46
      %p177 = pneg %p70
      %p178 = pneg %p67
      %p179 = pneg %p91
      %p180 = pneg %p88
      %p181 = pneg %p119
      %p182 = pneg %p116
      %s183 = smul.u32 8, %s19
      %p184 = scmp.lt.s32.totalorder %s18, 1
      %s185 = scalar_select %p184, %s18, 1
      %p186 = scmp.lt.s32.totalorder %s183, 15
      %s187 = scalar_select %p186, %s183, 15
      %s188 = smul.addr %s187, 2
      %s189 = smul.addr %s185, 32
      %s190 = sadd.s32 %s188, %s189
      %s191 = smul.addr %s190, 8
      %s192 = scalar_lea.vmem %s3, %s191
      %s193 = smul.u32 8, %s19
      %p194 = scmp.lt.s32.totalorder %s18, 1
      %s195 = scalar_select %p194, %s18, 1
      %p196 = scmp.lt.s32.totalorder %s193, 15
      %s197 = scalar_select %p196, %s193, 15
      %s198 = smul.addr %s197, 2
      %s199 = smul.addr %s195, 32
      %s200 = sadd.s32 %s198, %s199
      %s201 = smul.addr %s200, 4
      %s202 = scalar_lea.vmem %s0, %s201
      %s203 = smul.u32 8, %s19
      %s204 = smul.u32 8, %s19
      %p205 = scmp.lt.s32.totalorder %s18, 1
      %s206 = scalar_select %p205, %s18, 1
      %p207 = scmp.lt.s32.totalorder %s204, 15
      %s208 = scalar_select %p207, %s204, 15
      %s209 = smul.addr %s208, 2
      %s210 = smul.addr %s206, 32
      %s211 = sadd.s32 %s209, %s210
      %s212 = smul.addr %s211, 8
      %s213 = scalar_lea.vmem %s3, %s212
      %s214 = smul.u32 8, %s19
      %v215 = vld [vmem:[%s202] sm:$0xf]
      %v216 = vld [vmem:[%s202 + $0x4] sm:$0xf]
      %v217 = vld [vmem:[%s202 + $0x8] sm:$0xf]
      %v218 = vld [vmem:[%s202 + $0xc] sm:$0xf]
      %v219 = vld [vmem:[%s202 + $0x10] sm:$0xf]
      %v220 = vld [vmem:[%s202 + $0x14] sm:$0xf]
      %v221 = vld [vmem:[%s202 + $0x18] sm:$0xf]
      %v222 = vld [vmem:[%s202 + $0x1c] sm:$0xf]
      %v223 = vld [vmem:[%s202 + $0x20] sm:$0xf]
      %v224 = vld [vmem:[%s202 + $0x24] sm:$0xf]
      %v225 = vld [vmem:[%s202 + $0x28] sm:$0xf]
      %v226 = vld [vmem:[%s202 + $0x2c] sm:$0xf]
      %v227 = vld [vmem:[%s202 + $0x30] sm:$0xf]
      %v228 = vld [vmem:[%s202 + $0x34] sm:$0xf]
      %v229 = vld [vmem:[%s202 + $0x38] sm:$0xf]
      %v230 = vld [vmem:[%s202 + $0x3c] sm:$0xf]
      %v231 = vunpack.c.l.bf16 %v215
      %v232 = vunpack.c.l.bf16 %v216
      %v233 = vunpack.c.l.bf16 %v217
      %v234 = vunpack.c.l.bf16 %v218
      %v235 = vunpack.c.l.bf16 %v219
      %v236 = vunpack.c.l.bf16 %v220
      %v237 = vunpack.c.l.bf16 %v221
      %v238 = vunpack.c.l.bf16 %v222
      %v239 = vunpack.c.l.bf16 %v223
      %v240 = vunpack.c.l.bf16 %v224
      %v241 = vunpack.c.l.bf16 %v225
      %v242 = vunpack.c.l.bf16 %v226
      %v243 = vunpack.c.l.bf16 %v227
      %v244 = vunpack.c.l.bf16 %v228
      %v245 = vunpack.c.l.bf16 %v229
      %v246 = vunpack.c.l.bf16 %v230
      %v247 = vld [vmem:[%s1] sm:$0x1]
      %v248 = vld [vmem:[%s2] sm:$0x1]
      %v250 = vlaneseq
      %v251 = vshrl.u32 %v250, 7
      %v252 = vsub.s32 0, %v251
      %v253 = vrot.slane %v247, %v252
      %v255 = vmul.f32 %v231, %v253
      %v256 = vmul.f32 %v232, %v253
      %v257 = vmul.f32 %v233, %v253
      %v258 = vmul.f32 %v234, %v253
      %v259 = vmul.f32 %v235, %v253
      %v260 = vmul.f32 %v236, %v253
      %v261 = vmul.f32 %v237, %v253
      %v262 = vmul.f32 %v238, %v253
      %v263 = vmul.f32 %v239, %v253
      %v264 = vmul.f32 %v240, %v253
      %v265 = vmul.f32 %v241, %v253
      %v266 = vmul.f32 %v242, %v253
      %v267 = vmul.f32 %v243, %v253
      %v268 = vmul.f32 %v244, %v253
      %v269 = vmul.f32 %v245, %v253
      %v270 = vmul.f32 %v246, %v253
      %v272 = vlaneseq
      %v273 = vshrl.u32 %v272, 7
      %v274 = vsub.s32 0, %v273
      %v275 = vrot.slane %v248, %v274
      %v277 = vadd.f32 %v255, %v275
      %v278 = vadd.f32 %v256, %v275
      %v279 = vadd.f32 %v257, %v275
      %v280 = vadd.f32 %v258, %v275
      %v281 = vadd.f32 %v259, %v275
      %v282 = vadd.f32 %v260, %v275
      %v283 = vadd.f32 %v261, %v275
      %v284 = vadd.f32 %v262, %v275
      %v285 = vadd.f32 %v263, %v275
      %v286 = vadd.f32 %v264, %v275
      %v287 = vadd.f32 %v265, %v275
      %v288 = vadd.f32 %v266, %v275
      %v289 = vadd.f32 %v267, %v275
      %v290 = vadd.f32 %v268, %v275
      %v291 = vadd.f32 %v269, %v275
      %v292 = vadd.f32 %v270, %v275
      %vm293 = vcmp.ge.f32.partialorder %v277, 0.0
      %vm294 = vcmp.ge.f32.partialorder %v278, 0.0
      %vm295 = vcmp.ge.f32.partialorder %v279, 0.0
      %vm296 = vcmp.ge.f32.partialorder %v280, 0.0
      %vm297 = vcmp.ge.f32.partialorder %v281, 0.0
      %vm298 = vcmp.ge.f32.partialorder %v282, 0.0
      %vm299 = vcmp.ge.f32.partialorder %v283, 0.0
      %vm300 = vcmp.ge.f32.partialorder %v284, 0.0
      %vm301 = vcmp.ge.f32.partialorder %v285, 0.0
      %vm302 = vcmp.ge.f32.partialorder %v286, 0.0
      %vm303 = vcmp.ge.f32.partialorder %v287, 0.0
      %vm304 = vcmp.ge.f32.partialorder %v288, 0.0
      %vm305 = vcmp.ge.f32.partialorder %v289, 0.0
      %vm306 = vcmp.ge.f32.partialorder %v290, 0.0
      %vm307 = vcmp.ge.f32.partialorder %v291, 0.0
      %vm308 = vcmp.ge.f32.partialorder %v292, 0.0
      %v309 = vmul.f32 %v277, 0.1
      %v310 = vmul.f32 %v278, 0.1
      %v311 = vmul.f32 %v279, 0.1
      %v312 = vmul.f32 %v280, 0.1
      %v313 = vmul.f32 %v281, 0.1
      %v314 = vmul.f32 %v282, 0.1
      %v315 = vmul.f32 %v283, 0.1
      %v316 = vmul.f32 %v284, 0.1
      %v317 = vmul.f32 %v285, 0.1
      %v318 = vmul.f32 %v286, 0.1
      %v319 = vmul.f32 %v287, 0.1
      %v320 = vmul.f32 %v288, 0.1
      %v321 = vmul.f32 %v289, 0.1
      %v322 = vmul.f32 %v290, 0.1
      %v323 = vmul.f32 %v291, 0.1
      %v324 = vmul.f32 %v292, 0.1
      %v325 = vsel %vm293, %v277, %v309
      %v326 = vsel %vm294, %v278, %v310
      %v327 = vsel %vm295, %v279, %v311
      %v328 = vsel %vm296, %v280, %v312
      %v329 = vsel %vm297, %v281, %v313
      %v330 = vsel %vm298, %v282, %v314
      %v331 = vsel %vm299, %v283, %v315
      %v332 = vsel %vm300, %v284, %v316
      %v333 = vsel %vm301, %v285, %v317
      %v334 = vsel %vm302, %v286, %v318
      %v335 = vsel %vm303, %v287, %v319
      %v336 = vsel %vm304, %v288, %v320
      %v337 = vsel %vm305, %v289, %v321
      %v338 = vsel %vm306, %v290, %v322
      %v339 = vsel %vm307, %v291, %v323
      %v340 = vsel %vm308, %v292, %v324
      %vm341 = vcmask 64512
      %342 = vst.msk [vmem:[%s213] sm:$0xff] %vm341, %v325
      %343 = vst.msk [vmem:[%s213 + $0x8] sm:$0xff] %vm341, %v326
      %344 = vst.msk [vmem:[%s213 + $0x10] sm:$0xff] %vm341, %v327
      %345 = vst.msk [vmem:[%s213 + $0x18] sm:$0xff] %vm341, %v328
      %346 = vst.msk [vmem:[%s213 + $0x20] sm:$0xff] %vm341, %v329
      %347 = vst.msk [vmem:[%s213 + $0x28] sm:$0xff] %vm341, %v330
      %348 = vst.msk [vmem:[%s213 + $0x30] sm:$0xff] %vm341, %v331
      %349 = vst.msk [vmem:[%s213 + $0x38] sm:$0xff] %vm341, %v332
      %350 = vst.msk [vmem:[%s213 + $0x40] sm:$0xff] %vm341, %v333
      %351 = vst.msk [vmem:[%s213 + $0x48] sm:$0xff] %vm341, %v334
      %352 = vst.msk [vmem:[%s213 + $0x50] sm:$0xff] %vm341, %v335
      %353 = vst.msk [vmem:[%s213 + $0x58] sm:$0xff] %vm341, %v336
      %354 = vst.msk [vmem:[%s213 + $0x60] sm:$0xff] %vm341, %v337
      %355 = vst.msk [vmem:[%s213 + $0x68] sm:$0xff] %vm341, %v338
      %356 = vst.msk [vmem:[%s213 + $0x70] sm:$0xff] %vm341, %v339
      %357 = vst.msk [vmem:[%s213 + $0x78] sm:$0xff] %vm341, %v340
      %s358 = smul.u32 8, %s19
      %p359 = scmp.lt.s32.totalorder %s18, 1
      %s360 = scalar_select %p359, %s18, 1
      %p361 = scmp.lt.s32.totalorder %s358, 15
      %s362 = scalar_select %p361, %s358, 15
      %s363 = smul.addr %s362, 2
      %s364 = smul.addr %s360, 32
      %s365 = sadd.s32 %s363, %s364
      %s366 = smul.addr %s365, 8
      %s367 = scalar_lea.vmem %s3, %s366
      // Predicated region
      $region33: #{conv_bn_leakyrelu.3} parent=31 // pred_check
        %p368 = pneg %p116
      $region34: #{conv_bn_leakyrelu.3} parent=31 // pred_check_branch
        %370 = sbr.rel (%p368) target = $region36
      $region35: #{conv_bn_leakyrelu.3} parent=31 // pred_region
        %s371 = smul.u32 8, %s19
      $region36: #{conv_bn_leakyrelu.3} parent=31 // pred_fallthru
        _
    $region32: #{conv_bn_leakyrelu.3} parent=5 // pred_fallthru
      _
    %p372 = scmp.le.s32.totalorder 2, %s9
    // Predicated region
    $region37: #{conv_bn_leakyrelu.3} parent=5 // pred_check
      %p373 = pneg %p372
    $region38: #{conv_bn_leakyrelu.3} parent=5 // pred_check_branch
      %375 = sbr.rel (%p373) target = $region40
    $region39: #{conv_bn_leakyrelu.3} parent=5 // pred_region
      %s376 = ssub.s32 %s9, 2
      // Predicated region
      $region41: #{conv_bn_leakyrelu.3} parent=39 // pred_check
        %p377 = pneg %p122
      $region42: #{conv_bn_leakyrelu.3} parent=39 // pred_check_branch
        %379 = sbr.rel (%p377) target = $region44
      $region43: #{conv_bn_leakyrelu.3} parent=39 // pred_region
        %s380 = smul.u32 8, %s21
        %p381 = scmp.lt.s32.totalorder %s20, 1
        %s382 = scalar_select %p381, %s20, 1
        %p383 = scmp.lt.s32.totalorder %s380, 15
        %s384 = scalar_select %p383, %s380, 15
        %s385 = smul.addr %s384, 2
        %s386 = smul.addr %s382, 32
        %s387 = sadd.s32 %s385, %s386
        %s388 = smul.addr %s387, 8
        %s389 = scalar_lea.vmem %s3, %s388
      $region44: #{conv_bn_leakyrelu.3} parent=39 // pred_fallthru
        _
    $region40: #{conv_bn_leakyrelu.3} parent=5 // pred_fallthru
      _
  $region6: #{conv_bn_leakyrelu.3} parent=0 // loop_footer
    %s13 = sadd.s32 1, %s9
  $region7: #{conv_bn_leakyrelu.3} parent=0 // loop_footer_branch
    %8 = sbr.rel target = $region3
  $region8: #{conv_bn_leakyrelu.3} parent=0 // loop_exit
    _

// kernel: conv_bn_leakyrelu.3
$region0: #{conv_bn_leakyrelu.3}
  #allocation0 [shape = 'u32[]', space=smem, size = 0x4, offset = 0x4, fixed_abs, tag = 'smem constant byte address 0x4 - core index']
  #allocation1 [shape = 'u32[144,128]{1,0:T(1,128)}', space=vmem, size = 0x12000, scoped, tag = 'internal scratch']
  %s0 = inlined_call_operand.vmem [shape: f32[2,16,16,128], index: 0, kind: input, shape index: {}]
  %s1 = inlined_call_operand.vmem [shape: f32[1,128], index: 1, kind: input, shape index: {}]
  %s2 = inlined_call_operand.vmem [shape: f32[1,128], index: 2, kind: input, shape index: {}]
  %s3 = inlined_call_operand.vmem [shape: f32[2,16,16,8], index: 3, kind: output, shape index: {}]
  %s4 = sld [smem:[#allocation0]]
  $region45: #{conv_bn_leakyrelu.3} parent=0
    _
  %s6 = ssub.s32 1, %s4
  %s7 = scalar_select 0, %s6, %s4
  loop: start=0, step=1, limit=6
  $region2: #{conv_bn_leakyrelu.3} parent=0 // loop_pre_header
    _
  $region3: #{conv_bn_leakyrelu.3} parent=0 // loop_header
    %s9 = sphi 0, %s13
    %p10 = scmp.ge.s32.totalorder %s9, 6
    %s16 = sphi 0, %s28
    %s17 = sphi 0, %s24
    %s18 = sphi 0, %s16
    %s19 = sphi 0, %s17
    %s20 = sphi 0, %s18
    %s21 = sphi 0, %s19
    %s33 = sphi 0, %s35
    %s36 = sphi 0, %s33
    %s37 = sphi 0, %s36
    %s53 = sphi 0, %s37
    %s57 = sphi 0, %s57
    %s59 = sphi 0, %s57
    %s60 = sphi 0, %s59
    %s74 = sphi 0, %s60
    %s78 = sphi 0, %s78
    %s80 = sphi 0, %s78
    %s81 = sphi 0, %s80
    %s95 = sphi 0, %s81
    %s103 = sphi 0, %s105
    %s106 = sphi 0, %s103
    %s107 = sphi 0, %s106
    %s123 = sphi 0, %s107
  $region4: #{conv_bn_leakyrelu.3} parent=0 // loop_header_branch
    %12 = sbr.rel (%p10) target = $region8
  $region5: #{conv_bn_leakyrelu.3} parent=0 // loop_body
    %s14 = ssub.s32 %s9, 1
    %s15 = ssub.s32 %s9, 2
    %s22 = sadd.s32 1, %s17
    %p23 = scmp.ge.s32.totalorder %s22, 2
    %s24 = scalar_select %p23, 0, %s22
    %s25 = sadd.s32 1, %s16
    %s26 = scalar_select %p23, %s25, %s16
    %p27 = scmp.ge.s32.totalorder %s26, 2
    %s28 = scalar_select %p27, 0, %s26
    %s29 = ssub.s32 %s16, %s28
    %s30 = ssub.s32 %s17, %s24
    %s31 = sor.u32 %s29, %s30
    %p32 = scmp.eq.s32.totalorder %s31, 0
    %s34 = sadd.s32 %s33, 1
    %s35 = scalar_select %p32, %s33, %s34
    %p38 = pneg %p32
    %p39 = scmp.eq.s32.totalorder %s9, 3
    %p40 = por %p38, %p39
    %p41 = scmp.ne.s32.totalorder %s33, %s36
    %p42 = scmp.eq.s32.totalorder %s9, 0
    %p43 = por %p41, %p42
    %p44 = scmp.ne.s32.totalorder %s33, %s36
    %p45 = scmp.eq.s32.totalorder %s14, 3
    %p46 = por %p44, %p45
    %p47 = scmp.ne.s32.totalorder %s36, %s37
    %p48 = scmp.eq.s32.totalorder %s14, 0
    %p49 = por %p47, %p48
    %p50 = scmp.ne.s32.totalorder %s36, %s37
    %p51 = scmp.eq.s32.totalorder %s15, 3
    %p52 = por %p50, %p51
    %p54 = scmp.ne.s32.totalorder %s37, %s53
    %p55 = scmp.eq.s32.totalorder %s15, 0
    %p56 = por %p54, %p55
    %s58 = sadd.s32 %s57, 1
    %p61 = scmp.eq.s32.totalorder %s9, 3
    %p62 = scmp.ne.s32.totalorder %s57, %s59
    %p63 = scmp.eq.s32.totalorder %s9, 0
    %p64 = por %p62, %p63
    %p65 = scmp.ne.s32.totalorder %s57, %s59
    %p66 = scmp.eq.s32.totalorder %s14, 3
    %p67 = por %p65, %p66
    %p68 = scmp.ne.s32.totalorder %s59, %s60
    %p69 = scmp.eq.s32.totalorder %s14, 0
    %p70 = por %p68, %p69
    %p71 = scmp.ne.s32.totalorder %s59, %s60
    %p72 = scmp.eq.s32.totalorder %s15, 3
    %p73 = por %p71, %p72
    %p75 = scmp.ne.s32.totalorder %s60, %s74
    %p76 = scmp.eq.s32.totalorder %s15, 0
    %p77 = por %p75, %p76
    %s79 = sadd.s32 %s78, 1
    %p82 = scmp.eq.s32.totalorder %s9, 3
    %p83 = scmp.ne.s32.totalorder %s78, %s80
    %p84 = scmp.eq.s32.totalorder %s9, 0
    %p85 = por %p83, %p84
    %p86 = scmp.ne.s32.totalorder %s78, %s80
    %p87 = scmp.eq.s32.totalorder %s14, 3
    %p88 = por %p86, %p87
    %p89 = scmp.ne.s32.totalorder %s80, %s81
    %p90 = scmp.eq.s32.totalorder %s14, 0
    %p91 = por %p89, %p90
    %p92 = scmp.ne.s32.totalorder %s80, %s81
    %p93 = scmp.eq.s32.totalorder %s15, 3
    %p94 = por %p92, %p93
    %p96 = scmp.ne.s32.totalorder %s81, %s95
    %p97 = scmp.eq.s32.totalorder %s15, 0
    %p98 = por %p96, %p97
    %s99 = ssub.s32 %s16, %s28
    %s100 = ssub.s32 %s17, %s24
    %s101 = sor.u32 %s99, %s100
    %p102 = scmp.eq.s32.totalorder %s101, 0
    %s104 = sadd.s32 %s103, 1
    %s105 = scalar_select %p102, %s103, %s104
    %p108 = pneg %p102
    %p109 = scmp.eq.s32.totalorder %s9, 3
    %p110 = por %p108, %p109
    %p111 = scmp.ne.s32.totalorder %s103, %s106
    %p112 = scmp.eq.s32.totalorder %s9, 0
    %p113 = por %p111, %p112
    %p114 = scmp.ne.s32.totalorder %s103, %s106
    %p115 = scmp.eq.s32.totalorder %s14, 3
    %p116 = por %p114, %p115
    %p117 = scmp.ne.s32.totalorder %s106, %s107
    %p118 = scmp.eq.s32.totalorder %s14, 0
    %p119 = por %p117, %p118
    %p120 = scmp.ne.s32.totalorder %s106, %s107
    %p121 = scmp.eq.s32.totalorder %s15, 3
    %p122 = por %p120, %p121
    %p124 = scmp.ne.s32.totalorder %s107, %s123
    %p125 = scmp.eq.s32.totalorder %s15, 0
    %p126 = por %p124, %p125
    %p127 = scmp.le.s32.totalorder 1, %s9
    %p128 = scmp.lt.s32.totalorder %s9, 5
    %p129 = pnand %p127, %p128
    %p130 = pneg %p129
    // Predicated region
    $region9: #{conv_bn_leakyrelu.3} parent=5 // pred_check
      _
    $region10: #{conv_bn_leakyrelu.3} parent=5 // pred_check_branch
      %132 = sbr.rel (%p129) target = $region12
    $region11: #{conv_bn_leakyrelu.3} parent=5 // pred_region
      %s133 = ssub.s32 %s9, 1
      // Predicated region
      $region13: #{conv_bn_leakyrelu.3} parent=11 // pred_check
        %p134 = pneg %p70
      $region14: #{conv_bn_leakyrelu.3} parent=11 // pred_check_branch
        %136 = sbr.rel (%p134) target = $region16
      $region15: #{conv_bn_leakyrelu.3} parent=11 // pred_region
        _
      $region16: #{conv_bn_leakyrelu.3} parent=11 // pred_fallthru
        _
      // Predicated region
      $region17: #{conv_bn_leakyrelu.3} parent=11 // pred_check
        %p137 = pneg %p91
      $region18: #{conv_bn_leakyrelu.3} parent=11 // pred_check_branch
        %139 = sbr.rel (%p137) target = $region20
      $region19: #{conv_bn_leakyrelu.3} parent=11 // pred_region
        _
      $region20: #{conv_bn_leakyrelu.3} parent=11 // pred_fallthru
        _
    $region12: #{conv_bn_leakyrelu.3} parent=5 // pred_fallthru
      _
    %p140 = scmp.lt.s32.totalorder %s9, 4
    // Predicated region
    $region21: #{conv_bn_leakyrelu.3} parent=5 // pred_check
      %p141 = pneg %p140
    $region22: #{conv_bn_leakyrelu.3} parent=5 // pred_check_branch
      %143 = sbr.rel (%p141) target = $region24
    $region23: #{conv_bn_leakyrelu.3} parent=5 // pred_region
      // Predicated region
      $region25: #{conv_bn_leakyrelu.3} parent=23 // pred_check
        %p144 = pneg %p43
      $region26: #{conv_bn_leakyrelu.3} parent=23 // pred_check_branch
        %146 = sbr.rel (%p144) target = $region28
      $region27: #{conv_bn_leakyrelu.3} parent=23 // pred_region
        %s147 = smul.u32 8, %s17
        %p148 = scmp.lt.s32.totalorder %s16, 1
        %s149 = scalar_select %p148, %s16, 1
        %p150 = scmp.lt.s32.totalorder %s147, 15
        %s151 = scalar_select %p150, %s147, 15
        %s152 = smul.addr %s151, 2
        %s153 = smul.addr %s149, 32
        %s154 = sadd.s32 %s152, %s153
        %s155 = smul.addr %s154, 8
        %s156 = scalar_lea.vmem %s0, %s155
        %s157 = smul.u32 8, %s17
      $region28: #{conv_bn_leakyrelu.3} parent=23 // pred_fallthru
        _
    $region24: #{conv_bn_leakyrelu.3} parent=5 // pred_fallthru
      _
    %p158 = scmp.le.s32.totalorder 1, %s9
    %p159 = scmp.lt.s32.totalorder %s9, 5
    %p160 = pnand %p158, %p159
    %p161 = pneg %p160
    // Predicated region
    $region29: #{conv_bn_leakyrelu.3} parent=5 // pred_check
      _
    $region30: #{conv_bn_leakyrelu.3} parent=5 // pred_check_branch
      %163 = sbr.rel (%p160) target = $region32
    $region31: #{conv_bn_leakyrelu.3} parent=5 // pred_region
      %s164 = ssub.s32 %s9, 1
      %s165 = smul.u32 8, %s19
      %p166 = scmp.lt.s32.totalorder %s18, 1
      %s167 = scalar_select %p166, %s18, 1
      %p168 = scmp.lt.s32.totalorder %s165, 15
      %s169 = scalar_select %p168, %s165, 15
      %s170 = smul.addr %s169, 2
      %s171 = smul.addr %s167, 32
      %s172 = sadd.s32 %s170, %s171
      %s173 = smul.addr %s172, 8
      %s174 = scalar_lea.vmem %s0, %s173
      %p175 = pneg %p49
      %p176 = pneg %p46
      %p177 = pneg %p70
      %p178 = pneg %p67
      %p179 = pneg %p91
      %p180 = pneg %p88
      %p181 = pneg %p119
      %p182 = pneg %p116
      %s183 = smul.u32 8, %s19
      %p184 = scmp.lt.s32.totalorder %s18, 1
      %s185 = scalar_select %p184, %s18, 1
      %p186 = scmp.lt.s32.totalorder %s183, 15
      %s187 = scalar_select %p186, %s183, 15
      %s188 = smul.addr %s187, 2
      %s189 = smul.addr %s185, 32
      %s190 = sadd.s32 %s188, %s189
      %s191 = smul.addr %s190, 8
      %s192 = scalar_lea.vmem %s3, %s191
      %s193 = smul.u32 8, %s19
      %p194 = scmp.lt.s32.totalorder %s18, 1
      %s195 = scalar_select %p194, %s18, 1
      %p196 = scmp.lt.s32.totalorder %s193, 15
      %s197 = scalar_select %p196, %s193, 15
      %s198 = smul.addr %s197, 2
      %s199 = smul.addr %s195, 32
      %s200 = sadd.s32 %s198, %s199
      %s201 = smul.addr %s200, 8
      %s202 = scalar_lea.vmem %s0, %s201
      %s203 = smul.u32 8, %s19
      %s204 = smul.u32 8, %s19
      %p205 = scmp.lt.s32.totalorder %s18, 1
      %s206 = scalar_select %p205, %s18, 1
      %p207 = scmp.lt.s32.totalorder %s204, 15
      %s208 = scalar_select %p207, %s204, 15
      %s209 = smul.addr %s208, 2
      %s210 = smul.addr %s206, 32
      %s211 = sadd.s32 %s209, %s210
      %s212 = smul.addr %s211, 8
      %s213 = scalar_lea.vmem %s3, %s212
      %s214 = smul.u32 8, %s19
      %v215 = vld [vmem:[%s202] sm:$0xff]
      %v216 = vld [vmem:[%s202 + $0x8] sm:$0xff]
      %v217 = vld [vmem:[%s202 + $0x10] sm:$0xff]
      %v218 = vld [vmem:[%s202 + $0x18] sm:$0xff]
      %v219 = vld [vmem:[%s202 + $0x20] sm:$0xff]
      %v220 = vld [vmem:[%s202 + $0x28] sm:$0xff]
      %v221 = vld [vmem:[%s202 + $0x30] sm:$0xff]
      %v222 = vld [vmem:[%s202 + $0x38] sm:$0xff]
      %v223 = vld [vmem:[%s202 + $0x40] sm:$0xff]
      %v224 = vld [vmem:[%s202 + $0x48] sm:$0xff]
      %v225 = vld [vmem:[%s202 + $0x50] sm:$0xff]
      %v226 = vld [vmem:[%s202 + $0x58] sm:$0xff]
      %v227 = vld [vmem:[%s202 + $0x60] sm:$0xff]
      %v228 = vld [vmem:[%s202 + $0x68] sm:$0xff]
      %v229 = vld [vmem:[%s202 + $0x70] sm:$0xff]
      %v230 = vld [vmem:[%s202 + $0x78] sm:$0xff]
      %v231 = vld [vmem:[%s1] sm:$0x1]
      %v232 = vld [vmem:[%s2] sm:$0x1]
      %v234 = vlaneseq
      %v235 = vshrl.u32 %v234, 7
      %v236 = vsub.s32 0, %v235
      %v237 = vrot.slane %v231, %v236
      %v239 = vmul.f32 %v215, %v237
      %v240 = vmul.f32 %v216, %v237
      %v241 = vmul.f32 %v217, %v237
      %v242 = vmul.f32 %v218, %v237
      %v243 = vmul.f32 %v219, %v237
      %v244 = vmul.f32 %v220, %v237
      %v245 = vmul.f32 %v221, %v237
      %v246 = vmul.f32 %v222, %v237
      %v247 = vmul.f32 %v223, %v237
      %v248 = vmul.f32 %v224, %v237
      %v249 = vmul.f32 %v225, %v237
      %v250 = vmul.f32 %v226, %v237
      %v251 = vmul.f32 %v227, %v237
      %v252 = vmul.f32 %v228, %v237
      %v253 = vmul.f32 %v229, %v237
      %v254 = vmul.f32 %v230, %v237
      %v256 = vlaneseq
      %v257 = vshrl.u32 %v256, 7
      %v258 = vsub.s32 0, %v257
      %v259 = vrot.slane %v232, %v258
      %v261 = vadd.f32 %v239, %v259
      %v262 = vadd.f32 %v240, %v259
      %v263 = vadd.f32 %v241, %v259
      %v264 = vadd.f32 %v242, %v259
      %v265 = vadd.f32 %v243, %v259
      %v266 = vadd.f32 %v244, %v259
      %v267 = vadd.f32 %v245, %v259
      %v268 = vadd.f32 %v246, %v259
      %v269 = vadd.f32 %v247, %v259
      %v270 = vadd.f32 %v248, %v259
      %v271 = vadd.f32 %v249, %v259
      %v272 = vadd.f32 %v250, %v259
      %v273 = vadd.f32 %v251, %v259
      %v274 = vadd.f32 %v252, %v259
      %v275 = vadd.f32 %v253, %v259
      %v276 = vadd.f32 %v254, %v259
      %vm277 = vcmp.ge.f32.partialorder %v261, 0.0
      %vm278 = vcmp.ge.f32.partialorder %v262, 0.0
      %vm279 = vcmp.ge.f32.partialorder %v263, 0.0
      %vm280 = vcmp.ge.f32.partialorder %v264, 0.0
      %vm281 = vcmp.ge.f32.partialorder %v265, 0.0
      %vm282 = vcmp.ge.f32.partialorder %v266, 0.0
      %vm283 = vcmp.ge.f32.partialorder %v267, 0.0
      %vm284 = vcmp.ge.f32.partialorder %v268, 0.0
      %vm285 = vcmp.ge.f32.partialorder %v269, 0.0
      %vm286 = vcmp.ge.f32.partialorder %v270, 0.0
      %vm287 = vcmp.ge.f32.partialorder %v271, 0.0
      %vm288 = vcmp.ge.f32.partialorder %v272, 0.0
      %vm289 = vcmp.ge.f32.partialorder %v273, 0.0
      %vm290 = vcmp.ge.f32.partialorder %v274, 0.0
      %vm291 = vcmp.ge.f32.partialorder %v275, 0.0
      %vm292 = vcmp.ge.f32.partialorder %v276, 0.0
      %v293 = vmul.f32 %v261, 0.1
      %v294 = vmul.f32 %v262, 0.1
      %v295 = vmul.f32 %v263, 0.1
      %v296 = vmul.f32 %v264, 0.1
      %v297 = vmul.f32 %v265, 0.1
      %v298 = vmul.f32 %v266, 0.1
      %v299 = vmul.f32 %v267, 0.1
      %v300 = vmul.f32 %v268, 0.1
      %v301 = vmul.f32 %v269, 0.1
      %v302 = vmul.f32 %v270, 0.1
      %v303 = vmul.f32 %v271, 0.1
      %v304 = vmul.f32 %v272, 0.1
      %v305 = vmul.f32 %v273, 0.1
      %v306 = vmul.f32 %v274, 0.1
      %v307 = vmul.f32 %v275, 0.1
      %v308 = vmul.f32 %v276, 0.1
      %v309 = vsel %vm277, %v261, %v293
      %v310 = vsel %vm278, %v262, %v294
      %v311 = vsel %vm279, %v263, %v295
      %v312 = vsel %vm280, %v264, %v296
      %v313 = vsel %vm281, %v265, %v297
      %v314 = vsel %vm282, %v266, %v298
      %v315 = vsel %vm283, %v267, %v299
      %v316 = vsel %vm284, %v268, %v300
      %v317 = vsel %vm285, %v269, %v301
      %v318 = vsel %vm286, %v270, %v302
      %v319 = vsel %vm287, %v271, %v303
      %v320 = vsel %vm288, %v272, %v304
      %v321 = vsel %vm289, %v273, %v305
      %v322 = vsel %vm290, %v274, %v306
      %v323 = vsel %vm291, %v275, %v307
      %v324 = vsel %vm292, %v276, %v308
      %vm325 = vcmask 64512
      %326 = vst.msk [vmem:[%s213] sm:$0xff] %vm325, %v309
      %327 = vst.msk [vmem:[%s213 + $0x8] sm:$0xff] %vm325, %v310
      %328 = vst.msk [vmem:[%s213 + $0x10] sm:$0xff] %vm325, %v311
      %329 = vst.msk [vmem:[%s213 + $0x18] sm:$0xff] %vm325, %v312
      %330 = vst.msk [vmem:[%s213 + $0x20] sm:$0xff] %vm325, %v313
      %331 = vst.msk [vmem:[%s213 + $0x28] sm:$0xff] %vm325, %v314
      %332 = vst.msk [vmem:[%s213 + $0x30] sm:$0xff] %vm325, %v315
      %333 = vst.msk [vmem:[%s213 + $0x38] sm:$0xff] %vm325, %v316
      %334 = vst.msk [vmem:[%s213 + $0x40] sm:$0xff] %vm325, %v317
      %335 = vst.msk [vmem:[%s213 + $0x48] sm:$0xff] %vm325, %v318
      %336 = vst.msk [vmem:[%s213 + $0x50] sm:$0xff] %vm325, %v319
      %337 = vst.msk [vmem:[%s213 + $0x58] sm:$0xff] %vm325, %v320
      %338 = vst.msk [vmem:[%s213 + $0x60] sm:$0xff] %vm325, %v321
      %339 = vst.msk [vmem:[%s213 + $0x68] sm:$0xff] %vm325, %v322
      %340 = vst.msk [vmem:[%s213 + $0x70] sm:$0xff] %vm325, %v323
      %341 = vst.msk [vmem:[%s213 + $0x78] sm:$0xff] %vm325, %v324
      %s342 = smul.u32 8, %s19
      %p343 = scmp.lt.s32.totalorder %s18, 1
      %s344 = scalar_select %p343, %s18, 1
      %p345 = scmp.lt.s32.totalorder %s342, 15
      %s346 = scalar_select %p345, %s342, 15
      %s347 = smul.addr %s346, 2
      %s348 = smul.addr %s344, 32
      %s349 = sadd.s32 %s347, %s348
      %s350 = smul.addr %s349, 8
      %s351 = scalar_lea.vmem %s3, %s350
      // Predicated region
      $region33: #{conv_bn_leakyrelu.3} parent=31 // pred_check
        %p352 = pneg %p116
      $region34: #{conv_bn_leakyrelu.3} parent=31 // pred_check_branch
        %354 = sbr.rel (%p352) target = $region36
      $region35: #{conv_bn_leakyrelu.3} parent=31 // pred_region
        %s355 = smul.u32 8, %s19
      $region36: #{conv_bn_leakyrelu.3} parent=31 // pred_fallthru
        _
    $region32: #{conv_bn_leakyrelu.3} parent=5 // pred_fallthru
      _
    %p356 = scmp.le.s32.totalorder 2, %s9
    // Predicated region
    $region37: #{conv_bn_leakyrelu.3} parent=5 // pred_check
      %p357 = pneg %p356
    $region38: #{conv_bn_leakyrelu.3} parent=5 // pred_check_branch
      %359 = sbr.rel (%p357) target = $region40
    $region39: #{conv_bn_leakyrelu.3} parent=5 // pred_region
      %s360 = ssub.s32 %s9, 2
      // Predicated region
      $region41: #{conv_bn_leakyrelu.3} parent=39 // pred_check
        %p361 = pneg %p122
      $region42: #{conv_bn_leakyrelu.3} parent=39 // pred_check_branch
        %363 = sbr.rel (%p361) target = $region44
      $region43: #{conv_bn_leakyrelu.3} parent=39 // pred_region
        %s364 = smul.u32 8, %s21
        %p365 = scmp.lt.s32.totalorder %s20, 1
        %s366 = scalar_select %p365, %s20, 1
        %p367 = scmp.lt.s32.totalorder %s364, 15
        %s368 = scalar_select %p367, %s364, 15
        %s369 = smul.addr %s368, 2
        %s370 = smul.addr %s366, 32
        %s371 = sadd.s32 %s369, %s370
        %s372 = smul.addr %s371, 8
        %s373 = scalar_lea.vmem %s3, %s372
      $region44: #{conv_bn_leakyrelu.3} parent=39 // pred_fallthru
        _
    $region40: #{conv_bn_leakyrelu.3} parent=5 // pred_fallthru
      _
  $region6: #{conv_bn_leakyrelu.3} parent=0 // loop_footer
    %s13 = sadd.s32 1, %s9
  $region7: #{conv_bn_leakyrelu.3} parent=0 // loop_footer_branch
    %8 = sbr.rel target = $region3
  $region8: #{conv_bn_leakyrelu.3} parent=0 // loop_exit
    _

// kernel: conv_bn_leakyrelu.2
$region0: #{conv_bn_leakyrelu.2}
  #allocation0 [shape = 'u32[]', space=smem, size = 0x4, offset = 0x4, fixed_abs, tag = 'smem constant byte address 0x4 - core index']
  #allocation1 [shape = 'u32[144,128]{1,0:T(1,128)}', space=vmem, size = 0x12000, scoped, tag = 'internal scratch']
  %s0 = inlined_call_operand.vmem [shape: f32[2,324,4], index: 0, kind: input, shape index: {}]
  %s1 = inlined_call_operand.vmem [shape: f32[9,4,128], index: 1, kind: input, shape index: {}]
  %s2 = inlined_call_operand.vmem [shape: f32[2,16,16,128], index: 2, kind: output, shape index: {0}]
  %s3 = inlined_call_operand.vmem [shape: f32[4,1,128], index: 3, kind: output, shape index: {1}]
  %s4 = inlined_call_operand.vmem [shape: f32[4,1,128], index: 4, kind: output, shape index: {2}]
  %5 = xla_tuple %s2, %s3, %s4
  %s6 = sld [smem:[#allocation0]]
  $region57: #{conv_bn_leakyrelu.2} parent=0
    _
  %s8 = ssub.s32 1, %s6
  %s9 = scalar_select 0, %s8, %s6
  loop: start=0, step=1, limit=6
  $region2: #{conv_bn_leakyrelu.2} parent=0 // loop_pre_header
    _
  $region3: #{conv_bn_leakyrelu.2} parent=0 // loop_header
    %s11 = sphi 0, %s15
    %p12 = scmp.ge.s32.totalorder %s11, 6
    %s18 = sphi 0, %s30
    %s19 = sphi 0, %s26
    %s20 = sphi 0, %s18
    %s21 = sphi 0, %s19
    %s22 = sphi 0, %s20
    %s23 = sphi 0, %s21
    %s33 = sphi 0, %s35
    %s36 = sphi 0, %s33
    %s37 = sphi 0, %s36
    %s53 = sphi 0, %s37
    %s57 = sphi 0, %s57
    %s59 = sphi 0, %s57
    %s60 = sphi 0, %s59
    %s74 = sphi 0, %s60
    %s82 = sphi 0, %s84
    %s85 = sphi 0, %s82
    %s86 = sphi 0, %s85
    %s102 = sphi 0, %s86
    %s112 = sphi 0, %s114
    %s115 = sphi 0, %s112
    %s116 = sphi 0, %s115
    %s132 = sphi 0, %s116
    %s142 = sphi 0, %s144
    %s145 = sphi 0, %s142
    %s146 = sphi 0, %s145
    %s162 = sphi 0, %s146
  $region4: #{conv_bn_leakyrelu.2} parent=0 // loop_header_branch
    %14 = sbr.rel (%p12) target = $region8
  $region5: #{conv_bn_leakyrelu.2} parent=0 // loop_body
    %s16 = ssub.s32 %s11, 1
    %s17 = ssub.s32 %s11, 2
    %s24 = sadd.s32 1, %s19
    %p25 = scmp.ge.s32.totalorder %s24, 2
    %s26 = scalar_select %p25, 0, %s24
    %s27 = sadd.s32 1, %s18
    %s28 = scalar_select %p25, %s27, %s18
    %p29 = scmp.ge.s32.totalorder %s28, 2
    %s30 = scalar_select %p29, 0, %s28
    %s31 = ssub.s32 %s18, %s30
    %p32 = scmp.eq.s32.totalorder %s31, 0
    %s34 = sadd.s32 %s33, 1
    %s35 = scalar_select %p32, %s33, %s34
    %p38 = pneg %p32
    %p39 = scmp.eq.s32.totalorder %s11, 3
    %p40 = por %p38, %p39
    %p41 = scmp.ne.s32.totalorder %s33, %s36
    %p42 = scmp.eq.s32.totalorder %s11, 0
    %p43 = por %p41, %p42
    %p44 = scmp.ne.s32.totalorder %s33, %s36
    %p45 = scmp.eq.s32.totalorder %s16, 3
    %p46 = por %p44, %p45
    %p47 = scmp.ne.s32.totalorder %s36, %s37
    %p48 = scmp.eq.s32.totalorder %s16, 0
    %p49 = por %p47, %p48
    %p50 = scmp.ne.s32.totalorder %s36, %s37
    %p51 = scmp.eq.s32.totalorder %s17, 3
    %p52 = por %p50, %p51
    %p54 = scmp.ne.s32.totalorder %s37, %s53
    %p55 = scmp.eq.s32.totalorder %s17, 0
    %p56 = por %p54, %p55
    %s58 = sadd.s32 %s57, 1
    %p61 = scmp.eq.s32.totalorder %s11, 3
    %p62 = scmp.ne.s32.totalorder %s57, %s59
    %p63 = scmp.eq.s32.totalorder %s11, 0
    %p64 = por %p62, %p63
    %p65 = scmp.ne.s32.totalorder %s57, %s59
    %p66 = scmp.eq.s32.totalorder %s16, 3
    %p67 = por %p65, %p66
    %p68 = scmp.ne.s32.totalorder %s59, %s60
    %p69 = scmp.eq.s32.totalorder %s16, 0
    %p70 = por %p68, %p69
    %p71 = scmp.ne.s32.totalorder %s59, %s60
    %p72 = scmp.eq.s32.totalorder %s17, 3
    %p73 = por %p71, %p72
    %p75 = scmp.ne.s32.totalorder %s60, %s74
    %p76 = scmp.eq.s32.totalorder %s17, 0
    %p77 = por %p75, %p76
    %s78 = ssub.s32 %s18, %s30
    %s79 = ssub.s32 %s19, %s26
    %s80 = sor.u32 %s78, %s79
    %p81 = scmp.eq.s32.totalorder %s80, 0
    %s83 = sadd.s32 %s82, 1
    %s84 = scalar_select %p81, %s82, %s83
    %p87 = pneg %p81
    %p88 = scmp.eq.s32.totalorder %s11, 3
    %p89 = por %p87, %p88
    %p90 = scmp.ne.s32.totalorder %s82, %s85
    %p91 = scmp.eq.s32.totalorder %s11, 0
    %p92 = por %p90, %p91
    %p93 = scmp.ne.s32.totalorder %s82, %s85
    %p94 = scmp.eq.s32.totalorder %s16, 3
    %p95 = por %p93, %p94
    %p96 = scmp.ne.s32.totalorder %s85, %s86
    %p97 = scmp.eq.s32.totalorder %s16, 0
    %p98 = por %p96, %p97
    %p99 = scmp.ne.s32.totalorder %s85, %s86
    %p100 = scmp.eq.s32.totalorder %s17, 3
    %p101 = por %p99, %p100
    %p103 = scmp.ne.s32.totalorder %s86, %s102
    %p104 = scmp.eq.s32.totalorder %s17, 0
    %p105 = por %p103, %p104
    %s106 = smul.u32 %s18, 2
    %s107 = sadd.s32 %s106, %s19
    %s108 = smul.u32 %s30, 2
    %s109 = sadd.s32 %s108, %s26
    %s110 = ssub.s32 %s107, %s109
    %p111 = scmp.eq.s32.totalorder %s110, 0
    %s113 = sadd.s32 %s112, 1
    %s114 = scalar_select %p111, %s112, %s113
    %p117 = pneg %p111
    %p118 = scmp.eq.s32.totalorder %s11, 3
    %p119 = por %p117, %p118
    %p120 = scmp.ne.s32.totalorder %s112, %s115
    %p121 = scmp.eq.s32.totalorder %s11, 0
    %p122 = por %p120, %p121
    %p123 = scmp.ne.s32.totalorder %s112, %s115
    %p124 = scmp.eq.s32.totalorder %s16, 3
    %p125 = por %p123, %p124
    %p126 = scmp.ne.s32.totalorder %s115, %s116
    %p127 = scmp.eq.s32.totalorder %s16, 0
    %p128 = por %p126, %p127
    %p129 = scmp.ne.s32.totalorder %s115, %s116
    %p130 = scmp.eq.s32.totalorder %s17, 3
    %p131 = por %p129, %p130
    %p133 = scmp.ne.s32.totalorder %s116, %s132
    %p134 = scmp.eq.s32.totalorder %s17, 0
    %p135 = por %p133, %p134
    %s136 = smul.u32 %s18, 2
    %s137 = sadd.s32 %s136, %s19
    %s138 = smul.u32 %s30, 2
    %s139 = sadd.s32 %s138, %s26
    %s140 = ssub.s32 %s137, %s139
    %p141 = scmp.eq.s32.totalorder %s140, 0
    %s143 = sadd.s32 %s142, 1
    %s144 = scalar_select %p141, %s142, %s143
    %p147 = pneg %p141
    %p148 = scmp.eq.s32.totalorder %s11, 3
    %p149 = por %p147, %p148
    %p150 = scmp.ne.s32.totalorder %s142, %s145
    %p151 = scmp.eq.s32.totalorder %s11, 0
    %p152 = por %p150, %p151
    %p153 = scmp.ne.s32.totalorder %s142, %s145
    %p154 = scmp.eq.s32.totalorder %s16, 3
    %p155 = por %p153, %p154
    %p156 = scmp.ne.s32.totalorder %s145, %s146
    %p157 = scmp.eq.s32.totalorder %s16, 0
    %p158 = por %p156, %p157
    %p159 = scmp.ne.s32.totalorder %s145, %s146
    %p160 = scmp.eq.s32.totalorder %s17, 3
    %p161 = por %p159, %p160
    %p163 = scmp.ne.s32.totalorder %s146, %s162
    %p164 = scmp.eq.s32.totalorder %s17, 0
    %p165 = por %p163, %p164
    %p166 = scmp.le.s32.totalorder 1, %s11
    %p167 = scmp.lt.s32.totalorder %s11, 5
    %p168 = pnand %p166, %p167
    %p169 = pneg %p168
    // Predicated region
    $region9: #{conv_bn_leakyrelu.2} parent=5 // pred_check
      _
    $region10: #{conv_bn_leakyrelu.2} parent=5 // pred_check_branch
      %171 = sbr.rel (%p168) target = $region12
    $region11: #{conv_bn_leakyrelu.2} parent=5 // pred_region
      %s172 = ssub.s32 %s11, 1
      // Predicated region
      $region13: #{conv_bn_leakyrelu.2} parent=11 // pred_check
        %p173 = pneg %p70
      $region14: #{conv_bn_leakyrelu.2} parent=11 // pred_check_branch
        %175 = sbr.rel (%p173) target = $region16
      $region15: #{conv_bn_leakyrelu.2} parent=11 // pred_region
        _
      $region16: #{conv_bn_leakyrelu.2} parent=11 // pred_fallthru
        _
    $region12: #{conv_bn_leakyrelu.2} parent=5 // pred_fallthru
      _
    %p176 = scmp.lt.s32.totalorder %s11, 4
    // Predicated region
    $region17: #{conv_bn_leakyrelu.2} parent=5 // pred_check
      %p177 = pneg %p176
    $region18: #{conv_bn_leakyrelu.2} parent=5 // pred_check_branch
      %179 = sbr.rel (%p177) target = $region20
    $region19: #{conv_bn_leakyrelu.2} parent=5 // pred_region
      // Predicated region
      $region21: #{conv_bn_leakyrelu.2} parent=19 // pred_check
        %p180 = pneg %p43
      $region22: #{conv_bn_leakyrelu.2} parent=19 // pred_check_branch
        %182 = sbr.rel (%p180) target = $region24
      $region23: #{conv_bn_leakyrelu.2} parent=19 // pred_region
        %p183 = scmp.lt.s32.totalorder %s18, 1
        %s184 = scalar_select %p183, %s18, 1
        %s185 = smul.addr %s184, 41
        %s186 = smul.addr %s185, 8
        %s187 = scalar_lea.vmem %s0, %s186
      $region24: #{conv_bn_leakyrelu.2} parent=19 // pred_fallthru
        _
    $region20: #{conv_bn_leakyrelu.2} parent=5 // pred_fallthru
      _
    %p188 = scmp.le.s32.totalorder 1, %s11
    %p189 = scmp.lt.s32.totalorder %s11, 5
    %p190 = pnand %p188, %p189
    %p191 = pneg %p190
    // Predicated region
    $region25: #{conv_bn_leakyrelu.2} parent=5 // pred_check
      _
    $region26: #{conv_bn_leakyrelu.2} parent=5 // pred_check_branch
      %193 = sbr.rel (%p190) target = $region28
    $region27: #{conv_bn_leakyrelu.2} parent=5 // pred_region
      %s194 = ssub.s32 %s11, 1
      %p195 = scmp.lt.s32.totalorder %s20, 1
      %s196 = scalar_select %p195, %s20, 1
      %s197 = smul.addr %s196, 41
      %s198 = smul.addr %s197, 8
      %s199 = scalar_lea.vmem %s0, %s198
      %p200 = pneg %p49
      %p201 = pneg %p46
      %p202 = pneg %p70
      %p203 = pneg %p67
      %p204 = pneg %p98
      %p205 = pneg %p95
      %s206 = smul.u32 8, %s21
      %p207 = scmp.lt.s32.totalorder %s20, 1
      %s208 = scalar_select %p207, %s20, 1
      %p209 = scmp.lt.s32.totalorder %s206, 15
      %s210 = scalar_select %p209, %s206, 15
      %s211 = smul.addr %s210, 2
      %s212 = smul.addr %s208, 32
      %s213 = sadd.s32 %s211, %s212
      %s214 = smul.addr %s213, 8
      %s215 = scalar_lea.vmem %s2, %s214
      %p216 = pneg %p128
      %p217 = pneg %p125
      %s218 = smul.u32 %s20, 2
      %s219 = sadd.s32 %s218, %s21
      %p220 = scmp.lt.s32.totalorder %s219, 3
      %s221 = scalar_select %p220, %s219, 3
      %s222 = scalar_lea.vmem %s3, %s221
      %p223 = pneg %p158
      %p224 = pneg %p155
      %s225 = smul.u32 %s20, 2
      %s226 = sadd.s32 %s225, %s21
      %p227 = scmp.lt.s32.totalorder %s226, 3
      %s228 = scalar_select %p227, %s226, 3
      %s229 = scalar_lea.vmem %s4, %s228
      %p230 = scmp.lt.s32.totalorder %s20, 1
      %s231 = scalar_select %p230, %s20, 1
      %s232 = smul.addr %s231, 41
      %s233 = smul.addr %s232, 8
      %s234 = scalar_lea.vmem %s0, %s233
      %s235 = smul.u32 8, %s21
      %p236 = scmp.lt.s32.totalorder %s20, 1
      %s237 = scalar_select %p236, %s20, 1
      %p238 = scmp.lt.s32.totalorder %s235, 15
      %s239 = scalar_select %p238, %s235, 15
      %s240 = smul.addr %s239, 2
      %s241 = smul.addr %s237, 32
      %s242 = sadd.s32 %s240, %s241
      %s243 = smul.addr %s242, 8
      %s244 = scalar_lea.vmem %s2, %s243
      %s245 = smul.u32 8, %s21
      %s246 = smul.u32 %s20, 2
      %s247 = sadd.s32 %s246, %s21
      %p248 = scmp.lt.s32.totalorder %s247, 3
      %s249 = scalar_select %p248, %s247, 3
      %s250 = scalar_lea.vmem %s3, %s249
      %s251 = smul.u32 %s20, 2
      %s252 = sadd.s32 %s251, %s21
      %s253 = smul.u32 %s20, 2
      %s254 = sadd.s32 %s253, %s21
      %p255 = scmp.lt.s32.totalorder %s254, 3
      %s256 = scalar_select %p255, %s254, 3
      %s257 = scalar_lea.vmem %s4, %s256
      %s258 = smul.u32 %s20, 2
      %s259 = sadd.s32 %s258, %s21
      %s260 = smul.u32 %s21, 8
      %s261 = smul.u32 %s21, 144
      %s262 = scalar_lea.vmem %s234, %s261
      %v263 = vld [vmem:[%s262] sm:$0xff]
      %v264 = vld [vmem:[%s262 + $0x8] sm:$0xff]
      %v265 = vld [vmem:[%s1] sm:$0xf]
      %s266 = sadd.s32 %s261, 1
      %s267 = scalar_lea.vmem %s234, %s266
      %v268 = vld [vmem:[%s267] sm:$0xff]
      %v269 = vld [vmem:[%s267 + $0x8] sm:$0xff]
      %s270 = scalar_lea.vmem %s1, 4
      %v271 = vld [vmem:[%s270] sm:$0xf]
      %vm272 = vcmask 31744
      %v274 = vsel %vm272, %v268, 0
      %v277 = vsel %vm272, %v269, 0
      %vm279 = vcmask 1043456
      %v281 = vsel %vm279, %v271, 0
      %283 = vmatprep.subr.mxu0 0.0
      %284 = vmatpush1.msra.mxu0 %v281
      %285 = vmatprep.subr.mxu0 0.0
      %286 = vmatpush1.msra.mxu0 0.0
      %287 = vmatprep.subr.mxu0 0.0
      %288 = vmatpush1.msra.mxu0 0.0
      %289 = vmatprep.subr.mxu0 0.0
      %290 = vmatpush1.msra.mxu0 0.0
      %291 = vmatprep.subr.mxu0 0.0
      %292 = vmatpush1.msra.mxu0 0.0
      %293 = vmatprep.subr.mxu0 0.0
      %294 = vmatpush1.msra.mxu0 0.0
      %295 = vmatprep.subr.mxu0 0.0
      %296 = vmatpush1.msra.mxu0 0.0
      %297 = vmatprep.subr.mxu0 0.0
      %298 = vmatpush1.msra.mxu0 0.0
      %299 = vmatprep.subr.mxu0 0.0
      %300 = vmatpush1.msra.mxu0 0.0
      %301 = vmatprep.subr.mxu0 0.0
      %302 = vmatpush1.msra.mxu0 0.0
      %303 = vmatprep.subr.mxu0 0.0
      %304 = vmatpush1.msra.mxu0 0.0
      %305 = vmatprep.subr.mxu0 0.0
      %306 = vmatpush1.msra.mxu0 0.0
      %307 = vmatprep.subr.mxu0 0.0
      %308 = vmatpush1.msra.mxu0 0.0
      %309 = vmatprep.subr.mxu0 0.0
      %310 = vmatpush1.msra.mxu0 0.0
      %311 = vmatprep.subr.mxu0 0.0
      %312 = vmatpush1.msra.mxu0 0.0
      %313 = vmatprep.subr.mxu0 0.0
      %314 = vmatpush1.msra.mxu0 0.0
      %315 = vmatprep.subr.mxu0 0.0
      %316 = vmatpush1.msra.mxu0 0.0
      %317 = vmatprep.subr.mxu0 0.0
      %318 = vmatpush1.msra.mxu0 0.0
      %319 = vmatprep.subr.mxu0 0.0
      %320 = vmatpush1.msra.mxu0 0.0
      %321 = vmatprep.subr.mxu0 0.0
      %322 = vmatpush1.msra.mxu0 0.0
      %323 = vmatprep.subr.mxu0 0.0
      %324 = vmatpush1.msra.mxu0 0.0
      %325 = vmatprep.subr.mxu0 0.0
      %326 = vmatpush1.msra.mxu0 0.0
      %327 = vmatprep.subr.mxu0 0.0
      %328 = vmatpush1.msra.mxu0 0.0
      %329 = vmatprep.subr.mxu0 0.0
      %330 = vmatpush1.msra.mxu0 0.0
      %331 = vmatprep.subr.mxu0 0.0
      %332 = vmatpush1.msra.mxu0 0.0
      %333 = vmatprep.subr.mxu0 0.0
      %334 = vmatpush1.msra.mxu0 0.0
      %335 = vmatprep.subr.mxu0 0.0
      %336 = vmatpush1.msra.mxu0 0.0
      %337 = vmatprep.subr.mxu0 0.0
      %338 = vmatpush1.msra.mxu0 0.0
      %339 = vmatprep.subr.mxu0 0.0
      %340 = vmatpush1.msra.mxu0 0.0
      %341 = vmatprep.subr.mxu0 0.0
      %342 = vmatpush1.msra.mxu0 0.0
      %343 = vmatprep.subr.mxu0 0.0
      %344 = vmatpush1.msra.mxu0 0.0
      %345 = vmatprep.subr.mxu0 0.0
      %346 = vmatpush1.msra.mxu0 0.0
      %347 = vmatprep.mubr.f32.mxu0 0.0
      %348 = vmatmul.mubr.f32.gmra.mrb[0].mxu0 %v274
      %v349 = vpop.f32.mrb[0].mxu0
      %v350 = vadd.f32 0.0, %v349
      %v351 = vpop.f32.mrb[0].mxu0
      %352 = vmatprep.mubr.f32.mxu0 0.0
      %353 = vmatmul.mubr.f32.gmra.mrb[0].mxu0 %v277
      %v354 = vpop.f32.mrb[0].mxu0
      %v355 = vadd.f32 0.0, %v354
      %v356 = vpop.f32.mrb[0].mxu0
      %357 = vdwg.mxu0
      %v359 = vsel %vm272, %v263, 0
      %v362 = vsel %vm272, %v264, 0
      %v365 = vsel %vm279, %v265, 0
      %367 = vmatprep.subr.mxu0 0.0
      %368 = vmatpush1.msra.mxu0 %v365
      %369 = vmatprep.subr.mxu0 0.0
      %370 = vmatpush1.msra.mxu0 0.0
      %371 = vmatprep.subr.mxu0 0.0
      %372 = vmatpush1.msra.mxu0 0.0
      %373 = vmatprep.subr.mxu0 0.0
      %374 = vmatpush1.msra.mxu0 0.0
      %375 = vmatprep.subr.mxu0 0.0
      %376 = vmatpush1.msra.mxu0 0.0
      %377 = vmatprep.subr.mxu0 0.0
      %378 = vmatpush1.msra.mxu0 0.0
      %379 = vmatprep.subr.mxu0 0.0
      %380 = vmatpush1.msra.mxu0 0.0
      %381 = vmatprep.subr.mxu0 0.0
      %382 = vmatpush1.msra.mxu0 0.0
      %383 = vmatprep.subr.mxu0 0.0
      %384 = vmatpush1.msra.mxu0 0.0
      %385 = vmatprep.subr.mxu0 0.0
      %386 = vmatpush1.msra.mxu0 0.0
      %387 = vmatprep.subr.mxu0 0.0
      %388 = vmatpush1.msra.mxu0 0.0
      %389 = vmatprep.subr.mxu0 0.0
      %390 = vmatpush1.msra.mxu0 0.0
      %391 = vmatprep.subr.mxu0 0.0
      %392 = vmatpush1.msra.mxu0 0.0
      %393 = vmatprep.subr.mxu0 0.0
      %394 = vmatpush1.msra.mxu0 0.0
      %395 = vmatprep.subr.mxu0 0.0
      %396 = vmatpush1.msra.mxu0 0.0
      %397 = vmatprep.subr.mxu0 0.0
      %398 = vmatpush1.msra.mxu0 0.0
      %399 = vmatprep.subr.mxu0 0.0
      %400 = vmatpush1.msra.mxu0 0.0
      %401 = vmatprep.subr.mxu0 0.0
      %402 = vmatpush1.msra.mxu0 0.0
      %403 = vmatprep.subr.mxu0 0.0
      %404 = vmatpush1.msra.mxu0 0.0
      %405 = vmatprep.subr.mxu0 0.0
      %406 = vmatpush1.msra.mxu0 0.0
      %407 = vmatprep.subr.mxu0 0.0
      %408 = vmatpush1.msra.mxu0 0.0
      %409 = vmatprep.subr.mxu0 0.0
      %410 = vmatpush1.msra.mxu0 0.0
      %411 = vmatprep.subr.mxu0 0.0
      %412 = vmatpush1.msra.mxu0 0.0
      %413 = vmatprep.subr.mxu0 0.0
      %414 = vmatpush1.msra.mxu0 0.0
      %415 = vmatprep.subr.mxu0 0.0
      %416 = vmatpush1.msra.mxu0 0.0
      %417 = vmatprep.subr.mxu0 0.0
      %418 = vmatpush1.msra.mxu0 0.0
      %419 = vmatprep.subr.mxu0 0.0
      %420 = vmatpush1.msra.mxu0 0.0
      %421 = vmatprep.subr.mxu0 0.0
      %422 = vmatpush1.msra.mxu0 0.0
      %423 = vmatprep.subr.mxu0 0.0
      %424 = vmatpush1.msra.mxu0 0.0
      %425 = vmatprep.subr.mxu0 0.0
      %426 = vmatpush1.msra.mxu0 0.0
      %427 = vmatprep.subr.mxu0 0.0
      %428 = vmatpush1.msra.mxu0 0.0
      %429 = vmatprep.subr.mxu0 0.0
      %430 = vmatpush1.msra.mxu0 0.0
      %431 = vmatprep.mubr.f32.mxu0 0.0
      %432 = vmatmul.mubr.f32.gmra.mrb[0].mxu0 %v359
      %v433 = vpop.f32.mrb[0].mxu0
      %v434 = vadd.f32 %v350, %v433
      %v435 = vpop.f32.mrb[0].mxu0
      %436 = vmatprep.mubr.f32.mxu0 0.0
      %437 = vmatmul.mubr.f32.gmra.mrb[0].mxu0 %v362
      %v438 = vpop.f32.mrb[0].mxu0
      %v439 = vadd.f32 %v355, %v438
      %v440 = vpop.f32.mrb[0].mxu0
      %441 = vdwg.mxu0
      %s442 = sadd.s32 %s261, 2
      %s443 = scalar_lea.vmem %s234, %s442
      %v444 = vld [vmem:[%s443] sm:$0xff]
      %v445 = vld [vmem:[%s443 + $0x8] sm:$0xff]
      %s446 = scalar_lea.vmem %s1, 8
      %v447 = vld [vmem:[%s446] sm:$0xf]
      %v449 = vsel %vm272, %v444, 0
      %v452 = vsel %vm272, %v445, 0
      %v455 = vsel %vm279, %v447, 0
      %457 = vmatprep.subr.mxu0 0.0
      %458 = vmatpush1.msra.mxu0 %v455
      %459 = vmatprep.subr.mxu0 0.0
      %460 = vmatpush1.msra.mxu0 0.0
      %461 = vmatprep.subr.mxu0 0.0
      %462 = vmatpush1.msra.mxu0 0.0
      %463 = vmatprep.subr.mxu0 0.0
      %464 = vmatpush1.msra.mxu0 0.0
      %465 = vmatprep.subr.mxu0 0.0
      %466 = vmatpush1.msra.mxu0 0.0
      %467 = vmatprep.subr.mxu0 0.0
      %468 = vmatpush1.msra.mxu0 0.0
      %469 = vmatprep.subr.mxu0 0.0
      %470 = vmatpush1.msra.mxu0 0.0
      %471 = vmatprep.subr.mxu0 0.0
      %472 = vmatpush1.msra.mxu0 0.0
      %473 = vmatprep.subr.mxu0 0.0
      %474 = vmatpush1.msra.mxu0 0.0
      %475 = vmatprep.subr.mxu0 0.0
      %476 = vmatpush1.msra.mxu0 0.0
      %477 = vmatprep.subr.mxu0 0.0
      %478 = vmatpush1.msra.mxu0 0.0
      %479 = vmatprep.subr.mxu0 0.0
      %480 = vmatpush1.msra.mxu0 0.0
      %481 = vmatprep.subr.mxu0 0.0
      %482 = vmatpush1.msra.mxu0 0.0
      %483 = vmatprep.subr.mxu0 0.0
      %484 = vmatpush1.msra.mxu0 0.0
      %485 = vmatprep.subr.mxu0 0.0
      %486 = vmatpush1.msra.mxu0 0.0
      %487 = vmatprep.subr.mxu0 0.0
      %488 = vmatpush1.msra.mxu0 0.0
      %489 = vmatprep.subr.mxu0 0.0
      %490 = vmatpush1.msra.mxu0 0.0
      %491 = vmatprep.subr.mxu0 0.0
      %492 = vmatpush1.msra.mxu0 0.0
      %493 = vmatprep.subr.mxu0 0.0
      %494 = vmatpush1.msra.mxu0 0.0
      %495 = vmatprep.subr.mxu0 0.0
      %496 = vmatpush1.msra.mxu0 0.0
      %497 = vmatprep.subr.mxu0 0.0
      %498 = vmatpush1.msra.mxu0 0.0
      %499 = vmatprep.subr.mxu0 0.0
      %500 = vmatpush1.msra.mxu0 0.0
      %501 = vmatprep.subr.mxu0 0.0
      %502 = vmatpush1.msra.mxu0 0.0
      %503 = vmatprep.subr.mxu0 0.0
      %504 = vmatpush1.msra.mxu0 0.0
      %505 = vmatprep.subr.mxu0 0.0
      %506 = vmatpush1.msra.mxu0 0.0
      %507 = vmatprep.subr.mxu0 0.0
      %508 = vmatpush1.msra.mxu0 0.0
      %509 = vmatprep.subr.mxu0 0.0
      %510 = vmatpush1.msra.mxu0 0.0
      %511 = vmatprep.subr.mxu0 0.0
      %512 = vmatpush1.msra.mxu0 0.0
      %513 = vmatprep.subr.mxu0 0.0
      %514 = vmatpush1.msra.mxu0 0.0
      %515 = vmatprep.subr.mxu0 0.0
      %516 = vmatpush1.msra.mxu0 0.0
      %517 = vmatprep.subr.mxu0 0.0
      %518 = vmatpush1.msra.mxu0 0.0
      %519 = vmatprep.subr.mxu0 0.0
      %520 = vmatpush1.msra.mxu0 0.0
      %521 = vmatprep.mubr.f32.mxu0 0.0
      %522 = vmatmul.mubr.f32.gmra.mrb[0].mxu0 %v449
      %v523 = vpop.f32.mrb[0].mxu0
      %v524 = vadd.f32 0.0, %v523
      %v525 = vpop.f32.mrb[0].mxu0
      %526 = vmatprep.mubr.f32.mxu0 0.0
      %527 = vmatmul.mubr.f32.gmra.mrb[0].mxu0 %v452
      %v528 = vpop.f32.mrb[0].mxu0
      %v529 = vadd.f32 0.0, %v528
      %v530 = vpop.f32.mrb[0].mxu0
      %531 = vdwg.mxu0
      %v532 = vadd.f32 %v434, %v524
      %v533 = vadd.f32 %v439, %v529
      %s534 = sadd.s32 %s261, 18
      %s535 = scalar_lea.vmem %s234, %s534
      %v536 = vld [vmem:[%s535] sm:$0xff]
      %v537 = vld [vmem:[%s535 + $0x8] sm:$0xff]
      %s538 = scalar_lea.vmem %s1, 12
      %v539 = vld [vmem:[%s538] sm:$0xf]
      %v541 = vsel %vm272, %v536, 0
      %v544 = vsel %vm272, %v537, 0
      %v547 = vsel %vm279, %v539, 0
      %549 = vmatprep.subr.mxu0 0.0
      %550 = vmatpush1.msra.mxu0 %v547
      %551 = vmatprep.subr.mxu0 0.0
      %552 = vmatpush1.msra.mxu0 0.0
      %553 = vmatprep.subr.mxu0 0.0
      %554 = vmatpush1.msra.mxu0 0.0
      %555 = vmatprep.subr.mxu0 0.0
      %556 = vmatpush1.msra.mxu0 0.0
      %557 = vmatprep.subr.mxu0 0.0
      %558 = vmatpush1.msra.mxu0 0.0
      %559 = vmatprep.subr.mxu0 0.0
      %560 = vmatpush1.msra.mxu0 0.0
      %561 = vmatprep.subr.mxu0 0.0
      %562 = vmatpush1.msra.mxu0 0.0
      %563 = vmatprep.subr.mxu0 0.0
      %564 = vmatpush1.msra.mxu0 0.0
      %565 = vmatprep.subr.mxu0 0.0
      %566 = vmatpush1.msra.mxu0 0.0
      %567 = vmatprep.subr.mxu0 0.0
      %568 = vmatpush1.msra.mxu0 0.0
      %569 = vmatprep.subr.mxu0 0.0
      %570 = vmatpush1.msra.mxu0 0.0
      %571 = vmatprep.subr.mxu0 0.0
      %572 = vmatpush1.msra.mxu0 0.0
      %573 = vmatprep.subr.mxu0 0.0
      %574 = vmatpush1.msra.mxu0 0.0
      %575 = vmatprep.subr.mxu0 0.0
      %576 = vmatpush1.msra.mxu0 0.0
      %577 = vmatprep.subr.mxu0 0.0
      %578 = vmatpush1.msra.mxu0 0.0
      %579 = vmatprep.subr.mxu0 0.0
      %580 = vmatpush1.msra.mxu0 0.0
      %581 = vmatprep.subr.mxu0 0.0
      %582 = vmatpush1.msra.mxu0 0.0
      %583 = vmatprep.subr.mxu0 0.0
      %584 = vmatpush1.msra.mxu0 0.0
      %585 = vmatprep.subr.mxu0 0.0
      %586 = vmatpush1.msra.mxu0 0.0
      %587 = vmatprep.subr.mxu0 0.0
      %588 = vmatpush1.msra.mxu0 0.0
      %589 = vmatprep.subr.mxu0 0.0
      %590 = vmatpush1.msra.mxu0 0.0
      %591 = vmatprep.subr.mxu0 0.0
      %592 = vmatpush1.msra.mxu0 0.0
      %593 = vmatprep.subr.mxu0 0.0
      %594 = vmatpush1.msra.mxu0 0.0
      %595 = vmatprep.subr.mxu0 0.0
      %596 = vmatpush1.msra.mxu0 0.0
      %597 = vmatprep.subr.mxu0 0.0
      %598 = vmatpush1.msra.mxu0 0.0
      %599 = vmatprep.subr.mxu0 0.0
      %600 = vmatpush1.msra.mxu0 0.0
      %601 = vmatprep.subr.mxu0 0.0
      %602 = vmatpush1.msra.mxu0 0.0
      %603 = vmatprep.subr.mxu0 0.0
      %604 = vmatpush1.msra.mxu0 0.0
      %605 = vmatprep.subr.mxu0 0.0
      %606 = vmatpush1.msra.mxu0 0.0
      %607 = vmatprep.subr.mxu0 0.0
      %608 = vmatpush1.msra.mxu0 0.0
      %609 = vmatprep.subr.mxu0 0.0
      %610 = vmatpush1.msra.mxu0 0.0
      %611 = vmatprep.subr.mxu0 0.0
      %612 = vmatpush1.msra.mxu0 0.0
      %613 = vmatprep.mubr.f32.mxu0 0.0
      %614 = vmatmul.mubr.f32.gmra.mrb[0].mxu0 %v541
      %v615 = vpop.f32.mrb[0].mxu0
      %v616 = vadd.f32 0.0, %v615
      %v617 = vpop.f32.mrb[0].mxu0
      %618 = vmatprep.mubr.f32.mxu0 0.0
      %619 = vmatmul.mubr.f32.gmra.mrb[0].mxu0 %v544
      %v620 = vpop.f32.mrb[0].mxu0
      %v621 = vadd.f32 0.0, %v620
      %v622 = vpop.f32.mrb[0].mxu0
      %623 = vdwg.mxu0
      %v624 = vadd.f32 %v532, %v616
      %v625 = vadd.f32 %v533, %v621
      %s626 = sadd.s32 %s261, 19
      %s627 = scalar_lea.vmem %s234, %s626
      %v628 = vld [vmem:[%s627] sm:$0xff]
      %v629 = vld [vmem:[%s627 + $0x8] sm:$0xff]
      %s630 = scalar_lea.vmem %s1, 16
      %v631 = vld [vmem:[%s630] sm:$0xf]
      %v633 = vsel %vm272, %v628, 0
      %v636 = vsel %vm272, %v629, 0
      %v639 = vsel %vm279, %v631, 0
      %641 = vmatprep.subr.mxu0 0.0
      %642 = vmatpush1.msra.mxu0 %v639
      %643 = vmatprep.subr.mxu0 0.0
      %644 = vmatpush1.msra.mxu0 0.0
      %645 = vmatprep.subr.mxu0 0.0
      %646 = vmatpush1.msra.mxu0 0.0
      %647 = vmatprep.subr.mxu0 0.0
      %648 = vmatpush1.msra.mxu0 0.0
      %649 = vmatprep.subr.mxu0 0.0
      %650 = vmatpush1.msra.mxu0 0.0
      %651 = vmatprep.subr.mxu0 0.0
      %652 = vmatpush1.msra.mxu0 0.0
      %653 = vmatprep.subr.mxu0 0.0
      %654 = vmatpush1.msra.mxu0 0.0
      %655 = vmatprep.subr.mxu0 0.0
      %656 = vmatpush1.msra.mxu0 0.0
      %657 = vmatprep.subr.mxu0 0.0
      %658 = vmatpush1.msra.mxu0 0.0
      %659 = vmatprep.subr.mxu0 0.0
      %660 = vmatpush1.msra.mxu0 0.0
      %661 = vmatprep.subr.mxu0 0.0
      %662 = vmatpush1.msra.mxu0 0.0
      %663 = vmatprep.subr.mxu0 0.0
      %664 = vmatpush1.msra.mxu0 0.0
      %665 = vmatprep.subr.mxu0 0.0
      %666 = vmatpush1.msra.mxu0 0.0
      %667 = vmatprep.subr.mxu0 0.0
      %668 = vmatpush1.msra.mxu0 0.0
      %669 = vmatprep.subr.mxu0 0.0
      %670 = vmatpush1.msra.mxu0 0.0
      %671 = vmatprep.subr.mxu0 0.0
      %672 = vmatpush1.msra.mxu0 0.0
      %673 = vmatprep.subr.mxu0 0.0
      %674 = vmatpush1.msra.mxu0 0.0
      %675 = vmatprep.subr.mxu0 0.0
      %676 = vmatpush1.msra.mxu0 0.0
      %677 = vmatprep.subr.mxu0 0.0
      %678 = vmatpush1.msra.mxu0 0.0
      %679 = vmatprep.subr.mxu0 0.0
      %680 = vmatpush1.msra.mxu0 0.0
      %681 = vmatprep.subr.mxu0 0.0
      %682 = vmatpush1.msra.mxu0 0.0
      %683 = vmatprep.subr.mxu0 0.0
      %684 = vmatpush1.msra.mxu0 0.0
      %685 = vmatprep.subr.mxu0 0.0
      %686 = vmatpush1.msra.mxu0 0.0
      %687 = vmatprep.subr.mxu0 0.0
      %688 = vmatpush1.msra.mxu0 0.0
      %689 = vmatprep.subr.mxu0 0.0
      %690 = vmatpush1.msra.mxu0 0.0
      %691 = vmatprep.subr.mxu0 0.0
      %692 = vmatpush1.msra.mxu0 0.0
      %693 = vmatprep.subr.mxu0 0.0
      %694 = vmatpush1.msra.mxu0 0.0
      %695 = vmatprep.subr.mxu0 0.0
      %696 = vmatpush1.msra.mxu0 0.0
      %697 = vmatprep.subr.mxu0 0.0
      %698 = vmatpush1.msra.mxu0 0.0
      %699 = vmatprep.subr.mxu0 0.0
      %700 = vmatpush1.msra.mxu0 0.0
      %701 = vmatprep.subr.mxu0 0.0
      %702 = vmatpush1.msra.mxu0 0.0
      %703 = vmatprep.subr.mxu0 0.0
      %704 = vmatpush1.msra.mxu0 0.0
      %705 = vmatprep.mubr.f32.mxu0 0.0
      %706 = vmatmul.mubr.f32.gmra.mrb[0].mxu0 %v633
      %v707 = vpop.f32.mrb[0].mxu0
      %v708 = vadd.f32 0.0, %v707
      %v709 = vpop.f32.mrb[0].mxu0
      %710 = vmatprep.mubr.f32.mxu0 0.0
      %711 = vmatmul.mubr.f32.gmra.mrb[0].mxu0 %v636
      %v712 = vpop.f32.mrb[0].mxu0
      %v713 = vadd.f32 0.0, %v712
      %v714 = vpop.f32.mrb[0].mxu0
      %715 = vdwg.mxu0
      %v716 = vadd.f32 %v624, %v708
      %v717 = vadd.f32 %v625, %v713
      %s718 = sadd.s32 %s261, 20
      %s719 = scalar_lea.vmem %s234, %s718
      %v720 = vld [vmem:[%s719] sm:$0xff]
      %v721 = vld [vmem:[%s719 + $0x8] sm:$0xff]
      %s722 = scalar_lea.vmem %s1, 20
      %v723 = vld [vmem:[%s722] sm:$0xf]
      %v725 = vsel %vm272, %v720, 0
      %v728 = vsel %vm272, %v721, 0
      %v731 = vsel %vm279, %v723, 0
      %733 = vmatprep.subr.mxu0 0.0
      %734 = vmatpush1.msra.mxu0 %v731
      %735 = vmatprep.subr.mxu0 0.0
      %736 = vmatpush1.msra.mxu0 0.0
      %737 = vmatprep.subr.mxu0 0.0
      %738 = vmatpush1.msra.mxu0 0.0
      %739 = vmatprep.subr.mxu0 0.0
      %740 = vmatpush1.msra.mxu0 0.0
      %741 = vmatprep.subr.mxu0 0.0
      %742 = vmatpush1.msra.mxu0 0.0
      %743 = vmatprep.subr.mxu0 0.0
      %744 = vmatpush1.msra.mxu0 0.0
      %745 = vmatprep.subr.mxu0 0.0
      %746 = vmatpush1.msra.mxu0 0.0
      %747 = vmatprep.subr.mxu0 0.0
      %748 = vmatpush1.msra.mxu0 0.0
      %749 = vmatprep.subr.mxu0 0.0
      %750 = vmatpush1.msra.mxu0 0.0
      %751 = vmatprep.subr.mxu0 0.0
      %752 = vmatpush1.msra.mxu0 0.0
      %753 = vmatprep.subr.mxu0 0.0
      %754 = vmatpush1.msra.mxu0 0.0
      %755 = vmatprep.subr.mxu0 0.0
      %756 = vmatpush1.msra.mxu0 0.0
      %757 = vmatprep.subr.mxu0 0.0
      %758 = vmatpush1.msra.mxu0 0.0
      %759 = vmatprep.subr.mxu0 0.0
      %760 = vmatpush1.msra.mxu0 0.0
      %761 = vmatprep.subr.mxu0 0.0
      %762 = vmatpush1.msra.mxu0 0.0
      %763 = vmatprep.subr.mxu0 0.0
      %764 = vmatpush1.msra.mxu0 0.0
      %765 = vmatprep.subr.mxu0 0.0
      %766 = vmatpush1.msra.mxu0 0.0
      %767 = vmatprep.subr.mxu0 0.0
      %768 = vmatpush1.msra.mxu0 0.0
      %769 = vmatprep.subr.mxu0 0.0
      %770 = vmatpush1.msra.mxu0 0.0
      %771 = vmatprep.subr.mxu0 0.0
      %772 = vmatpush1.msra.mxu0 0.0
      %773 = vmatprep.subr.mxu0 0.0
      %774 = vmatpush1.msra.mxu0 0.0
      %775 = vmatprep.subr.mxu0 0.0
      %776 = vmatpush1.msra.mxu0 0.0
      %777 = vmatprep.subr.mxu0 0.0
      %778 = vmatpush1.msra.mxu0 0.0
      %779 = vmatprep.subr.mxu0 0.0
      %780 = vmatpush1.msra.mxu0 0.0
      %781 = vmatprep.subr.mxu0 0.0
      %782 = vmatpush1.msra.mxu0 0.0
      %783 = vmatprep.subr.mxu0 0.0
      %784 = vmatpush1.msra.mxu0 0.0
      %785 = vmatprep.subr.mxu0 0.0
      %786 = vmatpush1.msra.mxu0 0.0
      %787 = vmatprep.subr.mxu0 0.0
      %788 = vmatpush1.msra.mxu0 0.0
      %789 = vmatprep.subr.mxu0 0.0
      %790 = vmatpush1.msra.mxu0 0.0
      %791 = vmatprep.subr.mxu0 0.0
      %792 = vmatpush1.msra.mxu0 0.0
      %793 = vmatprep.subr.mxu0 0.0
      %794 = vmatpush1.msra.mxu0 0.0
      %795 = vmatprep.subr.mxu0 0.0
      %796 = vmatpush1.msra.mxu0 0.0
      %797 = vmatprep.mubr.f32.mxu0 0.0
      %798 = vmatmul.mubr.f32.gmra.mrb[0].mxu0 %v725
      %v799 = vpop.f32.mrb[0].mxu0
      %v800 = vadd.f32 0.0, %v799
      %v801 = vpop.f32.mrb[0].mxu0
      %802 = vmatprep.mubr.f32.mxu0 0.0
      %803 = vmatmul.mubr.f32.gmra.mrb[0].mxu0 %v728
      %v804 = vpop.f32.mrb[0].mxu0
      %v805 = vadd.f32 0.0, %v804
      %v806 = vpop.f32.mrb[0].mxu0
      %807 = vdwg.mxu0
      %v808 = vadd.f32 %v716, %v800
      %v809 = vadd.f32 %v717, %v805
      %s810 = sadd.s32 %s261, 36
      %s811 = scalar_lea.vmem %s234, %s810
      %v812 = vld [vmem:[%s811] sm:$0xff]
      %v813 = vld [vmem:[%s811 + $0x8] sm:$0xff]
      %s814 = scalar_lea.vmem %s1, 24
      %v815 = vld [vmem:[%s814] sm:$0xf]
      %v817 = vsel %vm272, %v812, 0
      %v820 = vsel %vm272, %v813, 0
      %v823 = vsel %vm279, %v815, 0
      %825 = vmatprep.subr.mxu0 0.0
      %826 = vmatpush1.msra.mxu0 %v823
      %827 = vmatprep.subr.mxu0 0.0
      %828 = vmatpush1.msra.mxu0 0.0
      %829 = vmatprep.subr.mxu0 0.0
      %830 = vmatpush1.msra.mxu0 0.0
      %831 = vmatprep.subr.mxu0 0.0
      %832 = vmatpush1.msra.mxu0 0.0
      %833 = vmatprep.subr.mxu0 0.0
      %834 = vmatpush1.msra.mxu0 0.0
      %835 = vmatprep.subr.mxu0 0.0
      %836 = vmatpush1.msra.mxu0 0.0
      %837 = vmatprep.subr.mxu0 0.0
      %838 = vmatpush1.msra.mxu0 0.0
      %839 = vmatprep.subr.mxu0 0.0
      %840 = vmatpush1.msra.mxu0 0.0
      %841 = vmatprep.subr.mxu0 0.0
      %842 = vmatpush1.msra.mxu0 0.0
      %843 = vmatprep.subr.mxu0 0.0
      %844 = vmatpush1.msra.mxu0 0.0
      %845 = vmatprep.subr.mxu0 0.0
      %846 = vmatpush1.msra.mxu0 0.0
      %847 = vmatprep.subr.mxu0 0.0
      %848 = vmatpush1.msra.mxu0 0.0
      %849 = vmatprep.subr.mxu0 0.0
      %850 = vmatpush1.msra.mxu0 0.0
      %851 = vmatprep.subr.mxu0 0.0
      %852 = vmatpush1.msra.mxu0 0.0
      %853 = vmatprep.subr.mxu0 0.0
      %854 = vmatpush1.msra.mxu0 0.0
      %855 = vmatprep.subr.mxu0 0.0
      %856 = vmatpush1.msra.mxu0 0.0
      %857 = vmatprep.subr.mxu0 0.0
      %858 = vmatpush1.msra.mxu0 0.0
      %859 = vmatprep.subr.mxu0 0.0
      %860 = vmatpush1.msra.mxu0 0.0
      %861 = vmatprep.subr.mxu0 0.0
      %862 = vmatpush1.msra.mxu0 0.0
      %863 = vmatprep.subr.mxu0 0.0
      %864 = vmatpush1.msra.mxu0 0.0
      %865 = vmatprep.subr.mxu0 0.0
      %866 = vmatpush1.msra.mxu0 0.0
      %867 = vmatprep.subr.mxu0 0.0
      %868 = vmatpush1.msra.mxu0 0.0
      %869 = vmatprep.subr.mxu0 0.0
      %870 = vmatpush1.msra.mxu0 0.0
      %871 = vmatprep.subr.mxu0 0.0
      %872 = vmatpush1.msra.mxu0 0.0
      %873 = vmatprep.subr.mxu0 0.0
      %874 = vmatpush1.msra.mxu0 0.0
      %875 = vmatprep.subr.mxu0 0.0
      %876 = vmatpush1.msra.mxu0 0.0
      %877 = vmatprep.subr.mxu0 0.0
      %878 = vmatpush1.msra.mxu0 0.0
      %879 = vmatprep.subr.mxu0 0.0
      %880 = vmatpush1.msra.mxu0 0.0
      %881 = vmatprep.subr.mxu0 0.0
      %882 = vmatpush1.msra.mxu0 0.0
      %883 = vmatprep.subr.mxu0 0.0
      %884 = vmatpush1.msra.mxu0 0.0
      %885 = vmatprep.subr.mxu0 0.0
      %886 = vmatpush1.msra.mxu0 0.0
      %887 = vmatprep.subr.mxu0 0.0
      %888 = vmatpush1.msra.mxu0 0.0
      %889 = vmatprep.mubr.f32.mxu0 0.0
      %890 = vmatmul.mubr.f32.gmra.mrb[0].mxu0 %v817
      %v891 = vpop.f32.mrb[0].mxu0
      %v892 = vadd.f32 0.0, %v891
      %v893 = vpop.f32.mrb[0].mxu0
      %894 = vmatprep.mubr.f32.mxu0 0.0
      %895 = vmatmul.mubr.f32.gmra.mrb[0].mxu0 %v820
      %v896 = vpop.f32.mrb[0].mxu0
      %v897 = vadd.f32 0.0, %v896
      %v898 = vpop.f32.mrb[0].mxu0
      %899 = vdwg.mxu0
      %v900 = vadd.f32 %v808, %v892
      %v901 = vadd.f32 %v809, %v897
      %s902 = sadd.s32 %s261, 37
      %s903 = scalar_lea.vmem %s234, %s902
      %v904 = vld [vmem:[%s903] sm:$0xff]
      %v905 = vld [vmem:[%s903 + $0x8] sm:$0xff]
      %s906 = scalar_lea.vmem %s1, 28
      %v907 = vld [vmem:[%s906] sm:$0xf]
      %v909 = vsel %vm272, %v904, 0
      %v912 = vsel %vm272, %v905, 0
      %v915 = vsel %vm279, %v907, 0
      %917 = vmatprep.subr.mxu0 0.0
      %918 = vmatpush1.msra.mxu0 %v915
      %919 = vmatprep.subr.mxu0 0.0
      %920 = vmatpush1.msra.mxu0 0.0
      %921 = vmatprep.subr.mxu0 0.0
      %922 = vmatpush1.msra.mxu0 0.0
      %923 = vmatprep.subr.mxu0 0.0
      %924 = vmatpush1.msra.mxu0 0.0
      %925 = vmatprep.subr.mxu0 0.0
      %926 = vmatpush1.msra.mxu0 0.0
      %927 = vmatprep.subr.mxu0 0.0
      %928 = vmatpush1.msra.mxu0 0.0
      %929 = vmatprep.subr.mxu0 0.0
      %930 = vmatpush1.msra.mxu0 0.0
      %931 = vmatprep.subr.mxu0 0.0
      %932 = vmatpush1.msra.mxu0 0.0
      %933 = vmatprep.subr.mxu0 0.0
      %934 = vmatpush1.msra.mxu0 0.0
      %935 = vmatprep.subr.mxu0 0.0
      %936 = vmatpush1.msra.mxu0 0.0
      %937 = vmatprep.subr.mxu0 0.0
      %938 = vmatpush1.msra.mxu0 0.0
      %939 = vmatprep.subr.mxu0 0.0
      %940 = vmatpush1.msra.mxu0 0.0
      %941 = vmatprep.subr.mxu0 0.0
      %942 = vmatpush1.msra.mxu0 0.0
      %943 = vmatprep.subr.mxu0 0.0
      %944 = vmatpush1.msra.mxu0 0.0
      %945 = vmatprep.subr.mxu0 0.0
      %946 = vmatpush1.msra.mxu0 0.0
      %947 = vmatprep.subr.mxu0 0.0
      %948 = vmatpush1.msra.mxu0 0.0
      %949 = vmatprep.subr.mxu0 0.0
      %950 = vmatpush1.msra.mxu0 0.0
      %951 = vmatprep.subr.mxu0 0.0
      %952 = vmatpush1.msra.mxu0 0.0
      %953 = vmatprep.subr.mxu0 0.0
      %954 = vmatpush1.msra.mxu0 0.0
      %955 = vmatprep.subr.mxu0 0.0
      %956 = vmatpush1.msra.mxu0 0.0
      %957 = vmatprep.subr.mxu0 0.0
      %958 = vmatpush1.msra.mxu0 0.0
      %959 = vmatprep.subr.mxu0 0.0
      %960 = vmatpush1.msra.mxu0 0.0
      %961 = vmatprep.subr.mxu0 0.0
      %962 = vmatpush1.msra.mxu0 0.0
      %963 = vmatprep.subr.mxu0 0.0
      %964 = vmatpush1.msra.mxu0 0.0
      %965 = vmatprep.subr.mxu0 0.0
      %966 = vmatpush1.msra.mxu0 0.0
      %967 = vmatprep.subr.mxu0 0.0
      %968 = vmatpush1.msra.mxu0 0.0
      %969 = vmatprep.subr.mxu0 0.0
      %970 = vmatpush1.msra.mxu0 0.0
      %971 = vmatprep.subr.mxu0 0.0
      %972 = vmatpush1.msra.mxu0 0.0
      %973 = vmatprep.subr.mxu0 0.0
      %974 = vmatpush1.msra.mxu0 0.0
      %975 = vmatprep.subr.mxu0 0.0
      %976 = vmatpush1.msra.mxu0 0.0
      %977 = vmatprep.subr.mxu0 0.0
      %978 = vmatpush1.msra.mxu0 0.0
      %979 = vmatprep.subr.mxu0 0.0
      %980 = vmatpush1.msra.mxu0 0.0
      %981 = vmatprep.mubr.f32.mxu0 0.0
      %982 = vmatmul.mubr.f32.gmra.mrb[0].mxu0 %v909
      %v983 = vpop.f32.mrb[0].mxu0
      %v984 = vadd.f32 0.0, %v983
      %v985 = vpop.f32.mrb[0].mxu0
      %986 = vmatprep.mubr.f32.mxu0 0.0
      %987 = vmatmul.mubr.f32.gmra.mrb[0].mxu0 %v912
      %v988 = vpop.f32.mrb[0].mxu0
      %v989 = vadd.f32 0.0, %v988
      %v990 = vpop.f32.mrb[0].mxu0
      %991 = vdwg.mxu0
      %v992 = vadd.f32 %v900, %v984
      %v993 = vadd.f32 %v901, %v989
      %s994 = sadd.s32 %s261, 38
      %s995 = scalar_lea.vmem %s234, %s994
      %v996 = vld [vmem:[%s995] sm:$0xff]
      %v997 = vld [vmem:[%s995 + $0x8] sm:$0xff]
      %s998 = scalar_lea.vmem %s1, 32
      %v999 = vld [vmem:[%s998] sm:$0xf]
      %v1001 = vsel %vm272, %v996, 0
      %v1004 = vsel %vm272, %v997, 0
      %v1007 = vsel %vm279, %v999, 0
      %1009 = vmatprep.subr.mxu0 0.0
      %1010 = vmatpush1.msra.mxu0 %v1007
      %1011 = vmatprep.subr.mxu0 0.0
      %1012 = vmatpush1.msra.mxu0 0.0
      %1013 = vmatprep.subr.mxu0 0.0
      %1014 = vmatpush1.msra.mxu0 0.0
      %1015 = vmatprep.subr.mxu0 0.0
      %1016 = vmatpush1.msra.mxu0 0.0
      %1017 = vmatprep.subr.mxu0 0.0
      %1018 = vmatpush1.msra.mxu0 0.0
      %1019 = vmatprep.subr.mxu0 0.0
      %1020 = vmatpush1.msra.mxu0 0.0
      %1021 = vmatprep.subr.mxu0 0.0
      %1022 = vmatpush1.msra.mxu0 0.0
      %1023 = vmatprep.subr.mxu0 0.0
      %1024 = vmatpush1.msra.mxu0 0.0
      %1025 = vmatprep.subr.mxu0 0.0
      %1026 = vmatpush1.msra.mxu0 0.0
      %1027 = vmatprep.subr.mxu0 0.0
      %1028 = vmatpush1.msra.mxu0 0.0
      %1029 = vmatprep.subr.mxu0 0.0
      %1030 = vmatpush1.msra.mxu0 0.0
      %1031 = vmatprep.subr.mxu0 0.0
      %1032 = vmatpush1.msra.mxu0 0.0
      %1033 = vmatprep.subr.mxu0 0.0
      %1034 = vmatpush1.msra.mxu0 0.0
      %1035 = vmatprep.subr.mxu0 0.0
      %1036 = vmatpush1.msra.mxu0 0.0
      %1037 = vmatprep.subr.mxu0 0.0
      %1038 = vmatpush1.msra.mxu0 0.0
      %1039 = vmatprep.subr.mxu0 0.0
      %1040 = vmatpush1.msra.mxu0 0.0
      %1041 = vmatprep.subr.mxu0 0.0
      %1042 = vmatpush1.msra.mxu0 0.0
      %1043 = vmatprep.subr.mxu0 0.0
      %1044 = vmatpush1.msra.mxu0 0.0
      %1045 = vmatprep.subr.mxu0 0.0
      %1046 = vmatpush1.msra.mxu0 0.0
      %1047 = vmatprep.subr.mxu0 0.0
      %1048 = vmatpush1.msra.mxu0 0.0
      %1049 = vmatprep.subr.mxu0 0.0
      %1050 = vmatpush1.msra.mxu0 0.0
      %1051 = vmatprep.subr.mxu0 0.0
      %1052 = vmatpush1.msra.mxu0 0.0
      %1053 = vmatprep.subr.mxu0 0.0
      %1054 = vmatpush1.msra.mxu0 0.0
      %1055 = vmatprep.subr.mxu0 0.0
      %1056 = vmatpush1.msra.mxu0 0.0
      %1057 = vmatprep.subr.mxu0 0.0
      %1058 = vmatpush1.msra.mxu0 0.0
      %1059 = vmatprep.subr.mxu0 0.0
      %1060 = vmatpush1.msra.mxu0 0.0
      %1061 = vmatprep.subr.mxu0 0.0
      %1062 = vmatpush1.msra.mxu0 0.0
      %1063 = vmatprep.subr.mxu0 0.0
      %1064 = vmatpush1.msra.mxu0 0.0
      %1065 = vmatprep.subr.mxu0 0.0
      %1066 = vmatpush1.msra.mxu0 0.0
      %1067 = vmatprep.subr.mxu0 0.0
      %1068 = vmatpush1.msra.mxu0 0.0
      %1069 = vmatprep.subr.mxu0 0.0
      %1070 = vmatpush1.msra.mxu0 0.0
      %1071 = vmatprep.subr.mxu0 0.0
      %1072 = vmatpush1.msra.mxu0 0.0
      %1073 = vmatprep.mubr.f32.mxu0 0.0
      %1074 = vmatmul.mubr.f32.gmra.mrb[0].mxu0 %v1001
      %v1075 = vpop.f32.mrb[0].mxu0
      %v1076 = vadd.f32 0.0, %v1075
      %v1077 = vpop.f32.mrb[0].mxu0
      %1078 = vmatprep.mubr.f32.mxu0 0.0
      %1079 = vmatmul.mubr.f32.gmra.mrb[0].mxu0 %v1004
      %v1080 = vpop.f32.mrb[0].mxu0
      %v1081 = vadd.f32 0.0, %v1080
      %v1082 = vpop.f32.mrb[0].mxu0
      %1083 = vdwg.mxu0
      %v1084 = vadd.f32 %v992, %v1076
      %v1085 = vadd.f32 %v993, %v1081
      %1086 = vst [vmem:[%s244] sm:$0xff] %v1084
      %1087 = vst [vmem:[%s244 + $0x8] sm:$0xff] %v1085
      %v1088 = vadd.f32 %v1084, %v1085
      %v1089 = vrot.slane %v1088, 4
      %v1090 = vadd.f32 %v1088, %v1089
      %v1091 = vrot.slane %v1090, 2
      %v1092 = vadd.f32 %v1090, %v1091
      %v1093 = vrot.slane %v1092, 1
      %v1094 = vadd.f32 %v1092, %v1093
      %v1095 = vadd.f32 %v1094, 0.0
      %v1096 = vmul.f32 %v1084, %v1084
      %v1097 = vmul.f32 %v1085, %v1085
      %v1098 = vadd.f32 %v1096, %v1097
      %v1099 = vrot.slane %v1098, 4
      %v1100 = vadd.f32 %v1098, %v1099
      %v1101 = vrot.slane %v1100, 2
      %v1102 = vadd.f32 %v1100, %v1101
      %v1103 = vrot.slane %v1102, 1
      %v1104 = vadd.f32 %v1102, %v1103
      %v1105 = vadd.f32 %v1104, 0.0
      %s1106 = sadd.s32 %s260, 1
      %s1107 = smul.u32 %s1106, 18
      %s1108 = scalar_lea.vmem %s234, %s1107
      %v1109 = vld [vmem:[%s1108] sm:$0xff]
      %v1110 = vld [vmem:[%s1108 + $0x8] sm:$0xff]
      %v1111 = vld [vmem:[%s1] sm:$0xf]
      %s1112 = sadd.s32 %s1107, 1
      %s1113 = scalar_lea.vmem %s234, %s1112
      %v1114 = vld [vmem:[%s1113] sm:$0xff]
      %v1115 = vld [vmem:[%s1113 + $0x8] sm:$0xff]
      %v1116 = vld [vmem:[%s270] sm:$0xf]
      %v1118 = vsel %vm272, %v1114, 0
      %v1121 = vsel %vm272, %v1115, 0
      %v1124 = vsel %vm279, %v1116, 0
      %1126 = vmatprep.subr.mxu0 0.0
      %1127 = vmatpush1.msra.mxu0 %v1124
      %1128 = vmatprep.subr.mxu0 0.0
      %1129 = vmatpush1.msra.mxu0 0.0
      %1130 = vmatprep.subr.mxu0 0.0
      %1131 = vmatpush1.msra.mxu0 0.0
      %1132 = vmatprep.subr.mxu0 0.0
      %1133 = vmatpush1.msra.mxu0 0.0
      %1134 = vmatprep.subr.mxu0 0.0
      %1135 = vmatpush1.msra.mxu0 0.0
      %1136 = vmatprep.subr.mxu0 0.0
      %1137 = vmatpush1.msra.mxu0 0.0
      %1138 = vmatprep.subr.mxu0 0.0
      %1139 = vmatpush1.msra.mxu0 0.0
      %1140 = vmatprep.subr.mxu0 0.0
      %1141 = vmatpush1.msra.mxu0 0.0
      %1142 = vmatprep.subr.mxu0 0.0
      %1143 = vmatpush1.msra.mxu0 0.0
      %1144 = vmatprep.subr.mxu0 0.0
      %1145 = vmatpush1.msra.mxu0 0.0
      %1146 = vmatprep.subr.mxu0 0.0
      %1147 = vmatpush1.msra.mxu0 0.0
      %1148 = vmatprep.subr.mxu0 0.0
      %1149 = vmatpush1.msra.mxu0 0.0
      %1150 = vmatprep.subr.mxu0 0.0
      %1151 = vmatpush1.msra.mxu0 0.0
      %1152 = vmatprep.subr.mxu0 0.0
      %1153 = vmatpush1.msra.mxu0 0.0
      %1154 = vmatprep.subr.mxu0 0.0
      %1155 = vmatpush1.msra.mxu0 0.0
      %1156 = vmatprep.subr.mxu0 0.0
      %1157 = vmatpush1.msra.mxu0 0.0
      %1158 = vmatprep.subr.mxu0 0.0
      %1159 = vmatpush1.msra.mxu0 0.0
      %1160 = vmatprep.subr.mxu0 0.0
      %1161 = vmatpush1.msra.mxu0 0.0
      %1162 = vmatprep.subr.mxu0 0.0
      %1163 = vmatpush1.msra.mxu0 0.0
      %1164 = vmatprep.subr.mxu0 0.0
      %1165 = vmatpush1.msra.mxu0 0.0
      %1166 = vmatprep.subr.mxu0 0.0
      %1167 = vmatpush1.msra.mxu0 0.0
      %1168 = vmatprep.subr.mxu0 0.0
      %1169 = vmatpush1.msra.mxu0 0.0
      %1170 = vmatprep.subr.mxu0 0.0
      %1171 = vmatpush1.msra.mxu0 0.0
      %1172 = vmatprep.subr.mxu0 0.0
      %1173 = vmatpush1.msra.mxu0 0.0
      %1174 = vmatprep.subr.mxu0 0.0
      %1175 = vmatpush1.msra.mxu0 0.0
      %1176 = vmatprep.subr.mxu0 0.0
      %1177 = vmatpush1.msra.mxu0 0.0
      %1178 = vmatprep.subr.mxu0 0.0
      %1179 = vmatpush1.msra.mxu0 0.0
      %1180 = vmatprep.subr.mxu0 0.0
      %1181 = vmatpush1.msra.mxu0 0.0
      %1182 = vmatprep.subr.mxu0 0.0
      %1183 = vmatpush1.msra.mxu0 0.0
      %1184 = vmatprep.subr.mxu0 0.0
      %1185 = vmatpush1.msra.mxu0 0.0
      %1186 = vmatprep.subr.mxu0 0.0
      %1187 = vmatpush1.msra.mxu0 0.0
      %1188 = vmatprep.subr.mxu0 0.0
      %1189 = vmatpush1.msra.mxu0 0.0
      %1190 = vmatprep.mubr.f32.mxu0 0.0
      %1191 = vmatmul.mubr.f32.gmra.mrb[0].mxu0 %v1118
      %v1192 = vpop.f32.mrb[0].mxu0
      %v1193 = vadd.f32 0.0, %v1192
      %v1194 = vpop.f32.mrb[0].mxu0
      %1195 = vmatprep.mubr.f32.mxu0 0.0
      %1196 = vmatmul.mubr.f32.gmra.mrb[0].mxu0 %v1121
      %v1197 = vpop.f32.mrb[0].mxu0
      %v1198 = vadd.f32 0.0, %v1197
      %v1199 = vpop.f32.mrb[0].mxu0
      %1200 = vdwg.mxu0
      %v1202 = vsel %vm272, %v1109, 0
      %v1205 = vsel %vm272, %v1110, 0
      %v1208 = vsel %vm279, %v1111, 0
      %1210 = vmatprep.subr.mxu0 0.0
      %1211 = vmatpush1.msra.mxu0 %v1208
      %1212 = vmatprep.subr.mxu0 0.0
      %1213 = vmatpush1.msra.mxu0 0.0
      %1214 = vmatprep.subr.mxu0 0.0
      %1215 = vmatpush1.msra.mxu0 0.0
      %1216 = vmatprep.subr.mxu0 0.0
      %1217 = vmatpush1.msra.mxu0 0.0
      %1218 = vmatprep.subr.mxu0 0.0
      %1219 = vmatpush1.msra.mxu0 0.0
      %1220 = vmatprep.subr.mxu0 0.0
      %1221 = vmatpush1.msra.mxu0 0.0
      %1222 = vmatprep.subr.mxu0 0.0
      %1223 = vmatpush1.msra.mxu0 0.0
      %1224 = vmatprep.subr.mxu0 0.0
      %1225 = vmatpush1.msra.mxu0 0.0
      %1226 = vmatprep.subr.mxu0 0.0
      %1227 = vmatpush1.msra.mxu0 0.0
      %1228 = vmatprep.subr.mxu0 0.0
      %1229 = vmatpush1.msra.mxu0 0.0
      %1230 = vmatprep.subr.mxu0 0.0
      %1231 = vmatpush1.msra.mxu0 0.0
      %1232 = vmatprep.subr.mxu0 0.0
      %1233 = vmatpush1.msra.mxu0 0.0
      %1234 = vmatprep.subr.mxu0 0.0
      %1235 = vmatpush1.msra.mxu0 0.0
      %1236 = vmatprep.subr.mxu0 0.0
      %1237 = vmatpush1.msra.mxu0 0.0
      %1238 = vmatprep.subr.mxu0 0.0
      %1239 = vmatpush1.msra.mxu0 0.0
      %1240 = vmatprep.subr.mxu0 0.0
      %1241 = vmatpush1.msra.mxu0 0.0
      %1242 = vmatprep.subr.mxu0 0.0
      %1243 = vmatpush1.msra.mxu0 0.0
      %1244 = vmatprep.subr.mxu0 0.0
      %1245 = vmatpush1.msra.mxu0 0.0
      %1246 = vmatprep.subr.mxu0 0.0
      %1247 = vmatpush1.msra.mxu0 0.0
      %1248 = vmatprep.subr.mxu0 0.0
      %1249 = vmatpush1.msra.mxu0 0.0
      %1250 = vmatprep.subr.mxu0 0.0
      %1251 = vmatpush1.msra.mxu0 0.0
      %1252 = vmatprep.subr.mxu0 0.0
      %1253 = vmatpush1.msra.mxu0 0.0
      %1254 = vmatprep.subr.mxu0 0.0
      %1255 = vmatpush1.msra.mxu0 0.0
      %1256 = vmatprep.subr.mxu0 0.0
      %1257 = vmatpush1.msra.mxu0 0.0
      %1258 = vmatprep.subr.mxu0 0.0
      %1259 = vmatpush1.msra.mxu0 0.0
      %1260 = vmatprep.subr.mxu0 0.0
      %1261 = vmatpush1.msra.mxu0 0.0
      %1262 = vmatprep.subr.mxu0 0.0
      %1263 = vmatpush1.msra.mxu0 0.0
      %1264 = vmatprep.subr.mxu0 0.0
      %1265 = vmatpush1.msra.mxu0 0.0
      %1266 = vmatprep.subr.mxu0 0.0
      %1267 = vmatpush1.msra.mxu0 0.0
      %1268 = vmatprep.subr.mxu0 0.0
      %1269 = vmatpush1.msra.mxu0 0.0
      %1270 = vmatprep.subr.mxu0 0.0
      %1271 = vmatpush1.msra.mxu0 0.0
      %1272 = vmatprep.subr.mxu0 0.0
      %1273 = vmatpush1.msra.mxu0 0.0
      %1274 = vmatprep.mubr.f32.mxu0 0.0
      %1275 = vmatmul.mubr.f32.gmra.mrb[0].mxu0 %v1202
      %v1276 = vpop.f32.mrb[0].mxu0
      %v1277 = vadd.f32 %v1193, %v1276
      %v1278 = vpop.f32.mrb[0].mxu0
      %1279 = vmatprep.mubr.f32.mxu0 0.0
      %1280 = vmatmul.mubr.f32.gmra.mrb[0].mxu0 %v1205
      %v1281 = vpop.f32.mrb[0].mxu0
      %v1282 = vadd.f32 %v1198, %v1281
      %v1283 = vpop.f32.mrb[0].mxu0
      %1284 = vdwg.mxu0
      %s1285 = sadd.s32 %s1107, 2
      %s1286 = scalar_lea.vmem %s234, %s1285
      %v1287 = vld [vmem:[%s1286] sm:$0xff]
      %v1288 = vld [vmem:[%s1286 + $0x8] sm:$0xff]
      %v1289 = vld [vmem:[%s446] sm:$0xf]
      %v1291 = vsel %vm272, %v1287, 0
      %v1294 = vsel %vm272, %v1288, 0
      %v1297 = vsel %vm279, %v1289, 0
      %1299 = vmatprep.subr.mxu0 0.0
      %1300 = vmatpush1.msra.mxu0 %v1297
      %1301 = vmatprep.subr.mxu0 0.0
      %1302 = vmatpush1.msra.mxu0 0.0
      %1303 = vmatprep.subr.mxu0 0.0
      %1304 = vmatpush1.msra.mxu0 0.0
      %1305 = vmatprep.subr.mxu0 0.0
      %1306 = vmatpush1.msra.mxu0 0.0
      %1307 = vmatprep.subr.mxu0 0.0
      %1308 = vmatpush1.msra.mxu0 0.0
      %1309 = vmatprep.subr.mxu0 0.0
      %1310 = vmatpush1.msra.mxu0 0.0
      %1311 = vmatprep.subr.mxu0 0.0
      %1312 = vmatpush1.msra.mxu0 0.0
      %1313 = vmatprep.subr.mxu0 0.0
      %1314 = vmatpush1.msra.mxu0 0.0
      %1315 = vmatprep.subr.mxu0 0.0
      %1316 = vmatpush1.msra.mxu0 0.0
      %1317 = vmatprep.subr.mxu0 0.0
      %1318 = vmatpush1.msra.mxu0 0.0
      %1319 = vmatprep.subr.mxu0 0.0
      %1320 = vmatpush1.msra.mxu0 0.0
      %1321 = vmatprep.subr.mxu0 0.0
      %1322 = vmatpush1.msra.mxu0 0.0
      %1323 = vmatprep.subr.mxu0 0.0
      %1324 = vmatpush1.msra.mxu0 0.0
      %1325 = vmatprep.subr.mxu0 0.0
      %1326 = vmatpush1.msra.mxu0 0.0
      %1327 = vmatprep.subr.mxu0 0.0
      %1328 = vmatpush1.msra.mxu0 0.0
      %1329 = vmatprep.subr.mxu0 0.0
      %1330 = vmatpush1.msra.mxu0 0.0
      %1331 = vmatprep.subr.mxu0 0.0
      %1332 = vmatpush1.msra.mxu0 0.0
      %1333 = vmatprep.subr.mxu0 0.0
      %1334 = vmatpush1.msra.mxu0 0.0
      %1335 = vmatprep.subr.mxu0 0.0
      %1336 = vmatpush1.msra.mxu0 0.0
      %1337 = vmatprep.subr.mxu0 0.0
      %1338 = vmatpush1.msra.mxu0 0.0
      %1339 = vmatprep.subr.mxu0 0.0
      %1340 = vmatpush1.msra.mxu0 0.0
      %1341 = vmatprep.subr.mxu0 0.0
      %1342 = vmatpush1.msra.mxu0 0.0
      %1343 = vmatprep.subr.mxu0 0.0
      %1344 = vmatpush1.msra.mxu0 0.0
      %1345 = vmatprep.subr.mxu0 0.0
      %1346 = vmatpush1.msra.mxu0 0.0
      %1347 = vmatprep.subr.mxu0 0.0
      %1348 = vmatpush1.msra.mxu0 0.0
      %1349 = vmatprep.subr.mxu0 0.0
      %1350 = vmatpush1.msra.mxu0 0.0
      %1351 = vmatprep.subr.mxu0 0.0
      %1352 = vmatpush1.msra.mxu0 0.0
      %1353 = vmatprep.subr.mxu0 0.0
      %1354 = vmatpush1.msra.mxu0 0.0
      %1355 = vmatprep.subr.mxu0 0.0
      %1356 = vmatpush1.msra.mxu0 0.0
      %1357 = vmatprep.subr.mxu0 0.0
      %1358 = vmatpush1.msra.mxu0 0.0
      %1359 = vmatprep.subr.mxu0 0.0
      %1360 = vmatpush1.msra.mxu0 0.0
      %1361 = vmatprep.subr.mxu0 0.0
      %1362 = vmatpush1.msra.mxu0 0.0
      %1363 = vmatprep.mubr.f32.mxu0 0.0
      %1364 = vmatmul.mubr.f32.gmra.mrb[0].mxu0 %v1291
      %v1365 = vpop.f32.mrb[0].mxu0
      %v1366 = vadd.f32 0.0, %v1365
      %v1367 = vpop.f32.mrb[0].mxu0
      %1368 = vmatprep.mubr.f32.mxu0 0.0
      %1369 = vmatmul.mubr.f32.gmra.mrb[0].mxu0 %v1294
      %v1370 = vpop.f32.mrb[0].mxu0
      %v1371 = vadd.f32 0.0, %v1370
      %v1372 = vpop.f32.mrb[0].mxu0
      %1373 = vdwg.mxu0
      %v1374 = vadd.f32 %v1277, %v1366
      %v1375 = vadd.f32 %v1282, %v1371
      %s1376 = sadd.s32 %s1107, 18
      %s1377 = scalar_lea.vmem %s234, %s1376
      %v1378 = vld [vmem:[%s1377] sm:$0xff]
      %v1379 = vld [vmem:[%s1377 + $0x8] sm:$0xff]
      %v1380 = vld [vmem:[%s538] sm:$0xf]
      %v1382 = vsel %vm272, %v1378, 0
      %v1385 = vsel %vm272, %v1379, 0
      %v1388 = vsel %vm279, %v1380, 0
      %1390 = vmatprep.subr.mxu0 0.0
      %1391 = vmatpush1.msra.mxu0 %v1388
      %1392 = vmatprep.subr.mxu0 0.0
      %1393 = vmatpush1.msra.mxu0 0.0
      %1394 = vmatprep.subr.mxu0 0.0
      %1395 = vmatpush1.msra.mxu0 0.0
      %1396 = vmatprep.subr.mxu0 0.0
      %1397 = vmatpush1.msra.mxu0 0.0
      %1398 = vmatprep.subr.mxu0 0.0
      %1399 = vmatpush1.msra.mxu0 0.0
      %1400 = vmatprep.subr.mxu0 0.0
      %1401 = vmatpush1.msra.mxu0 0.0
      %1402 = vmatprep.subr.mxu0 0.0
      %1403 = vmatpush1.msra.mxu0 0.0
      %1404 = vmatprep.subr.mxu0 0.0
      %1405 = vmatpush1.msra.mxu0 0.0
      %1406 = vmatprep.subr.mxu0 0.0
      %1407 = vmatpush1.msra.mxu0 0.0
      %1408 = vmatprep.subr.mxu0 0.0
      %1409 = vmatpush1.msra.mxu0 0.0
      %1410 = vmatprep.subr.mxu0 0.0
      %1411 = vmatpush1.msra.mxu0 0.0
      %1412 = vmatprep.subr.mxu0 0.0
      %1413 = vmatpush1.msra.mxu0 0.0
      %1414 = vmatprep.subr.mxu0 0.0
      %1415 = vmatpush1.msra.mxu0 0.0
      %1416 = vmatprep.subr.mxu0 0.0
      %1417 = vmatpush1.msra.mxu0 0.0
      %1418 = vmatprep.subr.mxu0 0.0
      %1419 = vmatpush1.msra.mxu0 0.0
      %1420 = vmatprep.subr.mxu0 0.0
      %1421 = vmatpush1.msra.mxu0 0.0
      %1422 = vmatprep.subr.mxu0 0.0
      %1423 = vmatpush1.msra.mxu0 0.0
      %1424 = vmatprep.subr.mxu0 0.0
      %1425 = vmatpush1.msra.mxu0 0.0
      %1426 = vmatprep.subr.mxu0 0.0
      %1427 = vmatpush1.msra.mxu0 0.0
      %1428 = vmatprep.subr.mxu0 0.0
      %1429 = vmatpush1.msra.mxu0 0.0
      %1430 = vmatprep.subr.mxu0 0.0
      %1431 = vmatpush1.msra.mxu0 0.0
      %1432 = vmatprep.subr.mxu0 0.0
      %1433 = vmatpush1.msra.mxu0 0.0
      %1434 = vmatprep.subr.mxu0 0.0
      %1435 = vmatpush1.msra.mxu0 0.0
      %1436 = vmatprep.subr.mxu0 0.0
      %1437 = vmatpush1.msra.mxu0 0.0
      %1438 = vmatprep.subr.mxu0 0.0
      %1439 = vmatpush1.msra.mxu0 0.0
      %1440 = vmatprep.subr.mxu0 0.0
      %1441 = vmatpush1.msra.mxu0 0.0
      %1442 = vmatprep.subr.mxu0 0.0
      %1443 = vmatpush1.msra.mxu0 0.0
      %1444 = vmatprep.subr.mxu0 0.0
      %1445 = vmatpush1.msra.mxu0 0.0
      %1446 = vmatprep.subr.mxu0 0.0
      %1447 = vmatpush1.msra.mxu0 0.0
      %1448 = vmatprep.subr.mxu0 0.0
      %1449 = vmatpush1.msra.mxu0 0.0
      %1450 = vmatprep.subr.mxu0 0.0
      %1451 = vmatpush1.msra.mxu0 0.0
      %1452 = vmatprep.subr.mxu0 0.0
      %1453 = vmatpush1.msra.mxu0 0.0
      %1454 = vmatprep.mubr.f32.mxu0 0.0
      %1455 = vmatmul.mubr.f32.gmra.mrb[0].mxu0 %v1382
      %v1456 = vpop.f32.mrb[0].mxu0
      %v1457 = vadd.f32 0.0, %v1456
      %v1458 = vpop.f32.mrb[0].mxu0
      %1459 = vmatprep.mubr.f32.mxu0 0.0
      %1460 = vmatmul.mubr.f32.gmra.mrb[0].mxu0 %v1385
      %v1461 = vpop.f32.mrb[0].mxu0
      %v1462 = vadd.f32 0.0, %v1461
      %v1463 = vpop.f32.mrb[0].mxu0
      %1464 = vdwg.mxu0
      %v1465 = vadd.f32 %v1374, %v1457
      %v1466 = vadd.f32 %v1375, %v1462
      %s1467 = sadd.s32 %s1107, 19
      %s1468 = scalar_lea.vmem %s234, %s1467
      %v1469 = vld [vmem:[%s1468] sm:$0xff]
      %v1470 = vld [vmem:[%s1468 + $0x8] sm:$0xff]
      %v1471 = vld [vmem:[%s630] sm:$0xf]
      %v1473 = vsel %vm272, %v1469, 0
      %v1476 = vsel %vm272, %v1470, 0
      %v1479 = vsel %vm279, %v1471, 0
      %1481 = vmatprep.subr.mxu0 0.0
      %1482 = vmatpush1.msra.mxu0 %v1479
      %1483 = vmatprep.subr.mxu0 0.0
      %1484 = vmatpush1.msra.mxu0 0.0
      %1485 = vmatprep.subr.mxu0 0.0
      %1486 = vmatpush1.msra.mxu0 0.0
      %1487 = vmatprep.subr.mxu0 0.0
      %1488 = vmatpush1.msra.mxu0 0.0
      %1489 = vmatprep.subr.mxu0 0.0
      %1490 = vmatpush1.msra.mxu0 0.0
      %1491 = vmatprep.subr.mxu0 0.0
      %1492 = vmatpush1.msra.mxu0 0.0
      %1493 = vmatprep.subr.mxu0 0.0
      %1494 = vmatpush1.msra.mxu0 0.0
      %1495 = vmatprep.subr.mxu0 0.0
      %1496 = vmatpush1.msra.mxu0 0.0
      %1497 = vmatprep.subr.mxu0 0.0
      %1498 = vmatpush1.msra.mxu0 0.0
      %1499 = vmatprep.subr.mxu0 0.0
      %1500 = vmatpush1.msra.mxu0 0.0
      %1501 = vmatprep.subr.mxu0 0.0
      %1502 = vmatpush1.msra.mxu0 0.0
      %1503 = vmatprep.subr.mxu0 0.0
      %1504 = vmatpush1.msra.mxu0 0.0
      %1505 = vmatprep.subr.mxu0 0.0
      %1506 = vmatpush1.msra.mxu0 0.0
      %1507 = vmatprep.subr.mxu0 0.0
      %1508 = vmatpush1.msra.mxu0 0.0
      %1509 = vmatprep.subr.mxu0 0.0
      %1510 = vmatpush1.msra.mxu0 0.0
      %1511 = vmatprep.subr.mxu0 0.0
      %1512 = vmatpush1.msra.mxu0 0.0
      %1513 = vmatprep.subr.mxu0 0.0
      %1514 = vmatpush1.msra.mxu0 0.0
      %1515 = vmatprep.subr.mxu0 0.0
      %1516 = vmatpush1.msra.mxu0 0.0
      %1517 = vmatprep.subr.mxu0 0.0
      %1518 = vmatpush1.msra.mxu0 0.0
      %1519 = vmatprep.subr.mxu0 0.0
      %1520 = vmatpush1.msra.mxu0 0.0
      %1521 = vmatprep.subr.mxu0 0.0
      %1522 = vmatpush1.msra.mxu0 0.0
      %1523 = vmatprep.subr.mxu0 0.0
      %1524 = vmatpush1.msra.mxu0 0.0
      %1525 = vmatprep.subr.mxu0 0.0
      %1526 = vmatpush1.msra.mxu0 0.0
      %1527 = vmatprep.subr.mxu0 0.0
      %1528 = vmatpush1.msra.mxu0 0.0
      %1529 = vmatprep.subr.mxu0 0.0
      %1530 = vmatpush1.msra.mxu0 0.0
      %1531 = vmatprep.subr.mxu0 0.0
      %1532 = vmatpush1.msra.mxu0 0.0
      %1533 = vmatprep.subr.mxu0 0.0
      %1534 = vmatpush1.msra.mxu0 0.0
      %1535 = vmatprep.subr.mxu0 0.0
      %1536 = vmatpush1.msra.mxu0 0.0
      %1537 = vmatprep.subr.mxu0 0.0
      %1538 = vmatpush1.msra.mxu0 0.0
      %1539 = vmatprep.subr.mxu0 0.0
      %1540 = vmatpush1.msra.mxu0 0.0
      %1541 = vmatprep.subr.mxu0 0.0
      %1542 = vmatpush1.msra.mxu0 0.0
      %1543 = vmatprep.subr.mxu0 0.0
      %1544 = vmatpush1.msra.mxu0 0.0
      %1545 = vmatprep.mubr.f32.mxu0 0.0
      %1546 = vmatmul.mubr.f32.gmra.mrb[0].mxu0 %v1473
      %v1547 = vpop.f32.mrb[0].mxu0
      %v1548 = vadd.f32 0.0, %v1547
      %v1549 = vpop.f32.mrb[0].mxu0
      %1550 = vmatprep.mubr.f32.mxu0 0.0
      %1551 = vmatmul.mubr.f32.gmra.mrb[0].mxu0 %v1476
      %v1552 = vpop.f32.mrb[0].mxu0
      %v1553 = vadd.f32 0.0, %v1552
      %v1554 = vpop.f32.mrb[0].mxu0
      %1555 = vdwg.mxu0
      %v1556 = vadd.f32 %v1465, %v1548
      %v1557 = vadd.f32 %v1466, %v1553
      %s1558 = sadd.s32 %s1107, 20
      %s1559 = scalar_lea.vmem %s234, %s1558
      %v1560 = vld [vmem:[%s1559] sm:$0xff]
      %v1561 = vld [vmem:[%s1559 + $0x8] sm:$0xff]
      %v1562 = vld [vmem:[%s722] sm:$0xf]
      %v1564 = vsel %vm272, %v1560, 0
      %v1567 = vsel %vm272, %v1561, 0
      %v1570 = vsel %vm279, %v1562, 0
      %1572 = vmatprep.subr.mxu0 0.0
      %1573 = vmatpush1.msra.mxu0 %v1570
      %1574 = vmatprep.subr.mxu0 0.0
      %1575 = vmatpush1.msra.mxu0 0.0
      %1576 = vmatprep.subr.mxu0 0.0
      %1577 = vmatpush1.msra.mxu0 0.0
      %1578 = vmatprep.subr.mxu0 0.0
      %1579 = vmatpush1.msra.mxu0 0.0
      %1580 = vmatprep.subr.mxu0 0.0
      %1581 = vmatpush1.msra.mxu0 0.0
      %1582 = vmatprep.subr.mxu0 0.0
      %1583 = vmatpush1.msra.mxu0 0.0
      %1584 = vmatprep.subr.mxu0 0.0
      %1585 = vmatpush1.msra.mxu0 0.0
      %1586 = vmatprep.subr.mxu0 0.0
      %1587 = vmatpush1.msra.mxu0 0.0
      %1588 = vmatprep.subr.mxu0 0.0
      %1589 = vmatpush1.msra.mxu0 0.0
      %1590 = vmatprep.subr.mxu0 0.0
      %1591 = vmatpush1.msra.mxu0 0.0
      %1592 = vmatprep.subr.mxu0 0.0
      %1593 = vmatpush1.msra.mxu0 0.0
      %1594 = vmatprep.subr.mxu0 0.0
      %1595 = vmatpush1.msra.mxu0 0.0
      %1596 = vmatprep.subr.mxu0 0.0
      %1597 = vmatpush1.msra.mxu0 0.0
      %1598 = vmatprep.subr.mxu0 0.0
      %1599 = vmatpush1.msra.mxu0 0.0
      %1600 = vmatprep.subr.mxu0 0.0
      %1601 = vmatpush1.msra.mxu0 0.0
      %1602 = vmatprep.subr.mxu0 0.0
      %1603 = vmatpush1.msra.mxu0 0.0
      %1604 = vmatprep.subr.mxu0 0.0
      %1605 = vmatpush1.msra.mxu0 0.0
      %1606 = vmatprep.subr.mxu0 0.0
      %1607 = vmatpush1.msra.mxu0 0.0
      %1608 = vmatprep.subr.mxu0 0.0
      %1609 = vmatpush1.msra.mxu0 0.0
      %1610 = vmatprep.subr.mxu0 0.0
      %1611 = vmatpush1.msra.mxu0 0.0
      %1612 = vmatprep.subr.mxu0 0.0
      %1613 = vmatpush1.msra.mxu0 0.0
      %1614 = vmatprep.subr.mxu0 0.0
      %1615 = vmatpush1.msra.mxu0 0.0
      %1616 = vmatprep.subr.mxu0 0.0
      %1617 = vmatpush1.msra.mxu0 0.0
      %1618 = vmatprep.subr.mxu0 0.0
      %1619 = vmatpush1.msra.mxu0 0.0
      %1620 = vmatprep.subr.mxu0 0.0
      %1621 = vmatpush1.msra.mxu0 0.0
      %1622 = vmatprep.subr.mxu0 0.0
      %1623 = vmatpush1.msra.mxu0 0.0
      %1624 = vmatprep.subr.mxu0 0.0
      %1625 = vmatpush1.msra.mxu0 0.0
      %1626 = vmatprep.subr.mxu0 0.0
      %1627 = vmatpush1.msra.mxu0 0.0
      %1628 = vmatprep.subr.mxu0 0.0
      %1629 = vmatpush1.msra.mxu0 0.0
      %1630 = vmatprep.subr.mxu0 0.0
      %1631 = vmatpush1.msra.mxu0 0.0
      %1632 = vmatprep.subr.mxu0 0.0
      %1633 = vmatpush1.msra.mxu0 0.0
      %1634 = vmatprep.subr.mxu0 0.0
      %1635 = vmatpush1.msra.mxu0 0.0
      %1636 = vmatprep.mubr.f32.mxu0 0.0
      %1637 = vmatmul.mubr.f32.gmra.mrb[0].mxu0 %v1564
      %v1638 = vpop.f32.mrb[0].mxu0
      %v1639 = vadd.f32 0.0, %v1638
      %v1640 = vpop.f32.mrb[0].mxu0
      %1641 = vmatprep.mubr.f32.mxu0 0.0
      %1642 = vmatmul.mubr.f32.gmra.mrb[0].mxu0 %v1567
      %v1643 = vpop.f32.mrb[0].mxu0
      %v1644 = vadd.f32 0.0, %v1643
      %v1645 = vpop.f32.mrb[0].mxu0
      %1646 = vdwg.mxu0
      %v1647 = vadd.f32 %v1556, %v1639
      %v1648 = vadd.f32 %v1557, %v1644
      %s1649 = sadd.s32 %s1107, 36
      %s1650 = scalar_lea.vmem %s234, %s1649
      %v1651 = vld [vmem:[%s1650] sm:$0xff]
      %v1652 = vld [vmem:[%s1650 + $0x8] sm:$0xff]
      %v1653 = vld [vmem:[%s814] sm:$0xf]
      %v1655 = vsel %vm272, %v1651, 0
      %v1658 = vsel %vm272, %v1652, 0
      %v1661 = vsel %vm279, %v1653, 0
      %1663 = vmatprep.subr.mxu0 0.0
      %1664 = vmatpush1.msra.mxu0 %v1661
      %1665 = vmatprep.subr.mxu0 0.0
      %1666 = vmatpush1.msra.mxu0 0.0
      %1667 = vmatprep.subr.mxu0 0.0
      %1668 = vmatpush1.msra.mxu0 0.0
      %1669 = vmatprep.subr.mxu0 0.0
      %1670 = vmatpush1.msra.mxu0 0.0
      %1671 = vmatprep.subr.mxu0 0.0
      %1672 = vmatpush1.msra.mxu0 0.0
      %1673 = vmatprep.subr.mxu0 0.0
      %1674 = vmatpush1.msra.mxu0 0.0
      %1675 = vmatprep.subr.mxu0 0.0
      %1676 = vmatpush1.msra.mxu0 0.0
      %1677 = vmatprep.subr.mxu0 0.0
      %1678 = vmatpush1.msra.mxu0 0.0
      %1679 = vmatprep.subr.mxu0 0.0
      %1680 = vmatpush1.msra.mxu0 0.0
      %1681 = vmatprep.subr.mxu0 0.0
      %1682 = vmatpush1.msra.mxu0 0.0
      %1683 = vmatprep.subr.mxu0 0.0
      %1684 = vmatpush1.msra.mxu0 0.0
      %1685 = vmatprep.subr.mxu0 0.0
      %1686 = vmatpush1.msra.mxu0 0.0
      %1687 = vmatprep.subr.mxu0 0.0
      %1688 = vmatpush1.msra.mxu0 0.0
      %1689 = vmatprep.subr.mxu0 0.0
      %1690 = vmatpush1.msra.mxu0 0.0
      %1691 = vmatprep.subr.mxu0 0.0
      %1692 = vmatpush1.msra.mxu0 0.0
      %1693 = vmatprep.subr.mxu0 0.0
      %1694 = vmatpush1.msra.mxu0 0.0
      %1695 = vmatprep.subr.mxu0 0.0
      %1696 = vmatpush1.msra.mxu0 0.0
      %1697 = vmatprep.subr.mxu0 0.0
      %1698 = vmatpush1.msra.mxu0 0.0
      %1699 = vmatprep.subr.mxu0 0.0
      %1700 = vmatpush1.msra.mxu0 0.0
      %1701 = vmatprep.subr.mxu0 0.0
      %1702 = vmatpush1.msra.mxu0 0.0
      %1703 = vmatprep.subr.mxu0 0.0
      %1704 = vmatpush1.msra.mxu0 0.0
      %1705 = vmatprep.subr.mxu0 0.0
      %1706 = vmatpush1.msra.mxu0 0.0
      %1707 = vmatprep.subr.mxu0 0.0
      %1708 = vmatpush1.msra.mxu0 0.0
      %1709 = vmatprep.subr.mxu0 0.0
      %1710 = vmatpush1.msra.mxu0 0.0
      %1711 = vmatprep.subr.mxu0 0.0
      %1712 = vmatpush1.msra.mxu0 0.0
      %1713 = vmatprep.subr.mxu0 0.0
      %1714 = vmatpush1.msra.mxu0 0.0
      %1715 = vmatprep.subr.mxu0 0.0
      %1716 = vmatpush1.msra.mxu0 0.0
      %1717 = vmatprep.subr.mxu0 0.0
      %1718 = vmatpush1.msra.mxu0 0.0
      %1719 = vmatprep.subr.mxu0 0.0
      %1720 = vmatpush1.msra.mxu0 0.0
      %1721 = vmatprep.subr.mxu0 0.0
      %1722 = vmatpush1.msra.mxu0 0.0
      %1723 = vmatprep.subr.mxu0 0.0
      %1724 = vmatpush1.msra.mxu0 0.0
      %1725 = vmatprep.subr.mxu0 0.0
      %1726 = vmatpush1.msra.mxu0 0.0
      %1727 = vmatprep.mubr.f32.mxu0 0.0
      %1728 = vmatmul.mubr.f32.gmra.mrb[0].mxu0 %v1655
      %v1729 = vpop.f32.mrb[0].mxu0
      %v1730 = vadd.f32 0.0, %v1729
      %v1731 = vpop.f32.mrb[0].mxu0
      %1732 = vmatprep.mubr.f32.mxu0 0.0
      %1733 = vmatmul.mubr.f32.gmra.mrb[0].mxu0 %v1658
      %v1734 = vpop.f32.mrb[0].mxu0
      %v1735 = vadd.f32 0.0, %v1734
      %v1736 = vpop.f32.mrb[0].mxu0
      %1737 = vdwg.mxu0
      %v1738 = vadd.f32 %v1647, %v1730
      %v1739 = vadd.f32 %v1648, %v1735
      %s1740 = sadd.s32 %s1107, 37
      %s1741 = scalar_lea.vmem %s234, %s1740
      %v1742 = vld [vmem:[%s1741] sm:$0xff]
      %v1743 = vld [vmem:[%s1741 + $0x8] sm:$0xff]
      %v1744 = vld [vmem:[%s906] sm:$0xf]
      %v1746 = vsel %vm272, %v1742, 0
      %v1749 = vsel %vm272, %v1743, 0
      %v1752 = vsel %vm279, %v1744, 0
      %1754 = vmatprep.subr.mxu0 0.0
      %1755 = vmatpush1.msra.mxu0 %v1752
      %1756 = vmatprep.subr.mxu0 0.0
      %1757 = vmatpush1.msra.mxu0 0.0
      %1758 = vmatprep.subr.mxu0 0.0
      %1759 = vmatpush1.msra.mxu0 0.0
      %1760 = vmatprep.subr.mxu0 0.0
      %1761 = vmatpush1.msra.mxu0 0.0
      %1762 = vmatprep.subr.mxu0 0.0
      %1763 = vmatpush1.msra.mxu0 0.0
      %1764 = vmatprep.subr.mxu0 0.0
      %1765 = vmatpush1.msra.mxu0 0.0
      %1766 = vmatprep.subr.mxu0 0.0
      %1767 = vmatpush1.msra.mxu0 0.0
      %1768 = vmatprep.subr.mxu0 0.0
      %1769 = vmatpush1.msra.mxu0 0.0
      %1770 = vmatprep.subr.mxu0 0.0
      %1771 = vmatpush1.msra.mxu0 0.0
      %1772 = vmatprep.subr.mxu0 0.0
      %1773 = vmatpush1.msra.mxu0 0.0
      %1774 = vmatprep.subr.mxu0 0.0
      %1775 = vmatpush1.msra.mxu0 0.0
      %1776 = vmatprep.subr.mxu0 0.0
      %1777 = vmatpush1.msra.mxu0 0.0
      %1778 = vmatprep.subr.mxu0 0.0
      %1779 = vmatpush1.msra.mxu0 0.0
      %1780 = vmatprep.subr.mxu0 0.0
      %1781 = vmatpush1.msra.mxu0 0.0
      %1782 = vmatprep.subr.mxu0 0.0
      %1783 = vmatpush1.msra.mxu0 0.0
      %1784 = vmatprep.subr.mxu0 0.0
      %1785 = vmatpush1.msra.mxu0 0.0
      %1786 = vmatprep.subr.mxu0 0.0
      %1787 = vmatpush1.msra.mxu0 0.0
      %1788 = vmatprep.subr.mxu0 0.0
      %1789 = vmatpush1.msra.mxu0 0.0
      %1790 = vmatprep.subr.mxu0 0.0
      %1791 = vmatpush1.msra.mxu0 0.0
      %1792 = vmatprep.subr.mxu0 0.0
      %1793 = vmatpush1.msra.mxu0 0.0
      %1794 = vmatprep.subr.mxu0 0.0
      %1795 = vmatpush1.msra.mxu0 0.0
      %1796 = vmatprep.subr.mxu0 0.0
      %1797 = vmatpush1.msra.mxu0 0.0
      %1798 = vmatprep.subr.mxu0 0.0
      %1799 = vmatpush1.msra.mxu0 0.0
      %1800 = vmatprep.subr.mxu0 0.0
      %1801 = vmatpush1.msra.mxu0 0.0
      %1802 = vmatprep.subr.mxu0 0.0
      %1803 = vmatpush1.msra.mxu0 0.0
      %1804 = vmatprep.subr.mxu0 0.0
      %1805 = vmatpush1.msra.mxu0 0.0
      %1806 = vmatprep.subr.mxu0 0.0
      %1807 = vmatpush1.msra.mxu0 0.0
      %1808 = vmatprep.subr.mxu0 0.0
      %1809 = vmatpush1.msra.mxu0 0.0
      %1810 = vmatprep.subr.mxu0 0.0
      %1811 = vmatpush1.msra.mxu0 0.0
      %1812 = vmatprep.subr.mxu0 0.0
      %1813 = vmatpush1.msra.mxu0 0.0
      %1814 = vmatprep.subr.mxu0 0.0
      %1815 = vmatpush1.msra.mxu0 0.0
      %1816 = vmatprep.subr.mxu0 0.0
      %1817 = vmatpush1.msra.mxu0 0.0
      %1818 = vmatprep.mubr.f32.mxu0 0.0
      %1819 = vmatmul.mubr.f32.gmra.mrb[0].mxu0 %v1746
      %v1820 = vpop.f32.mrb[0].mxu0
      %v1821 = vadd.f32 0.0, %v1820
      %v1822 = vpop.f32.mrb[0].mxu0
      %1823 = vmatprep.mubr.f32.mxu0 0.0
      %1824 = vmatmul.mubr.f32.gmra.mrb[0].mxu0 %v1749
      %v1825 = vpop.f32.mrb[0].mxu0
      %v1826 = vadd.f32 0.0, %v1825
      %v1827 = vpop.f32.mrb[0].mxu0
      %1828 = vdwg.mxu0
      %v1829 = vadd.f32 %v1738, %v1821
      %v1830 = vadd.f32 %v1739, %v1826
      %s1831 = sadd.s32 %s1107, 38
      %s1832 = scalar_lea.vmem %s234, %s1831
      %v1833 = vld [vmem:[%s1832] sm:$0xff]
      %v1834 = vld [vmem:[%s1832 + $0x8] sm:$0xff]
      %v1835 = vld [vmem:[%s998] sm:$0xf]
      %v1837 = vsel %vm272, %v1833, 0
      %v1840 = vsel %vm272, %v1834, 0
      %v1843 = vsel %vm279, %v1835, 0
      %1845 = vmatprep.subr.mxu0 0.0
      %1846 = vmatpush1.msra.mxu0 %v1843
      %1847 = vmatprep.subr.mxu0 0.0
      %1848 = vmatpush1.msra.mxu0 0.0
      %1849 = vmatprep.subr.mxu0 0.0
      %1850 = vmatpush1.msra.mxu0 0.0
      %1851 = vmatprep.subr.mxu0 0.0
      %1852 = vmatpush1.msra.mxu0 0.0
      %1853 = vmatprep.subr.mxu0 0.0
      %1854 = vmatpush1.msra.mxu0 0.0
      %1855 = vmatprep.subr.mxu0 0.0
      %1856 = vmatpush1.msra.mxu0 0.0
      %1857 = vmatprep.subr.mxu0 0.0
      %1858 = vmatpush1.msra.mxu0 0.0
      %1859 = vmatprep.subr.mxu0 0.0
      %1860 = vmatpush1.msra.mxu0 0.0
      %1861 = vmatprep.subr.mxu0 0.0
      %1862 = vmatpush1.msra.mxu0 0.0
      %1863 = vmatprep.subr.mxu0 0.0
      %1864 = vmatpush1.msra.mxu0 0.0
      %1865 = vmatprep.subr.mxu0 0.0
      %1866 = vmatpush1.msra.mxu0 0.0
      %1867 = vmatprep.subr.mxu0 0.0
      %1868 = vmatpush1.msra.mxu0 0.0
      %1869 = vmatprep.subr.mxu0 0.0
      %1870 = vmatpush1.msra.mxu0 0.0
      %1871 = vmatprep.subr.mxu0 0.0
      %1872 = vmatpush1.msra.mxu0 0.0
      %1873 = vmatprep.subr.mxu0 0.0
      %1874 = vmatpush1.msra.mxu0 0.0
      %1875 = vmatprep.subr.mxu0 0.0
      %1876 = vmatpush1.msra.mxu0 0.0
      %1877 = vmatprep.subr.mxu0 0.0
      %1878 = vmatpush1.msra.mxu0 0.0
      %1879 = vmatprep.subr.mxu0 0.0
      %1880 = vmatpush1.msra.mxu0 0.0
      %1881 = vmatprep.subr.mxu0 0.0
      %1882 = vmatpush1.msra.mxu0 0.0
      %1883 = vmatprep.subr.mxu0 0.0
      %1884 = vmatpush1.msra.mxu0 0.0
      %1885 = vmatprep.subr.mxu0 0.0
      %1886 = vmatpush1.msra.mxu0 0.0
      %1887 = vmatprep.subr.mxu0 0.0
      %1888 = vmatpush1.msra.mxu0 0.0
      %1889 = vmatprep.subr.mxu0 0.0
      %1890 = vmatpush1.msra.mxu0 0.0
      %1891 = vmatprep.subr.mxu0 0.0
      %1892 = vmatpush1.msra.mxu0 0.0
      %1893 = vmatprep.subr.mxu0 0.0
      %1894 = vmatpush1.msra.mxu0 0.0
      %1895 = vmatprep.subr.mxu0 0.0
      %1896 = vmatpush1.msra.mxu0 0.0
      %1897 = vmatprep.subr.mxu0 0.0
      %1898 = vmatpush1.msra.mxu0 0.0
      %1899 = vmatprep.subr.mxu0 0.0
      %1900 = vmatpush1.msra.mxu0 0.0
      %1901 = vmatprep.subr.mxu0 0.0
      %1902 = vmatpush1.msra.mxu0 0.0
      %1903 = vmatprep.subr.mxu0 0.0
      %1904 = vmatpush1.msra.mxu0 0.0
      %1905 = vmatprep.subr.mxu0 0.0
      %1906 = vmatpush1.msra.mxu0 0.0
      %1907 = vmatprep.subr.mxu0 0.0
      %1908 = vmatpush1.msra.mxu0 0.0
      %1909 = vmatprep.mubr.f32.mxu0 0.0
      %1910 = vmatmul.mubr.f32.gmra.mrb[0].mxu0 %v1837
      %v1911 = vpop.f32.mrb[0].mxu0
      %v1912 = vadd.f32 0.0, %v1911
      %v1913 = vpop.f32.mrb[0].mxu0
      %1914 = vmatprep.mubr.f32.mxu0 0.0
      %1915 = vmatmul.mubr.f32.gmra.mrb[0].mxu0 %v1840
      %v1916 = vpop.f32.mrb[0].mxu0
      %v1917 = vadd.f32 0.0, %v1916
      %v1918 = vpop.f32.mrb[0].mxu0
      %1919 = vdwg.mxu0
      %v1920 = vadd.f32 %v1829, %v1912
      %v1921 = vadd.f32 %v1830, %v1917
      %s1922 = scalar_lea.vmem %s244, 16
      %1923 = vst [vmem:[%s1922] sm:$0xff] %v1920
      %1924 = vst [vmem:[%s1922 + $0x8] sm:$0xff] %v1921
      %v1925 = vadd.f32 %v1920, %v1921
      %v1926 = vrot.slane %v1925, 4
      %v1927 = vadd.f32 %v1925, %v1926
      %v1928 = vrot.slane %v1927, 2
      %v1929 = vadd.f32 %v1927, %v1928
      %v1930 = vrot.slane %v1929, 1
      %v1931 = vadd.f32 %v1929, %v1930
      %v1932 = vadd.f32 %v1095, %v1931
      %v1933 = vmul.f32 %v1920, %v1920
      %v1934 = vmul.f32 %v1921, %v1921
      %v1935 = vadd.f32 %v1933, %v1934
      %v1936 = vrot.slane %v1935, 4
      %v1937 = vadd.f32 %v1935, %v1936
      %v1938 = vrot.slane %v1937, 2
      %v1939 = vadd.f32 %v1937, %v1938
      %v1940 = vrot.slane %v1939, 1
      %v1941 = vadd.f32 %v1939, %v1940
      %v1942 = vadd.f32 %v1105, %v1941
      %s1943 = sadd.s32 %s260, 2
      %s1944 = smul.u32 %s1943, 18
      %s1945 = scalar_lea.vmem %s234, %s1944
      %v1946 = vld [vmem:[%s1945] sm:$0xff]
      %v1947 = vld [vmem:[%s1945 + $0x8] sm:$0xff]
      %v1948 = vld [vmem:[%s1] sm:$0xf]
      %s1949 = sadd.s32 %s1944, 1
      %s1950 = scalar_lea.vmem %s234, %s1949
      %v1951 = vld [vmem:[%s1950] sm:$0xff]
      %v1952 = vld [vmem:[%s1950 + $0x8] sm:$0xff]
      %v1953 = vld [vmem:[%s270] sm:$0xf]
      %v1955 = vsel %vm272, %v1951, 0
      %v1958 = vsel %vm272, %v1952, 0
      %v1961 = vsel %vm279, %v1953, 0
      %1963 = vmatprep.subr.mxu0 0.0
      %1964 = vmatpush1.msra.mxu0 %v1961
      %1965 = vmatprep.subr.mxu0 0.0
      %1966 = vmatpush1.msra.mxu0 0.0
      %1967 = vmatprep.subr.mxu0 0.0
      %1968 = vmatpush1.msra.mxu0 0.0
      %1969 = vmatprep.subr.mxu0 0.0
      %1970 = vmatpush1.msra.mxu0 0.0
      %1971 = vmatprep.subr.mxu0 0.0
      %1972 = vmatpush1.msra.mxu0 0.0
      %1973 = vmatprep.subr.mxu0 0.0
      %1974 = vmatpush1.msra.mxu0 0.0
      %1975 = vmatprep.subr.mxu0 0.0
      %1976 = vmatpush1.msra.mxu0 0.0
      %1977 = vmatprep.subr.mxu0 0.0
      %1978 = vmatpush1.msra.mxu0 0.0
      %1979 = vmatprep.subr.mxu0 0.0
      %1980 = vmatpush1.msra.mxu0 0.0
      %1981 = vmatprep.subr.mxu0 0.0
      %1982 = vmatpush1.msra.mxu0 0.0
      %1983 = vmatprep.subr.mxu0 0.0
      %1984 = vmatpush1.msra.mxu0 0.0
      %1985 = vmatprep.subr.mxu0 0.0
      %1986 = vmatpush1.msra.mxu0 0.0
      %1987 = vmatprep.subr.mxu0 0.0
      %1988 = vmatpush1.msra.mxu0 0.0
      %1989 = vmatprep.subr.mxu0 0.0
      %1990 = vmatpush1.msra.mxu0 0.0
      %1991 = vmatprep.subr.mxu0 0.0
      %1992 = vmatpush1.msra.mxu0 0.0
      %1993 = vmatprep.subr.mxu0 0.0
      %1994 = vmatpush1.msra.mxu0 0.0
      %1995 = vmatprep.subr.mxu0 0.0
      %1996 = vmatpush1.msra.mxu0 0.0
      %1997 = vmatprep.subr.mxu0 0.0
      %1998 = vmatpush1.msra.mxu0 0.0
      %1999 = vmatprep.subr.mxu0 0.0
      %2000 = vmatpush1.msra.mxu0 0.0
      %2001 = vmatprep.subr.mxu0 0.0
      %2002 = vmatpush1.msra.mxu0 0.0
      %2003 = vmatprep.subr.mxu0 0.0
      %2004 = vmatpush1.msra.mxu0 0.0
      %2005 = vmatprep.subr.mxu0 0.0
      %2006 = vmatpush1.msra.mxu0 0.0
      %2007 = vmatprep.subr.mxu0 0.0
      %2008 = vmatpush1.msra.mxu0 0.0
      %2009 = vmatprep.subr.mxu0 0.0
      %2010 = vmatpush1.msra.mxu0 0.0
      %2011 = vmatprep.subr.mxu0 0.0
      %2012 = vmatpush1.msra.mxu0 0.0
      %2013 = vmatprep.subr.mxu0 0.0
      %2014 = vmatpush1.msra.mxu0 0.0
      %2015 = vmatprep.subr.mxu0 0.0
      %2016 = vmatpush1.msra.mxu0 0.0
      %2017 = vmatprep.subr.mxu0 0.0
      %2018 = vmatpush1.msra.mxu0 0.0
      %2019 = vmatprep.subr.mxu0 0.0
      %2020 = vmatpush1.msra.mxu0 0.0
      %2021 = vmatprep.subr.mxu0 0.0
      %2022 = vmatpush1.msra.mxu0 0.0
      %2023 = vmatprep.subr.mxu0 0.0
      %2024 = vmatpush1.msra.mxu0 0.0
      %2025 = vmatprep.subr.mxu0 0.0
      %2026 = vmatpush1.msra.mxu0 0.0
      %2027 = vmatprep.mubr.f32.mxu0 0.0
      %2028 = vmatmul.mubr.f32.gmra.mrb[0].mxu0 %v1955
      %v2029 = vpop.f32.mrb[0].mxu0
      %v2030 = vadd.f32 0.0, %v2029
      %v2031 = vpop.f32.mrb[0].mxu0
      %2032 = vmatprep.mubr.f32.mxu0 0.0
      %2033 = vmatmul.mubr.f32.gmra.mrb[0].mxu0 %v1958
      %v2034 = vpop.f32.mrb[0].mxu0
      %v2035 = vadd.f32 0.0, %v2034
      %v2036 = vpop.f32.mrb[0].mxu0
      %2037 = vdwg.mxu0
      %v2039 = vsel %vm272, %v1946, 0
      %v2042 = vsel %vm272, %v1947, 0
      %v2045 = vsel %vm279, %v1948, 0
      %2047 = vmatprep.subr.mxu0 0.0
      %2048 = vmatpush1.msra.mxu0 %v2045
      %2049 = vmatprep.subr.mxu0 0.0
      %2050 = vmatpush1.msra.mxu0 0.0
      %2051 = vmatprep.subr.mxu0 0.0
      %2052 = vmatpush1.msra.mxu0 0.0
      %2053 = vmatprep.subr.mxu0 0.0
      %2054 = vmatpush1.msra.mxu0 0.0
      %2055 = vmatprep.subr.mxu0 0.0
      %2056 = vmatpush1.msra.mxu0 0.0
      %2057 = vmatprep.subr.mxu0 0.0
      %2058 = vmatpush1.msra.mxu0 0.0
      %2059 = vmatprep.subr.mxu0 0.0
      %2060 = vmatpush1.msra.mxu0 0.0
      %2061 = vmatprep.subr.mxu0 0.0
      %2062 = vmatpush1.msra.mxu0 0.0
      %2063 = vmatprep.subr.mxu0 0.0
      %2064 = vmatpush1.msra.mxu0 0.0
      %2065 = vmatprep.subr.mxu0 0.0
      %2066 = vmatpush1.msra.mxu0 0.0
      %2067 = vmatprep.subr.mxu0 0.0
      %2068 = vmatpush1.msra.mxu0 0.0
      %2069 = vmatprep.subr.mxu0 0.0
      %2070 = vmatpush1.msra.mxu0 0.0
      %2071 = vmatprep.subr.mxu0 0.0
      %2072 = vmatpush1.msra.mxu0 0.0
      %2073 = vmatprep.subr.mxu0 0.0
      %2074 = vmatpush1.msra.mxu0 0.0
      %2075 = vmatprep.subr.mxu0 0.0
      %2076 = vmatpush1.msra.mxu0 0.0
      %2077 = vmatprep.subr.mxu0 0.0
      %2078 = vmatpush1.msra.mxu0 0.0
      %2079 = vmatprep.subr.mxu0 0.0
      %2080 = vmatpush1.msra.mxu0 0.0
      %2081 = vmatprep.subr.mxu0 0.0
      %2082 = vmatpush1.msra.mxu0 0.0
      %2083 = vmatprep.subr.mxu0 0.0
      %2084 = vmatpush1.msra.mxu0 0.0
      %2085 = vmatprep.subr.mxu0 0.0
      %2086 = vmatpush1.msra.mxu0 0.0
      %2087 = vmatprep.subr.mxu0 0.0
      %2088 = vmatpush1.msra.mxu0 0.0
      %2089 = vmatprep.subr.mxu0 0.0
      %2090 = vmatpush1.msra.mxu0 0.0
      %2091 = vmatprep.subr.mxu0 0.0
      %2092 = vmatpush1.msra.mxu0 0.0
      %2093 = vmatprep.subr.mxu0 0.0
      %2094 = vmatpush1.msra.mxu0 0.0
      %2095 = vmatprep.subr.mxu0 0.0
      %2096 = vmatpush1.msra.mxu0 0.0
      %2097 = vmatprep.subr.mxu0 0.0
      %2098 = vmatpush1.msra.mxu0 0.0
      %2099 = vmatprep.subr.mxu0 0.0
      %2100 = vmatpush1.msra.mxu0 0.0
      %2101 = vmatprep.subr.mxu0 0.0
      %2102 = vmatpush1.msra.mxu0 0.0
      %2103 = vmatprep.subr.mxu0 0.0
      %2104 = vmatpush1.msra.mxu0 0.0
      %2105 = vmatprep.subr.mxu0 0.0
      %2106 = vmatpush1.msra.mxu0 0.0
      %2107 = vmatprep.subr.mxu0 0.0
      %2108 = vmatpush1.msra.mxu0 0.0
      %2109 = vmatprep.subr.mxu0 0.0
      %2110 = vmatpush1.msra.mxu0 0.0
      %2111 = vmatprep.mubr.f32.mxu0 0.0
      %2112 = vmatmul.mubr.f32.gmra.mrb[0].mxu0 %v2039
      %v2113 = vpop.f32.mrb[0].mxu0
      %v2114 = vadd.f32 %v2030, %v2113
      %v2115 = vpop.f32.mrb[0].mxu0
      %2116 = vmatprep.mubr.f32.mxu0 0.0
      %2117 = vmatmul.mubr.f32.gmra.mrb[0].mxu0 %v2042
      %v2118 = vpop.f32.mrb[0].mxu0
      %v2119 = vadd.f32 %v2035, %v2118
      %v2120 = vpop.f32.mrb[0].mxu0
      %2121 = vdwg.mxu0
      %s2122 = sadd.s32 %s1944, 2
      %s2123 = scalar_lea.vmem %s234, %s2122
      %v2124 = vld [vmem:[%s2123] sm:$0xff]
      %v2125 = vld [vmem:[%s2123 + $0x8] sm:$0xff]
      %v2126 = vld [vmem:[%s446] sm:$0xf]
      %v2128 = vsel %vm272, %v2124, 0
      %v2131 = vsel %vm272, %v2125, 0
      %v2134 = vsel %vm279, %v2126, 0
      %2136 = vmatprep.subr.mxu0 0.0
      %2137 = vmatpush1.msra.mxu0 %v2134
      %2138 = vmatprep.subr.mxu0 0.0
      %2139 = vmatpush1.msra.mxu0 0.0
      %2140 = vmatprep.subr.mxu0 0.0
      %2141 = vmatpush1.msra.mxu0 0.0
      %2142 = vmatprep.subr.mxu0 0.0
      %2143 = vmatpush1.msra.mxu0 0.0
      %2144 = vmatprep.subr.mxu0 0.0
      %2145 = vmatpush1.msra.mxu0 0.0
      %2146 = vmatprep.subr.mxu0 0.0
      %2147 = vmatpush1.msra.mxu0 0.0
      %2148 = vmatprep.subr.mxu0 0.0
      %2149 = vmatpush1.msra.mxu0 0.0
      %2150 = vmatprep.subr.mxu0 0.0
      %2151 = vmatpush1.msra.mxu0 0.0
      %2152 = vmatprep.subr.mxu0 0.0
      %2153 = vmatpush1.msra.mxu0 0.0
      %2154 = vmatprep.subr.mxu0 0.0
      %2155 = vmatpush1.msra.mxu0 0.0
      %2156 = vmatprep.subr.mxu0 0.0
      %2157 = vmatpush1.msra.mxu0 0.0
      %2158 = vmatprep.subr.mxu0 0.0
      %2159 = vmatpush1.msra.mxu0 0.0
      %2160 = vmatprep.subr.mxu0 0.0
      %2161 = vmatpush1.msra.mxu0 0.0
      %2162 = vmatprep.subr.mxu0 0.0
      %2163 = vmatpush1.msra.mxu0 0.0
      %2164 = vmatprep.subr.mxu0 0.0
      %2165 = vmatpush1.msra.mxu0 0.0
      %2166 = vmatprep.subr.mxu0 0.0
      %2167 = vmatpush1.msra.mxu0 0.0
      %2168 = vmatprep.subr.mxu0 0.0
      %2169 = vmatpush1.msra.mxu0 0.0
      %2170 = vmatprep.subr.mxu0 0.0
      %2171 = vmatpush1.msra.mxu0 0.0
      %2172 = vmatprep.subr.mxu0 0.0
      %2173 = vmatpush1.msra.mxu0 0.0
      %2174 = vmatprep.subr.mxu0 0.0
      %2175 = vmatpush1.msra.mxu0 0.0
      %2176 = vmatprep.subr.mxu0 0.0
      %2177 = vmatpush1.msra.mxu0 0.0
      %2178 = vmatprep.subr.mxu0 0.0
      %2179 = vmatpush1.msra.mxu0 0.0
      %2180 = vmatprep.subr.mxu0 0.0
      %2181 = vmatpush1.msra.mxu0 0.0
      %2182 = vmatprep.subr.mxu0 0.0
      %2183 = vmatpush1.msra.mxu0 0.0
      %2184 = vmatprep.subr.mxu0 0.0
      %2185 = vmatpush1.msra.mxu0 0.0
      %2186 = vmatprep.subr.mxu0 0.0
      %2187 = vmatpush1.msra.mxu0 0.0
      %2188 = vmatprep.subr.mxu0 0.0
      %2189 = vmatpush1.msra.mxu0 0.0
      %2190 = vmatprep.subr.mxu0 0.0
      %2191 = vmatpush1.msra.mxu0 0.0
      %2192 = vmatprep.subr.mxu0 0.0
      %2193 = vmatpush1.msra.mxu0 0.0
      %2194 = vmatprep.subr.mxu0 0.0
      %2195 = vmatpush1.msra.mxu0 0.0
      %2196 = vmatprep.subr.mxu0 0.0
      %2197 = vmatpush1.msra.mxu0 0.0
      %2198 = vmatprep.subr.mxu0 0.0
      %2199 = vmatpush1.msra.mxu0 0.0
      %2200 = vmatprep.mubr.f32.mxu0 0.0
      %2201 = vmatmul.mubr.f32.gmra.mrb[0].mxu0 %v2128
      %v2202 = vpop.f32.mrb[0].mxu0
      %v2203 = vadd.f32 0.0, %v2202
      %v2204 = vpop.f32.mrb[0].mxu0
      %2205 = vmatprep.mubr.f32.mxu0 0.0
      %2206 = vmatmul.mubr.f32.gmra.mrb[0].mxu0 %v2131
      %v2207 = vpop.f32.mrb[0].mxu0
      %v2208 = vadd.f32 0.0, %v2207
      %v2209 = vpop.f32.mrb[0].mxu0
      %2210 = vdwg.mxu0
      %v2211 = vadd.f32 %v2114, %v2203
      %v2212 = vadd.f32 %v2119, %v2208
      %s2213 = sadd.s32 %s1944, 18
      %s2214 = scalar_lea.vmem %s234, %s2213
      %v2215 = vld [vmem:[%s2214] sm:$0xff]
      %v2216 = vld [vmem:[%s2214 + $0x8] sm:$0xff]
      %v2217 = vld [vmem:[%s538] sm:$0xf]
      %v2219 = vsel %vm272, %v2215, 0
      %v2222 = vsel %vm272, %v2216, 0
      %v2225 = vsel %vm279, %v2217, 0
      %2227 = vmatprep.subr.mxu0 0.0
      %2228 = vmatpush1.msra.mxu0 %v2225
      %2229 = vmatprep.subr.mxu0 0.0
      %2230 = vmatpush1.msra.mxu0 0.0
      %2231 = vmatprep.subr.mxu0 0.0
      %2232 = vmatpush1.msra.mxu0 0.0
      %2233 = vmatprep.subr.mxu0 0.0
      %2234 = vmatpush1.msra.mxu0 0.0
      %2235 = vmatprep.subr.mxu0 0.0
      %2236 = vmatpush1.msra.mxu0 0.0
      %2237 = vmatprep.subr.mxu0 0.0
      %2238 = vmatpush1.msra.mxu0 0.0
      %2239 = vmatprep.subr.mxu0 0.0
      %2240 = vmatpush1.msra.mxu0 0.0
      %2241 = vmatprep.subr.mxu0 0.0
      %2242 = vmatpush1.msra.mxu0 0.0
      %2243 = vmatprep.subr.mxu0 0.0
      %2244 = vmatpush1.msra.mxu0 0.0
      %2245 = vmatprep.subr.mxu0 0.0
      %2246 = vmatpush1.msra.mxu0 0.0
      %2247 = vmatprep.subr.mxu0 0.0
      %2248 = vmatpush1.msra.mxu0 0.0
      %2249 = vmatprep.subr.mxu0 0.0
      %2250 = vmatpush1.msra.mxu0 0.0
      %2251 = vmatprep.subr.mxu0 0.0
      %2252 = vmatpush1.msra.mxu0 0.0
      %2253 = vmatprep.subr.mxu0 0.0
      %2254 = vmatpush1.msra.mxu0 0.0
      %2255 = vmatprep.subr.mxu0 0.0
      %2256 = vmatpush1.msra.mxu0 0.0
      %2257 = vmatprep.subr.mxu0 0.0
      %2258 = vmatpush1.msra.mxu0 0.0
      %2259 = vmatprep.subr.mxu0 0.0
      %2260 = vmatpush1.msra.mxu0 0.0
      %2261 = vmatprep.subr.mxu0 0.0
      %2262 = vmatpush1.msra.mxu0 0.0
      %2263 = vmatprep.subr.mxu0 0.0
      %2264 = vmatpush1.msra.mxu0 0.0
      %2265 = vmatprep.subr.mxu0 0.0
      %2266 = vmatpush1.msra.mxu0 0.0
      %2267 = vmatprep.subr.mxu0 0.0
      %2268 = vmatpush1.msra.mxu0 0.0
      %2269 = vmatprep.subr.mxu0 0.0
      %2270 = vmatpush1.msra.mxu0 0.0
      %2271 = vmatprep.subr.mxu0 0.0
      %2272 = vmatpush1.msra.mxu0 0.0
      %2273 = vmatprep.subr.mxu0 0.0
      %2274 = vmatpush1.msra.mxu0 0.0
      %2275 = vmatprep.subr.mxu0 0.0
      %2276 = vmatpush1.msra.mxu0 0.0
      %2277 = vmatprep.subr.mxu0 0.0
      %2278 = vmatpush1.msra.mxu0 0.0
      %2279 = vmatprep.subr.mxu0 0.0
      %2280 = vmatpush1.msra.mxu0 0.0
      %2281 = vmatprep.subr.mxu0 0.0
      %2282 = vmatpush1.msra.mxu0 0.0
      %2283 = vmatprep.subr.mxu0 0.0
      %2284 = vmatpush1.msra.mxu0 0.0
      %2285 = vmatprep.subr.mxu0 0.0
      %2286 = vmatpush1.msra.mxu0 0.0
      %2287 = vmatprep.subr.mxu0 0.0
      %2288 = vmatpush1.msra.mxu0 0.0
      %2289 = vmatprep.subr.mxu0 0.0
      %2290 = vmatpush1.msra.mxu0 0.0
      %2291 = vmatprep.mubr.f32.mxu0 0.0
      %2292 = vmatmul.mubr.f32.gmra.mrb[0].mxu0 %v2219
      %v2293 = vpop.f32.mrb[0].mxu0
      %v2294 = vadd.f32 0.0, %v2293
      %v2295 = vpop.f32.mrb[0].mxu0
      %2296 = vmatprep.mubr.f32.mxu0 0.0
      %2297 = vmatmul.mubr.f32.gmra.mrb[0].mxu0 %v2222
      %v2298 = vpop.f32.mrb[0].mxu0
      %v2299 = vadd.f32 0.0, %v2298
      %v2300 = vpop.f32.mrb[0].mxu0
      %2301 = vdwg.mxu0
      %v2302 = vadd.f32 %v2211, %v2294
      %v2303 = vadd.f32 %v2212, %v2299
      %s2304 = sadd.s32 %s1944, 19
      %s2305 = scalar_lea.vmem %s234, %s2304
      %v2306 = vld [vmem:[%s2305] sm:$0xff]
      %v2307 = vld [vmem:[%s2305 + $0x8] sm:$0xff]
      %v2308 = vld [vmem:[%s630] sm:$0xf]
      %v2310 = vsel %vm272, %v2306, 0
      %v2313 = vsel %vm272, %v2307, 0
      %v2316 = vsel %vm279, %v2308, 0
      %2318 = vmatprep.subr.mxu0 0.0
      %2319 = vmatpush1.msra.mxu0 %v2316
      %2320 = vmatprep.subr.mxu0 0.0
      %2321 = vmatpush1.msra.mxu0 0.0
      %2322 = vmatprep.subr.mxu0 0.0
      %2323 = vmatpush1.msra.mxu0 0.0
      %2324 = vmatprep.subr.mxu0 0.0
      %2325 = vmatpush1.msra.mxu0 0.0
      %2326 = vmatprep.subr.mxu0 0.0
      %2327 = vmatpush1.msra.mxu0 0.0
      %2328 = vmatprep.subr.mxu0 0.0
      %2329 = vmatpush1.msra.mxu0 0.0
      %2330 = vmatprep.subr.mxu0 0.0
      %2331 = vmatpush1.msra.mxu0 0.0
      %2332 = vmatprep.subr.mxu0 0.0
      %2333 = vmatpush1.msra.mxu0 0.0
      %2334 = vmatprep.subr.mxu0 0.0
      %2335 = vmatpush1.msra.mxu0 0.0
      %2336 = vmatprep.subr.mxu0 0.0
      %2337 = vmatpush1.msra.mxu0 0.0
      %2338 = vmatprep.subr.mxu0 0.0
      %2339 = vmatpush1.msra.mxu0 0.0
      %2340 = vmatprep.subr.mxu0 0.0
      %2341 = vmatpush1.msra.mxu0 0.0
      %2342 = vmatprep.subr.mxu0 0.0
      %2343 = vmatpush1.msra.mxu0 0.0
      %2344 = vmatprep.subr.mxu0 0.0
      %2345 = vmatpush1.msra.mxu0 0.0
      %2346 = vmatprep.subr.mxu0 0.0
      %2347 = vmatpush1.msra.mxu0 0.0
      %2348 = vmatprep.subr.mxu0 0.0
      %2349 = vmatpush1.msra.mxu0 0.0
      %2350 = vmatprep.subr.mxu0 0.0
      %2351 = vmatpush1.msra.mxu0 0.0
      %2352 = vmatprep.subr.mxu0 0.0
      %2353 = vmatpush1.msra.mxu0 0.0
      %2354 = vmatprep.subr.mxu0 0.0
      %2355 = vmatpush1.msra.mxu0 0.0
      %2356 = vmatprep.subr.mxu0 0.0
      %2357 = vmatpush1.msra.mxu0 0.0
      %2358 = vmatprep.subr.mxu0 0.0
      %2359 = vmatpush1.msra.mxu0 0.0
      %2360 = vmatprep.subr.mxu0 0.0
      %2361 = vmatpush1.msra.mxu0 0.0
      %2362 = vmatprep.subr.mxu0 0.0
      %2363 = vmatpush1.msra.mxu0 0.0
      %2364 = vmatprep.subr.mxu0 0.0
      %2365 = vmatpush1.msra.mxu0 0.0
      %2366 = vmatprep.subr.mxu0 0.0
      %2367 = vmatpush1.msra.mxu0 0.0
      %2368 = vmatprep.subr.mxu0 0.0
      %2369 = vmatpush1.msra.mxu0 0.0
      %2370 = vmatprep.subr.mxu0 0.0
      %2371 = vmatpush1.msra.mxu0 0.0
      %2372 = vmatprep.subr.mxu0 0.0
      %2373 = vmatpush1.msra.mxu0 0.0
      %2374 = vmatprep.subr.mxu0 0.0
      %2375 = vmatpush1.msra.mxu0 0.0
      %2376 = vmatprep.subr.mxu0 0.0
      %2377 = vmatpush1.msra.mxu0 0.0
      %2378 = vmatprep.subr.mxu0 0.0
      %2379 = vmatpush1.msra.mxu0 0.0
      %2380 = vmatprep.subr.mxu0 0.0
      %2381 = vmatpush1.msra.mxu0 0.0
      %2382 = vmatprep.mubr.f32.mxu0 0.0
      %2383 = vmatmul.mubr.f32.gmra.mrb[0].mxu0 %v2310
      %v2384 = vpop.f32.mrb[0].mxu0
      %v2385 = vadd.f32 0.0, %v2384
      %v2386 = vpop.f32.mrb[0].mxu0
      %2387 = vmatprep.mubr.f32.mxu0 0.0
      %2388 = vmatmul.mubr.f32.gmra.mrb[0].mxu0 %v2313
      %v2389 = vpop.f32.mrb[0].mxu0
      %v2390 = vadd.f32 0.0, %v2389
      %v2391 = vpop.f32.mrb[0].mxu0
      %2392 = vdwg.mxu0
      %v2393 = vadd.f32 %v2302, %v2385
      %v2394 = vadd.f32 %v2303, %v2390
      %s2395 = sadd.s32 %s1944, 20
      %s2396 = scalar_lea.vmem %s234, %s2395
      %v2397 = vld [vmem:[%s2396] sm:$0xff]
      %v2398 = vld [vmem:[%s2396 + $0x8] sm:$0xff]
      %v2399 = vld [vmem:[%s722] sm:$0xf]
      %v2401 = vsel %vm272, %v2397, 0
      %v2404 = vsel %vm272, %v2398, 0
      %v2407 = vsel %vm279, %v2399, 0
      %2409 = vmatprep.subr.mxu0 0.0
      %2410 = vmatpush1.msra.mxu0 %v2407
      %2411 = vmatprep.subr.mxu0 0.0
      %2412 = vmatpush1.msra.mxu0 0.0
      %2413 = vmatprep.subr.mxu0 0.0
      %2414 = vmatpush1.msra.mxu0 0.0
      %2415 = vmatprep.subr.mxu0 0.0
      %2416 = vmatpush1.msra.mxu0 0.0
      %2417 = vmatprep.subr.mxu0 0.0
      %2418 = vmatpush1.msra.mxu0 0.0
      %2419 = vmatprep.subr.mxu0 0.0
      %2420 = vmatpush1.msra.mxu0 0.0
      %2421 = vmatprep.subr.mxu0 0.0
      %2422 = vmatpush1.msra.mxu0 0.0
      %2423 = vmatprep.subr.mxu0 0.0
      %2424 = vmatpush1.msra.mxu0 0.0
      %2425 = vmatprep.subr.mxu0 0.0
      %2426 = vmatpush1.msra.mxu0 0.0
      %2427 = vmatprep.subr.mxu0 0.0
      %2428 = vmatpush1.msra.mxu0 0.0
      %2429 = vmatprep.subr.mxu0 0.0
      %2430 = vmatpush1.msra.mxu0 0.0
      %2431 = vmatprep.subr.mxu0 0.0
      %2432 = vmatpush1.msra.mxu0 0.0
      %2433 = vmatprep.subr.mxu0 0.0
      %2434 = vmatpush1.msra.mxu0 0.0
      %2435 = vmatprep.subr.mxu0 0.0
      %2436 = vmatpush1.msra.mxu0 0.0
      %2437 = vmatprep.subr.mxu0 0.0
      %2438 = vmatpush1.msra.mxu0 0.0
      %2439 = vmatprep.subr.mxu0 0.0
      %2440 = vmatpush1.msra.mxu0 0.0
      %2441 = vmatprep.subr.mxu0 0.0
      %2442 = vmatpush1.msra.mxu0 0.0
      %2443 = vmatprep.subr.mxu0 0.0
      %2444 = vmatpush1.msra.mxu0 0.0
      %2445 = vmatprep.subr.mxu0 0.0
      %2446 = vmatpush1.msra.mxu0 0.0
      %2447 = vmatprep.subr.mxu0 0.0
      %2448 = vmatpush1.msra.mxu0 0.0
      %2449 = vmatprep.subr.mxu0 0.0
      %2450 = vmatpush1.msra.mxu0 0.0
      %2451 = vmatprep.subr.mxu0 0.0
      %2452 = vmatpush1.msra.mxu0 0.0
      %2453 = vmatprep.subr.mxu0 0.0
      %2454 = vmatpush1.msra.mxu0 0.0
      %2455 = vmatprep.subr.mxu0 0.0
      %2456 = vmatpush1.msra.mxu0 0.0
      %2457 = vmatprep.subr.mxu0 0.0
      %2458 = vmatpush1.msra.mxu0 0.0
      %2459 = vmatprep.subr.mxu0 0.0
      %2460 = vmatpush1.msra.mxu0 0.0
      %2461 = vmatprep.subr.mxu0 0.0
      %2462 = vmatpush1.msra.mxu0 0.0
      %2463 = vmatprep.subr.mxu0 0.0
      %2464 = vmatpush1.msra.mxu0 0.0
      %2465 = vmatprep.subr.mxu0 0.0
      %2466 = vmatpush1.msra.mxu0 0.0
      %2467 = vmatprep.subr.mxu0 0.0
      %2468 = vmatpush1.msra.mxu0 0.0
      %2469 = vmatprep.subr.mxu0 0.0
      %2470 = vmatpush1.msra.mxu0 0.0
      %2471 = vmatprep.subr.mxu0 0.0
      %2472 = vmatpush1.msra.mxu0 0.0
      %2473 = vmatprep.mubr.f32.mxu0 0.0
      %2474 = vmatmul.mubr.f32.gmra.mrb[0].mxu0 %v2401
      %v2475 = vpop.f32.mrb[0].mxu0
      %v2476 = vadd.f32 0.0, %v2475
      %v2477 = vpop.f32.mrb[0].mxu0
      %2478 = vmatprep.mubr.f32.mxu0 0.0
      %2479 = vmatmul.mubr.f32.gmra.mrb[0].mxu0 %v2404
      %v2480 = vpop.f32.mrb[0].mxu0
      %v2481 = vadd.f32 0.0, %v2480
      %v2482 = vpop.f32.mrb[0].mxu0
      %2483 = vdwg.mxu0
      %v2484 = vadd.f32 %v2393, %v2476
      %v2485 = vadd.f32 %v2394, %v2481
      %s2486 = sadd.s32 %s1944, 36
      %s2487 = scalar_lea.vmem %s234, %s2486
      %v2488 = vld [vmem:[%s2487] sm:$0xff]
      %v2489 = vld [vmem:[%s2487 + $0x8] sm:$0xff]
      %v2490 = vld [vmem:[%s814] sm:$0xf]
      %v2492 = vsel %vm272, %v2488, 0
      %v2495 = vsel %vm272, %v2489, 0
      %v2498 = vsel %vm279, %v2490, 0
      %2500 = vmatprep.subr.mxu0 0.0
      %2501 = vmatpush1.msra.mxu0 %v2498
      %2502 = vmatprep.subr.mxu0 0.0
      %2503 = vmatpush1.msra.mxu0 0.0
      %2504 = vmatprep.subr.mxu0 0.0
      %2505 = vmatpush1.msra.mxu0 0.0
      %2506 = vmatprep.subr.mxu0 0.0
      %2507 = vmatpush1.msra.mxu0 0.0
      %2508 = vmatprep.subr.mxu0 0.0
      %2509 = vmatpush1.msra.mxu0 0.0
      %2510 = vmatprep.subr.mxu0 0.0
      %2511 = vmatpush1.msra.mxu0 0.0
      %2512 = vmatprep.subr.mxu0 0.0
      %2513 = vmatpush1.msra.mxu0 0.0
      %2514 = vmatprep.subr.mxu0 0.0
      %2515 = vmatpush1.msra.mxu0 0.0
      %2516 = vmatprep.subr.mxu0 0.0
      %2517 = vmatpush1.msra.mxu0 0.0
      %2518 = vmatprep.subr.mxu0 0.0
      %2519 = vmatpush1.msra.mxu0 0.0
      %2520 = vmatprep.subr.mxu0 0.0
      %2521 = vmatpush1.msra.mxu0 0.0
      %2522 = vmatprep.subr.mxu0 0.0
      %2523 = vmatpush1.msra.mxu0 0.0
      %2524 = vmatprep.subr.mxu0 0.0
      %2525 = vmatpush1.msra.mxu0 0.0
      %2526 = vmatprep.subr.mxu0 0.0
      %2527 = vmatpush1.msra.mxu0 0.0
      %2528 = vmatprep.subr.mxu0 0.0
      %2529 = vmatpush1.msra.mxu0 0.0
      %2530 = vmatprep.subr.mxu0 0.0
      %2531 = vmatpush1.msra.mxu0 0.0
      %2532 = vmatprep.subr.mxu0 0.0
      %2533 = vmatpush1.msra.mxu0 0.0
      %2534 = vmatprep.subr.mxu0 0.0
      %2535 = vmatpush1.msra.mxu0 0.0
      %2536 = vmatprep.subr.mxu0 0.0
      %2537 = vmatpush1.msra.mxu0 0.0
      %2538 = vmatprep.subr.mxu0 0.0
      %2539 = vmatpush1.msra.mxu0 0.0
      %2540 = vmatprep.subr.mxu0 0.0
      %2541 = vmatpush1.msra.mxu0 0.0
      %2542 = vmatprep.subr.mxu0 0.0
      %2543 = vmatpush1.msra.mxu0 0.0
      %2544 = vmatprep.subr.mxu0 0.0
      %2545 = vmatpush1.msra.mxu0 0.0
      %2546 = vmatprep.subr.mxu0 0.0
      %2547 = vmatpush1.msra.mxu0 0.0
      %2548 = vmatprep.subr.mxu0 0.0
      %2549 = vmatpush1.msra.mxu0 0.0
      %2550 = vmatprep.subr.mxu0 0.0
      %2551 = vmatpush1.msra.mxu0 0.0
      %2552 = vmatprep.subr.mxu0 0.0
      %2553 = vmatpush1.msra.mxu0 0.0
      %2554 = vmatprep.subr.mxu0 0.0
      %2555 = vmatpush1.msra.mxu0 0.0
      %2556 = vmatprep.subr.mxu0 0.0
      %2557 = vmatpush1.msra.mxu0 0.0
      %2558 = vmatprep.subr.mxu0 0.0
      %2559 = vmatpush1.msra.mxu0 0.0
      %2560 = vmatprep.subr.mxu0 0.0
      %2561 = vmatpush1.msra.mxu0 0.0
      %2562 = vmatprep.subr.mxu0 0.0
      %2563 = vmatpush1.msra.mxu0 0.0
      %2564 = vmatprep.mubr.f32.mxu0 0.0
      %2565 = vmatmul.mubr.f32.gmra.mrb[0].mxu0 %v2492
      %v2566 = vpop.f32.mrb[0].mxu0
      %v2567 = vadd.f32 0.0, %v2566
      %v2568 = vpop.f32.mrb[0].mxu0
      %2569 = vmatprep.mubr.f32.mxu0 0.0
      %2570 = vmatmul.mubr.f32.gmra.mrb[0].mxu0 %v2495
      %v2571 = vpop.f32.mrb[0].mxu0
      %v2572 = vadd.f32 0.0, %v2571
      %v2573 = vpop.f32.mrb[0].mxu0
      %2574 = vdwg.mxu0
      %v2575 = vadd.f32 %v2484, %v2567
      %v2576 = vadd.f32 %v2485, %v2572
      %s2577 = sadd.s32 %s1944, 37
      %s2578 = scalar_lea.vmem %s234, %s2577
      %v2579 = vld [vmem:[%s2578] sm:$0xff]
      %v2580 = vld [vmem:[%s2578 + $0x8] sm:$0xff]
      %v2581 = vld [vmem:[%s906] sm:$0xf]
      %v2583 = vsel %vm272, %v2579, 0
      %v2586 = vsel %vm272, %v2580, 0
      %v2589 = vsel %vm279, %v2581, 0
      %2591 = vmatprep.subr.mxu0 0.0
      %2592 = vmatpush1.msra.mxu0 %v2589
      %2593 = vmatprep.subr.mxu0 0.0
      %2594 = vmatpush1.msra.mxu0 0.0
      %2595 = vmatprep.subr.mxu0 0.0
      %2596 = vmatpush1.msra.mxu0 0.0
      %2597 = vmatprep.subr.mxu0 0.0
      %2598 = vmatpush1.msra.mxu0 0.0
      %2599 = vmatprep.subr.mxu0 0.0
      %2600 = vmatpush1.msra.mxu0 0.0
      %2601 = vmatprep.subr.mxu0 0.0
      %2602 = vmatpush1.msra.mxu0 0.0
      %2603 = vmatprep.subr.mxu0 0.0
      %2604 = vmatpush1.msra.mxu0 0.0
      %2605 = vmatprep.subr.mxu0 0.0
      %2606 = vmatpush1.msra.mxu0 0.0
      %2607 = vmatprep.subr.mxu0 0.0
      %2608 = vmatpush1.msra.mxu0 0.0
      %2609 = vmatprep.subr.mxu0 0.0
      %2610 = vmatpush1.msra.mxu0 0.0
      %2611 = vmatprep.subr.mxu0 0.0
      %2612 = vmatpush1.msra.mxu0 0.0
      %2613 = vmatprep.subr.mxu0 0.0
      %2614 = vmatpush1.msra.mxu0 0.0
      %2615 = vmatprep.subr.mxu0 0.0
      %2616 = vmatpush1.msra.mxu0 0.0
      %2617 = vmatprep.subr.mxu0 0.0
      %2618 = vmatpush1.msra.mxu0 0.0
      %2619 = vmatprep.subr.mxu0 0.0
      %2620 = vmatpush1.msra.mxu0 0.0
      %2621 = vmatprep.subr.mxu0 0.0
      %2622 = vmatpush1.msra.mxu0 0.0
      %2623 = vmatprep.subr.mxu0 0.0
      %2624 = vmatpush1.msra.mxu0 0.0
      %2625 = vmatprep.subr.mxu0 0.0
      %2626 = vmatpush1.msra.mxu0 0.0
      %2627 = vmatprep.subr.mxu0 0.0
      %2628 = vmatpush1.msra.mxu0 0.0
      %2629 = vmatprep.subr.mxu0 0.0
      %2630 = vmatpush1.msra.mxu0 0.0
      %2631 = vmatprep.subr.mxu0 0.0
      %2632 = vmatpush1.msra.mxu0 0.0
      %2633 = vmatprep.subr.mxu0 0.0
      %2634 = vmatpush1.msra.mxu0 0.0
      %2635 = vmatprep.subr.mxu0 0.0
      %2636 = vmatpush1.msra.mxu0 0.0
      %2637 = vmatprep.subr.mxu0 0.0
      %2638 = vmatpush1.msra.mxu0 0.0
      %2639 = vmatprep.subr.mxu0 0.0
      %2640 = vmatpush1.msra.mxu0 0.0
      %2641 = vmatprep.subr.mxu0 0.0
      %2642 = vmatpush1.msra.mxu0 0.0
      %2643 = vmatprep.subr.mxu0 0.0
      %2644 = vmatpush1.msra.mxu0 0.0
      %2645 = vmatprep.subr.mxu0 0.0
      %2646 = vmatpush1.msra.mxu0 0.0
      %2647 = vmatprep.subr.mxu0 0.0
      %2648 = vmatpush1.msra.mxu0 0.0
      %2649 = vmatprep.subr.mxu0 0.0
      %2650 = vmatpush1.msra.mxu0 0.0
      %2651 = vmatprep.subr.mxu0 0.0
      %2652 = vmatpush1.msra.mxu0 0.0
      %2653 = vmatprep.subr.mxu0 0.0
      %2654 = vmatpush1.msra.mxu0 0.0
      %2655 = vmatprep.mubr.f32.mxu0 0.0
      %2656 = vmatmul.mubr.f32.gmra.mrb[0].mxu0 %v2583
      %v2657 = vpop.f32.mrb[0].mxu0
      %v2658 = vadd.f32 0.0, %v2657
      %v2659 = vpop.f32.mrb[0].mxu0
      %2660 = vmatprep.mubr.f32.mxu0 0.0
      %2661 = vmatmul.mubr.f32.gmra.mrb[0].mxu0 %v2586
      %v2662 = vpop.f32.mrb[0].mxu0
      %v2663 = vadd.f32 0.0, %v2662
      %v2664 = vpop.f32.mrb[0].mxu0
      %2665 = vdwg.mxu0
      %v2666 = vadd.f32 %v2575, %v2658
      %v2667 = vadd.f32 %v2576, %v2663
      %s2668 = sadd.s32 %s1944, 38
      %s2669 = scalar_lea.vmem %s234, %s2668
      %v2670 = vld [vmem:[%s2669] sm:$0xff]
      %v2671 = vld [vmem:[%s2669 + $0x8] sm:$0xff]
      %v2672 = vld [vmem:[%s998] sm:$0xf]
      %v2674 = vsel %vm272, %v2670, 0
      %v2677 = vsel %vm272, %v2671, 0
      %v2680 = vsel %vm279, %v2672, 0
      %2682 = vmatprep.subr.mxu0 0.0
      %2683 = vmatpush1.msra.mxu0 %v2680
      %2684 = vmatprep.subr.mxu0 0.0
      %2685 = vmatpush1.msra.mxu0 0.0
      %2686 = vmatprep.subr.mxu0 0.0
      %2687 = vmatpush1.msra.mxu0 0.0
      %2688 = vmatprep.subr.mxu0 0.0
      %2689 = vmatpush1.msra.mxu0 0.0
      %2690 = vmatprep.subr.mxu0 0.0
      %2691 = vmatpush1.msra.mxu0 0.0
      %2692 = vmatprep.subr.mxu0 0.0
      %2693 = vmatpush1.msra.mxu0 0.0
      %2694 = vmatprep.subr.mxu0 0.0
      %2695 = vmatpush1.msra.mxu0 0.0
      %2696 = vmatprep.subr.mxu0 0.0
      %2697 = vmatpush1.msra.mxu0 0.0
      %2698 = vmatprep.subr.mxu0 0.0
      %2699 = vmatpush1.msra.mxu0 0.0
      %2700 = vmatprep.subr.mxu0 0.0
      %2701 = vmatpush1.msra.mxu0 0.0
      %2702 = vmatprep.subr.mxu0 0.0
      %2703 = vmatpush1.msra.mxu0 0.0
      %2704 = vmatprep.subr.mxu0 0.0
      %2705 = vmatpush1.msra.mxu0 0.0
      %2706 = vmatprep.subr.mxu0 0.0
      %2707 = vmatpush1.msra.mxu0 0.0
      %2708 = vmatprep.subr.mxu0 0.0
      %2709 = vmatpush1.msra.mxu0 0.0
      %2710 = vmatprep.subr.mxu0 0.0
      %2711 = vmatpush1.msra.mxu0 0.0
      %2712 = vmatprep.subr.mxu0 0.0
      %2713 = vmatpush1.msra.mxu0 0.0
      %2714 = vmatprep.subr.mxu0 0.0
      %2715 = vmatpush1.msra.mxu0 0.0
      %2716 = vmatprep.subr.mxu0 0.0
      %2717 = vmatpush1.msra.mxu0 0.0
      %2718 = vmatprep.subr.mxu0 0.0
      %2719 = vmatpush1.msra.mxu0 0.0
      %2720 = vmatprep.subr.mxu0 0.0
      %2721 = vmatpush1.msra.mxu0 0.0
      %2722 = vmatprep.subr.mxu0 0.0
      %2723 = vmatpush1.msra.mxu0 0.0
      %2724 = vmatprep.subr.mxu0 0.0
      %2725 = vmatpush1.msra.mxu0 0.0
      %2726 = vmatprep.subr.mxu0 0.0
      %2727 = vmatpush1.msra.mxu0 0.0
      %2728 = vmatprep.subr.mxu0 0.0
      %2729 = vmatpush1.msra.mxu0 0.0
      %2730 = vmatprep.subr.mxu0 0.0
      %2731 = vmatpush1.msra.mxu0 0.0
      %2732 = vmatprep.subr.mxu0 0.0
      %2733 = vmatpush1.msra.mxu0 0.0
      %2734 = vmatprep.subr.mxu0 0.0
      %2735 = vmatpush1.msra.mxu0 0.0
      %2736 = vmatprep.subr.mxu0 0.0
      %2737 = vmatpush1.msra.mxu0 0.0
      %2738 = vmatprep.subr.mxu0 0.0
      %2739 = vmatpush1.msra.mxu0 0.0
      %2740 = vmatprep.subr.mxu0 0.0
      %2741 = vmatpush1.msra.mxu0 0.0
      %2742 = vmatprep.subr.mxu0 0.0
      %2743 = vmatpush1.msra.mxu0 0.0
      %2744 = vmatprep.subr.mxu0 0.0
      %2745 = vmatpush1.msra.mxu0 0.0
      %2746 = vmatprep.mubr.f32.mxu0 0.0
      %2747 = vmatmul.mubr.f32.gmra.mrb[0].mxu0 %v2674
      %v2748 = vpop.f32.mrb[0].mxu0
      %v2749 = vadd.f32 0.0, %v2748
      %v2750 = vpop.f32.mrb[0].mxu0
      %2751 = vmatprep.mubr.f32.mxu0 0.0
      %2752 = vmatmul.mubr.f32.gmra.mrb[0].mxu0 %v2677
      %v2753 = vpop.f32.mrb[0].mxu0
      %v2754 = vadd.f32 0.0, %v2753
      %v2755 = vpop.f32.mrb[0].mxu0
      %2756 = vdwg.mxu0
      %v2757 = vadd.f32 %v2666, %v2749
      %v2758 = vadd.f32 %v2667, %v2754
      %s2759 = scalar_lea.vmem %s244, 32
      %2760 = vst [vmem:[%s2759] sm:$0xff] %v2757
      %2761 = vst [vmem:[%s2759 + $0x8] sm:$0xff] %v2758
      %v2762 = vadd.f32 %v2757, %v2758
      %v2763 = vrot.slane %v2762, 4
      %v2764 = vadd.f32 %v2762, %v2763
      %v2765 = vrot.slane %v2764, 2
      %v2766 = vadd.f32 %v2764, %v2765
      %v2767 = vrot.slane %v2766, 1
      %v2768 = vadd.f32 %v2766, %v2767
      %v2769 = vadd.f32 %v1932, %v2768
      %v2770 = vmul.f32 %v2757, %v2757
      %v2771 = vmul.f32 %v2758, %v2758
      %v2772 = vadd.f32 %v2770, %v2771
      %v2773 = vrot.slane %v2772, 4
      %v2774 = vadd.f32 %v2772, %v2773
      %v2775 = vrot.slane %v2774, 2
      %v2776 = vadd.f32 %v2774, %v2775
      %v2777 = vrot.slane %v2776, 1
      %v2778 = vadd.f32 %v2776, %v2777
      %v2779 = vadd.f32 %v1942, %v2778
      %s2780 = sadd.s32 %s260, 3
      %s2781 = smul.u32 %s2780, 18
      %s2782 = scalar_lea.vmem %s234, %s2781
      %v2783 = vld [vmem:[%s2782] sm:$0xff]
      %v2784 = vld [vmem:[%s2782 + $0x8] sm:$0xff]
      %v2785 = vld [vmem:[%s1] sm:$0xf]
      %s2786 = sadd.s32 %s2781, 1
      %s2787 = scalar_lea.vmem %s234, %s2786
      %v2788 = vld [vmem:[%s2787] sm:$0xff]
      %v2789 = vld [vmem:[%s2787 + $0x8] sm:$0xff]
      %v2790 = vld [vmem:[%s270] sm:$0xf]
      %v2792 = vsel %vm272, %v2788, 0
      %v2795 = vsel %vm272, %v2789, 0
      %v2798 = vsel %vm279, %v2790, 0
      %2800 = vmatprep.subr.mxu0 0.0
      %2801 = vmatpush1.msra.mxu0 %v2798
      %2802 = vmatprep.subr.mxu0 0.0
      %2803 = vmatpush1.msra.mxu0 0.0
      %2804 = vmatprep.subr.mxu0 0.0
      %2805 = vmatpush1.msra.mxu0 0.0
      %2806 = vmatprep.subr.mxu0 0.0
      %2807 = vmatpush1.msra.mxu0 0.0
      %2808 = vmatprep.subr.mxu0 0.0
      %2809 = vmatpush1.msra.mxu0 0.0
      %2810 = vmatprep.subr.mxu0 0.0
      %2811 = vmatpush1.msra.mxu0 0.0
      %2812 = vmatprep.subr.mxu0 0.0
      %2813 = vmatpush1.msra.mxu0 0.0
      %2814 = vmatprep.subr.mxu0 0.0
      %2815 = vmatpush1.msra.mxu0 0.0
      %2816 = vmatprep.subr.mxu0 0.0
      %2817 = vmatpush1.msra.mxu0 0.0
      %2818 = vmatprep.subr.mxu0 0.0
      %2819 = vmatpush1.msra.mxu0 0.0
      %2820 = vmatprep.subr.mxu0 0.0
      %2821 = vmatpush1.msra.mxu0 0.0
      %2822 = vmatprep.subr.mxu0 0.0
      %2823 = vmatpush1.msra.mxu0 0.0
      %2824 = vmatprep.subr.mxu0 0.0
      %2825 = vmatpush1.msra.mxu0 0.0
      %2826 = vmatprep.subr.mxu0 0.0
      %2827 = vmatpush1.msra.mxu0 0.0
      %2828 = vmatprep.subr.mxu0 0.0
      %2829 = vmatpush1.msra.mxu0 0.0
      %2830 = vmatprep.subr.mxu0 0.0
      %2831 = vmatpush1.msra.mxu0 0.0
      %2832 = vmatprep.subr.mxu0 0.0
      %2833 = vmatpush1.msra.mxu0 0.0
      %2834 = vmatprep.subr.mxu0 0.0
      %2835 = vmatpush1.msra.mxu0 0.0
      %2836 = vmatprep.subr.mxu0 0.0
      %2837 = vmatpush1.msra.mxu0 0.0
      %2838 = vmatprep.subr.mxu0 0.0
      %2839 = vmatpush1.msra.mxu0 0.0
      %2840 = vmatprep.subr.mxu0 0.0
      %2841 = vmatpush1.msra.mxu0 0.0
      %2842 = vmatprep.subr.mxu0 0.0
      %2843 = vmatpush1.msra.mxu0 0.0
      %2844 = vmatprep.subr.mxu0 0.0
      %2845 = vmatpush1.msra.mxu0 0.0
      %2846 = vmatprep.subr.mxu0 0.0
      %2847 = vmatpush1.msra.mxu0 0.0
      %2848 = vmatprep.subr.mxu0 0.0
      %2849 = vmatpush1.msra.mxu0 0.0
      %2850 = vmatprep.subr.mxu0 0.0
      %2851 = vmatpush1.msra.mxu0 0.0
      %2852 = vmatprep.subr.mxu0 0.0
      %2853 = vmatpush1.msra.mxu0 0.0
      %2854 = vmatprep.subr.mxu0 0.0
      %2855 = vmatpush1.msra.mxu0 0.0
      %2856 = vmatprep.subr.mxu0 0.0
      %2857 = vmatpush1.msra.mxu0 0.0
      %2858 = vmatprep.subr.mxu0 0.0
      %2859 = vmatpush1.msra.mxu0 0.0
      %2860 = vmatprep.subr.mxu0 0.0
      %2861 = vmatpush1.msra.mxu0 0.0
      %2862 = vmatprep.subr.mxu0 0.0
      %2863 = vmatpush1.msra.mxu0 0.0
      %2864 = vmatprep.mubr.f32.mxu0 0.0
      %2865 = vmatmul.mubr.f32.gmra.mrb[0].mxu0 %v2792
      %v2866 = vpop.f32.mrb[0].mxu0
      %v2867 = vadd.f32 0.0, %v2866
      %v2868 = vpop.f32.mrb[0].mxu0
      %2869 = vmatprep.mubr.f32.mxu0 0.0
      %2870 = vmatmul.mubr.f32.gmra.mrb[0].mxu0 %v2795
      %v2871 = vpop.f32.mrb[0].mxu0
      %v2872 = vadd.f32 0.0, %v2871
      %v2873 = vpop.f32.mrb[0].mxu0
      %2874 = vdwg.mxu0
      %v2876 = vsel %vm272, %v2783, 0
      %v2879 = vsel %vm272, %v2784, 0
      %v2882 = vsel %vm279, %v2785, 0
      %2884 = vmatprep.subr.mxu0 0.0
      %2885 = vmatpush1.msra.mxu0 %v2882
      %2886 = vmatprep.subr.mxu0 0.0
      %2887 = vmatpush1.msra.mxu0 0.0
      %2888 = vmatprep.subr.mxu0 0.0
      %2889 = vmatpush1.msra.mxu0 0.0
      %2890 = vmatprep.subr.mxu0 0.0
      %2891 = vmatpush1.msra.mxu0 0.0
      %2892 = vmatprep.subr.mxu0 0.0
      %2893 = vmatpush1.msra.mxu0 0.0
      %2894 = vmatprep.subr.mxu0 0.0
      %2895 = vmatpush1.msra.mxu0 0.0
      %2896 = vmatprep.subr.mxu0 0.0
      %2897 = vmatpush1.msra.mxu0 0.0
      %2898 = vmatprep.subr.mxu0 0.0
      %2899 = vmatpush1.msra.mxu0 0.0
      %2900 = vmatprep.subr.mxu0 0.0
      %2901 = vmatpush1.msra.mxu0 0.0
      %2902 = vmatprep.subr.mxu0 0.0
      %2903 = vmatpush1.msra.mxu0 0.0
      %2904 = vmatprep.subr.mxu0 0.0
      %2905 = vmatpush1.msra.mxu0 0.0
      %2906 = vmatprep.subr.mxu0 0.0
      %2907 = vmatpush1.msra.mxu0 0.0
      %2908 = vmatprep.subr.mxu0 0.0
      %2909 = vmatpush1.msra.mxu0 0.0
      %2910 = vmatprep.subr.mxu0 0.0
      %2911 = vmatpush1.msra.mxu0 0.0
      %2912 = vmatprep.subr.mxu0 0.0
      %2913 = vmatpush1.msra.mxu0 0.0
      %2914 = vmatprep.subr.mxu0 0.0
      %2915 = vmatpush1.msra.mxu0 0.0
      %2916 = vmatprep.subr.mxu0 0.0
      %2917 = vmatpush1.msra.mxu0 0.0
      %2918 = vmatprep.subr.mxu0 0.0
      %2919 = vmatpush1.msra.mxu0 0.0
      %2920 = vmatprep.subr.mxu0 0.0
      %2921 = vmatpush1.msra.mxu0 0.0
      %2922 = vmatprep.subr.mxu0 0.0
      %2923 = vmatpush1.msra.mxu0 0.0
      %2924 = vmatprep.subr.mxu0 0.0
      %2925 = vmatpush1.msra.mxu0 0.0
      %2926 = vmatprep.subr.mxu0 0.0
      %2927 = vmatpush1.msra.mxu0 0.0
      %2928 = vmatprep.subr.mxu0 0.0
      %2929 = vmatpush1.msra.mxu0 0.0
      %2930 = vmatprep.subr.mxu0 0.0
      %2931 = vmatpush1.msra.mxu0 0.0
      %2932 = vmatprep.subr.mxu0 0.0
      %2933 = vmatpush1.msra.mxu0 0.0
      %2934 = vmatprep.subr.mxu0 0.0
      %2935 = vmatpush1.msra.mxu0 0.0
      %2936 = vmatprep.subr.mxu0 0.0
      %2937 = vmatpush1.msra.mxu0 0.0
      %2938 = vmatprep.subr.mxu0 0.0
      %2939 = vmatpush1.msra.mxu0 0.0
      %2940 = vmatprep.subr.mxu0 0.0
      %2941 = vmatpush1.msra.mxu0 0.0
      %2942 = vmatprep.subr.mxu0 0.0
      %2943 = vmatpush1.msra.mxu0 0.0
      %2944 = vmatprep.subr.mxu0 0.0
      %2945 = vmatpush1.msra.mxu0 0.0
      %2946 = vmatprep.subr.mxu0 0.0
      %2947 = vmatpush1.msra.mxu0 0.0
      %2948 = vmatprep.mubr.f32.mxu0 0.0
      %2949 = vmatmul.mubr.f32.gmra.mrb[0].mxu0 %v2876
      %v2950 = vpop.f32.mrb[0].mxu0
      %v2951 = vadd.f32 %v2867, %v2950
      %v2952 = vpop.f32.mrb[0].mxu0
      %2953 = vmatprep.mubr.f32.mxu0 0.0
      %2954 = vmatmul.mubr.f32.gmra.mrb[0].mxu0 %v2879
      %v2955 = vpop.f32.mrb[0].mxu0
      %v2956 = vadd.f32 %v2872, %v2955
      %v2957 = vpop.f32.mrb[0].mxu0
      %2958 = vdwg.mxu0
      %s2959 = sadd.s32 %s2781, 2
      %s2960 = scalar_lea.vmem %s234, %s2959
      %v2961 = vld [vmem:[%s2960] sm:$0xff]
      %v2962 = vld [vmem:[%s2960 + $0x8] sm:$0xff]
      %v2963 = vld [vmem:[%s446] sm:$0xf]
      %v2965 = vsel %vm272, %v2961, 0
      %v2968 = vsel %vm272, %v2962, 0
      %v2971 = vsel %vm279, %v2963, 0
      %2973 = vmatprep.subr.mxu0 0.0
      %2974 = vmatpush1.msra.mxu0 %v2971
      %2975 = vmatprep.subr.mxu0 0.0
      %2976 = vmatpush1.msra.mxu0 0.0
      %2977 = vmatprep.subr.mxu0 0.0
      %2978 = vmatpush1.msra.mxu0 0.0
      %2979 = vmatprep.subr.mxu0 0.0
      %2980 = vmatpush1.msra.mxu0 0.0
      %2981 = vmatprep.subr.mxu0 0.0
      %2982 = vmatpush1.msra.mxu0 0.0
      %2983 = vmatprep.subr.mxu0 0.0
      %2984 = vmatpush1.msra.mxu0 0.0
      %2985 = vmatprep.subr.mxu0 0.0
      %2986 = vmatpush1.msra.mxu0 0.0
      %2987 = vmatprep.subr.mxu0 0.0
      %2988 = vmatpush1.msra.mxu0 0.0
      %2989 = vmatprep.subr.mxu0 0.0
      %2990 = vmatpush1.msra.mxu0 0.0
      %2991 = vmatprep.subr.mxu0 0.0
      %2992 = vmatpush1.msra.mxu0 0.0
      %2993 = vmatprep.subr.mxu0 0.0
      %2994 = vmatpush1.msra.mxu0 0.0
      %2995 = vmatprep.subr.mxu0 0.0
      %2996 = vmatpush1.msra.mxu0 0.0
      %2997 = vmatprep.subr.mxu0 0.0
      %2998 = vmatpush1.msra.mxu0 0.0
      %2999 = vmatprep.subr.mxu0 0.0
      %3000 = vmatpush1.msra.mxu0 0.0
      %3001 = vmatprep.subr.mxu0 0.0
      %3002 = vmatpush1.msra.mxu0 0.0
      %3003 = vmatprep.subr.mxu0 0.0
      %3004 = vmatpush1.msra.mxu0 0.0
      %3005 = vmatprep.subr.mxu0 0.0
      %3006 = vmatpush1.msra.mxu0 0.0
      %3007 = vmatprep.subr.mxu0 0.0
      %3008 = vmatpush1.msra.mxu0 0.0
      %3009 = vmatprep.subr.mxu0 0.0
      %3010 = vmatpush1.msra.mxu0 0.0
      %3011 = vmatprep.subr.mxu0 0.0
      %3012 = vmatpush1.msra.mxu0 0.0
      %3013 = vmatprep.subr.mxu0 0.0
      %3014 = vmatpush1.msra.mxu0 0.0
      %3015 = vmatprep.subr.mxu0 0.0
      %3016 = vmatpush1.msra.mxu0 0.0
      %3017 = vmatprep.subr.mxu0 0.0
      %3018 = vmatpush1.msra.mxu0 0.0
      %3019 = vmatprep.subr.mxu0 0.0
      %3020 = vmatpush1.msra.mxu0 0.0
      %3021 = vmatprep.subr.mxu0 0.0
      %3022 = vmatpush1.msra.mxu0 0.0
      %3023 = vmatprep.subr.mxu0 0.0
      %3024 = vmatpush1.msra.mxu0 0.0
      %3025 = vmatprep.subr.mxu0 0.0
      %3026 = vmatpush1.msra.mxu0 0.0
      %3027 = vmatprep.subr.mxu0 0.0
      %3028 = vmatpush1.msra.mxu0 0.0
      %3029 = vmatprep.subr.mxu0 0.0
      %3030 = vmatpush1.msra.mxu0 0.0
      %3031 = vmatprep.subr.mxu0 0.0
      %3032 = vmatpush1.msra.mxu0 0.0
      %3033 = vmatprep.subr.mxu0 0.0
      %3034 = vmatpush1.msra.mxu0 0.0
      %3035 = vmatprep.subr.mxu0 0.0
      %3036 = vmatpush1.msra.mxu0 0.0
      %3037 = vmatprep.mubr.f32.mxu0 0.0
      %3038 = vmatmul.mubr.f32.gmra.mrb[0].mxu0 %v2965
      %v3039 = vpop.f32.mrb[0].mxu0
      %v3040 = vadd.f32 0.0, %v3039
      %v3041 = vpop.f32.mrb[0].mxu0
      %3042 = vmatprep.mubr.f32.mxu0 0.0
      %3043 = vmatmul.mubr.f32.gmra.mrb[0].mxu0 %v2968
      %v3044 = vpop.f32.mrb[0].mxu0
      %v3045 = vadd.f32 0.0, %v3044
      %v3046 = vpop.f32.mrb[0].mxu0
      %3047 = vdwg.mxu0
      %v3048 = vadd.f32 %v2951, %v3040
      %v3049 = vadd.f32 %v2956, %v3045
      %s3050 = sadd.s32 %s2781, 18
      %s3051 = scalar_lea.vmem %s234, %s3050
      %v3052 = vld [vmem:[%s3051] sm:$0xff]
      %v3053 = vld [vmem:[%s3051 + $0x8] sm:$0xff]
      %v3054 = vld [vmem:[%s538] sm:$0xf]
      %v3056 = vsel %vm272, %v3052, 0
      %v3059 = vsel %vm272, %v3053, 0
      %v3062 = vsel %vm279, %v3054, 0
      %3064 = vmatprep.subr.mxu0 0.0
      %3065 = vmatpush1.msra.mxu0 %v3062
      %3066 = vmatprep.subr.mxu0 0.0
      %3067 = vmatpush1.msra.mxu0 0.0
      %3068 = vmatprep.subr.mxu0 0.0
      %3069 = vmatpush1.msra.mxu0 0.0
      %3070 = vmatprep.subr.mxu0 0.0
      %3071 = vmatpush1.msra.mxu0 0.0
      %3072 = vmatprep.subr.mxu0 0.0
      %3073 = vmatpush1.msra.mxu0 0.0
      %3074 = vmatprep.subr.mxu0 0.0
      %3075 = vmatpush1.msra.mxu0 0.0
      %3076 = vmatprep.subr.mxu0 0.0
      %3077 = vmatpush1.msra.mxu0 0.0
      %3078 = vmatprep.subr.mxu0 0.0
      %3079 = vmatpush1.msra.mxu0 0.0
      %3080 = vmatprep.subr.mxu0 0.0
      %3081 = vmatpush1.msra.mxu0 0.0
      %3082 = vmatprep.subr.mxu0 0.0
      %3083 = vmatpush1.msra.mxu0 0.0
      %3084 = vmatprep.subr.mxu0 0.0
      %3085 = vmatpush1.msra.mxu0 0.0
      %3086 = vmatprep.subr.mxu0 0.0
      %3087 = vmatpush1.msra.mxu0 0.0
      %3088 = vmatprep.subr.mxu0 0.0
      %3089 = vmatpush1.msra.mxu0 0.0
      %3090 = vmatprep.subr.mxu0 0.0
      %3091 = vmatpush1.msra.mxu0 0.0
      %3092 = vmatprep.subr.mxu0 0.0
      %3093 = vmatpush1.msra.mxu0 0.0
      %3094 = vmatprep.subr.mxu0 0.0
      %3095 = vmatpush1.msra.mxu0 0.0
      %3096 = vmatprep.subr.mxu0 0.0
      %3097 = vmatpush1.msra.mxu0 0.0
      %3098 = vmatprep.subr.mxu0 0.0
      %3099 = vmatpush1.msra.mxu0 0.0
      %3100 = vmatprep.subr.mxu0 0.0
      %3101 = vmatpush1.msra.mxu0 0.0
      %3102 = vmatprep.subr.mxu0 0.0
      %3103 = vmatpush1.msra.mxu0 0.0
      %3104 = vmatprep.subr.mxu0 0.0
      %3105 = vmatpush1.msra.mxu0 0.0
      %3106 = vmatprep.subr.mxu0 0.0
      %3107 = vmatpush1.msra.mxu0 0.0
      %3108 = vmatprep.subr.mxu0 0.0
      %3109 = vmatpush1.msra.mxu0 0.0
      %3110 = vmatprep.subr.mxu0 0.0
      %3111 = vmatpush1.msra.mxu0 0.0
      %3112 = vmatprep.subr.mxu0 0.0
      %3113 = vmatpush1.msra.mxu0 0.0
      %3114 = vmatprep.subr.mxu0 0.0
      %3115 = vmatpush1.msra.mxu0 0.0
      %3116 = vmatprep.subr.mxu0 0.0
      %3117 = vmatpush1.msra.mxu0 0.0
      %3118 = vmatprep.subr.mxu0 0.0
      %3119 = vmatpush1.msra.mxu0 0.0
      %3120 = vmatprep.subr.mxu0 0.0
      %3121 = vmatpush1.msra.mxu0 0.0
      %3122 = vmatprep.subr.mxu0 0.0
      %3123 = vmatpush1.msra.mxu0 0.0
      %3124 = vmatprep.subr.mxu0 0.0
      %3125 = vmatpush1.msra.mxu0 0.0
      %3126 = vmatprep.subr.mxu0 0.0
      %3127 = vmatpush1.msra.mxu0 0.0
      %3128 = vmatprep.mubr.f32.mxu0 0.0
      %3129 = vmatmul.mubr.f32.gmra.mrb[0].mxu0 %v3056
      %v3130 = vpop.f32.mrb[0].mxu0
      %v3131 = vadd.f32 0.0, %v3130
      %v3132 = vpop.f32.mrb[0].mxu0
      %3133 = vmatprep.mubr.f32.mxu0 0.0
      %3134 = vmatmul.mubr.f32.gmra.mrb[0].mxu0 %v3059
      %v3135 = vpop.f32.mrb[0].mxu0
      %v3136 = vadd.f32 0.0, %v3135
      %v3137 = vpop.f32.mrb[0].mxu0
      %3138 = vdwg.mxu0
      %v3139 = vadd.f32 %v3048, %v3131
      %v3140 = vadd.f32 %v3049, %v3136
      %s3141 = sadd.s32 %s2781, 19
      %s3142 = scalar_lea.vmem %s234, %s3141
      %v3143 = vld [vmem:[%s3142] sm:$0xff]
      %v3144 = vld [vmem:[%s3142 + $0x8] sm:$0xff]
      %v3145 = vld [vmem:[%s630] sm:$0xf]
      %v3147 = vsel %vm272, %v3143, 0
      %v3150 = vsel %vm272, %v3144, 0
      %v3153 = vsel %vm279, %v3145, 0
      %3155 = vmatprep.subr.mxu0 0.0
      %3156 = vmatpush1.msra.mxu0 %v3153
      %3157 = vmatprep.subr.mxu0 0.0
      %3158 = vmatpush1.msra.mxu0 0.0
      %3159 = vmatprep.subr.mxu0 0.0
      %3160 = vmatpush1.msra.mxu0 0.0
      %3161 = vmatprep.subr.mxu0 0.0
      %3162 = vmatpush1.msra.mxu0 0.0
      %3163 = vmatprep.subr.mxu0 0.0
      %3164 = vmatpush1.msra.mxu0 0.0
      %3165 = vmatprep.subr.mxu0 0.0
      %3166 = vmatpush1.msra.mxu0 0.0
      %3167 = vmatprep.subr.mxu0 0.0
      %3168 = vmatpush1.msra.mxu0 0.0
      %3169 = vmatprep.subr.mxu0 0.0
      %3170 = vmatpush1.msra.mxu0 0.0
      %3171 = vmatprep.subr.mxu0 0.0
      %3172 = vmatpush1.msra.mxu0 0.0
      %3173 = vmatprep.subr.mxu0 0.0
      %3174 = vmatpush1.msra.mxu0 0.0
      %3175 = vmatprep.subr.mxu0 0.0
      %3176 = vmatpush1.msra.mxu0 0.0
      %3177 = vmatprep.subr.mxu0 0.0
      %3178 = vmatpush1.msra.mxu0 0.0
      %3179 = vmatprep.subr.mxu0 0.0
      %3180 = vmatpush1.msra.mxu0 0.0
      %3181 = vmatprep.subr.mxu0 0.0
      %3182 = vmatpush1.msra.mxu0 0.0
      %3183 = vmatprep.subr.mxu0 0.0
      %3184 = vmatpush1.msra.mxu0 0.0
      %3185 = vmatprep.subr.mxu0 0.0
      %3186 = vmatpush1.msra.mxu0 0.0
      %3187 = vmatprep.subr.mxu0 0.0
      %3188 = vmatpush1.msra.mxu0 0.0
      %3189 = vmatprep.subr.mxu0 0.0
      %3190 = vmatpush1.msra.mxu0 0.0
      %3191 = vmatprep.subr.mxu0 0.0
      %3192 = vmatpush1.msra.mxu0 0.0
      %3193 = vmatprep.subr.mxu0 0.0
      %3194 = vmatpush1.msra.mxu0 0.0
      %3195 = vmatprep.subr.mxu0 0.0
      %3196 = vmatpush1.msra.mxu0 0.0
      %3197 = vmatprep.subr.mxu0 0.0
      %3198 = vmatpush1.msra.mxu0 0.0
      %3199 = vmatprep.subr.mxu0 0.0
      %3200 = vmatpush1.msra.mxu0 0.0
      %3201 = vmatprep.subr.mxu0 0.0
      %3202 = vmatpush1.msra.mxu0 0.0
      %3203 = vmatprep.subr.mxu0 0.0
      %3204 = vmatpush1.msra.mxu0 0.0
      %3205 = vmatprep.subr.mxu0 0.0
      %3206 = vmatpush1.msra.mxu0 0.0
      %3207 = vmatprep.subr.mxu0 0.0
      %3208 = vmatpush1.msra.mxu0 0.0
      %3209 = vmatprep.subr.mxu0 0.0
      %3210 = vmatpush1.msra.mxu0 0.0
      %3211 = vmatprep.subr.mxu0 0.0
      %3212 = vmatpush1.msra.mxu0 0.0
      %3213 = vmatprep.subr.mxu0 0.0
      %3214 = vmatpush1.msra.mxu0 0.0
      %3215 = vmatprep.subr.mxu0 0.0
      %3216 = vmatpush1.msra.mxu0 0.0
      %3217 = vmatprep.subr.mxu0 0.0
      %3218 = vmatpush1.msra.mxu0 0.0
      %3219 = vmatprep.mubr.f32.mxu0 0.0
      %3220 = vmatmul.mubr.f32.gmra.mrb[0].mxu0 %v3147
      %v3221 = vpop.f32.mrb[0].mxu0
      %v3222 = vadd.f32 0.0, %v3221
      %v3223 = vpop.f32.mrb[0].mxu0
      %3224 = vmatprep.mubr.f32.mxu0 0.0
      %3225 = vmatmul.mubr.f32.gmra.mrb[0].mxu0 %v3150
      %v3226 = vpop.f32.mrb[0].mxu0
      %v3227 = vadd.f32 0.0, %v3226
      %v3228 = vpop.f32.mrb[0].mxu0
      %3229 = vdwg.mxu0
      %v3230 = vadd.f32 %v3139, %v3222
      %v3231 = vadd.f32 %v3140, %v3227
      %s3232 = sadd.s32 %s2781, 20
      %s3233 = scalar_lea.vmem %s234, %s3232
      %v3234 = vld [vmem:[%s3233] sm:$0xff]
      %v3235 = vld [vmem:[%s3233 + $0x8] sm:$0xff]
      %v3236 = vld [vmem:[%s722] sm:$0xf]
      %v3238 = vsel %vm272, %v3234, 0
      %v3241 = vsel %vm272, %v3235, 0
      %v3244 = vsel %vm279, %v3236, 0
      %3246 = vmatprep.subr.mxu0 0.0
      %3247 = vmatpush1.msra.mxu0 %v3244
      %3248 = vmatprep.subr.mxu0 0.0
      %3249 = vmatpush1.msra.mxu0 0.0
      %3250 = vmatprep.subr.mxu0 0.0
      %3251 = vmatpush1.msra.mxu0 0.0
      %3252 = vmatprep.subr.mxu0 0.0
      %3253 = vmatpush1.msra.mxu0 0.0
      %3254 = vmatprep.subr.mxu0 0.0
      %3255 = vmatpush1.msra.mxu0 0.0
      %3256 = vmatprep.subr.mxu0 0.0
      %3257 = vmatpush1.msra.mxu0 0.0
      %3258 = vmatprep.subr.mxu0 0.0
      %3259 = vmatpush1.msra.mxu0 0.0
      %3260 = vmatprep.subr.mxu0 0.0
      %3261 = vmatpush1.msra.mxu0 0.0
      %3262 = vmatprep.subr.mxu0 0.0
      %3263 = vmatpush1.msra.mxu0 0.0
      %3264 = vmatprep.subr.mxu0 0.0
      %3265 = vmatpush1.msra.mxu0 0.0
      %3266 = vmatprep.subr.mxu0 0.0
      %3267 = vmatpush1.msra.mxu0 0.0
      %3268 = vmatprep.subr.mxu0 0.0
      %3269 = vmatpush1.msra.mxu0 0.0
      %3270 = vmatprep.subr.mxu0 0.0
      %3271 = vmatpush1.msra.mxu0 0.0
      %3272 = vmatprep.subr.mxu0 0.0
      %3273 = vmatpush1.msra.mxu0 0.0
      %3274 = vmatprep.subr.mxu0 0.0
      %3275 = vmatpush1.msra.mxu0 0.0
      %3276 = vmatprep.subr.mxu0 0.0
      %3277 = vmatpush1.msra.mxu0 0.0
      %3278 = vmatprep.subr.mxu0 0.0
      %3279 = vmatpush1.msra.mxu0 0.0
      %3280 = vmatprep.subr.mxu0 0.0
      %3281 = vmatpush1.msra.mxu0 0.0
      %3282 = vmatprep.subr.mxu0 0.0
      %3283 = vmatpush1.msra.mxu0 0.0
      %3284 = vmatprep.subr.mxu0 0.0
      %3285 = vmatpush1.msra.mxu0 0.0
      %3286 = vmatprep.subr.mxu0 0.0
      %3287 = vmatpush1.msra.mxu0 0.0
      %3288 = vmatprep.subr.mxu0 0.0
      %3289 = vmatpush1.msra.mxu0 0.0
      %3290 = vmatprep.subr.mxu0 0.0
      %3291 = vmatpush1.msra.mxu0 0.0
      %3292 = vmatprep.subr.mxu0 0.0
      %3293 = vmatpush1.msra.mxu0 0.0
      %3294 = vmatprep.subr.mxu0 0.0
      %3295 = vmatpush1.msra.mxu0 0.0
      %3296 = vmatprep.subr.mxu0 0.0
      %3297 = vmatpush1.msra.mxu0 0.0
      %3298 = vmatprep.subr.mxu0 0.0
      %3299 = vmatpush1.msra.mxu0 0.0
      %3300 = vmatprep.subr.mxu0 0.0
      %3301 = vmatpush1.msra.mxu0 0.0
      %3302 = vmatprep.subr.mxu0 0.0
      %3303 = vmatpush1.msra.mxu0 0.0
      %3304 = vmatprep.subr.mxu0 0.0
      %3305 = vmatpush1.msra.mxu0 0.0
      %3306 = vmatprep.subr.mxu0 0.0
      %3307 = vmatpush1.msra.mxu0 0.0
      %3308 = vmatprep.subr.mxu0 0.0
      %3309 = vmatpush1.msra.mxu0 0.0
      %3310 = vmatprep.mubr.f32.mxu0 0.0
      %3311 = vmatmul.mubr.f32.gmra.mrb[0].mxu0 %v3238
      %v3312 = vpop.f32.mrb[0].mxu0
      %v3313 = vadd.f32 0.0, %v3312
      %v3314 = vpop.f32.mrb[0].mxu0
      %3315 = vmatprep.mubr.f32.mxu0 0.0
      %3316 = vmatmul.mubr.f32.gmra.mrb[0].mxu0 %v3241
      %v3317 = vpop.f32.mrb[0].mxu0
      %v3318 = vadd.f32 0.0, %v3317
      %v3319 = vpop.f32.mrb[0].mxu0
      %3320 = vdwg.mxu0
      %v3321 = vadd.f32 %v3230, %v3313
      %v3322 = vadd.f32 %v3231, %v3318
      %s3323 = sadd.s32 %s2781, 36
      %s3324 = scalar_lea.vmem %s234, %s3323
      %v3325 = vld [vmem:[%s3324] sm:$0xff]
      %v3326 = vld [vmem:[%s3324 + $0x8] sm:$0xff]
      %v3327 = vld [vmem:[%s814] sm:$0xf]
      %v3329 = vsel %vm272, %v3325, 0
      %v3332 = vsel %vm272, %v3326, 0
      %v3335 = vsel %vm279, %v3327, 0
      %3337 = vmatprep.subr.mxu0 0.0
      %3338 = vmatpush1.msra.mxu0 %v3335
      %3339 = vmatprep.subr.mxu0 0.0
      %3340 = vmatpush1.msra.mxu0 0.0
      %3341 = vmatprep.subr.mxu0 0.0
      %3342 = vmatpush1.msra.mxu0 0.0
      %3343 = vmatprep.subr.mxu0 0.0
      %3344 = vmatpush1.msra.mxu0 0.0
      %3345 = vmatprep.subr.mxu0 0.0
      %3346 = vmatpush1.msra.mxu0 0.0
      %3347 = vmatprep.subr.mxu0 0.0
      %3348 = vmatpush1.msra.mxu0 0.0
      %3349 = vmatprep.subr.mxu0 0.0
      %3350 = vmatpush1.msra.mxu0 0.0
      %3351 = vmatprep.subr.mxu0 0.0
      %3352 = vmatpush1.msra.mxu0 0.0
      %3353 = vmatprep.subr.mxu0 0.0
      %3354 = vmatpush1.msra.mxu0 0.0
      %3355 = vmatprep.subr.mxu0 0.0
      %3356 = vmatpush1.msra.mxu0 0.0
      %3357 = vmatprep.subr.mxu0 0.0
      %3358 = vmatpush1.msra.mxu0 0.0
      %3359 = vmatprep.subr.mxu0 0.0
      %3360 = vmatpush1.msra.mxu0 0.0
      %3361 = vmatprep.subr.mxu0 0.0
      %3362 = vmatpush1.msra.mxu0 0.0
      %3363 = vmatprep.subr.mxu0 0.0
      %3364 = vmatpush1.msra.mxu0 0.0
      %3365 = vmatprep.subr.mxu0 0.0
      %3366 = vmatpush1.msra.mxu0 0.0
      %3367 = vmatprep.subr.mxu0 0.0
      %3368 = vmatpush1.msra.mxu0 0.0
      %3369 = vmatprep.subr.mxu0 0.0
      %3370 = vmatpush1.msra.mxu0 0.0
      %3371 = vmatprep.subr.mxu0 0.0
      %3372 = vmatpush1.msra.mxu0 0.0
      %3373 = vmatprep.subr.mxu0 0.0
      %3374 = vmatpush1.msra.mxu0 0.0
      %3375 = vmatprep.subr.mxu0 0.0
      %3376 = vmatpush1.msra.mxu0 0.0
      %3377 = vmatprep.subr.mxu0 0.0
      %3378 = vmatpush1.msra.mxu0 0.0
      %3379 = vmatprep.subr.mxu0 0.0
      %3380 = vmatpush1.msra.mxu0 0.0
      %3381 = vmatprep.subr.mxu0 0.0
      %3382 = vmatpush1.msra.mxu0 0.0
      %3383 = vmatprep.subr.mxu0 0.0
      %3384 = vmatpush1.msra.mxu0 0.0
      %3385 = vmatprep.subr.mxu0 0.0
      %3386 = vmatpush1.msra.mxu0 0.0
      %3387 = vmatprep.subr.mxu0 0.0
      %3388 = vmatpush1.msra.mxu0 0.0
      %3389 = vmatprep.subr.mxu0 0.0
      %3390 = vmatpush1.msra.mxu0 0.0
      %3391 = vmatprep.subr.mxu0 0.0
      %3392 = vmatpush1.msra.mxu0 0.0
      %3393 = vmatprep.subr.mxu0 0.0
      %3394 = vmatpush1.msra.mxu0 0.0
      %3395 = vmatprep.subr.mxu0 0.0
      %3396 = vmatpush1.msra.mxu0 0.0
      %3397 = vmatprep.subr.mxu0 0.0
      %3398 = vmatpush1.msra.mxu0 0.0
      %3399 = vmatprep.subr.mxu0 0.0
      %3400 = vmatpush1.msra.mxu0 0.0
      %3401 = vmatprep.mubr.f32.mxu0 0.0
      %3402 = vmatmul.mubr.f32.gmra.mrb[0].mxu0 %v3329
      %v3403 = vpop.f32.mrb[0].mxu0
      %v3404 = vadd.f32 0.0, %v3403
      %v3405 = vpop.f32.mrb[0].mxu0
      %3406 = vmatprep.mubr.f32.mxu0 0.0
      %3407 = vmatmul.mubr.f32.gmra.mrb[0].mxu0 %v3332
      %v3408 = vpop.f32.mrb[0].mxu0
      %v3409 = vadd.f32 0.0, %v3408
      %v3410 = vpop.f32.mrb[0].mxu0
      %3411 = vdwg.mxu0
      %v3412 = vadd.f32 %v3321, %v3404
      %v3413 = vadd.f32 %v3322, %v3409
      %s3414 = sadd.s32 %s2781, 37
      %s3415 = scalar_lea.vmem %s234, %s3414
      %v3416 = vld [vmem:[%s3415] sm:$0xff]
      %v3417 = vld [vmem:[%s3415 + $0x8] sm:$0xff]
      %v3418 = vld [vmem:[%s906] sm:$0xf]
      %v3420 = vsel %vm272, %v3416, 0
      %v3423 = vsel %vm272, %v3417, 0
      %v3426 = vsel %vm279, %v3418, 0
      %3428 = vmatprep.subr.mxu0 0.0
      %3429 = vmatpush1.msra.mxu0 %v3426
      %3430 = vmatprep.subr.mxu0 0.0
      %3431 = vmatpush1.msra.mxu0 0.0
      %3432 = vmatprep.subr.mxu0 0.0
      %3433 = vmatpush1.msra.mxu0 0.0
      %3434 = vmatprep.subr.mxu0 0.0
      %3435 = vmatpush1.msra.mxu0 0.0
      %3436 = vmatprep.subr.mxu0 0.0
      %3437 = vmatpush1.msra.mxu0 0.0
      %3438 = vmatprep.subr.mxu0 0.0
      %3439 = vmatpush1.msra.mxu0 0.0
      %3440 = vmatprep.subr.mxu0 0.0
      %3441 = vmatpush1.msra.mxu0 0.0
      %3442 = vmatprep.subr.mxu0 0.0
      %3443 = vmatpush1.msra.mxu0 0.0
      %3444 = vmatprep.subr.mxu0 0.0
      %3445 = vmatpush1.msra.mxu0 0.0
      %3446 = vmatprep.subr.mxu0 0.0
      %3447 = vmatpush1.msra.mxu0 0.0
      %3448 = vmatprep.subr.mxu0 0.0
      %3449 = vmatpush1.msra.mxu0 0.0
      %3450 = vmatprep.subr.mxu0 0.0
      %3451 = vmatpush1.msra.mxu0 0.0
      %3452 = vmatprep.subr.mxu0 0.0
      %3453 = vmatpush1.msra.mxu0 0.0
      %3454 = vmatprep.subr.mxu0 0.0
      %3455 = vmatpush1.msra.mxu0 0.0
      %3456 = vmatprep.subr.mxu0 0.0
      %3457 = vmatpush1.msra.mxu0 0.0
      %3458 = vmatprep.subr.mxu0 0.0
      %3459 = vmatpush1.msra.mxu0 0.0
      %3460 = vmatprep.subr.mxu0 0.0
      %3461 = vmatpush1.msra.mxu0 0.0
      %3462 = vmatprep.subr.mxu0 0.0
      %3463 = vmatpush1.msra.mxu0 0.0
      %3464 = vmatprep.subr.mxu0 0.0
      %3465 = vmatpush1.msra.mxu0 0.0
      %3466 = vmatprep.subr.mxu0 0.0
      %3467 = vmatpush1.msra.mxu0 0.0
      %3468 = vmatprep.subr.mxu0 0.0
      %3469 = vmatpush1.msra.mxu0 0.0
      %3470 = vmatprep.subr.mxu0 0.0
      %3471 = vmatpush1.msra.mxu0 0.0
      %3472 = vmatprep.subr.mxu0 0.0
      %3473 = vmatpush1.msra.mxu0 0.0
      %3474 = vmatprep.subr.mxu0 0.0
      %3475 = vmatpush1.msra.mxu0 0.0
      %3476 = vmatprep.subr.mxu0 0.0
      %3477 = vmatpush1.msra.mxu0 0.0
      %3478 = vmatprep.subr.mxu0 0.0
      %3479 = vmatpush1.msra.mxu0 0.0
      %3480 = vmatprep.subr.mxu0 0.0
      %3481 = vmatpush1.msra.mxu0 0.0
      %3482 = vmatprep.subr.mxu0 0.0
      %3483 = vmatpush1.msra.mxu0 0.0
      %3484 = vmatprep.subr.mxu0 0.0
      %3485 = vmatpush1.msra.mxu0 0.0
      %3486 = vmatprep.subr.mxu0 0.0
      %3487 = vmatpush1.msra.mxu0 0.0
      %3488 = vmatprep.subr.mxu0 0.0
      %3489 = vmatpush1.msra.mxu0 0.0
      %3490 = vmatprep.subr.mxu0 0.0
      %3491 = vmatpush1.msra.mxu0 0.0
      %3492 = vmatprep.mubr.f32.mxu0 0.0
      %3493 = vmatmul.mubr.f32.gmra.mrb[0].mxu0 %v3420
      %v3494 = vpop.f32.mrb[0].mxu0
      %v3495 = vadd.f32 0.0, %v3494
      %v3496 = vpop.f32.mrb[0].mxu0
      %3497 = vmatprep.mubr.f32.mxu0 0.0
      %3498 = vmatmul.mubr.f32.gmra.mrb[0].mxu0 %v3423
      %v3499 = vpop.f32.mrb[0].mxu0
      %v3500 = vadd.f32 0.0, %v3499
      %v3501 = vpop.f32.mrb[0].mxu0
      %3502 = vdwg.mxu0
      %v3503 = vadd.f32 %v3412, %v3495
      %v3504 = vadd.f32 %v3413, %v3500
      %s3505 = sadd.s32 %s2781, 38
      %s3506 = scalar_lea.vmem %s234, %s3505
      %v3507 = vld [vmem:[%s3506] sm:$0xff]
      %v3508 = vld [vmem:[%s3506 + $0x8] sm:$0xff]
      %v3509 = vld [vmem:[%s998] sm:$0xf]
      %v3511 = vsel %vm272, %v3507, 0
      %v3514 = vsel %vm272, %v3508, 0
      %v3517 = vsel %vm279, %v3509, 0
      %3519 = vmatprep.subr.mxu0 0.0
      %3520 = vmatpush1.msra.mxu0 %v3517
      %3521 = vmatprep.subr.mxu0 0.0
      %3522 = vmatpush1.msra.mxu0 0.0
      %3523 = vmatprep.subr.mxu0 0.0
      %3524 = vmatpush1.msra.mxu0 0.0
      %3525 = vmatprep.subr.mxu0 0.0
      %3526 = vmatpush1.msra.mxu0 0.0
      %3527 = vmatprep.subr.mxu0 0.0
      %3528 = vmatpush1.msra.mxu0 0.0
      %3529 = vmatprep.subr.mxu0 0.0
      %3530 = vmatpush1.msra.mxu0 0.0
      %3531 = vmatprep.subr.mxu0 0.0
      %3532 = vmatpush1.msra.mxu0 0.0
      %3533 = vmatprep.subr.mxu0 0.0
      %3534 = vmatpush1.msra.mxu0 0.0
      %3535 = vmatprep.subr.mxu0 0.0
      %3536 = vmatpush1.msra.mxu0 0.0
      %3537 = vmatprep.subr.mxu0 0.0
      %3538 = vmatpush1.msra.mxu0 0.0
      %3539 = vmatprep.subr.mxu0 0.0
      %3540 = vmatpush1.msra.mxu0 0.0
      %3541 = vmatprep.subr.mxu0 0.0
      %3542 = vmatpush1.msra.mxu0 0.0
      %3543 = vmatprep.subr.mxu0 0.0
      %3544 = vmatpush1.msra.mxu0 0.0
      %3545 = vmatprep.subr.mxu0 0.0
      %3546 = vmatpush1.msra.mxu0 0.0
      %3547 = vmatprep.subr.mxu0 0.0
      %3548 = vmatpush1.msra.mxu0 0.0
      %3549 = vmatprep.subr.mxu0 0.0
      %3550 = vmatpush1.msra.mxu0 0.0
      %3551 = vmatprep.subr.mxu0 0.0
      %3552 = vmatpush1.msra.mxu0 0.0
      %3553 = vmatprep.subr.mxu0 0.0
      %3554 = vmatpush1.msra.mxu0 0.0
      %3555 = vmatprep.subr.mxu0 0.0
      %3556 = vmatpush1.msra.mxu0 0.0
      %3557 = vmatprep.subr.mxu0 0.0
      %3558 = vmatpush1.msra.mxu0 0.0
      %3559 = vmatprep.subr.mxu0 0.0
      %3560 = vmatpush1.msra.mxu0 0.0
      %3561 = vmatprep.subr.mxu0 0.0
      %3562 = vmatpush1.msra.mxu0 0.0
      %3563 = vmatprep.subr.mxu0 0.0
      %3564 = vmatpush1.msra.mxu0 0.0
      %3565 = vmatprep.subr.mxu0 0.0
      %3566 = vmatpush1.msra.mxu0 0.0
      %3567 = vmatprep.subr.mxu0 0.0
      %3568 = vmatpush1.msra.mxu0 0.0
      %3569 = vmatprep.subr.mxu0 0.0
      %3570 = vmatpush1.msra.mxu0 0.0
      %3571 = vmatprep.subr.mxu0 0.0
      %3572 = vmatpush1.msra.mxu0 0.0
      %3573 = vmatprep.subr.mxu0 0.0
      %3574 = vmatpush1.msra.mxu0 0.0
      %3575 = vmatprep.subr.mxu0 0.0
      %3576 = vmatpush1.msra.mxu0 0.0
      %3577 = vmatprep.subr.mxu0 0.0
      %3578 = vmatpush1.msra.mxu0 0.0
      %3579 = vmatprep.subr.mxu0 0.0
      %3580 = vmatpush1.msra.mxu0 0.0
      %3581 = vmatprep.subr.mxu0 0.0
      %3582 = vmatpush1.msra.mxu0 0.0
      %3583 = vmatprep.mubr.f32.mxu0 0.0
      %3584 = vmatmul.mubr.f32.gmra.mrb[0].mxu0 %v3511
      %v3585 = vpop.f32.mrb[0].mxu0
      %v3586 = vadd.f32 0.0, %v3585
      %v3587 = vpop.f32.mrb[0].mxu0
      %3588 = vmatprep.mubr.f32.mxu0 0.0
      %3589 = vmatmul.mubr.f32.gmra.mrb[0].mxu0 %v3514
      %v3590 = vpop.f32.mrb[0].mxu0
      %v3591 = vadd.f32 0.0, %v3590
      %v3592 = vpop.f32.mrb[0].mxu0
      %3593 = vdwg.mxu0
      %v3594 = vadd.f32 %v3503, %v3586
      %v3595 = vadd.f32 %v3504, %v3591
      %s3596 = scalar_lea.vmem %s244, 48
      %3597 = vst [vmem:[%s3596] sm:$0xff] %v3594
      %3598 = vst [vmem:[%s3596 + $0x8] sm:$0xff] %v3595
      %v3599 = vadd.f32 %v3594, %v3595
      %v3600 = vrot.slane %v3599, 4
      %v3601 = vadd.f32 %v3599, %v3600
      %v3602 = vrot.slane %v3601, 2
      %v3603 = vadd.f32 %v3601, %v3602
      %v3604 = vrot.slane %v3603, 1
      %v3605 = vadd.f32 %v3603, %v3604
      %v3606 = vadd.f32 %v2769, %v3605
      %v3607 = vmul.f32 %v3594, %v3594
      %v3608 = vmul.f32 %v3595, %v3595
      %v3609 = vadd.f32 %v3607, %v3608
      %v3610 = vrot.slane %v3609, 4
      %v3611 = vadd.f32 %v3609, %v3610
      %v3612 = vrot.slane %v3611, 2
      %v3613 = vadd.f32 %v3611, %v3612
      %v3614 = vrot.slane %v3613, 1
      %v3615 = vadd.f32 %v3613, %v3614
      %v3616 = vadd.f32 %v2779, %v3615
      %s3617 = sadd.s32 %s260, 4
      %s3618 = smul.u32 %s3617, 18
      %s3619 = scalar_lea.vmem %s234, %s3618
      %v3620 = vld [vmem:[%s3619] sm:$0xff]
      %v3621 = vld [vmem:[%s3619 + $0x8] sm:$0xff]
      %v3622 = vld [vmem:[%s1] sm:$0xf]
      %s3623 = sadd.s32 %s3618, 1
      %s3624 = scalar_lea.vmem %s234, %s3623
      %v3625 = vld [vmem:[%s3624] sm:$0xff]
      %v3626 = vld [vmem:[%s3624 + $0x8] sm:$0xff]
      %v3627 = vld [vmem:[%s270] sm:$0xf]
      %v3629 = vsel %vm272, %v3625, 0
      %v3632 = vsel %vm272, %v3626, 0
      %v3635 = vsel %vm279, %v3627, 0
      %3637 = vmatprep.subr.mxu0 0.0
      %3638 = vmatpush1.msra.mxu0 %v3635
      %3639 = vmatprep.subr.mxu0 0.0
      %3640 = vmatpush1.msra.mxu0 0.0
      %3641 = vmatprep.subr.mxu0 0.0
      %3642 = vmatpush1.msra.mxu0 0.0
      %3643 = vmatprep.subr.mxu0 0.0
      %3644 = vmatpush1.msra.mxu0 0.0
      %3645 = vmatprep.subr.mxu0 0.0
      %3646 = vmatpush1.msra.mxu0 0.0
      %3647 = vmatprep.subr.mxu0 0.0
      %3648 = vmatpush1.msra.mxu0 0.0
      %3649 = vmatprep.subr.mxu0 0.0
      %3650 = vmatpush1.msra.mxu0 0.0
      %3651 = vmatprep.subr.mxu0 0.0
      %3652 = vmatpush1.msra.mxu0 0.0
      %3653 = vmatprep.subr.mxu0 0.0
      %3654 = vmatpush1.msra.mxu0 0.0
      %3655 = vmatprep.subr.mxu0 0.0
      %3656 = vmatpush1.msra.mxu0 0.0
      %3657 = vmatprep.subr.mxu0 0.0
      %3658 = vmatpush1.msra.mxu0 0.0
      %3659 = vmatprep.subr.mxu0 0.0
      %3660 = vmatpush1.msra.mxu0 0.0
      %3661 = vmatprep.subr.mxu0 0.0
      %3662 = vmatpush1.msra.mxu0 0.0
      %3663 = vmatprep.subr.mxu0 0.0
      %3664 = vmatpush1.msra.mxu0 0.0
      %3665 = vmatprep.subr.mxu0 0.0
      %3666 = vmatpush1.msra.mxu0 0.0
      %3667 = vmatprep.subr.mxu0 0.0
      %3668 = vmatpush1.msra.mxu0 0.0
      %3669 = vmatprep.subr.mxu0 0.0
      %3670 = vmatpush1.msra.mxu0 0.0
      %3671 = vmatprep.subr.mxu0 0.0
      %3672 = vmatpush1.msra.mxu0 0.0
      %3673 = vmatprep.subr.mxu0 0.0
      %3674 = vmatpush1.msra.mxu0 0.0
      %3675 = vmatprep.subr.mxu0 0.0
      %3676 = vmatpush1.msra.mxu0 0.0
      %3677 = vmatprep.subr.mxu0 0.0
      %3678 = vmatpush1.msra.mxu0 0.0
      %3679 = vmatprep.subr.mxu0 0.0
      %3680 = vmatpush1.msra.mxu0 0.0
      %3681 = vmatprep.subr.mxu0 0.0
      %3682 = vmatpush1.msra.mxu0 0.0
      %3683 = vmatprep.subr.mxu0 0.0
      %3684 = vmatpush1.msra.mxu0 0.0
      %3685 = vmatprep.subr.mxu0 0.0
      %3686 = vmatpush1.msra.mxu0 0.0
      %3687 = vmatprep.subr.mxu0 0.0
      %3688 = vmatpush1.msra.mxu0 0.0
      %3689 = vmatprep.subr.mxu0 0.0
      %3690 = vmatpush1.msra.mxu0 0.0
      %3691 = vmatprep.subr.mxu0 0.0
      %3692 = vmatpush1.msra.mxu0 0.0
      %3693 = vmatprep.subr.mxu0 0.0
      %3694 = vmatpush1.msra.mxu0 0.0
      %3695 = vmatprep.subr.mxu0 0.0
      %3696 = vmatpush1.msra.mxu0 0.0
      %3697 = vmatprep.subr.mxu0 0.0
      %3698 = vmatpush1.msra.mxu0 0.0
      %3699 = vmatprep.subr.mxu0 0.0
      %3700 = vmatpush1.msra.mxu0 0.0
      %3701 = vmatprep.mubr.f32.mxu0 0.0
      %3702 = vmatmul.mubr.f32.gmra.mrb[0].mxu0 %v3629
      %v3703 = vpop.f32.mrb[0].mxu0
      %v3704 = vadd.f32 0.0, %v3703
      %v3705 = vpop.f32.mrb[0].mxu0
      %3706 = vmatprep.mubr.f32.mxu0 0.0
      %3707 = vmatmul.mubr.f32.gmra.mrb[0].mxu0 %v3632
      %v3708 = vpop.f32.mrb[0].mxu0
      %v3709 = vadd.f32 0.0, %v3708
      %v3710 = vpop.f32.mrb[0].mxu0
      %3711 = vdwg.mxu0
      %v3713 = vsel %vm272, %v3620, 0
      %v3716 = vsel %vm272, %v3621, 0
      %v3719 = vsel %vm279, %v3622, 0
      %3721 = vmatprep.subr.mxu0 0.0
      %3722 = vmatpush1.msra.mxu0 %v3719
      %3723 = vmatprep.subr.mxu0 0.0
      %3724 = vmatpush1.msra.mxu0 0.0
      %3725 = vmatprep.subr.mxu0 0.0
      %3726 = vmatpush1.msra.mxu0 0.0
      %3727 = vmatprep.subr.mxu0 0.0
      %3728 = vmatpush1.msra.mxu0 0.0
      %3729 = vmatprep.subr.mxu0 0.0
      %3730 = vmatpush1.msra.mxu0 0.0
      %3731 = vmatprep.subr.mxu0 0.0
      %3732 = vmatpush1.msra.mxu0 0.0
      %3733 = vmatprep.subr.mxu0 0.0
      %3734 = vmatpush1.msra.mxu0 0.0
      %3735 = vmatprep.subr.mxu0 0.0
      %3736 = vmatpush1.msra.mxu0 0.0
      %3737 = vmatprep.subr.mxu0 0.0
      %3738 = vmatpush1.msra.mxu0 0.0
      %3739 = vmatprep.subr.mxu0 0.0
      %3740 = vmatpush1.msra.mxu0 0.0
      %3741 = vmatprep.subr.mxu0 0.0
      %3742 = vmatpush1.msra.mxu0 0.0
      %3743 = vmatprep.subr.mxu0 0.0
      %3744 = vmatpush1.msra.mxu0 0.0
      %3745 = vmatprep.subr.mxu0 0.0
      %3746 = vmatpush1.msra.mxu0 0.0
      %3747 = vmatprep.subr.mxu0 0.0
      %3748 = vmatpush1.msra.mxu0 0.0
      %3749 = vmatprep.subr.mxu0 0.0
      %3750 = vmatpush1.msra.mxu0 0.0
      %3751 = vmatprep.subr.mxu0 0.0
      %3752 = vmatpush1.msra.mxu0 0.0
      %3753 = vmatprep.subr.mxu0 0.0
      %3754 = vmatpush1.msra.mxu0 0.0
      %3755 = vmatprep.subr.mxu0 0.0
      %3756 = vmatpush1.msra.mxu0 0.0
      %3757 = vmatprep.subr.mxu0 0.0
      %3758 = vmatpush1.msra.mxu0 0.0
      %3759 = vmatprep.subr.mxu0 0.0
      %3760 = vmatpush1.msra.mxu0 0.0
      %3761 = vmatprep.subr.mxu0 0.0
      %3762 = vmatpush1.msra.mxu0 0.0
      %3763 = vmatprep.subr.mxu0 0.0
      %3764 = vmatpush1.msra.mxu0 0.0
      %3765 = vmatprep.subr.mxu0 0.0
      %3766 = vmatpush1.msra.mxu0 0.0
      %3767 = vmatprep.subr.mxu0 0.0
      %3768 = vmatpush1.msra.mxu0 0.0
      %3769 = vmatprep.subr.mxu0 0.0
      %3770 = vmatpush1.msra.mxu0 0.0
      %3771 = vmatprep.subr.mxu0 0.0
      %3772 = vmatpush1.msra.mxu0 0.0
      %3773 = vmatprep.subr.mxu0 0.0
      %3774 = vmatpush1.msra.mxu0 0.0
      %3775 = vmatprep.subr.mxu0 0.0
      %3776 = vmatpush1.msra.mxu0 0.0
      %3777 = vmatprep.subr.mxu0 0.0
      %3778 = vmatpush1.msra.mxu0 0.0
      %3779 = vmatprep.subr.mxu0 0.0
      %3780 = vmatpush1.msra.mxu0 0.0
      %3781 = vmatprep.subr.mxu0 0.0
      %3782 = vmatpush1.msra.mxu0 0.0
      %3783 = vmatprep.subr.mxu0 0.0
      %3784 = vmatpush1.msra.mxu0 0.0
      %3785 = vmatprep.mubr.f32.mxu0 0.0
      %3786 = vmatmul.mubr.f32.gmra.mrb[0].mxu0 %v3713
      %v3787 = vpop.f32.mrb[0].mxu0
      %v3788 = vadd.f32 %v3704, %v3787
      %v3789 = vpop.f32.mrb[0].mxu0
      %3790 = vmatprep.mubr.f32.mxu0 0.0
      %3791 = vmatmul.mubr.f32.gmra.mrb[0].mxu0 %v3716
      %v3792 = vpop.f32.mrb[0].mxu0
      %v3793 = vadd.f32 %v3709, %v3792
      %v3794 = vpop.f32.mrb[0].mxu0
      %3795 = vdwg.mxu0
      %s3796 = sadd.s32 %s3618, 2
      %s3797 = scalar_lea.vmem %s234, %s3796
      %v3798 = vld [vmem:[%s3797] sm:$0xff]
      %v3799 = vld [vmem:[%s3797 + $0x8] sm:$0xff]
      %v3800 = vld [vmem:[%s446] sm:$0xf]
      %v3802 = vsel %vm272, %v3798, 0
      %v3805 = vsel %vm272, %v3799, 0
      %v3808 = vsel %vm279, %v3800, 0
      %3810 = vmatprep.subr.mxu0 0.0
      %3811 = vmatpush1.msra.mxu0 %v3808
      %3812 = vmatprep.subr.mxu0 0.0
      %3813 = vmatpush1.msra.mxu0 0.0
      %3814 = vmatprep.subr.mxu0 0.0
      %3815 = vmatpush1.msra.mxu0 0.0
      %3816 = vmatprep.subr.mxu0 0.0
      %3817 = vmatpush1.msra.mxu0 0.0
      %3818 = vmatprep.subr.mxu0 0.0
      %3819 = vmatpush1.msra.mxu0 0.0
      %3820 = vmatprep.subr.mxu0 0.0
      %3821 = vmatpush1.msra.mxu0 0.0
      %3822 = vmatprep.subr.mxu0 0.0
      %3823 = vmatpush1.msra.mxu0 0.0
      %3824 = vmatprep.subr.mxu0 0.0
      %3825 = vmatpush1.msra.mxu0 0.0
      %3826 = vmatprep.subr.mxu0 0.0
      %3827 = vmatpush1.msra.mxu0 0.0
      %3828 = vmatprep.subr.mxu0 0.0
      %3829 = vmatpush1.msra.mxu0 0.0
      %3830 = vmatprep.subr.mxu0 0.0
      %3831 = vmatpush1.msra.mxu0 0.0
      %3832 = vmatprep.subr.mxu0 0.0
      %3833 = vmatpush1.msra.mxu0 0.0
      %3834 = vmatprep.subr.mxu0 0.0
      %3835 = vmatpush1.msra.mxu0 0.0
      %3836 = vmatprep.subr.mxu0 0.0
      %3837 = vmatpush1.msra.mxu0 0.0
      %3838 = vmatprep.subr.mxu0 0.0
      %3839 = vmatpush1.msra.mxu0 0.0
      %3840 = vmatprep.subr.mxu0 0.0
      %3841 = vmatpush1.msra.mxu0 0.0
      %3842 = vmatprep.subr.mxu0 0.0
      %3843 = vmatpush1.msra.mxu0 0.0
      %3844 = vmatprep.subr.mxu0 0.0
      %3845 = vmatpush1.msra.mxu0 0.0
      %3846 = vmatprep.subr.mxu0 0.0
      %3847 = vmatpush1.msra.mxu0 0.0
      %3848 = vmatprep.subr.mxu0 0.0
      %3849 = vmatpush1.msra.mxu0 0.0
      %3850 = vmatprep.subr.mxu0 0.0
      %3851 = vmatpush1.msra.mxu0 0.0
      %3852 = vmatprep.subr.mxu0 0.0
      %3853 = vmatpush1.msra.mxu0 0.0
      %3854 = vmatprep.subr.mxu0 0.0
      %3855 = vmatpush1.msra.mxu0 0.0
      %3856 = vmatprep.subr.mxu0 0.0
      %3857 = vmatpush1.msra.mxu0 0.0
      %3858 = vmatprep.subr.mxu0 0.0
      %3859 = vmatpush1.msra.mxu0 0.0
      %3860 = vmatprep.subr.mxu0 0.0
      %3861 = vmatpush1.msra.mxu0 0.0
      %3862 = vmatprep.subr.mxu0 0.0
      %3863 = vmatpush1.msra.mxu0 0.0
      %3864 = vmatprep.subr.mxu0 0.0
      %3865 = vmatpush1.msra.mxu0 0.0
      %3866 = vmatprep.subr.mxu0 0.0
      %3867 = vmatpush1.msra.mxu0 0.0
      %3868 = vmatprep.subr.mxu0 0.0
      %3869 = vmatpush1.msra.mxu0 0.0
      %3870 = vmatprep.subr.mxu0 0.0
      %3871 = vmatpush1.msra.mxu0 0.0
      %3872 = vmatprep.subr.mxu0 0.0
      %3873 = vmatpush1.msra.mxu0 0.0
      %3874 = vmatprep.mubr.f32.mxu0 0.0
      %3875 = vmatmul.mubr.f32.gmra.mrb[0].mxu0 %v3802
      %v3876 = vpop.f32.mrb[0].mxu0
      %v3877 = vadd.f32 0.0, %v3876
      %v3878 = vpop.f32.mrb[0].mxu0
      %3879 = vmatprep.mubr.f32.mxu0 0.0
      %3880 = vmatmul.mubr.f32.gmra.mrb[0].mxu0 %v3805
      %v3881 = vpop.f32.mrb[0].mxu0
      %v3882 = vadd.f32 0.0, %v3881
      %v3883 = vpop.f32.mrb[0].mxu0
      %3884 = vdwg.mxu0
      %v3885 = vadd.f32 %v3788, %v3877
      %v3886 = vadd.f32 %v3793, %v3882
      %s3887 = sadd.s32 %s3618, 18
      %s3888 = scalar_lea.vmem %s234, %s3887
      %v3889 = vld [vmem:[%s3888] sm:$0xff]
      %v3890 = vld [vmem:[%s3888 + $0x8] sm:$0xff]
      %v3891 = vld [vmem:[%s538] sm:$0xf]
      %v3893 = vsel %vm272, %v3889, 0
      %v3896 = vsel %vm272, %v3890, 0
      %v3899 = vsel %vm279, %v3891, 0
      %3901 = vmatprep.subr.mxu0 0.0
      %3902 = vmatpush1.msra.mxu0 %v3899
      %3903 = vmatprep.subr.mxu0 0.0
      %3904 = vmatpush1.msra.mxu0 0.0
      %3905 = vmatprep.subr.mxu0 0.0
      %3906 = vmatpush1.msra.mxu0 0.0
      %3907 = vmatprep.subr.mxu0 0.0
      %3908 = vmatpush1.msra.mxu0 0.0
      %3909 = vmatprep.subr.mxu0 0.0
      %3910 = vmatpush1.msra.mxu0 0.0
      %3911 = vmatprep.subr.mxu0 0.0
      %3912 = vmatpush1.msra.mxu0 0.0
      %3913 = vmatprep.subr.mxu0 0.0
      %3914 = vmatpush1.msra.mxu0 0.0
      %3915 = vmatprep.subr.mxu0 0.0
      %3916 = vmatpush1.msra.mxu0 0.0
      %3917 = vmatprep.subr.mxu0 0.0
      %3918 = vmatpush1.msra.mxu0 0.0
      %3919 = vmatprep.subr.mxu0 0.0
      %3920 = vmatpush1.msra.mxu0 0.0
      %3921 = vmatprep.subr.mxu0 0.0
      %3922 = vmatpush1.msra.mxu0 0.0
      %3923 = vmatprep.subr.mxu0 0.0
      %3924 = vmatpush1.msra.mxu0 0.0
      %3925 = vmatprep.subr.mxu0 0.0
      %3926 = vmatpush1.msra.mxu0 0.0
      %3927 = vmatprep.subr.mxu0 0.0
      %3928 = vmatpush1.msra.mxu0 0.0
      %3929 = vmatprep.subr.mxu0 0.0
      %3930 = vmatpush1.msra.mxu0 0.0
      %3931 = vmatprep.subr.mxu0 0.0
      %3932 = vmatpush1.msra.mxu0 0.0
      %3933 = vmatprep.subr.mxu0 0.0
      %3934 = vmatpush1.msra.mxu0 0.0
      %3935 = vmatprep.subr.mxu0 0.0
      %3936 = vmatpush1.msra.mxu0 0.0
      %3937 = vmatprep.subr.mxu0 0.0
      %3938 = vmatpush1.msra.mxu0 0.0
      %3939 = vmatprep.subr.mxu0 0.0
      %3940 = vmatpush1.msra.mxu0 0.0
      %3941 = vmatprep.subr.mxu0 0.0
      %3942 = vmatpush1.msra.mxu0 0.0
      %3943 = vmatprep.subr.mxu0 0.0
      %3944 = vmatpush1.msra.mxu0 0.0
      %3945 = vmatprep.subr.mxu0 0.0
      %3946 = vmatpush1.msra.mxu0 0.0
      %3947 = vmatprep.subr.mxu0 0.0
      %3948 = vmatpush1.msra.mxu0 0.0
      %3949 = vmatprep.subr.mxu0 0.0
      %3950 = vmatpush1.msra.mxu0 0.0
      %3951 = vmatprep.subr.mxu0 0.0
      %3952 = vmatpush1.msra.mxu0 0.0
      %3953 = vmatprep.subr.mxu0 0.0
      %3954 = vmatpush1.msra.mxu0 0.0
      %3955 = vmatprep.subr.mxu0 0.0
      %3956 = vmatpush1.msra.mxu0 0.0
      %3957 = vmatprep.subr.mxu0 0.0
      %3958 = vmatpush1.msra.mxu0 0.0
      %3959 = vmatprep.subr.mxu0 0.0
      %3960 = vmatpush1.msra.mxu0 0.0
      %3961 = vmatprep.subr.mxu0 0.0
      %3962 = vmatpush1.msra.mxu0 0.0
      %3963 = vmatprep.subr.mxu0 0.0
      %3964 = vmatpush1.msra.mxu0 0.0
      %3965 = vmatprep.mubr.f32.mxu0 0.0
      %3966 = vmatmul.mubr.f32.gmra.mrb[0].mxu0 %v3893
      %v3967 = vpop.f32.mrb[0].mxu0
      %v3968 = vadd.f32 0.0, %v3967
      %v3969 = vpop.f32.mrb[0].mxu0
      %3970 = vmatprep.mubr.f32.mxu0 0.0
      %3971 = vmatmul.mubr.f32.gmra.mrb[0].mxu0 %v3896
      %v3972 = vpop.f32.mrb[0].mxu0
      %v3973 = vadd.f32 0.0, %v3972
      %v3974 = vpop.f32.mrb[0].mxu0
      %3975 = vdwg.mxu0
      %v3976 = vadd.f32 %v3885, %v3968
      %v3977 = vadd.f32 %v3886, %v3973
      %s3978 = sadd.s32 %s3618, 19
      %s3979 = scalar_lea.vmem %s234, %s3978
      %v3980 = vld [vmem:[%s3979] sm:$0xff]
      %v3981 = vld [vmem:[%s3979 + $0x8] sm:$0xff]
      %v3982 = vld [vmem:[%s630] sm:$0xf]
      %v3984 = vsel %vm272, %v3980, 0
      %v3987 = vsel %vm272, %v3981, 0
      %v3990 = vsel %vm279, %v3982, 0
      %3992 = vmatprep.subr.mxu0 0.0
      %3993 = vmatpush1.msra.mxu0 %v3990
      %3994 = vmatprep.subr.mxu0 0.0
      %3995 = vmatpush1.msra.mxu0 0.0
      %3996 = vmatprep.subr.mxu0 0.0
      %3997 = vmatpush1.msra.mxu0 0.0
      %3998 = vmatprep.subr.mxu0 0.0
      %3999 = vmatpush1.msra.mxu0 0.0
      %4000 = vmatprep.subr.mxu0 0.0
      %4001 = vmatpush1.msra.mxu0 0.0
      %4002 = vmatprep.subr.mxu0 0.0
      %4003 = vmatpush1.msra.mxu0 0.0
      %4004 = vmatprep.subr.mxu0 0.0
      %4005 = vmatpush1.msra.mxu0 0.0
      %4006 = vmatprep.subr.mxu0 0.0
      %4007 = vmatpush1.msra.mxu0 0.0
      %4008 = vmatprep.subr.mxu0 0.0
      %4009 = vmatpush1.msra.mxu0 0.0
      %4010 = vmatprep.subr.mxu0 0.0
      %4011 = vmatpush1.msra.mxu0 0.0
      %4012 = vmatprep.subr.mxu0 0.0
      %4013 = vmatpush1.msra.mxu0 0.0
      %4014 = vmatprep.subr.mxu0 0.0
      %4015 = vmatpush1.msra.mxu0 0.0
      %4016 = vmatprep.subr.mxu0 0.0
      %4017 = vmatpush1.msra.mxu0 0.0
      %4018 = vmatprep.subr.mxu0 0.0
      %4019 = vmatpush1.msra.mxu0 0.0
      %4020 = vmatprep.subr.mxu0 0.0
      %4021 = vmatpush1.msra.mxu0 0.0
      %4022 = vmatprep.subr.mxu0 0.0
      %4023 = vmatpush1.msra.mxu0 0.0
      %4024 = vmatprep.subr.mxu0 0.0
      %4025 = vmatpush1.msra.mxu0 0.0
      %4026 = vmatprep.subr.mxu0 0.0
      %4027 = vmatpush1.msra.mxu0 0.0
      %4028 = vmatprep.subr.mxu0 0.0
      %4029 = vmatpush1.msra.mxu0 0.0
      %4030 = vmatprep.subr.mxu0 0.0
      %4031 = vmatpush1.msra.mxu0 0.0
      %4032 = vmatprep.subr.mxu0 0.0
      %4033 = vmatpush1.msra.mxu0 0.0
      %4034 = vmatprep.subr.mxu0 0.0
      %4035 = vmatpush1.msra.mxu0 0.0
      %4036 = vmatprep.subr.mxu0 0.0
      %4037 = vmatpush1.msra.mxu0 0.0
      %4038 = vmatprep.subr.mxu0 0.0
      %4039 = vmatpush1.msra.mxu0 0.0
      %4040 = vmatprep.subr.mxu0 0.0
      %4041 = vmatpush1.msra.mxu0 0.0
      %4042 = vmatprep.subr.mxu0 0.0
      %4043 = vmatpush1.msra.mxu0 0.0
      %4044 = vmatprep.subr.mxu0 0.0
      %4045 = vmatpush1.msra.mxu0 0.0
      %4046 = vmatprep.subr.mxu0 0.0
      %4047 = vmatpush1.msra.mxu0 0.0
      %4048 = vmatprep.subr.mxu0 0.0
      %4049 = vmatpush1.msra.mxu0 0.0
      %4050 = vmatprep.subr.mxu0 0.0
      %4051 = vmatpush1.msra.mxu0 0.0
      %4052 = vmatprep.subr.mxu0 0.0
      %4053 = vmatpush1.msra.mxu0 0.0
      %4054 = vmatprep.subr.mxu0 0.0
      %4055 = vmatpush1.msra.mxu0 0.0
      %4056 = vmatprep.mubr.f32.mxu0 0.0
      %4057 = vmatmul.mubr.f32.gmra.mrb[0].mxu0 %v3984
      %v4058 = vpop.f32.mrb[0].mxu0
      %v4059 = vadd.f32 0.0, %v4058
      %v4060 = vpop.f32.mrb[0].mxu0
      %4061 = vmatprep.mubr.f32.mxu0 0.0
      %4062 = vmatmul.mubr.f32.gmra.mrb[0].mxu0 %v3987
      %v4063 = vpop.f32.mrb[0].mxu0
      %v4064 = vadd.f32 0.0, %v4063
      %v4065 = vpop.f32.mrb[0].mxu0
      %4066 = vdwg.mxu0
      %v4067 = vadd.f32 %v3976, %v4059
      %v4068 = vadd.f32 %v3977, %v4064
      %s4069 = sadd.s32 %s3618, 20
      %s4070 = scalar_lea.vmem %s234, %s4069
      %v4071 = vld [vmem:[%s4070] sm:$0xff]
      %v4072 = vld [vmem:[%s4070 + $0x8] sm:$0xff]
      %v4073 = vld [vmem:[%s722] sm:$0xf]
      %v4075 = vsel %vm272, %v4071, 0
      %v4078 = vsel %vm272, %v4072, 0
      %v4081 = vsel %vm279, %v4073, 0
      %4083 = vmatprep.subr.mxu0 0.0
      %4084 = vmatpush1.msra.mxu0 %v4081
      %4085 = vmatprep.subr.mxu0 0.0
      %4086 = vmatpush1.msra.mxu0 0.0
      %4087 = vmatprep.subr.mxu0 0.0
      %4088 = vmatpush1.msra.mxu0 0.0
      %4089 = vmatprep.subr.mxu0 0.0
      %4090 = vmatpush1.msra.mxu0 0.0
      %4091 = vmatprep.subr.mxu0 0.0
      %4092 = vmatpush1.msra.mxu0 0.0
      %4093 = vmatprep.subr.mxu0 0.0
      %4094 = vmatpush1.msra.mxu0 0.0
      %4095 = vmatprep.subr.mxu0 0.0
      %4096 = vmatpush1.msra.mxu0 0.0
      %4097 = vmatprep.subr.mxu0 0.0
      %4098 = vmatpush1.msra.mxu0 0.0
      %4099 = vmatprep.subr.mxu0 0.0
      %4100 = vmatpush1.msra.mxu0 0.0
      %4101 = vmatprep.subr.mxu0 0.0
      %4102 = vmatpush1.msra.mxu0 0.0
      %4103 = vmatprep.subr.mxu0 0.0
      %4104 = vmatpush1.msra.mxu0 0.0
      %4105 = vmatprep.subr.mxu0 0.0
      %4106 = vmatpush1.msra.mxu0 0.0
      %4107 = vmatprep.subr.mxu0 0.0
      %4108 = vmatpush1.msra.mxu0 0.0
      %4109 = vmatprep.subr.mxu0 0.0
      %4110 = vmatpush1.msra.mxu0 0.0
      %4111 = vmatprep.subr.mxu0 0.0
      %4112 = vmatpush1.msra.mxu0 0.0
      %4113 = vmatprep.subr.mxu0 0.0
      %4114 = vmatpush1.msra.mxu0 0.0
      %4115 = vmatprep.subr.mxu0 0.0
      %4116 = vmatpush1.msra.mxu0 0.0
      %4117 = vmatprep.subr.mxu0 0.0
      %4118 = vmatpush1.msra.mxu0 0.0
      %4119 = vmatprep.subr.mxu0 0.0
      %4120 = vmatpush1.msra.mxu0 0.0
      %4121 = vmatprep.subr.mxu0 0.0
      %4122 = vmatpush1.msra.mxu0 0.0
      %4123 = vmatprep.subr.mxu0 0.0
      %4124 = vmatpush1.msra.mxu0 0.0
      %4125 = vmatprep.subr.mxu0 0.0
      %4126 = vmatpush1.msra.mxu0 0.0
      %4127 = vmatprep.subr.mxu0 0.0
      %4128 = vmatpush1.msra.mxu0 0.0
      %4129 = vmatprep.subr.mxu0 0.0
      %4130 = vmatpush1.msra.mxu0 0.0
      %4131 = vmatprep.subr.mxu0 0.0
      %4132 = vmatpush1.msra.mxu0 0.0
      %4133 = vmatprep.subr.mxu0 0.0
      %4134 = vmatpush1.msra.mxu0 0.0
      %4135 = vmatprep.subr.mxu0 0.0
      %4136 = vmatpush1.msra.mxu0 0.0
      %4137 = vmatprep.subr.mxu0 0.0
      %4138 = vmatpush1.msra.mxu0 0.0
      %4139 = vmatprep.subr.mxu0 0.0
      %4140 = vmatpush1.msra.mxu0 0.0
      %4141 = vmatprep.subr.mxu0 0.0
      %4142 = vmatpush1.msra.mxu0 0.0
      %4143 = vmatprep.subr.mxu0 0.0
      %4144 = vmatpush1.msra.mxu0 0.0
      %4145 = vmatprep.subr.mxu0 0.0
      %4146 = vmatpush1.msra.mxu0 0.0
      %4147 = vmatprep.mubr.f32.mxu0 0.0
      %4148 = vmatmul.mubr.f32.gmra.mrb[0].mxu0 %v4075
      %v4149 = vpop.f32.mrb[0].mxu0
      %v4150 = vadd.f32 0.0, %v4149
      %v4151 = vpop.f32.mrb[0].mxu0
      %4152 = vmatprep.mubr.f32.mxu0 0.0
      %4153 = vmatmul.mubr.f32.gmra.mrb[0].mxu0 %v4078
      %v4154 = vpop.f32.mrb[0].mxu0
      %v4155 = vadd.f32 0.0, %v4154
      %v4156 = vpop.f32.mrb[0].mxu0
      %4157 = vdwg.mxu0
      %v4158 = vadd.f32 %v4067, %v4150
      %v4159 = vadd.f32 %v4068, %v4155
      %s4160 = sadd.s32 %s3618, 36
      %s4161 = scalar_lea.vmem %s234, %s4160
      %v4162 = vld [vmem:[%s4161] sm:$0xff]
      %v4163 = vld [vmem:[%s4161 + $0x8] sm:$0xff]
      %v4164 = vld [vmem:[%s814] sm:$0xf]
      %v4166 = vsel %vm272, %v4162, 0
      %v4169 = vsel %vm272, %v4163, 0
      %v4172 = vsel %vm279, %v4164, 0
      %4174 = vmatprep.subr.mxu0 0.0
      %4175 = vmatpush1.msra.mxu0 %v4172
      %4176 = vmatprep.subr.mxu0 0.0
      %4177 = vmatpush1.msra.mxu0 0.0
      %4178 = vmatprep.subr.mxu0 0.0
      %4179 = vmatpush1.msra.mxu0 0.0
      %4180 = vmatprep.subr.mxu0 0.0
      %4181 = vmatpush1.msra.mxu0 0.0
      %4182 = vmatprep.subr.mxu0 0.0
      %4183 = vmatpush1.msra.mxu0 0.0
      %4184 = vmatprep.subr.mxu0 0.0
      %4185 = vmatpush1.msra.mxu0 0.0
      %4186 = vmatprep.subr.mxu0 0.0
      %4187 = vmatpush1.msra.mxu0 0.0
      %4188 = vmatprep.subr.mxu0 0.0
      %4189 = vmatpush1.msra.mxu0 0.0
      %4190 = vmatprep.subr.mxu0 0.0
      %4191 = vmatpush1.msra.mxu0 0.0
      %4192 = vmatprep.subr.mxu0 0.0
      %4193 = vmatpush1.msra.mxu0 0.0
      %4194 = vmatprep.subr.mxu0 0.0
      %4195 = vmatpush1.msra.mxu0 0.0
      %4196 = vmatprep.subr.mxu0 0.0
      %4197 = vmatpush1.msra.mxu0 0.0
      %4198 = vmatprep.subr.mxu0 0.0
      %4199 = vmatpush1.msra.mxu0 0.0
      %4200 = vmatprep.subr.mxu0 0.0
      %4201 = vmatpush1.msra.mxu0 0.0
      %4202 = vmatprep.subr.mxu0 0.0
      %4203 = vmatpush1.msra.mxu0 0.0
      %4204 = vmatprep.subr.mxu0 0.0
      %4205 = vmatpush1.msra.mxu0 0.0
      %4206 = vmatprep.subr.mxu0 0.0
      %4207 = vmatpush1.msra.mxu0 0.0
      %4208 = vmatprep.subr.mxu0 0.0
      %4209 = vmatpush1.msra.mxu0 0.0
      %4210 = vmatprep.subr.mxu0 0.0
      %4211 = vmatpush1.msra.mxu0 0.0
      %4212 = vmatprep.subr.mxu0 0.0
      %4213 = vmatpush1.msra.mxu0 0.0
      %4214 = vmatprep.subr.mxu0 0.0
      %4215 = vmatpush1.msra.mxu0 0.0
      %4216 = vmatprep.subr.mxu0 0.0
      %4217 = vmatpush1.msra.mxu0 0.0
      %4218 = vmatprep.subr.mxu0 0.0
      %4219 = vmatpush1.msra.mxu0 0.0
      %4220 = vmatprep.subr.mxu0 0.0
      %4221 = vmatpush1.msra.mxu0 0.0
      %4222 = vmatprep.subr.mxu0 0.0
      %4223 = vmatpush1.msra.mxu0 0.0
      %4224 = vmatprep.subr.mxu0 0.0
      %4225 = vmatpush1.msra.mxu0 0.0
      %4226 = vmatprep.subr.mxu0 0.0
      %4227 = vmatpush1.msra.mxu0 0.0
      %4228 = vmatprep.subr.mxu0 0.0
      %4229 = vmatpush1.msra.mxu0 0.0
      %4230 = vmatprep.subr.mxu0 0.0
      %4231 = vmatpush1.msra.mxu0 0.0
      %4232 = vmatprep.subr.mxu0 0.0
      %4233 = vmatpush1.msra.mxu0 0.0
      %4234 = vmatprep.subr.mxu0 0.0
      %4235 = vmatpush1.msra.mxu0 0.0
      %4236 = vmatprep.subr.mxu0 0.0
      %4237 = vmatpush1.msra.mxu0 0.0
      %4238 = vmatprep.mubr.f32.mxu0 0.0
      %4239 = vmatmul.mubr.f32.gmra.mrb[0].mxu0 %v4166
      %v4240 = vpop.f32.mrb[0].mxu0
      %v4241 = vadd.f32 0.0, %v4240
      %v4242 = vpop.f32.mrb[0].mxu0
      %4243 = vmatprep.mubr.f32.mxu0 0.0
      %4244 = vmatmul.mubr.f32.gmra.mrb[0].mxu0 %v4169
      %v4245 = vpop.f32.mrb[0].mxu0
      %v4246 = vadd.f32 0.0, %v4245
      %v4247 = vpop.f32.mrb[0].mxu0
      %4248 = vdwg.mxu0
      %v4249 = vadd.f32 %v4158, %v4241
      %v4250 = vadd.f32 %v4159, %v4246
      %s4251 = sadd.s32 %s3618, 37
      %s4252 = scalar_lea.vmem %s234, %s4251
      %v4253 = vld [vmem:[%s4252] sm:$0xff]
      %v4254 = vld [vmem:[%s4252 + $0x8] sm:$0xff]
      %v4255 = vld [vmem:[%s906] sm:$0xf]
      %v4257 = vsel %vm272, %v4253, 0
      %v4260 = vsel %vm272, %v4254, 0
      %v4263 = vsel %vm279, %v4255, 0
      %4265 = vmatprep.subr.mxu0 0.0
      %4266 = vmatpush1.msra.mxu0 %v4263
      %4267 = vmatprep.subr.mxu0 0.0
      %4268 = vmatpush1.msra.mxu0 0.0
      %4269 = vmatprep.subr.mxu0 0.0
      %4270 = vmatpush1.msra.mxu0 0.0
      %4271 = vmatprep.subr.mxu0 0.0
      %4272 = vmatpush1.msra.mxu0 0.0
      %4273 = vmatprep.subr.mxu0 0.0
      %4274 = vmatpush1.msra.mxu0 0.0
      %4275 = vmatprep.subr.mxu0 0.0
      %4276 = vmatpush1.msra.mxu0 0.0
      %4277 = vmatprep.subr.mxu0 0.0
      %4278 = vmatpush1.msra.mxu0 0.0
      %4279 = vmatprep.subr.mxu0 0.0
      %4280 = vmatpush1.msra.mxu0 0.0
      %4281 = vmatprep.subr.mxu0 0.0
      %4282 = vmatpush1.msra.mxu0 0.0
      %4283 = vmatprep.subr.mxu0 0.0
      %4284 = vmatpush1.msra.mxu0 0.0
      %4285 = vmatprep.subr.mxu0 0.0
      %4286 = vmatpush1.msra.mxu0 0.0
      %4287 = vmatprep.subr.mxu0 0.0
      %4288 = vmatpush1.msra.mxu0 0.0
      %4289 = vmatprep.subr.mxu0 0.0
      %4290 = vmatpush1.msra.mxu0 0.0
      %4291 = vmatprep.subr.mxu0 0.0
      %4292 = vmatpush1.msra.mxu0 0.0
      %4293 = vmatprep.subr.mxu0 0.0
      %4294 = vmatpush1.msra.mxu0 0.0
      %4295 = vmatprep.subr.mxu0 0.0
      %4296 = vmatpush1.msra.mxu0 0.0
      %4297 = vmatprep.subr.mxu0 0.0
      %4298 = vmatpush1.msra.mxu0 0.0
      %4299 = vmatprep.subr.mxu0 0.0
      %4300 = vmatpush1.msra.mxu0 0.0
      %4301 = vmatprep.subr.mxu0 0.0
      %4302 = vmatpush1.msra.mxu0 0.0
      %4303 = vmatprep.subr.mxu0 0.0
      %4304 = vmatpush1.msra.mxu0 0.0
      %4305 = vmatprep.subr.mxu0 0.0
      %4306 = vmatpush1.msra.mxu0 0.0
      %4307 = vmatprep.subr.mxu0 0.0
      %4308 = vmatpush1.msra.mxu0 0.0
      %4309 = vmatprep.subr.mxu0 0.0
      %4310 = vmatpush1.msra.mxu0 0.0
      %4311 = vmatprep.subr.mxu0 0.0
      %4312 = vmatpush1.msra.mxu0 0.0
      %4313 = vmatprep.subr.mxu0 0.0
      %4314 = vmatpush1.msra.mxu0 0.0
      %4315 = vmatprep.subr.mxu0 0.0
      %4316 = vmatpush1.msra.mxu0 0.0
      %4317 = vmatprep.subr.mxu0 0.0
      %4318 = vmatpush1.msra.mxu0 0.0
      %4319 = vmatprep.subr.mxu0 0.0
      %4320 = vmatpush1.msra.mxu0 0.0
      %4321 = vmatprep.subr.mxu0 0.0
      %4322 = vmatpush1.msra.mxu0 0.0
      %4323 = vmatprep.subr.mxu0 0.0
      %4324 = vmatpush1.msra.mxu0 0.0
      %4325 = vmatprep.subr.mxu0 0.0
      %4326 = vmatpush1.msra.mxu0 0.0
      %4327 = vmatprep.subr.mxu0 0.0
      %4328 = vmatpush1.msra.mxu0 0.0
      %4329 = vmatprep.mubr.f32.mxu0 0.0
      %4330 = vmatmul.mubr.f32.gmra.mrb[0].mxu0 %v4257
      %v4331 = vpop.f32.mrb[0].mxu0
      %v4332 = vadd.f32 0.0, %v4331
      %v4333 = vpop.f32.mrb[0].mxu0
      %4334 = vmatprep.mubr.f32.mxu0 0.0
      %4335 = vmatmul.mubr.f32.gmra.mrb[0].mxu0 %v4260
      %v4336 = vpop.f32.mrb[0].mxu0
      %v4337 = vadd.f32 0.0, %v4336
      %v4338 = vpop.f32.mrb[0].mxu0
      %4339 = vdwg.mxu0
      %v4340 = vadd.f32 %v4249, %v4332
      %v4341 = vadd.f32 %v4250, %v4337
      %s4342 = sadd.s32 %s3618, 38
      %s4343 = scalar_lea.vmem %s234, %s4342
      %v4344 = vld [vmem:[%s4343] sm:$0xff]
      %v4345 = vld [vmem:[%s4343 + $0x8] sm:$0xff]
      %v4346 = vld [vmem:[%s998] sm:$0xf]
      %v4348 = vsel %vm272, %v4344, 0
      %v4351 = vsel %vm272, %v4345, 0
      %v4354 = vsel %vm279, %v4346, 0
      %4356 = vmatprep.subr.mxu0 0.0
      %4357 = vmatpush1.msra.mxu0 %v4354
      %4358 = vmatprep.subr.mxu0 0.0
      %4359 = vmatpush1.msra.mxu0 0.0
      %4360 = vmatprep.subr.mxu0 0.0
      %4361 = vmatpush1.msra.mxu0 0.0
      %4362 = vmatprep.subr.mxu0 0.0
      %4363 = vmatpush1.msra.mxu0 0.0
      %4364 = vmatprep.subr.mxu0 0.0
      %4365 = vmatpush1.msra.mxu0 0.0
      %4366 = vmatprep.subr.mxu0 0.0
      %4367 = vmatpush1.msra.mxu0 0.0
      %4368 = vmatprep.subr.mxu0 0.0
      %4369 = vmatpush1.msra.mxu0 0.0
      %4370 = vmatprep.subr.mxu0 0.0
      %4371 = vmatpush1.msra.mxu0 0.0
      %4372 = vmatprep.subr.mxu0 0.0
      %4373 = vmatpush1.msra.mxu0 0.0
      %4374 = vmatprep.subr.mxu0 0.0
      %4375 = vmatpush1.msra.mxu0 0.0
      %4376 = vmatprep.subr.mxu0 0.0
      %4377 = vmatpush1.msra.mxu0 0.0
      %4378 = vmatprep.subr.mxu0 0.0
      %4379 = vmatpush1.msra.mxu0 0.0
      %4380 = vmatprep.subr.mxu0 0.0
      %4381 = vmatpush1.msra.mxu0 0.0
      %4382 = vmatprep.subr.mxu0 0.0
      %4383 = vmatpush1.msra.mxu0 0.0
      %4384 = vmatprep.subr.mxu0 0.0
      %4385 = vmatpush1.msra.mxu0 0.0
      %4386 = vmatprep.subr.mxu0 0.0
      %4387 = vmatpush1.msra.mxu0 0.0
      %4388 = vmatprep.subr.mxu0 0.0
      %4389 = vmatpush1.msra.mxu0 0.0
      %4390 = vmatprep.subr.mxu0 0.0
      %4391 = vmatpush1.msra.mxu0 0.0
      %4392 = vmatprep.subr.mxu0 0.0
      %4393 = vmatpush1.msra.mxu0 0.0
      %4394 = vmatprep.subr.mxu0 0.0
      %4395 = vmatpush1.msra.mxu0 0.0
      %4396 = vmatprep.subr.mxu0 0.0
      %4397 = vmatpush1.msra.mxu0 0.0
      %4398 = vmatprep.subr.mxu0 0.0
      %4399 = vmatpush1.msra.mxu0 0.0
      %4400 = vmatprep.subr.mxu0 0.0
      %4401 = vmatpush1.msra.mxu0 0.0
      %4402 = vmatprep.subr.mxu0 0.0
      %4403 = vmatpush1.msra.mxu0 0.0
      %4404 = vmatprep.subr.mxu0 0.0
      %4405 = vmatpush1.msra.mxu0 0.0
      %4406 = vmatprep.subr.mxu0 0.0
      %4407 = vmatpush1.msra.mxu0 0.0
      %4408 = vmatprep.subr.mxu0 0.0
      %4409 = vmatpush1.msra.mxu0 0.0
      %4410 = vmatprep.subr.mxu0 0.0
      %4411 = vmatpush1.msra.mxu0 0.0
      %4412 = vmatprep.subr.mxu0 0.0
      %4413 = vmatpush1.msra.mxu0 0.0
      %4414 = vmatprep.subr.mxu0 0.0
      %4415 = vmatpush1.msra.mxu0 0.0
      %4416 = vmatprep.subr.mxu0 0.0
      %4417 = vmatpush1.msra.mxu0 0.0
      %4418 = vmatprep.subr.mxu0 0.0
      %4419 = vmatpush1.msra.mxu0 0.0
      %4420 = vmatprep.mubr.f32.mxu0 0.0
      %4421 = vmatmul.mubr.f32.gmra.mrb[0].mxu0 %v4348
      %v4422 = vpop.f32.mrb[0].mxu0
      %v4423 = vadd.f32 0.0, %v4422
      %v4424 = vpop.f32.mrb[0].mxu0
      %4425 = vmatprep.mubr.f32.mxu0 0.0
      %4426 = vmatmul.mubr.f32.gmra.mrb[0].mxu0 %v4351
      %v4427 = vpop.f32.mrb[0].mxu0
      %v4428 = vadd.f32 0.0, %v4427
      %v4429 = vpop.f32.mrb[0].mxu0
      %4430 = vdwg.mxu0
      %v4431 = vadd.f32 %v4340, %v4423
      %v4432 = vadd.f32 %v4341, %v4428
      %s4433 = scalar_lea.vmem %s244, 64
      %4434 = vst [vmem:[%s4433] sm:$0xff] %v4431
      %4435 = vst [vmem:[%s4433 + $0x8] sm:$0xff] %v4432
      %v4436 = vadd.f32 %v4431, %v4432
      %v4437 = vrot.slane %v4436, 4
      %v4438 = vadd.f32 %v4436, %v4437
      %v4439 = vrot.slane %v4438, 2
      %v4440 = vadd.f32 %v4438, %v4439
      %v4441 = vrot.slane %v4440, 1
      %v4442 = vadd.f32 %v4440, %v4441
      %v4443 = vadd.f32 %v3606, %v4442
      %v4444 = vmul.f32 %v4431, %v4431
      %v4445 = vmul.f32 %v4432, %v4432
      %v4446 = vadd.f32 %v4444, %v4445
      %v4447 = vrot.slane %v4446, 4
      %v4448 = vadd.f32 %v4446, %v4447
      %v4449 = vrot.slane %v4448, 2
      %v4450 = vadd.f32 %v4448, %v4449
      %v4451 = vrot.slane %v4450, 1
      %v4452 = vadd.f32 %v4450, %v4451
      %v4453 = vadd.f32 %v3616, %v4452
      %s4454 = sadd.s32 %s260, 5
      %s4455 = smul.u32 %s4454, 18
      %s4456 = scalar_lea.vmem %s234, %s4455
      %v4457 = vld [vmem:[%s4456] sm:$0xff]
      %v4458 = vld [vmem:[%s4456 + $0x8] sm:$0xff]
      %v4459 = vld [vmem:[%s1] sm:$0xf]
      %s4460 = sadd.s32 %s4455, 1
      %s4461 = scalar_lea.vmem %s234, %s4460
      %v4462 = vld [vmem:[%s4461] sm:$0xff]
      %v4463 = vld [vmem:[%s4461 + $0x8] sm:$0xff]
      %v4464 = vld [vmem:[%s270] sm:$0xf]
      %v4466 = vsel %vm272, %v4462, 0
      %v4469 = vsel %vm272, %v4463, 0
      %v4472 = vsel %vm279, %v4464, 0
      %4474 = vmatprep.subr.mxu0 0.0
      %4475 = vmatpush1.msra.mxu0 %v4472
      %4476 = vmatprep.subr.mxu0 0.0
      %4477 = vmatpush1.msra.mxu0 0.0
      %4478 = vmatprep.subr.mxu0 0.0
      %4479 = vmatpush1.msra.mxu0 0.0
      %4480 = vmatprep.subr.mxu0 0.0
      %4481 = vmatpush1.msra.mxu0 0.0
      %4482 = vmatprep.subr.mxu0 0.0
      %4483 = vmatpush1.msra.mxu0 0.0
      %4484 = vmatprep.subr.mxu0 0.0
      %4485 = vmatpush1.msra.mxu0 0.0
      %4486 = vmatprep.subr.mxu0 0.0
      %4487 = vmatpush1.msra.mxu0 0.0
      %4488 = vmatprep.subr.mxu0 0.0
      %4489 = vmatpush1.msra.mxu0 0.0
      %4490 = vmatprep.subr.mxu0 0.0
      %4491 = vmatpush1.msra.mxu0 0.0
      %4492 = vmatprep.subr.mxu0 0.0
      %4493 = vmatpush1.msra.mxu0 0.0
      %4494 = vmatprep.subr.mxu0 0.0
      %4495 = vmatpush1.msra.mxu0 0.0
      %4496 = vmatprep.subr.mxu0 0.0
      %4497 = vmatpush1.msra.mxu0 0.0
      %4498 = vmatprep.subr.mxu0 0.0
      %4499 = vmatpush1.msra.mxu0 0.0
      %4500 = vmatprep.subr.mxu0 0.0
      %4501 = vmatpush1.msra.mxu0 0.0
      %4502 = vmatprep.subr.mxu0 0.0
      %4503 = vmatpush1.msra.mxu0 0.0
      %4504 = vmatprep.subr.mxu0 0.0
      %4505 = vmatpush1.msra.mxu0 0.0
      %4506 = vmatprep.subr.mxu0 0.0
      %4507 = vmatpush1.msra.mxu0 0.0
      %4508 = vmatprep.subr.mxu0 0.0
      %4509 = vmatpush1.msra.mxu0 0.0
      %4510 = vmatprep.subr.mxu0 0.0
      %4511 = vmatpush1.msra.mxu0 0.0
      %4512 = vmatprep.subr.mxu0 0.0
      %4513 = vmatpush1.msra.mxu0 0.0
      %4514 = vmatprep.subr.mxu0 0.0
      %4515 = vmatpush1.msra.mxu0 0.0
      %4516 = vmatprep.subr.mxu0 0.0
      %4517 = vmatpush1.msra.mxu0 0.0
      %4518 = vmatprep.subr.mxu0 0.0
      %4519 = vmatpush1.msra.mxu0 0.0
      %4520 = vmatprep.subr.mxu0 0.0
      %4521 = vmatpush1.msra.mxu0 0.0
      %4522 = vmatprep.subr.mxu0 0.0
      %4523 = vmatpush1.msra.mxu0 0.0
      %4524 = vmatprep.subr.mxu0 0.0
      %4525 = vmatpush1.msra.mxu0 0.0
      %4526 = vmatprep.subr.mxu0 0.0
      %4527 = vmatpush1.msra.mxu0 0.0
      %4528 = vmatprep.subr.mxu0 0.0
      %4529 = vmatpush1.msra.mxu0 0.0
      %4530 = vmatprep.subr.mxu0 0.0
      %4531 = vmatpush1.msra.mxu0 0.0
      %4532 = vmatprep.subr.mxu0 0.0
      %4533 = vmatpush1.msra.mxu0 0.0
      %4534 = vmatprep.subr.mxu0 0.0
      %4535 = vmatpush1.msra.mxu0 0.0
      %4536 = vmatprep.subr.mxu0 0.0
      %4537 = vmatpush1.msra.mxu0 0.0
      %4538 = vmatprep.mubr.f32.mxu0 0.0
      %4539 = vmatmul.mubr.f32.gmra.mrb[0].mxu0 %v4466
      %v4540 = vpop.f32.mrb[0].mxu0
      %v4541 = vadd.f32 0.0, %v4540
      %v4542 = vpop.f32.mrb[0].mxu0
      %4543 = vmatprep.mubr.f32.mxu0 0.0
      %4544 = vmatmul.mubr.f32.gmra.mrb[0].mxu0 %v4469
      %v4545 = vpop.f32.mrb[0].mxu0
      %v4546 = vadd.f32 0.0, %v4545
      %v4547 = vpop.f32.mrb[0].mxu0
      %4548 = vdwg.mxu0
      %v4550 = vsel %vm272, %v4457, 0
      %v4553 = vsel %vm272, %v4458, 0
      %v4556 = vsel %vm279, %v4459, 0
      %4558 = vmatprep.subr.mxu0 0.0
      %4559 = vmatpush1.msra.mxu0 %v4556
      %4560 = vmatprep.subr.mxu0 0.0
      %4561 = vmatpush1.msra.mxu0 0.0
      %4562 = vmatprep.subr.mxu0 0.0
      %4563 = vmatpush1.msra.mxu0 0.0
      %4564 = vmatprep.subr.mxu0 0.0
      %4565 = vmatpush1.msra.mxu0 0.0
      %4566 = vmatprep.subr.mxu0 0.0
      %4567 = vmatpush1.msra.mxu0 0.0
      %4568 = vmatprep.subr.mxu0 0.0
      %4569 = vmatpush1.msra.mxu0 0.0
      %4570 = vmatprep.subr.mxu0 0.0
      %4571 = vmatpush1.msra.mxu0 0.0
      %4572 = vmatprep.subr.mxu0 0.0
      %4573 = vmatpush1.msra.mxu0 0.0
      %4574 = vmatprep.subr.mxu0 0.0
      %4575 = vmatpush1.msra.mxu0 0.0
      %4576 = vmatprep.subr.mxu0 0.0
      %4577 = vmatpush1.msra.mxu0 0.0
      %4578 = vmatprep.subr.mxu0 0.0
      %4579 = vmatpush1.msra.mxu0 0.0
      %4580 = vmatprep.subr.mxu0 0.0
      %4581 = vmatpush1.msra.mxu0 0.0
      %4582 = vmatprep.subr.mxu0 0.0
      %4583 = vmatpush1.msra.mxu0 0.0
      %4584 = vmatprep.subr.mxu0 0.0
      %4585 = vmatpush1.msra.mxu0 0.0
      %4586 = vmatprep.subr.mxu0 0.0
      %4587 = vmatpush1.msra.mxu0 0.0
      %4588 = vmatprep.subr.mxu0 0.0
      %4589 = vmatpush1.msra.mxu0 0.0
      %4590 = vmatprep.subr.mxu0 0.0
      %4591 = vmatpush1.msra.mxu0 0.0
      %4592 = vmatprep.subr.mxu0 0.0
      %4593 = vmatpush1.msra.mxu0 0.0
      %4594 = vmatprep.subr.mxu0 0.0
      %4595 = vmatpush1.msra.mxu0 0.0
      %4596 = vmatprep.subr.mxu0 0.0
      %4597 = vmatpush1.msra.mxu0 0.0
      %4598 = vmatprep.subr.mxu0 0.0
      %4599 = vmatpush1.msra.mxu0 0.0
      %4600 = vmatprep.subr.mxu0 0.0
      %4601 = vmatpush1.msra.mxu0 0.0
      %4602 = vmatprep.subr.mxu0 0.0
      %4603 = vmatpush1.msra.mxu0 0.0
      %4604 = vmatprep.subr.mxu0 0.0
      %4605 = vmatpush1.msra.mxu0 0.0
      %4606 = vmatprep.subr.mxu0 0.0
      %4607 = vmatpush1.msra.mxu0 0.0
      %4608 = vmatprep.subr.mxu0 0.0
      %4609 = vmatpush1.msra.mxu0 0.0
      %4610 = vmatprep.subr.mxu0 0.0
      %4611 = vmatpush1.msra.mxu0 0.0
      %4612 = vmatprep.subr.mxu0 0.0
      %4613 = vmatpush1.msra.mxu0 0.0
      %4614 = vmatprep.subr.mxu0 0.0
      %4615 = vmatpush1.msra.mxu0 0.0
      %4616 = vmatprep.subr.mxu0 0.0
      %4617 = vmatpush1.msra.mxu0 0.0
      %4618 = vmatprep.subr.mxu0 0.0
      %4619 = vmatpush1.msra.mxu0 0.0
      %4620 = vmatprep.subr.mxu0 0.0
      %4621 = vmatpush1.msra.mxu0 0.0
      %4622 = vmatprep.mubr.f32.mxu0 0.0
      %4623 = vmatmul.mubr.f32.gmra.mrb[0].mxu0 %v4550
      %v4624 = vpop.f32.mrb[0].mxu0
      %v4625 = vadd.f32 %v4541, %v4624
      %v4626 = vpop.f32.mrb[0].mxu0
      %4627 = vmatprep.mubr.f32.mxu0 0.0
      %4628 = vmatmul.mubr.f32.gmra.mrb[0].mxu0 %v4553
      %v4629 = vpop.f32.mrb[0].mxu0
      %v4630 = vadd.f32 %v4546, %v4629
      %v4631 = vpop.f32.mrb[0].mxu0
      %4632 = vdwg.mxu0
      %s4633 = sadd.s32 %s4455, 2
      %s4634 = scalar_lea.vmem %s234, %s4633
      %v4635 = vld [vmem:[%s4634] sm:$0xff]
      %v4636 = vld [vmem:[%s4634 + $0x8] sm:$0xff]
      %v4637 = vld [vmem:[%s446] sm:$0xf]
      %v4639 = vsel %vm272, %v4635, 0
      %v4642 = vsel %vm272, %v4636, 0
      %v4645 = vsel %vm279, %v4637, 0
      %4647 = vmatprep.subr.mxu0 0.0
      %4648 = vmatpush1.msra.mxu0 %v4645
      %4649 = vmatprep.subr.mxu0 0.0
      %4650 = vmatpush1.msra.mxu0 0.0
      %4651 = vmatprep.subr.mxu0 0.0
      %4652 = vmatpush1.msra.mxu0 0.0
      %4653 = vmatprep.subr.mxu0 0.0
      %4654 = vmatpush1.msra.mxu0 0.0
      %4655 = vmatprep.subr.mxu0 0.0
      %4656 = vmatpush1.msra.mxu0 0.0
      %4657 = vmatprep.subr.mxu0 0.0
      %4658 = vmatpush1.msra.mxu0 0.0
      %4659 = vmatprep.subr.mxu0 0.0
      %4660 = vmatpush1.msra.mxu0 0.0
      %4661 = vmatprep.subr.mxu0 0.0
      %4662 = vmatpush1.msra.mxu0 0.0
      %4663 = vmatprep.subr.mxu0 0.0
      %4664 = vmatpush1.msra.mxu0 0.0
      %4665 = vmatprep.subr.mxu0 0.0
      %4666 = vmatpush1.msra.mxu0 0.0
      %4667 = vmatprep.subr.mxu0 0.0
      %4668 = vmatpush1.msra.mxu0 0.0
      %4669 = vmatprep.subr.mxu0 0.0
      %4670 = vmatpush1.msra.mxu0 0.0
      %4671 = vmatprep.subr.mxu0 0.0
      %4672 = vmatpush1.msra.mxu0 0.0
      %4673 = vmatprep.subr.mxu0 0.0
      %4674 = vmatpush1.msra.mxu0 0.0
      %4675 = vmatprep.subr.mxu0 0.0
      %4676 = vmatpush1.msra.mxu0 0.0
      %4677 = vmatprep.subr.mxu0 0.0
      %4678 = vmatpush1.msra.mxu0 0.0
      %4679 = vmatprep.subr.mxu0 0.0
      %4680 = vmatpush1.msra.mxu0 0.0
      %4681 = vmatprep.subr.mxu0 0.0
      %4682 = vmatpush1.msra.mxu0 0.0
      %4683 = vmatprep.subr.mxu0 0.0
      %4684 = vmatpush1.msra.mxu0 0.0
      %4685 = vmatprep.subr.mxu0 0.0
      %4686 = vmatpush1.msra.mxu0 0.0
      %4687 = vmatprep.subr.mxu0 0.0
      %4688 = vmatpush1.msra.mxu0 0.0
      %4689 = vmatprep.subr.mxu0 0.0
      %4690 = vmatpush1.msra.mxu0 0.0
      %4691 = vmatprep.subr.mxu0 0.0
      %4692 = vmatpush1.msra.mxu0 0.0
      %4693 = vmatprep.subr.mxu0 0.0
      %4694 = vmatpush1.msra.mxu0 0.0
      %4695 = vmatprep.subr.mxu0 0.0
      %4696 = vmatpush1.msra.mxu0 0.0
      %4697 = vmatprep.subr.mxu0 0.0
      %4698 = vmatpush1.msra.mxu0 0.0
      %4699 = vmatprep.subr.mxu0 0.0
      %4700 = vmatpush1.msra.mxu0 0.0
      %4701 = vmatprep.subr.mxu0 0.0
      %4702 = vmatpush1.msra.mxu0 0.0
      %4703 = vmatprep.subr.mxu0 0.0
      %4704 = vmatpush1.msra.mxu0 0.0
      %4705 = vmatprep.subr.mxu0 0.0
      %4706 = vmatpush1.msra.mxu0 0.0
      %4707 = vmatprep.subr.mxu0 0.0
      %4708 = vmatpush1.msra.mxu0 0.0
      %4709 = vmatprep.subr.mxu0 0.0
      %4710 = vmatpush1.msra.mxu0 0.0
      %4711 = vmatprep.mubr.f32.mxu0 0.0
      %4712 = vmatmul.mubr.f32.gmra.mrb[0].mxu0 %v4639
      %v4713 = vpop.f32.mrb[0].mxu0
      %v4714 = vadd.f32 0.0, %v4713
      %v4715 = vpop.f32.mrb[0].mxu0
      %4716 = vmatprep.mubr.f32.mxu0 0.0
      %4717 = vmatmul.mubr.f32.gmra.mrb[0].mxu0 %v4642
      %v4718 = vpop.f32.mrb[0].mxu0
      %v4719 = vadd.f32 0.0, %v4718
      %v4720 = vpop.f32.mrb[0].mxu0
      %4721 = vdwg.mxu0
      %v4722 = vadd.f32 %v4625, %v4714
      %v4723 = vadd.f32 %v4630, %v4719
      %s4724 = sadd.s32 %s4455, 18
      %s4725 = scalar_lea.vmem %s234, %s4724
      %v4726 = vld [vmem:[%s4725] sm:$0xff]
      %v4727 = vld [vmem:[%s4725 + $0x8] sm:$0xff]
      %v4728 = vld [vmem:[%s538] sm:$0xf]
      %v4730 = vsel %vm272, %v4726, 0
      %v4733 = vsel %vm272, %v4727, 0
      %v4736 = vsel %vm279, %v4728, 0
      %4738 = vmatprep.subr.mxu0 0.0
      %4739 = vmatpush1.msra.mxu0 %v4736
      %4740 = vmatprep.subr.mxu0 0.0
      %4741 = vmatpush1.msra.mxu0 0.0
      %4742 = vmatprep.subr.mxu0 0.0
      %4743 = vmatpush1.msra.mxu0 0.0
      %4744 = vmatprep.subr.mxu0 0.0
      %4745 = vmatpush1.msra.mxu0 0.0
      %4746 = vmatprep.subr.mxu0 0.0
      %4747 = vmatpush1.msra.mxu0 0.0
      %4748 = vmatprep.subr.mxu0 0.0
      %4749 = vmatpush1.msra.mxu0 0.0
      %4750 = vmatprep.subr.mxu0 0.0
      %4751 = vmatpush1.msra.mxu0 0.0
      %4752 = vmatprep.subr.mxu0 0.0
      %4753 = vmatpush1.msra.mxu0 0.0
      %4754 = vmatprep.subr.mxu0 0.0
      %4755 = vmatpush1.msra.mxu0 0.0
      %4756 = vmatprep.subr.mxu0 0.0
      %4757 = vmatpush1.msra.mxu0 0.0
      %4758 = vmatprep.subr.mxu0 0.0
      %4759 = vmatpush1.msra.mxu0 0.0
      %4760 = vmatprep.subr.mxu0 0.0
      %4761 = vmatpush1.msra.mxu0 0.0
      %4762 = vmatprep.subr.mxu0 0.0
      %4763 = vmatpush1.msra.mxu0 0.0
      %4764 = vmatprep.subr.mxu0 0.0
      %4765 = vmatpush1.msra.mxu0 0.0
      %4766 = vmatprep.subr.mxu0 0.0
      %4767 = vmatpush1.msra.mxu0 0.0
      %4768 = vmatprep.subr.mxu0 0.0
      %4769 = vmatpush1.msra.mxu0 0.0
      %4770 = vmatprep.subr.mxu0 0.0
      %4771 = vmatpush1.msra.mxu0 0.0
      %4772 = vmatprep.subr.mxu0 0.0
      %4773 = vmatpush1.msra.mxu0 0.0
      %4774 = vmatprep.subr.mxu0 0.0
      %4775 = vmatpush1.msra.mxu0 0.0
      %4776 = vmatprep.subr.mxu0 0.0
      %4777 = vmatpush1.msra.mxu0 0.0
      %4778 = vmatprep.subr.mxu0 0.0
      %4779 = vmatpush1.msra.mxu0 0.0
      %4780 = vmatprep.subr.mxu0 0.0
      %4781 = vmatpush1.msra.mxu0 0.0
      %4782 = vmatprep.subr.mxu0 0.0
      %4783 = vmatpush1.msra.mxu0 0.0
      %4784 = vmatprep.subr.mxu0 0.0
      %4785 = vmatpush1.msra.mxu0 0.0
      %4786 = vmatprep.subr.mxu0 0.0
      %4787 = vmatpush1.msra.mxu0 0.0
      %4788 = vmatprep.subr.mxu0 0.0
      %4789 = vmatpush1.msra.mxu0 0.0
      %4790 = vmatprep.subr.mxu0 0.0
      %4791 = vmatpush1.msra.mxu0 0.0
      %4792 = vmatprep.subr.mxu0 0.0
      %4793 = vmatpush1.msra.mxu0 0.0
      %4794 = vmatprep.subr.mxu0 0.0
      %4795 = vmatpush1.msra.mxu0 0.0
      %4796 = vmatprep.subr.mxu0 0.0
      %4797 = vmatpush1.msra.mxu0 0.0
      %4798 = vmatprep.subr.mxu0 0.0
      %4799 = vmatpush1.msra.mxu0 0.0
      %4800 = vmatprep.subr.mxu0 0.0
      %4801 = vmatpush1.msra.mxu0 0.0
      %4802 = vmatprep.mubr.f32.mxu0 0.0
      %4803 = vmatmul.mubr.f32.gmra.mrb[0].mxu0 %v4730
      %v4804 = vpop.f32.mrb[0].mxu0
      %v4805 = vadd.f32 0.0, %v4804
      %v4806 = vpop.f32.mrb[0].mxu0
      %4807 = vmatprep.mubr.f32.mxu0 0.0
      %4808 = vmatmul.mubr.f32.gmra.mrb[0].mxu0 %v4733
      %v4809 = vpop.f32.mrb[0].mxu0
      %v4810 = vadd.f32 0.0, %v4809
      %v4811 = vpop.f32.mrb[0].mxu0
      %4812 = vdwg.mxu0
      %v4813 = vadd.f32 %v4722, %v4805
      %v4814 = vadd.f32 %v4723, %v4810
      %s4815 = sadd.s32 %s4455, 19
      %s4816 = scalar_lea.vmem %s234, %s4815
      %v4817 = vld [vmem:[%s4816] sm:$0xff]
      %v4818 = vld [vmem:[%s4816 + $0x8] sm:$0xff]
      %v4819 = vld [vmem:[%s630] sm:$0xf]
      %v4821 = vsel %vm272, %v4817, 0
      %v4824 = vsel %vm272, %v4818, 0
      %v4827 = vsel %vm279, %v4819, 0
      %4829 = vmatprep.subr.mxu0 0.0
      %4830 = vmatpush1.msra.mxu0 %v4827
      %4831 = vmatprep.subr.mxu0 0.0
      %4832 = vmatpush1.msra.mxu0 0.0
      %4833 = vmatprep.subr.mxu0 0.0
      %4834 = vmatpush1.msra.mxu0 0.0
      %4835 = vmatprep.subr.mxu0 0.0
      %4836 = vmatpush1.msra.mxu0 0.0
      %4837 = vmatprep.subr.mxu0 0.0
      %4838 = vmatpush1.msra.mxu0 0.0
      %4839 = vmatprep.subr.mxu0 0.0
      %4840 = vmatpush1.msra.mxu0 0.0
      %4841 = vmatprep.subr.mxu0 0.0
      %4842 = vmatpush1.msra.mxu0 0.0
      %4843 = vmatprep.subr.mxu0 0.0
      %4844 = vmatpush1.msra.mxu0 0.0
      %4845 = vmatprep.subr.mxu0 0.0
      %4846 = vmatpush1.msra.mxu0 0.0
      %4847 = vmatprep.subr.mxu0 0.0
      %4848 = vmatpush1.msra.mxu0 0.0
      %4849 = vmatprep.subr.mxu0 0.0
      %4850 = vmatpush1.msra.mxu0 0.0
      %4851 = vmatprep.subr.mxu0 0.0
      %4852 = vmatpush1.msra.mxu0 0.0
      %4853 = vmatprep.subr.mxu0 0.0
      %4854 = vmatpush1.msra.mxu0 0.0
      %4855 = vmatprep.subr.mxu0 0.0
      %4856 = vmatpush1.msra.mxu0 0.0
      %4857 = vmatprep.subr.mxu0 0.0
      %4858 = vmatpush1.msra.mxu0 0.0
      %4859 = vmatprep.subr.mxu0 0.0
      %4860 = vmatpush1.msra.mxu0 0.0
      %4861 = vmatprep.subr.mxu0 0.0
      %4862 = vmatpush1.msra.mxu0 0.0
      %4863 = vmatprep.subr.mxu0 0.0
      %4864 = vmatpush1.msra.mxu0 0.0
      %4865 = vmatprep.subr.mxu0 0.0
      %4866 = vmatpush1.msra.mxu0 0.0
      %4867 = vmatprep.subr.mxu0 0.0
      %4868 = vmatpush1.msra.mxu0 0.0
      %4869 = vmatprep.subr.mxu0 0.0
      %4870 = vmatpush1.msra.mxu0 0.0
      %4871 = vmatprep.subr.mxu0 0.0
      %4872 = vmatpush1.msra.mxu0 0.0
      %4873 = vmatprep.subr.mxu0 0.0
      %4874 = vmatpush1.msra.mxu0 0.0
      %4875 = vmatprep.subr.mxu0 0.0
      %4876 = vmatpush1.msra.mxu0 0.0
      %4877 = vmatprep.subr.mxu0 0.0
      %4878 = vmatpush1.msra.mxu0 0.0
      %4879 = vmatprep.subr.mxu0 0.0
      %4880 = vmatpush1.msra.mxu0 0.0
      %4881 = vmatprep.subr.mxu0 0.0
      %4882 = vmatpush1.msra.mxu0 0.0
      %4883 = vmatprep.subr.mxu0 0.0
      %4884 = vmatpush1.msra.mxu0 0.0
      %4885 = vmatprep.subr.mxu0 0.0
      %4886 = vmatpush1.msra.mxu0 0.0
      %4887 = vmatprep.subr.mxu0 0.0
      %4888 = vmatpush1.msra.mxu0 0.0
      %4889 = vmatprep.subr.mxu0 0.0
      %4890 = vmatpush1.msra.mxu0 0.0
      %4891 = vmatprep.subr.mxu0 0.0
      %4892 = vmatpush1.msra.mxu0 0.0
      %4893 = vmatprep.mubr.f32.mxu0 0.0
      %4894 = vmatmul.mubr.f32.gmra.mrb[0].mxu0 %v4821
      %v4895 = vpop.f32.mrb[0].mxu0
      %v4896 = vadd.f32 0.0, %v4895
      %v4897 = vpop.f32.mrb[0].mxu0
      %4898 = vmatprep.mubr.f32.mxu0 0.0
      %4899 = vmatmul.mubr.f32.gmra.mrb[0].mxu0 %v4824
      %v4900 = vpop.f32.mrb[0].mxu0
      %v4901 = vadd.f32 0.0, %v4900
      %v4902 = vpop.f32.mrb[0].mxu0
      %4903 = vdwg.mxu0
      %v4904 = vadd.f32 %v4813, %v4896
      %v4905 = vadd.f32 %v4814, %v4901
      %s4906 = sadd.s32 %s4455, 20
      %s4907 = scalar_lea.vmem %s234, %s4906
      %v4908 = vld [vmem:[%s4907] sm:$0xff]
      %v4909 = vld [vmem:[%s4907 + $0x8] sm:$0xff]
      %v4910 = vld [vmem:[%s722] sm:$0xf]
      %v4912 = vsel %vm272, %v4908, 0
      %v4915 = vsel %vm272, %v4909, 0
      %v4918 = vsel %vm279, %v4910, 0
      %4920 = vmatprep.subr.mxu0 0.0
      %4921 = vmatpush1.msra.mxu0 %v4918
      %4922 = vmatprep.subr.mxu0 0.0
      %4923 = vmatpush1.msra.mxu0 0.0
      %4924 = vmatprep.subr.mxu0 0.0
      %4925 = vmatpush1.msra.mxu0 0.0
      %4926 = vmatprep.subr.mxu0 0.0
      %4927 = vmatpush1.msra.mxu0 0.0
      %4928 = vmatprep.subr.mxu0 0.0
      %4929 = vmatpush1.msra.mxu0 0.0
      %4930 = vmatprep.subr.mxu0 0.0
      %4931 = vmatpush1.msra.mxu0 0.0
      %4932 = vmatprep.subr.mxu0 0.0
      %4933 = vmatpush1.msra.mxu0 0.0
      %4934 = vmatprep.subr.mxu0 0.0
      %4935 = vmatpush1.msra.mxu0 0.0
      %4936 = vmatprep.subr.mxu0 0.0
      %4937 = vmatpush1.msra.mxu0 0.0
      %4938 = vmatprep.subr.mxu0 0.0
      %4939 = vmatpush1.msra.mxu0 0.0
      %4940 = vmatprep.subr.mxu0 0.0
      %4941 = vmatpush1.msra.mxu0 0.0
      %4942 = vmatprep.subr.mxu0 0.0
      %4943 = vmatpush1.msra.mxu0 0.0
      %4944 = vmatprep.subr.mxu0 0.0
      %4945 = vmatpush1.msra.mxu0 0.0
      %4946 = vmatprep.subr.mxu0 0.0
      %4947 = vmatpush1.msra.mxu0 0.0
      %4948 = vmatprep.subr.mxu0 0.0
      %4949 = vmatpush1.msra.mxu0 0.0
      %4950 = vmatprep.subr.mxu0 0.0
      %4951 = vmatpush1.msra.mxu0 0.0
      %4952 = vmatprep.subr.mxu0 0.0
      %4953 = vmatpush1.msra.mxu0 0.0
      %4954 = vmatprep.subr.mxu0 0.0
      %4955 = vmatpush1.msra.mxu0 0.0
      %4956 = vmatprep.subr.mxu0 0.0
      %4957 = vmatpush1.msra.mxu0 0.0
      %4958 = vmatprep.subr.mxu0 0.0
      %4959 = vmatpush1.msra.mxu0 0.0
      %4960 = vmatprep.subr.mxu0 0.0
      %4961 = vmatpush1.msra.mxu0 0.0
      %4962 = vmatprep.subr.mxu0 0.0
      %4963 = vmatpush1.msra.mxu0 0.0
      %4964 = vmatprep.subr.mxu0 0.0
      %4965 = vmatpush1.msra.mxu0 0.0
      %4966 = vmatprep.subr.mxu0 0.0
      %4967 = vmatpush1.msra.mxu0 0.0
      %4968 = vmatprep.subr.mxu0 0.0
      %4969 = vmatpush1.msra.mxu0 0.0
      %4970 = vmatprep.subr.mxu0 0.0
      %4971 = vmatpush1.msra.mxu0 0.0
      %4972 = vmatprep.subr.mxu0 0.0
      %4973 = vmatpush1.msra.mxu0 0.0
      %4974 = vmatprep.subr.mxu0 0.0
      %4975 = vmatpush1.msra.mxu0 0.0
      %4976 = vmatprep.subr.mxu0 0.0
      %4977 = vmatpush1.msra.mxu0 0.0
      %4978 = vmatprep.subr.mxu0 0.0
      %4979 = vmatpush1.msra.mxu0 0.0
      %4980 = vmatprep.subr.mxu0 0.0
      %4981 = vmatpush1.msra.mxu0 0.0
      %4982 = vmatprep.subr.mxu0 0.0
      %4983 = vmatpush1.msra.mxu0 0.0
      %4984 = vmatprep.mubr.f32.mxu0 0.0
      %4985 = vmatmul.mubr.f32.gmra.mrb[0].mxu0 %v4912
      %v4986 = vpop.f32.mrb[0].mxu0
      %v4987 = vadd.f32 0.0, %v4986
      %v4988 = vpop.f32.mrb[0].mxu0
      %4989 = vmatprep.mubr.f32.mxu0 0.0
      %4990 = vmatmul.mubr.f32.gmra.mrb[0].mxu0 %v4915
      %v4991 = vpop.f32.mrb[0].mxu0
      %v4992 = vadd.f32 0.0, %v4991
      %v4993 = vpop.f32.mrb[0].mxu0
      %4994 = vdwg.mxu0
      %v4995 = vadd.f32 %v4904, %v4987
      %v4996 = vadd.f32 %v4905, %v4992
      %s4997 = sadd.s32 %s4455, 36
      %s4998 = scalar_lea.vmem %s234, %s4997
      %v4999 = vld [vmem:[%s4998] sm:$0xff]
      %v5000 = vld [vmem:[%s4998 + $0x8] sm:$0xff]
      %v5001 = vld [vmem:[%s814] sm:$0xf]
      %v5003 = vsel %vm272, %v4999, 0
      %v5006 = vsel %vm272, %v5000, 0
      %v5009 = vsel %vm279, %v5001, 0
      %5011 = vmatprep.subr.mxu0 0.0
      %5012 = vmatpush1.msra.mxu0 %v5009
      %5013 = vmatprep.subr.mxu0 0.0
      %5014 = vmatpush1.msra.mxu0 0.0
      %5015 = vmatprep.subr.mxu0 0.0
      %5016 = vmatpush1.msra.mxu0 0.0
      %5017 = vmatprep.subr.mxu0 0.0
      %5018 = vmatpush1.msra.mxu0 0.0
      %5019 = vmatprep.subr.mxu0 0.0
      %5020 = vmatpush1.msra.mxu0 0.0
      %5021 = vmatprep.subr.mxu0 0.0
      %5022 = vmatpush1.msra.mxu0 0.0
      %5023 = vmatprep.subr.mxu0 0.0
      %5024 = vmatpush1.msra.mxu0 0.0
      %5025 = vmatprep.subr.mxu0 0.0
      %5026 = vmatpush1.msra.mxu0 0.0
      %5027 = vmatprep.subr.mxu0 0.0
      %5028 = vmatpush1.msra.mxu0 0.0
      %5029 = vmatprep.subr.mxu0 0.0
      %5030 = vmatpush1.msra.mxu0 0.0
      %5031 = vmatprep.subr.mxu0 0.0
      %5032 = vmatpush1.msra.mxu0 0.0
      %5033 = vmatprep.subr.mxu0 0.0
      %5034 = vmatpush1.msra.mxu0 0.0
      %5035 = vmatprep.subr.mxu0 0.0
      %5036 = vmatpush1.msra.mxu0 0.0
      %5037 = vmatprep.subr.mxu0 0.0
      %5038 = vmatpush1.msra.mxu0 0.0
      %5039 = vmatprep.subr.mxu0 0.0
      %5040 = vmatpush1.msra.mxu0 0.0
      %5041 = vmatprep.subr.mxu0 0.0
      %5042 = vmatpush1.msra.mxu0 0.0
      %5043 = vmatprep.subr.mxu0 0.0
      %5044 = vmatpush1.msra.mxu0 0.0
      %5045 = vmatprep.subr.mxu0 0.0
      %5046 = vmatpush1.msra.mxu0 0.0
      %5047 = vmatprep.subr.mxu0 0.0
      %5048 = vmatpush1.msra.mxu0 0.0
      %5049 = vmatprep.subr.mxu0 0.0
      %5050 = vmatpush1.msra.mxu0 0.0
      %5051 = vmatprep.subr.mxu0 0.0
      %5052 = vmatpush1.msra.mxu0 0.0
      %5053 = vmatprep.subr.mxu0 0.0
      %5054 = vmatpush1.msra.mxu0 0.0
      %5055 = vmatprep.subr.mxu0 0.0
      %5056 = vmatpush1.msra.mxu0 0.0
      %5057 = vmatprep.subr.mxu0 0.0
      %5058 = vmatpush1.msra.mxu0 0.0
      %5059 = vmatprep.subr.mxu0 0.0
      %5060 = vmatpush1.msra.mxu0 0.0
      %5061 = vmatprep.subr.mxu0 0.0
      %5062 = vmatpush1.msra.mxu0 0.0
      %5063 = vmatprep.subr.mxu0 0.0
      %5064 = vmatpush1.msra.mxu0 0.0
      %5065 = vmatprep.subr.mxu0 0.0
      %5066 = vmatpush1.msra.mxu0 0.0
      %5067 = vmatprep.subr.mxu0 0.0
      %5068 = vmatpush1.msra.mxu0 0.0
      %5069 = vmatprep.subr.mxu0 0.0
      %5070 = vmatpush1.msra.mxu0 0.0
      %5071 = vmatprep.subr.mxu0 0.0
      %5072 = vmatpush1.msra.mxu0 0.0
      %5073 = vmatprep.subr.mxu0 0.0
      %5074 = vmatpush1.msra.mxu0 0.0
      %5075 = vmatprep.mubr.f32.mxu0 0.0
      %5076 = vmatmul.mubr.f32.gmra.mrb[0].mxu0 %v5003
      %v5077 = vpop.f32.mrb[0].mxu0
      %v5078 = vadd.f32 0.0, %v5077
      %v5079 = vpop.f32.mrb[0].mxu0
      %5080 = vmatprep.mubr.f32.mxu0 0.0
      %5081 = vmatmul.mubr.f32.gmra.mrb[0].mxu0 %v5006
      %v5082 = vpop.f32.mrb[0].mxu0
      %v5083 = vadd.f32 0.0, %v5082
      %v5084 = vpop.f32.mrb[0].mxu0
      %5085 = vdwg.mxu0
      %v5086 = vadd.f32 %v4995, %v5078
      %v5087 = vadd.f32 %v4996, %v5083
      %s5088 = sadd.s32 %s4455, 37
      %s5089 = scalar_lea.vmem %s234, %s5088
      %v5090 = vld [vmem:[%s5089] sm:$0xff]
      %v5091 = vld [vmem:[%s5089 + $0x8] sm:$0xff]
      %v5092 = vld [vmem:[%s906] sm:$0xf]
      %v5094 = vsel %vm272, %v5090, 0
      %v5097 = vsel %vm272, %v5091, 0
      %v5100 = vsel %vm279, %v5092, 0
      %5102 = vmatprep.subr.mxu0 0.0
      %5103 = vmatpush1.msra.mxu0 %v5100
      %5104 = vmatprep.subr.mxu0 0.0
      %5105 = vmatpush1.msra.mxu0 0.0
      %5106 = vmatprep.subr.mxu0 0.0
      %5107 = vmatpush1.msra.mxu0 0.0
      %5108 = vmatprep.subr.mxu0 0.0
      %5109 = vmatpush1.msra.mxu0 0.0
      %5110 = vmatprep.subr.mxu0 0.0
      %5111 = vmatpush1.msra.mxu0 0.0
      %5112 = vmatprep.subr.mxu0 0.0
      %5113 = vmatpush1.msra.mxu0 0.0
      %5114 = vmatprep.subr.mxu0 0.0
      %5115 = vmatpush1.msra.mxu0 0.0
      %5116 = vmatprep.subr.mxu0 0.0
      %5117 = vmatpush1.msra.mxu0 0.0
      %5118 = vmatprep.subr.mxu0 0.0
      %5119 = vmatpush1.msra.mxu0 0.0
      %5120 = vmatprep.subr.mxu0 0.0
      %5121 = vmatpush1.msra.mxu0 0.0
      %5122 = vmatprep.subr.mxu0 0.0
      %5123 = vmatpush1.msra.mxu0 0.0
      %5124 = vmatprep.subr.mxu0 0.0
      %5125 = vmatpush1.msra.mxu0 0.0
      %5126 = vmatprep.subr.mxu0 0.0
      %5127 = vmatpush1.msra.mxu0 0.0
      %5128 = vmatprep.subr.mxu0 0.0
      %5129 = vmatpush1.msra.mxu0 0.0
      %5130 = vmatprep.subr.mxu0 0.0
      %5131 = vmatpush1.msra.mxu0 0.0
      %5132 = vmatprep.subr.mxu0 0.0
      %5133 = vmatpush1.msra.mxu0 0.0
      %5134 = vmatprep.subr.mxu0 0.0
      %5135 = vmatpush1.msra.mxu0 0.0
      %5136 = vmatprep.subr.mxu0 0.0
      %5137 = vmatpush1.msra.mxu0 0.0
      %5138 = vmatprep.subr.mxu0 0.0
      %5139 = vmatpush1.msra.mxu0 0.0
      %5140 = vmatprep.subr.mxu0 0.0
      %5141 = vmatpush1.msra.mxu0 0.0
      %5142 = vmatprep.subr.mxu0 0.0
      %5143 = vmatpush1.msra.mxu0 0.0
      %5144 = vmatprep.subr.mxu0 0.0
      %5145 = vmatpush1.msra.mxu0 0.0
      %5146 = vmatprep.subr.mxu0 0.0
      %5147 = vmatpush1.msra.mxu0 0.0
      %5148 = vmatprep.subr.mxu0 0.0
      %5149 = vmatpush1.msra.mxu0 0.0
      %5150 = vmatprep.subr.mxu0 0.0
      %5151 = vmatpush1.msra.mxu0 0.0
      %5152 = vmatprep.subr.mxu0 0.0
      %5153 = vmatpush1.msra.mxu0 0.0
      %5154 = vmatprep.subr.mxu0 0.0
      %5155 = vmatpush1.msra.mxu0 0.0
      %5156 = vmatprep.subr.mxu0 0.0
      %5157 = vmatpush1.msra.mxu0 0.0
      %5158 = vmatprep.subr.mxu0 0.0
      %5159 = vmatpush1.msra.mxu0 0.0
      %5160 = vmatprep.subr.mxu0 0.0
      %5161 = vmatpush1.msra.mxu0 0.0
      %5162 = vmatprep.subr.mxu0 0.0
      %5163 = vmatpush1.msra.mxu0 0.0
      %5164 = vmatprep.subr.mxu0 0.0
      %5165 = vmatpush1.msra.mxu0 0.0
      %5166 = vmatprep.mubr.f32.mxu0 0.0
      %5167 = vmatmul.mubr.f32.gmra.mrb[0].mxu0 %v5094
      %v5168 = vpop.f32.mrb[0].mxu0
      %v5169 = vadd.f32 0.0, %v5168
      %v5170 = vpop.f32.mrb[0].mxu0
      %5171 = vmatprep.mubr.f32.mxu0 0.0
      %5172 = vmatmul.mubr.f32.gmra.mrb[0].mxu0 %v5097
      %v5173 = vpop.f32.mrb[0].mxu0
      %v5174 = vadd.f32 0.0, %v5173
      %v5175 = vpop.f32.mrb[0].mxu0
      %5176 = vdwg.mxu0
      %v5177 = vadd.f32 %v5086, %v5169
      %v5178 = vadd.f32 %v5087, %v5174
      %s5179 = sadd.s32 %s4455, 38
      %s5180 = scalar_lea.vmem %s234, %s5179
      %v5181 = vld [vmem:[%s5180] sm:$0xff]
      %v5182 = vld [vmem:[%s5180 + $0x8] sm:$0xff]
      %v5183 = vld [vmem:[%s998] sm:$0xf]
      %v5185 = vsel %vm272, %v5181, 0
      %v5188 = vsel %vm272, %v5182, 0
      %v5191 = vsel %vm279, %v5183, 0
      %5193 = vmatprep.subr.mxu0 0.0
      %5194 = vmatpush1.msra.mxu0 %v5191
      %5195 = vmatprep.subr.mxu0 0.0
      %5196 = vmatpush1.msra.mxu0 0.0
      %5197 = vmatprep.subr.mxu0 0.0
      %5198 = vmatpush1.msra.mxu0 0.0
      %5199 = vmatprep.subr.mxu0 0.0
      %5200 = vmatpush1.msra.mxu0 0.0
      %5201 = vmatprep.subr.mxu0 0.0
      %5202 = vmatpush1.msra.mxu0 0.0
      %5203 = vmatprep.subr.mxu0 0.0
      %5204 = vmatpush1.msra.mxu0 0.0
      %5205 = vmatprep.subr.mxu0 0.0
      %5206 = vmatpush1.msra.mxu0 0.0
      %5207 = vmatprep.subr.mxu0 0.0
      %5208 = vmatpush1.msra.mxu0 0.0
      %5209 = vmatprep.subr.mxu0 0.0
      %5210 = vmatpush1.msra.mxu0 0.0
      %5211 = vmatprep.subr.mxu0 0.0
      %5212 = vmatpush1.msra.mxu0 0.0
      %5213 = vmatprep.subr.mxu0 0.0
      %5214 = vmatpush1.msra.mxu0 0.0
      %5215 = vmatprep.subr.mxu0 0.0
      %5216 = vmatpush1.msra.mxu0 0.0
      %5217 = vmatprep.subr.mxu0 0.0
      %5218 = vmatpush1.msra.mxu0 0.0
      %5219 = vmatprep.subr.mxu0 0.0
      %5220 = vmatpush1.msra.mxu0 0.0
      %5221 = vmatprep.subr.mxu0 0.0
      %5222 = vmatpush1.msra.mxu0 0.0
      %5223 = vmatprep.subr.mxu0 0.0
      %5224 = vmatpush1.msra.mxu0 0.0
      %5225 = vmatprep.subr.mxu0 0.0
      %5226 = vmatpush1.msra.mxu0 0.0
      %5227 = vmatprep.subr.mxu0 0.0
      %5228 = vmatpush1.msra.mxu0 0.0
      %5229 = vmatprep.subr.mxu0 0.0
      %5230 = vmatpush1.msra.mxu0 0.0
      %5231 = vmatprep.subr.mxu0 0.0
      %5232 = vmatpush1.msra.mxu0 0.0
      %5233 = vmatprep.subr.mxu0 0.0
      %5234 = vmatpush1.msra.mxu0 0.0
      %5235 = vmatprep.subr.mxu0 0.0
      %5236 = vmatpush1.msra.mxu0 0.0
      %5237 = vmatprep.subr.mxu0 0.0
      %5238 = vmatpush1.msra.mxu0 0.0
      %5239 = vmatprep.subr.mxu0 0.0
      %5240 = vmatpush1.msra.mxu0 0.0
      %5241 = vmatprep.subr.mxu0 0.0
      %5242 = vmatpush1.msra.mxu0 0.0
      %5243 = vmatprep.subr.mxu0 0.0
      %5244 = vmatpush1.msra.mxu0 0.0
      %5245 = vmatprep.subr.mxu0 0.0
      %5246 = vmatpush1.msra.mxu0 0.0
      %5247 = vmatprep.subr.mxu0 0.0
      %5248 = vmatpush1.msra.mxu0 0.0
      %5249 = vmatprep.subr.mxu0 0.0
      %5250 = vmatpush1.msra.mxu0 0.0
      %5251 = vmatprep.subr.mxu0 0.0
      %5252 = vmatpush1.msra.mxu0 0.0
      %5253 = vmatprep.subr.mxu0 0.0
      %5254 = vmatpush1.msra.mxu0 0.0
      %5255 = vmatprep.subr.mxu0 0.0
      %5256 = vmatpush1.msra.mxu0 0.0
      %5257 = vmatprep.mubr.f32.mxu0 0.0
      %5258 = vmatmul.mubr.f32.gmra.mrb[0].mxu0 %v5185
      %v5259 = vpop.f32.mrb[0].mxu0
      %v5260 = vadd.f32 0.0, %v5259
      %v5261 = vpop.f32.mrb[0].mxu0
      %5262 = vmatprep.mubr.f32.mxu0 0.0
      %5263 = vmatmul.mubr.f32.gmra.mrb[0].mxu0 %v5188
      %v5264 = vpop.f32.mrb[0].mxu0
      %v5265 = vadd.f32 0.0, %v5264
      %v5266 = vpop.f32.mrb[0].mxu0
      %5267 = vdwg.mxu0
      %v5268 = vadd.f32 %v5177, %v5260
      %v5269 = vadd.f32 %v5178, %v5265
      %s5270 = scalar_lea.vmem %s244, 80
      %5271 = vst [vmem:[%s5270] sm:$0xff] %v5268
      %5272 = vst [vmem:[%s5270 + $0x8] sm:$0xff] %v5269
      %v5273 = vadd.f32 %v5268, %v5269
      %v5274 = vrot.slane %v5273, 4
      %v5275 = vadd.f32 %v5273, %v5274
      %v5276 = vrot.slane %v5275, 2
      %v5277 = vadd.f32 %v5275, %v5276
      %v5278 = vrot.slane %v5277, 1
      %v5279 = vadd.f32 %v5277, %v5278
      %v5280 = vadd.f32 %v4443, %v5279
      %v5281 = vmul.f32 %v5268, %v5268
      %v5282 = vmul.f32 %v5269, %v5269
      %v5283 = vadd.f32 %v5281, %v5282
      %v5284 = vrot.slane %v5283, 4
      %v5285 = vadd.f32 %v5283, %v5284
      %v5286 = vrot.slane %v5285, 2
      %v5287 = vadd.f32 %v5285, %v5286
      %v5288 = vrot.slane %v5287, 1
      %v5289 = vadd.f32 %v5287, %v5288
      %v5290 = vadd.f32 %v4453, %v5289
      %s5291 = sadd.s32 %s260, 6
      %s5292 = smul.u32 %s5291, 18
      %s5293 = scalar_lea.vmem %s234, %s5292
      %v5294 = vld [vmem:[%s5293] sm:$0xff]
      %v5295 = vld [vmem:[%s5293 + $0x8] sm:$0xff]
      %v5296 = vld [vmem:[%s1] sm:$0xf]
      %s5297 = sadd.s32 %s5292, 1
      %s5298 = scalar_lea.vmem %s234, %s5297
      %v5299 = vld [vmem:[%s5298] sm:$0xff]
      %v5300 = vld [vmem:[%s5298 + $0x8] sm:$0xff]
      %v5301 = vld [vmem:[%s270] sm:$0xf]
      %v5303 = vsel %vm272, %v5299, 0
      %v5306 = vsel %vm272, %v5300, 0
      %v5309 = vsel %vm279, %v5301, 0
      %5311 = vmatprep.subr.mxu0 0.0
      %5312 = vmatpush1.msra.mxu0 %v5309
      %5313 = vmatprep.subr.mxu0 0.0
      %5314 = vmatpush1.msra.mxu0 0.0
      %5315 = vmatprep.subr.mxu0 0.0
      %5316 = vmatpush1.msra.mxu0 0.0
      %5317 = vmatprep.subr.mxu0 0.0
      %5318 = vmatpush1.msra.mxu0 0.0
      %5319 = vmatprep.subr.mxu0 0.0
      %5320 = vmatpush1.msra.mxu0 0.0
      %5321 = vmatprep.subr.mxu0 0.0
      %5322 = vmatpush1.msra.mxu0 0.0
      %5323 = vmatprep.subr.mxu0 0.0
      %5324 = vmatpush1.msra.mxu0 0.0
      %5325 = vmatprep.subr.mxu0 0.0
      %5326 = vmatpush1.msra.mxu0 0.0
      %5327 = vmatprep.subr.mxu0 0.0
      %5328 = vmatpush1.msra.mxu0 0.0
      %5329 = vmatprep.subr.mxu0 0.0
      %5330 = vmatpush1.msra.mxu0 0.0
      %5331 = vmatprep.subr.mxu0 0.0
      %5332 = vmatpush1.msra.mxu0 0.0
      %5333 = vmatprep.subr.mxu0 0.0
      %5334 = vmatpush1.msra.mxu0 0.0
      %5335 = vmatprep.subr.mxu0 0.0
      %5336 = vmatpush1.msra.mxu0 0.0
      %5337 = vmatprep.subr.mxu0 0.0
      %5338 = vmatpush1.msra.mxu0 0.0
      %5339 = vmatprep.subr.mxu0 0.0
      %5340 = vmatpush1.msra.mxu0 0.0
      %5341 = vmatprep.subr.mxu0 0.0
      %5342 = vmatpush1.msra.mxu0 0.0
      %5343 = vmatprep.subr.mxu0 0.0
      %5344 = vmatpush1.msra.mxu0 0.0
      %5345 = vmatprep.subr.mxu0 0.0
      %5346 = vmatpush1.msra.mxu0 0.0
      %5347 = vmatprep.subr.mxu0 0.0
      %5348 = vmatpush1.msra.mxu0 0.0
      %5349 = vmatprep.subr.mxu0 0.0
      %5350 = vmatpush1.msra.mxu0 0.0
      %5351 = vmatprep.subr.mxu0 0.0
      %5352 = vmatpush1.msra.mxu0 0.0
      %5353 = vmatprep.subr.mxu0 0.0
      %5354 = vmatpush1.msra.mxu0 0.0
      %5355 = vmatprep.subr.mxu0 0.0
      %5356 = vmatpush1.msra.mxu0 0.0
      %5357 = vmatprep.subr.mxu0 0.0
      %5358 = vmatpush1.msra.mxu0 0.0
      %5359 = vmatprep.subr.mxu0 0.0
      %5360 = vmatpush1.msra.mxu0 0.0
      %5361 = vmatprep.subr.mxu0 0.0
      %5362 = vmatpush1.msra.mxu0 0.0
      %5363 = vmatprep.subr.mxu0 0.0
      %5364 = vmatpush1.msra.mxu0 0.0
      %5365 = vmatprep.subr.mxu0 0.0
      %5366 = vmatpush1.msra.mxu0 0.0
      %5367 = vmatprep.subr.mxu0 0.0
      %5368 = vmatpush1.msra.mxu0 0.0
      %5369 = vmatprep.subr.mxu0 0.0
      %5370 = vmatpush1.msra.mxu0 0.0
      %5371 = vmatprep.subr.mxu0 0.0
      %5372 = vmatpush1.msra.mxu0 0.0
      %5373 = vmatprep.subr.mxu0 0.0
      %5374 = vmatpush1.msra.mxu0 0.0
      %5375 = vmatprep.mubr.f32.mxu0 0.0
      %5376 = vmatmul.mubr.f32.gmra.mrb[0].mxu0 %v5303
      %v5377 = vpop.f32.mrb[0].mxu0
      %v5378 = vadd.f32 0.0, %v5377
      %v5379 = vpop.f32.mrb[0].mxu0
      %5380 = vmatprep.mubr.f32.mxu0 0.0
      %5381 = vmatmul.mubr.f32.gmra.mrb[0].mxu0 %v5306
      %v5382 = vpop.f32.mrb[0].mxu0
      %v5383 = vadd.f32 0.0, %v5382
      %v5384 = vpop.f32.mrb[0].mxu0
      %5385 = vdwg.mxu0
      %v5387 = vsel %vm272, %v5294, 0
      %v5390 = vsel %vm272, %v5295, 0
      %v5393 = vsel %vm279, %v5296, 0
      %5395 = vmatprep.subr.mxu0 0.0
      %5396 = vmatpush1.msra.mxu0 %v5393
      %5397 = vmatprep.subr.mxu0 0.0
      %5398 = vmatpush1.msra.mxu0 0.0
      %5399 = vmatprep.subr.mxu0 0.0
      %5400 = vmatpush1.msra.mxu0 0.0
      %5401 = vmatprep.subr.mxu0 0.0
      %5402 = vmatpush1.msra.mxu0 0.0
      %5403 = vmatprep.subr.mxu0 0.0
      %5404 = vmatpush1.msra.mxu0 0.0
      %5405 = vmatprep.subr.mxu0 0.0
      %5406 = vmatpush1.msra.mxu0 0.0
      %5407 = vmatprep.subr.mxu0 0.0
      %5408 = vmatpush1.msra.mxu0 0.0
      %5409 = vmatprep.subr.mxu0 0.0
      %5410 = vmatpush1.msra.mxu0 0.0
      %5411 = vmatprep.subr.mxu0 0.0
      %5412 = vmatpush1.msra.mxu0 0.0
      %5413 = vmatprep.subr.mxu0 0.0
      %5414 = vmatpush1.msra.mxu0 0.0
      %5415 = vmatprep.subr.mxu0 0.0
      %5416 = vmatpush1.msra.mxu0 0.0
      %5417 = vmatprep.subr.mxu0 0.0
      %5418 = vmatpush1.msra.mxu0 0.0
      %5419 = vmatprep.subr.mxu0 0.0
      %5420 = vmatpush1.msra.mxu0 0.0
      %5421 = vmatprep.subr.mxu0 0.0
      %5422 = vmatpush1.msra.mxu0 0.0
      %5423 = vmatprep.subr.mxu0 0.0
      %5424 = vmatpush1.msra.mxu0 0.0
      %5425 = vmatprep.subr.mxu0 0.0
      %5426 = vmatpush1.msra.mxu0 0.0
      %5427 = vmatprep.subr.mxu0 0.0
      %5428 = vmatpush1.msra.mxu0 0.0
      %5429 = vmatprep.subr.mxu0 0.0
      %5430 = vmatpush1.msra.mxu0 0.0
      %5431 = vmatprep.subr.mxu0 0.0
      %5432 = vmatpush1.msra.mxu0 0.0
      %5433 = vmatprep.subr.mxu0 0.0
      %5434 = vmatpush1.msra.mxu0 0.0
      %5435 = vmatprep.subr.mxu0 0.0
      %5436 = vmatpush1.msra.mxu0 0.0
      %5437 = vmatprep.subr.mxu0 0.0
      %5438 = vmatpush1.msra.mxu0 0.0
      %5439 = vmatprep.subr.mxu0 0.0
      %5440 = vmatpush1.msra.mxu0 0.0
      %5441 = vmatprep.subr.mxu0 0.0
      %5442 = vmatpush1.msra.mxu0 0.0
      %5443 = vmatprep.subr.mxu0 0.0
      %5444 = vmatpush1.msra.mxu0 0.0
      %5445 = vmatprep.subr.mxu0 0.0
      %5446 = vmatpush1.msra.mxu0 0.0
      %5447 = vmatprep.subr.mxu0 0.0
      %5448 = vmatpush1.msra.mxu0 0.0
      %5449 = vmatprep.subr.mxu0 0.0
      %5450 = vmatpush1.msra.mxu0 0.0
      %5451 = vmatprep.subr.mxu0 0.0
      %5452 = vmatpush1.msra.mxu0 0.0
      %5453 = vmatprep.subr.mxu0 0.0
      %5454 = vmatpush1.msra.mxu0 0.0
      %5455 = vmatprep.subr.mxu0 0.0
      %5456 = vmatpush1.msra.mxu0 0.0
      %5457 = vmatprep.subr.mxu0 0.0
      %5458 = vmatpush1.msra.mxu0 0.0
      %5459 = vmatprep.mubr.f32.mxu0 0.0
      %5460 = vmatmul.mubr.f32.gmra.mrb[0].mxu0 %v5387
      %v5461 = vpop.f32.mrb[0].mxu0
      %v5462 = vadd.f32 %v5378, %v5461
      %v5463 = vpop.f32.mrb[0].mxu0
      %5464 = vmatprep.mubr.f32.mxu0 0.0
      %5465 = vmatmul.mubr.f32.gmra.mrb[0].mxu0 %v5390
      %v5466 = vpop.f32.mrb[0].mxu0
      %v5467 = vadd.f32 %v5383, %v5466
      %v5468 = vpop.f32.mrb[0].mxu0
      %5469 = vdwg.mxu0
      %s5470 = sadd.s32 %s5292, 2
      %s5471 = scalar_lea.vmem %s234, %s5470
      %v5472 = vld [vmem:[%s5471] sm:$0xff]
      %v5473 = vld [vmem:[%s5471 + $0x8] sm:$0xff]
      %v5474 = vld [vmem:[%s446] sm:$0xf]
      %v5476 = vsel %vm272, %v5472, 0
      %v5479 = vsel %vm272, %v5473, 0
      %v5482 = vsel %vm279, %v5474, 0
      %5484 = vmatprep.subr.mxu0 0.0
      %5485 = vmatpush1.msra.mxu0 %v5482
      %5486 = vmatprep.subr.mxu0 0.0
      %5487 = vmatpush1.msra.mxu0 0.0
      %5488 = vmatprep.subr.mxu0 0.0
      %5489 = vmatpush1.msra.mxu0 0.0
      %5490 = vmatprep.subr.mxu0 0.0
      %5491 = vmatpush1.msra.mxu0 0.0
      %5492 = vmatprep.subr.mxu0 0.0
      %5493 = vmatpush1.msra.mxu0 0.0
      %5494 = vmatprep.subr.mxu0 0.0
      %5495 = vmatpush1.msra.mxu0 0.0
      %5496 = vmatprep.subr.mxu0 0.0
      %5497 = vmatpush1.msra.mxu0 0.0
      %5498 = vmatprep.subr.mxu0 0.0
      %5499 = vmatpush1.msra.mxu0 0.0
      %5500 = vmatprep.subr.mxu0 0.0
      %5501 = vmatpush1.msra.mxu0 0.0
      %5502 = vmatprep.subr.mxu0 0.0
      %5503 = vmatpush1.msra.mxu0 0.0
      %5504 = vmatprep.subr.mxu0 0.0
      %5505 = vmatpush1.msra.mxu0 0.0
      %5506 = vmatprep.subr.mxu0 0.0
      %5507 = vmatpush1.msra.mxu0 0.0
      %5508 = vmatprep.subr.mxu0 0.0
      %5509 = vmatpush1.msra.mxu0 0.0
      %5510 = vmatprep.subr.mxu0 0.0
      %5511 = vmatpush1.msra.mxu0 0.0
      %5512 = vmatprep.subr.mxu0 0.0
      %5513 = vmatpush1.msra.mxu0 0.0
      %5514 = vmatprep.subr.mxu0 0.0
      %5515 = vmatpush1.msra.mxu0 0.0
      %5516 = vmatprep.subr.mxu0 0.0
      %5517 = vmatpush1.msra.mxu0 0.0
      %5518 = vmatprep.subr.mxu0 0.0
      %5519 = vmatpush1.msra.mxu0 0.0
      %5520 = vmatprep.subr.mxu0 0.0
      %5521 = vmatpush1.msra.mxu0 0.0
      %5522 = vmatprep.subr.mxu0 0.0
      %5523 = vmatpush1.msra.mxu0 0.0
      %5524 = vmatprep.subr.mxu0 0.0
      %5525 = vmatpush1.msra.mxu0 0.0
      %5526 = vmatprep.subr.mxu0 0.0
      %5527 = vmatpush1.msra.mxu0 0.0
      %5528 = vmatprep.subr.mxu0 0.0
      %5529 = vmatpush1.msra.mxu0 0.0
      %5530 = vmatprep.subr.mxu0 0.0
      %5531 = vmatpush1.msra.mxu0 0.0
      %5532 = vmatprep.subr.mxu0 0.0
      %5533 = vmatpush1.msra.mxu0 0.0
      %5534 = vmatprep.subr.mxu0 0.0
      %5535 = vmatpush1.msra.mxu0 0.0
      %5536 = vmatprep.subr.mxu0 0.0
      %5537 = vmatpush1.msra.mxu0 0.0
      %5538 = vmatprep.subr.mxu0 0.0
      %5539 = vmatpush1.msra.mxu0 0.0
      %5540 = vmatprep.subr.mxu0 0.0
      %5541 = vmatpush1.msra.mxu0 0.0
      %5542 = vmatprep.subr.mxu0 0.0
      %5543 = vmatpush1.msra.mxu0 0.0
      %5544 = vmatprep.subr.mxu0 0.0
      %5545 = vmatpush1.msra.mxu0 0.0
      %5546 = vmatprep.subr.mxu0 0.0
      %5547 = vmatpush1.msra.mxu0 0.0
      %5548 = vmatprep.mubr.f32.mxu0 0.0
      %5549 = vmatmul.mubr.f32.gmra.mrb[0].mxu0 %v5476
      %v5550 = vpop.f32.mrb[0].mxu0
      %v5551 = vadd.f32 0.0, %v5550
      %v5552 = vpop.f32.mrb[0].mxu0
      %5553 = vmatprep.mubr.f32.mxu0 0.0
      %5554 = vmatmul.mubr.f32.gmra.mrb[0].mxu0 %v5479
      %v5555 = vpop.f32.mrb[0].mxu0
      %v5556 = vadd.f32 0.0, %v5555
      %v5557 = vpop.f32.mrb[0].mxu0
      %5558 = vdwg.mxu0
      %v5559 = vadd.f32 %v5462, %v5551
      %v5560 = vadd.f32 %v5467, %v5556
      %s5561 = sadd.s32 %s5292, 18
      %s5562 = scalar_lea.vmem %s234, %s5561
      %v5563 = vld [vmem:[%s5562] sm:$0xff]
      %v5564 = vld [vmem:[%s5562 + $0x8] sm:$0xff]
      %v5565 = vld [vmem:[%s538] sm:$0xf]
      %v5567 = vsel %vm272, %v5563, 0
      %v5570 = vsel %vm272, %v5564, 0
      %v5573 = vsel %vm279, %v5565, 0
      %5575 = vmatprep.subr.mxu0 0.0
      %5576 = vmatpush1.msra.mxu0 %v5573
      %5577 = vmatprep.subr.mxu0 0.0
      %5578 = vmatpush1.msra.mxu0 0.0
      %5579 = vmatprep.subr.mxu0 0.0
      %5580 = vmatpush1.msra.mxu0 0.0
      %5581 = vmatprep.subr.mxu0 0.0
      %5582 = vmatpush1.msra.mxu0 0.0
      %5583 = vmatprep.subr.mxu0 0.0
      %5584 = vmatpush1.msra.mxu0 0.0
      %5585 = vmatprep.subr.mxu0 0.0
      %5586 = vmatpush1.msra.mxu0 0.0
      %5587 = vmatprep.subr.mxu0 0.0
      %5588 = vmatpush1.msra.mxu0 0.0
      %5589 = vmatprep.subr.mxu0 0.0
      %5590 = vmatpush1.msra.mxu0 0.0
      %5591 = vmatprep.subr.mxu0 0.0
      %5592 = vmatpush1.msra.mxu0 0.0
      %5593 = vmatprep.subr.mxu0 0.0
      %5594 = vmatpush1.msra.mxu0 0.0
      %5595 = vmatprep.subr.mxu0 0.0
      %5596 = vmatpush1.msra.mxu0 0.0
      %5597 = vmatprep.subr.mxu0 0.0
      %5598 = vmatpush1.msra.mxu0 0.0
      %5599 = vmatprep.subr.mxu0 0.0
      %5600 = vmatpush1.msra.mxu0 0.0
      %5601 = vmatprep.subr.mxu0 0.0
      %5602 = vmatpush1.msra.mxu0 0.0
      %5603 = vmatprep.subr.mxu0 0.0
      %5604 = vmatpush1.msra.mxu0 0.0
      %5605 = vmatprep.subr.mxu0 0.0
      %5606 = vmatpush1.msra.mxu0 0.0
      %5607 = vmatprep.subr.mxu0 0.0
      %5608 = vmatpush1.msra.mxu0 0.0
      %5609 = vmatprep.subr.mxu0 0.0
      %5610 = vmatpush1.msra.mxu0 0.0
      %5611 = vmatprep.subr.mxu0 0.0
      %5612 = vmatpush1.msra.mxu0 0.0
      %5613 = vmatprep.subr.mxu0 0.0
      %5614 = vmatpush1.msra.mxu0 0.0
      %5615 = vmatprep.subr.mxu0 0.0
      %5616 = vmatpush1.msra.mxu0 0.0
      %5617 = vmatprep.subr.mxu0 0.0
      %5618 = vmatpush1.msra.mxu0 0.0
      %5619 = vmatprep.subr.mxu0 0.0
      %5620 = vmatpush1.msra.mxu0 0.0
      %5621 = vmatprep.subr.mxu0 0.0
      %5622 = vmatpush1.msra.mxu0 0.0
      %5623 = vmatprep.subr.mxu0 0.0
      %5624 = vmatpush1.msra.mxu0 0.0
      %5625 = vmatprep.subr.mxu0 0.0
      %5626 = vmatpush1.msra.mxu0 0.0
      %5627 = vmatprep.subr.mxu0 0.0
      %5628 = vmatpush1.msra.mxu0 0.0
      %5629 = vmatprep.subr.mxu0 0.0
      %5630 = vmatpush1.msra.mxu0 0.0
      %5631 = vmatprep.subr.mxu0 0.0
      %5632 = vmatpush1.msra.mxu0 0.0
      %5633 = vmatprep.subr.mxu0 0.0
      %5634 = vmatpush1.msra.mxu0 0.0
      %5635 = vmatprep.subr.mxu0 0.0
      %5636 = vmatpush1.msra.mxu0 0.0
      %5637 = vmatprep.subr.mxu0 0.0
      %5638 = vmatpush1.msra.mxu0 0.0
      %5639 = vmatprep.mubr.f32.mxu0 0.0
      %5640 = vmatmul.mubr.f32.gmra.mrb[0].mxu0 %v5567
      %v5641 = vpop.f32.mrb[0].mxu0
      %v5642 = vadd.f32 0.0, %v5641
      %v5643 = vpop.f32.mrb[0].mxu0
      %5644 = vmatprep.mubr.f32.mxu0 0.0
      %5645 = vmatmul.mubr.f32.gmra.mrb[0].mxu0 %v5570
      %v5646 = vpop.f32.mrb[0].mxu0
      %v5647 = vadd.f32 0.0, %v5646
      %v5648 = vpop.f32.mrb[0].mxu0
      %5649 = vdwg.mxu0
      %v5650 = vadd.f32 %v5559, %v5642
      %v5651 = vadd.f32 %v5560, %v5647
      %s5652 = sadd.s32 %s5292, 19
      %s5653 = scalar_lea.vmem %s234, %s5652
      %v5654 = vld [vmem:[%s5653] sm:$0xff]
      %v5655 = vld [vmem:[%s5653 + $0x8] sm:$0xff]
      %v5656 = vld [vmem:[%s630] sm:$0xf]
      %v5658 = vsel %vm272, %v5654, 0
      %v5661 = vsel %vm272, %v5655, 0
      %v5664 = vsel %vm279, %v5656, 0
      %5666 = vmatprep.subr.mxu0 0.0
      %5667 = vmatpush1.msra.mxu0 %v5664
      %5668 = vmatprep.subr.mxu0 0.0
      %5669 = vmatpush1.msra.mxu0 0.0
      %5670 = vmatprep.subr.mxu0 0.0
      %5671 = vmatpush1.msra.mxu0 0.0
      %5672 = vmatprep.subr.mxu0 0.0
      %5673 = vmatpush1.msra.mxu0 0.0
      %5674 = vmatprep.subr.mxu0 0.0
      %5675 = vmatpush1.msra.mxu0 0.0
      %5676 = vmatprep.subr.mxu0 0.0
      %5677 = vmatpush1.msra.mxu0 0.0
      %5678 = vmatprep.subr.mxu0 0.0
      %5679 = vmatpush1.msra.mxu0 0.0
      %5680 = vmatprep.subr.mxu0 0.0
      %5681 = vmatpush1.msra.mxu0 0.0
      %5682 = vmatprep.subr.mxu0 0.0
      %5683 = vmatpush1.msra.mxu0 0.0
      %5684 = vmatprep.subr.mxu0 0.0
      %5685 = vmatpush1.msra.mxu0 0.0
      %5686 = vmatprep.subr.mxu0 0.0
      %5687 = vmatpush1.msra.mxu0 0.0
      %5688 = vmatprep.subr.mxu0 0.0
      %5689 = vmatpush1.msra.mxu0 0.0
      %5690 = vmatprep.subr.mxu0 0.0
      %5691 = vmatpush1.msra.mxu0 0.0
      %5692 = vmatprep.subr.mxu0 0.0
      %5693 = vmatpush1.msra.mxu0 0.0
      %5694 = vmatprep.subr.mxu0 0.0
      %5695 = vmatpush1.msra.mxu0 0.0
      %5696 = vmatprep.subr.mxu0 0.0
      %5697 = vmatpush1.msra.mxu0 0.0
      %5698 = vmatprep.subr.mxu0 0.0
      %5699 = vmatpush1.msra.mxu0 0.0
      %5700 = vmatprep.subr.mxu0 0.0
      %5701 = vmatpush1.msra.mxu0 0.0
      %5702 = vmatprep.subr.mxu0 0.0
      %5703 = vmatpush1.msra.mxu0 0.0
      %5704 = vmatprep.subr.mxu0 0.0
      %5705 = vmatpush1.msra.mxu0 0.0
      %5706 = vmatprep.subr.mxu0 0.0
      %5707 = vmatpush1.msra.mxu0 0.0
      %5708 = vmatprep.subr.mxu0 0.0
      %5709 = vmatpush1.msra.mxu0 0.0
      %5710 = vmatprep.subr.mxu0 0.0
      %5711 = vmatpush1.msra.mxu0 0.0
      %5712 = vmatprep.subr.mxu0 0.0
      %5713 = vmatpush1.msra.mxu0 0.0
      %5714 = vmatprep.subr.mxu0 0.0
      %5715 = vmatpush1.msra.mxu0 0.0
      %5716 = vmatprep.subr.mxu0 0.0
      %5717 = vmatpush1.msra.mxu0 0.0
      %5718 = vmatprep.subr.mxu0 0.0
      %5719 = vmatpush1.msra.mxu0 0.0
      %5720 = vmatprep.subr.mxu0 0.0
      %5721 = vmatpush1.msra.mxu0 0.0
      %5722 = vmatprep.subr.mxu0 0.0
      %5723 = vmatpush1.msra.mxu0 0.0
      %5724 = vmatprep.subr.mxu0 0.0
      %5725 = vmatpush1.msra.mxu0 0.0
      %5726 = vmatprep.subr.mxu0 0.0
      %5727 = vmatpush1.msra.mxu0 0.0
      %5728 = vmatprep.subr.mxu0 0.0
      %5729 = vmatpush1.msra.mxu0 0.0
      %5730 = vmatprep.mubr.f32.mxu0 0.0
      %5731 = vmatmul.mubr.f32.gmra.mrb[0].mxu0 %v5658
      %v5732 = vpop.f32.mrb[0].mxu0
      %v5733 = vadd.f32 0.0, %v5732
      %v5734 = vpop.f32.mrb[0].mxu0
      %5735 = vmatprep.mubr.f32.mxu0 0.0
      %5736 = vmatmul.mubr.f32.gmra.mrb[0].mxu0 %v5661
      %v5737 = vpop.f32.mrb[0].mxu0
      %v5738 = vadd.f32 0.0, %v5737
      %v5739 = vpop.f32.mrb[0].mxu0
      %5740 = vdwg.mxu0
      %v5741 = vadd.f32 %v5650, %v5733
      %v5742 = vadd.f32 %v5651, %v5738
      %s5743 = sadd.s32 %s5292, 20
      %s5744 = scalar_lea.vmem %s234, %s5743
      %v5745 = vld [vmem:[%s5744] sm:$0xff]
      %v5746 = vld [vmem:[%s5744 + $0x8] sm:$0xff]
      %v5747 = vld [vmem:[%s722] sm:$0xf]
      %v5749 = vsel %vm272, %v5745, 0
      %v5752 = vsel %vm272, %v5746, 0
      %v5755 = vsel %vm279, %v5747, 0
      %5757 = vmatprep.subr.mxu0 0.0
      %5758 = vmatpush1.msra.mxu0 %v5755
      %5759 = vmatprep.subr.mxu0 0.0
      %5760 = vmatpush1.msra.mxu0 0.0
      %5761 = vmatprep.subr.mxu0 0.0
      %5762 = vmatpush1.msra.mxu0 0.0
      %5763 = vmatprep.subr.mxu0 0.0
      %5764 = vmatpush1.msra.mxu0 0.0
      %5765 = vmatprep.subr.mxu0 0.0
      %5766 = vmatpush1.msra.mxu0 0.0
      %5767 = vmatprep.subr.mxu0 0.0
      %5768 = vmatpush1.msra.mxu0 0.0
      %5769 = vmatprep.subr.mxu0 0.0
      %5770 = vmatpush1.msra.mxu0 0.0
      %5771 = vmatprep.subr.mxu0 0.0
      %5772 = vmatpush1.msra.mxu0 0.0
      %5773 = vmatprep.subr.mxu0 0.0
      %5774 = vmatpush1.msra.mxu0 0.0
      %5775 = vmatprep.subr.mxu0 0.0
      %5776 = vmatpush1.msra.mxu0 0.0
      %5777 = vmatprep.subr.mxu0 0.0
      %5778 = vmatpush1.msra.mxu0 0.0
      %5779 = vmatprep.subr.mxu0 0.0
      %5780 = vmatpush1.msra.mxu0 0.0
      %5781 = vmatprep.subr.mxu0 0.0
      %5782 = vmatpush1.msra.mxu0 0.0
      %5783 = vmatprep.subr.mxu0 0.0
      %5784 = vmatpush1.msra.mxu0 0.0
      %5785 = vmatprep.subr.mxu0 0.0
      %5786 = vmatpush1.msra.mxu0 0.0
      %5787 = vmatprep.subr.mxu0 0.0
      %5788 = vmatpush1.msra.mxu0 0.0
      %5789 = vmatprep.subr.mxu0 0.0
      %5790 = vmatpush1.msra.mxu0 0.0
      %5791 = vmatprep.subr.mxu0 0.0
      %5792 = vmatpush1.msra.mxu0 0.0
      %5793 = vmatprep.subr.mxu0 0.0
      %5794 = vmatpush1.msra.mxu0 0.0
      %5795 = vmatprep.subr.mxu0 0.0
      %5796 = vmatpush1.msra.mxu0 0.0
      %5797 = vmatprep.subr.mxu0 0.0
      %5798 = vmatpush1.msra.mxu0 0.0
      %5799 = vmatprep.subr.mxu0 0.0
      %5800 = vmatpush1.msra.mxu0 0.0
      %5801 = vmatprep.subr.mxu0 0.0
      %5802 = vmatpush1.msra.mxu0 0.0
      %5803 = vmatprep.subr.mxu0 0.0
      %5804 = vmatpush1.msra.mxu0 0.0
      %5805 = vmatprep.subr.mxu0 0.0
      %5806 = vmatpush1.msra.mxu0 0.0
      %5807 = vmatprep.subr.mxu0 0.0
      %5808 = vmatpush1.msra.mxu0 0.0
      %5809 = vmatprep.subr.mxu0 0.0
      %5810 = vmatpush1.msra.mxu0 0.0
      %5811 = vmatprep.subr.mxu0 0.0
      %5812 = vmatpush1.msra.mxu0 0.0
      %5813 = vmatprep.subr.mxu0 0.0
      %5814 = vmatpush1.msra.mxu0 0.0
      %5815 = vmatprep.subr.mxu0 0.0
      %5816 = vmatpush1.msra.mxu0 0.0
      %5817 = vmatprep.subr.mxu0 0.0
      %5818 = vmatpush1.msra.mxu0 0.0
      %5819 = vmatprep.subr.mxu0 0.0
      %5820 = vmatpush1.msra.mxu0 0.0
      %5821 = vmatprep.mubr.f32.mxu0 0.0
      %5822 = vmatmul.mubr.f32.gmra.mrb[0].mxu0 %v5749
      %v5823 = vpop.f32.mrb[0].mxu0
      %v5824 = vadd.f32 0.0, %v5823
      %v5825 = vpop.f32.mrb[0].mxu0
      %5826 = vmatprep.mubr.f32.mxu0 0.0
      %5827 = vmatmul.mubr.f32.gmra.mrb[0].mxu0 %v5752
      %v5828 = vpop.f32.mrb[0].mxu0
      %v5829 = vadd.f32 0.0, %v5828
      %v5830 = vpop.f32.mrb[0].mxu0
      %5831 = vdwg.mxu0
      %v5832 = vadd.f32 %v5741, %v5824
      %v5833 = vadd.f32 %v5742, %v5829
      %s5834 = sadd.s32 %s5292, 36
      %s5835 = scalar_lea.vmem %s234, %s5834
      %v5836 = vld [vmem:[%s5835] sm:$0xff]
      %v5837 = vld [vmem:[%s5835 + $0x8] sm:$0xff]
      %v5838 = vld [vmem:[%s814] sm:$0xf]
      %v5840 = vsel %vm272, %v5836, 0
      %v5843 = vsel %vm272, %v5837, 0
      %v5846 = vsel %vm279, %v5838, 0
      %5848 = vmatprep.subr.mxu0 0.0
      %5849 = vmatpush1.msra.mxu0 %v5846
      %5850 = vmatprep.subr.mxu0 0.0
      %5851 = vmatpush1.msra.mxu0 0.0
      %5852 = vmatprep.subr.mxu0 0.0
      %5853 = vmatpush1.msra.mxu0 0.0
      %5854 = vmatprep.subr.mxu0 0.0
      %5855 = vmatpush1.msra.mxu0 0.0
      %5856 = vmatprep.subr.mxu0 0.0
      %5857 = vmatpush1.msra.mxu0 0.0
      %5858 = vmatprep.subr.mxu0 0.0
      %5859 = vmatpush1.msra.mxu0 0.0
      %5860 = vmatprep.subr.mxu0 0.0
      %5861 = vmatpush1.msra.mxu0 0.0
      %5862 = vmatprep.subr.mxu0 0.0
      %5863 = vmatpush1.msra.mxu0 0.0
      %5864 = vmatprep.subr.mxu0 0.0
      %5865 = vmatpush1.msra.mxu0 0.0
      %5866 = vmatprep.subr.mxu0 0.0
      %5867 = vmatpush1.msra.mxu0 0.0
      %5868 = vmatprep.subr.mxu0 0.0
      %5869 = vmatpush1.msra.mxu0 0.0
      %5870 = vmatprep.subr.mxu0 0.0
      %5871 = vmatpush1.msra.mxu0 0.0
      %5872 = vmatprep.subr.mxu0 0.0
      %5873 = vmatpush1.msra.mxu0 0.0
      %5874 = vmatprep.subr.mxu0 0.0
      %5875 = vmatpush1.msra.mxu0 0.0
      %5876 = vmatprep.subr.mxu0 0.0
      %5877 = vmatpush1.msra.mxu0 0.0
      %5878 = vmatprep.subr.mxu0 0.0
      %5879 = vmatpush1.msra.mxu0 0.0
      %5880 = vmatprep.subr.mxu0 0.0
      %5881 = vmatpush1.msra.mxu0 0.0
      %5882 = vmatprep.subr.mxu0 0.0
      %5883 = vmatpush1.msra.mxu0 0.0
      %5884 = vmatprep.subr.mxu0 0.0
      %5885 = vmatpush1.msra.mxu0 0.0
      %5886 = vmatprep.subr.mxu0 0.0
      %5887 = vmatpush1.msra.mxu0 0.0
      %5888 = vmatprep.subr.mxu0 0.0
      %5889 = vmatpush1.msra.mxu0 0.0
      %5890 = vmatprep.subr.mxu0 0.0
      %5891 = vmatpush1.msra.mxu0 0.0
      %5892 = vmatprep.subr.mxu0 0.0
      %5893 = vmatpush1.msra.mxu0 0.0
      %5894 = vmatprep.subr.mxu0 0.0
      %5895 = vmatpush1.msra.mxu0 0.0
      %5896 = vmatprep.subr.mxu0 0.0
      %5897 = vmatpush1.msra.mxu0 0.0
      %5898 = vmatprep.subr.mxu0 0.0
      %5899 = vmatpush1.msra.mxu0 0.0
      %5900 = vmatprep.subr.mxu0 0.0
      %5901 = vmatpush1.msra.mxu0 0.0
      %5902 = vmatprep.subr.mxu0 0.0
      %5903 = vmatpush1.msra.mxu0 0.0
      %5904 = vmatprep.subr.mxu0 0.0
      %5905 = vmatpush1.msra.mxu0 0.0
      %5906 = vmatprep.subr.mxu0 0.0
      %5907 = vmatpush1.msra.mxu0 0.0
      %5908 = vmatprep.subr.mxu0 0.0
      %5909 = vmatpush1.msra.mxu0 0.0
      %5910 = vmatprep.subr.mxu0 0.0
      %5911 = vmatpush1.msra.mxu0 0.0
      %5912 = vmatprep.mubr.f32.mxu0 0.0
      %5913 = vmatmul.mubr.f32.gmra.mrb[0].mxu0 %v5840
      %v5914 = vpop.f32.mrb[0].mxu0
      %v5915 = vadd.f32 0.0, %v5914
      %v5916 = vpop.f32.mrb[0].mxu0
      %5917 = vmatprep.mubr.f32.mxu0 0.0
      %5918 = vmatmul.mubr.f32.gmra.mrb[0].mxu0 %v5843
      %v5919 = vpop.f32.mrb[0].mxu0
      %v5920 = vadd.f32 0.0, %v5919
      %v5921 = vpop.f32.mrb[0].mxu0
      %5922 = vdwg.mxu0
      %v5923 = vadd.f32 %v5832, %v5915
      %v5924 = vadd.f32 %v5833, %v5920
      %s5925 = sadd.s32 %s5292, 37
      %s5926 = scalar_lea.vmem %s234, %s5925
      %v5927 = vld [vmem:[%s5926] sm:$0xff]
      %v5928 = vld [vmem:[%s5926 + $0x8] sm:$0xff]
      %v5929 = vld [vmem:[%s906] sm:$0xf]
      %v5931 = vsel %vm272, %v5927, 0
      %v5934 = vsel %vm272, %v5928, 0
      %v5937 = vsel %vm279, %v5929, 0
      %5939 = vmatprep.subr.mxu0 0.0
      %5940 = vmatpush1.msra.mxu0 %v5937
      %5941 = vmatprep.subr.mxu0 0.0
      %5942 = vmatpush1.msra.mxu0 0.0
      %5943 = vmatprep.subr.mxu0 0.0
      %5944 = vmatpush1.msra.mxu0 0.0
      %5945 = vmatprep.subr.mxu0 0.0
      %5946 = vmatpush1.msra.mxu0 0.0
      %5947 = vmatprep.subr.mxu0 0.0
      %5948 = vmatpush1.msra.mxu0 0.0
      %5949 = vmatprep.subr.mxu0 0.0
      %5950 = vmatpush1.msra.mxu0 0.0
      %5951 = vmatprep.subr.mxu0 0.0
      %5952 = vmatpush1.msra.mxu0 0.0
      %5953 = vmatprep.subr.mxu0 0.0
      %5954 = vmatpush1.msra.mxu0 0.0
      %5955 = vmatprep.subr.mxu0 0.0
      %5956 = vmatpush1.msra.mxu0 0.0
      %5957 = vmatprep.subr.mxu0 0.0
      %5958 = vmatpush1.msra.mxu0 0.0
      %5959 = vmatprep.subr.mxu0 0.0
      %5960 = vmatpush1.msra.mxu0 0.0
      %5961 = vmatprep.subr.mxu0 0.0
      %5962 = vmatpush1.msra.mxu0 0.0
      %5963 = vmatprep.subr.mxu0 0.0
      %5964 = vmatpush1.msra.mxu0 0.0
      %5965 = vmatprep.subr.mxu0 0.0
      %5966 = vmatpush1.msra.mxu0 0.0
      %5967 = vmatprep.subr.mxu0 0.0
      %5968 = vmatpush1.msra.mxu0 0.0
      %5969 = vmatprep.subr.mxu0 0.0
      %5970 = vmatpush1.msra.mxu0 0.0
      %5971 = vmatprep.subr.mxu0 0.0
      %5972 = vmatpush1.msra.mxu0 0.0
      %5973 = vmatprep.subr.mxu0 0.0
      %5974 = vmatpush1.msra.mxu0 0.0
      %5975 = vmatprep.subr.mxu0 0.0
      %5976 = vmatpush1.msra.mxu0 0.0
      %5977 = vmatprep.subr.mxu0 0.0
      %5978 = vmatpush1.msra.mxu0 0.0
      %5979 = vmatprep.subr.mxu0 0.0
      %5980 = vmatpush1.msra.mxu0 0.0
      %5981 = vmatprep.subr.mxu0 0.0
      %5982 = vmatpush1.msra.mxu0 0.0
      %5983 = vmatprep.subr.mxu0 0.0
      %5984 = vmatpush1.msra.mxu0 0.0
      %5985 = vmatprep.subr.mxu0 0.0
      %5986 = vmatpush1.msra.mxu0 0.0
      %5987 = vmatprep.subr.mxu0 0.0
      %5988 = vmatpush1.msra.mxu0 0.0
      %5989 = vmatprep.subr.mxu0 0.0
      %5990 = vmatpush1.msra.mxu0 0.0
      %5991 = vmatprep.subr.mxu0 0.0
      %5992 = vmatpush1.msra.mxu0 0.0
      %5993 = vmatprep.subr.mxu0 0.0
      %5994 = vmatpush1.msra.mxu0 0.0
      %5995 = vmatprep.subr.mxu0 0.0
      %5996 = vmatpush1.msra.mxu0 0.0
      %5997 = vmatprep.subr.mxu0 0.0
      %5998 = vmatpush1.msra.mxu0 0.0
      %5999 = vmatprep.subr.mxu0 0.0
      %6000 = vmatpush1.msra.mxu0 0.0
      %6001 = vmatprep.subr.mxu0 0.0
      %6002 = vmatpush1.msra.mxu0 0.0
      %6003 = vmatprep.mubr.f32.mxu0 0.0
      %6004 = vmatmul.mubr.f32.gmra.mrb[0].mxu0 %v5931
      %v6005 = vpop.f32.mrb[0].mxu0
      %v6006 = vadd.f32 0.0, %v6005
      %v6007 = vpop.f32.mrb[0].mxu0
      %6008 = vmatprep.mubr.f32.mxu0 0.0
      %6009 = vmatmul.mubr.f32.gmra.mrb[0].mxu0 %v5934
      %v6010 = vpop.f32.mrb[0].mxu0
      %v6011 = vadd.f32 0.0, %v6010
      %v6012 = vpop.f32.mrb[0].mxu0
      %6013 = vdwg.mxu0
      %v6014 = vadd.f32 %v5923, %v6006
      %v6015 = vadd.f32 %v5924, %v6011
      %s6016 = sadd.s32 %s5292, 38
      %s6017 = scalar_lea.vmem %s234, %s6016
      %v6018 = vld [vmem:[%s6017] sm:$0xff]
      %v6019 = vld [vmem:[%s6017 + $0x8] sm:$0xff]
      %v6020 = vld [vmem:[%s998] sm:$0xf]
      %v6022 = vsel %vm272, %v6018, 0
      %v6025 = vsel %vm272, %v6019, 0
      %v6028 = vsel %vm279, %v6020, 0
      %6030 = vmatprep.subr.mxu0 0.0
      %6031 = vmatpush1.msra.mxu0 %v6028
      %6032 = vmatprep.subr.mxu0 0.0
      %6033 = vmatpush1.msra.mxu0 0.0
      %6034 = vmatprep.subr.mxu0 0.0
      %6035 = vmatpush1.msra.mxu0 0.0
      %6036 = vmatprep.subr.mxu0 0.0
      %6037 = vmatpush1.msra.mxu0 0.0
      %6038 = vmatprep.subr.mxu0 0.0
      %6039 = vmatpush1.msra.mxu0 0.0
      %6040 = vmatprep.subr.mxu0 0.0
      %6041 = vmatpush1.msra.mxu0 0.0
      %6042 = vmatprep.subr.mxu0 0.0
      %6043 = vmatpush1.msra.mxu0 0.0
      %6044 = vmatprep.subr.mxu0 0.0
      %6045 = vmatpush1.msra.mxu0 0.0
      %6046 = vmatprep.subr.mxu0 0.0
      %6047 = vmatpush1.msra.mxu0 0.0
      %6048 = vmatprep.subr.mxu0 0.0
      %6049 = vmatpush1.msra.mxu0 0.0
      %6050 = vmatprep.subr.mxu0 0.0
      %6051 = vmatpush1.msra.mxu0 0.0
      %6052 = vmatprep.subr.mxu0 0.0
      %6053 = vmatpush1.msra.mxu0 0.0
      %6054 = vmatprep.subr.mxu0 0.0
      %6055 = vmatpush1.msra.mxu0 0.0
      %6056 = vmatprep.subr.mxu0 0.0
      %6057 = vmatpush1.msra.mxu0 0.0
      %6058 = vmatprep.subr.mxu0 0.0
      %6059 = vmatpush1.msra.mxu0 0.0
      %6060 = vmatprep.subr.mxu0 0.0
      %6061 = vmatpush1.msra.mxu0 0.0
      %6062 = vmatprep.subr.mxu0 0.0
      %6063 = vmatpush1.msra.mxu0 0.0
      %6064 = vmatprep.subr.mxu0 0.0
      %6065 = vmatpush1.msra.mxu0 0.0
      %6066 = vmatprep.subr.mxu0 0.0
      %6067 = vmatpush1.msra.mxu0 0.0
      %6068 = vmatprep.subr.mxu0 0.0
      %6069 = vmatpush1.msra.mxu0 0.0
      %6070 = vmatprep.subr.mxu0 0.0
      %6071 = vmatpush1.msra.mxu0 0.0
      %6072 = vmatprep.subr.mxu0 0.0
      %6073 = vmatpush1.msra.mxu0 0.0
      %6074 = vmatprep.subr.mxu0 0.0
      %6075 = vmatpush1.msra.mxu0 0.0
      %6076 = vmatprep.subr.mxu0 0.0
      %6077 = vmatpush1.msra.mxu0 0.0
      %6078 = vmatprep.subr.mxu0 0.0
      %6079 = vmatpush1.msra.mxu0 0.0
      %6080 = vmatprep.subr.mxu0 0.0
      %6081 = vmatpush1.msra.mxu0 0.0
      %6082 = vmatprep.subr.mxu0 0.0
      %6083 = vmatpush1.msra.mxu0 0.0
      %6084 = vmatprep.subr.mxu0 0.0
      %6085 = vmatpush1.msra.mxu0 0.0
      %6086 = vmatprep.subr.mxu0 0.0
      %6087 = vmatpush1.msra.mxu0 0.0
      %6088 = vmatprep.subr.mxu0 0.0
      %6089 = vmatpush1.msra.mxu0 0.0
      %6090 = vmatprep.subr.mxu0 0.0
      %6091 = vmatpush1.msra.mxu0 0.0
      %6092 = vmatprep.subr.mxu0 0.0
      %6093 = vmatpush1.msra.mxu0 0.0
      %6094 = vmatprep.mubr.f32.mxu0 0.0
      %6095 = vmatmul.mubr.f32.gmra.mrb[0].mxu0 %v6022
      %v6096 = vpop.f32.mrb[0].mxu0
      %v6097 = vadd.f32 0.0, %v6096
      %v6098 = vpop.f32.mrb[0].mxu0
      %6099 = vmatprep.mubr.f32.mxu0 0.0
      %6100 = vmatmul.mubr.f32.gmra.mrb[0].mxu0 %v6025
      %v6101 = vpop.f32.mrb[0].mxu0
      %v6102 = vadd.f32 0.0, %v6101
      %v6103 = vpop.f32.mrb[0].mxu0
      %6104 = vdwg.mxu0
      %v6105 = vadd.f32 %v6014, %v6097
      %v6106 = vadd.f32 %v6015, %v6102
      %s6107 = scalar_lea.vmem %s244, 96
      %6108 = vst [vmem:[%s6107] sm:$0xff] %v6105
      %6109 = vst [vmem:[%s6107 + $0x8] sm:$0xff] %v6106
      %v6110 = vadd.f32 %v6105, %v6106
      %v6111 = vrot.slane %v6110, 4
      %v6112 = vadd.f32 %v6110, %v6111
      %v6113 = vrot.slane %v6112, 2
      %v6114 = vadd.f32 %v6112, %v6113
      %v6115 = vrot.slane %v6114, 1
      %v6116 = vadd.f32 %v6114, %v6115
      %v6117 = vadd.f32 %v5280, %v6116
      %v6118 = vmul.f32 %v6105, %v6105
      %v6119 = vmul.f32 %v6106, %v6106
      %v6120 = vadd.f32 %v6118, %v6119
      %v6121 = vrot.slane %v6120, 4
      %v6122 = vadd.f32 %v6120, %v6121
      %v6123 = vrot.slane %v6122, 2
      %v6124 = vadd.f32 %v6122, %v6123
      %v6125 = vrot.slane %v6124, 1
      %v6126 = vadd.f32 %v6124, %v6125
      %v6127 = vadd.f32 %v5290, %v6126
      %s6128 = sadd.s32 %s260, 7
      %s6129 = smul.u32 %s6128, 18
      %s6130 = scalar_lea.vmem %s234, %s6129
      %v6131 = vld [vmem:[%s6130] sm:$0xff]
      %v6132 = vld [vmem:[%s6130 + $0x8] sm:$0xff]
      %v6133 = vld [vmem:[%s1] sm:$0xf]
      %s6134 = sadd.s32 %s6129, 1
      %s6135 = scalar_lea.vmem %s234, %s6134
      %v6136 = vld [vmem:[%s6135] sm:$0xff]
      %v6137 = vld [vmem:[%s6135 + $0x8] sm:$0xff]
      %v6138 = vld [vmem:[%s270] sm:$0xf]
      %v6140 = vsel %vm272, %v6136, 0
      %v6143 = vsel %vm272, %v6137, 0
      %v6146 = vsel %vm279, %v6138, 0
      %6148 = vmatprep.subr.mxu0 0.0
      %6149 = vmatpush1.msra.mxu0 %v6146
      %6150 = vmatprep.subr.mxu0 0.0
      %6151 = vmatpush1.msra.mxu0 0.0
      %6152 = vmatprep.subr.mxu0 0.0
      %6153 = vmatpush1.msra.mxu0 0.0
      %6154 = vmatprep.subr.mxu0 0.0
      %6155 = vmatpush1.msra.mxu0 0.0
      %6156 = vmatprep.subr.mxu0 0.0
      %6157 = vmatpush1.msra.mxu0 0.0
      %6158 = vmatprep.subr.mxu0 0.0
      %6159 = vmatpush1.msra.mxu0 0.0
      %6160 = vmatprep.subr.mxu0 0.0
      %6161 = vmatpush1.msra.mxu0 0.0
      %6162 = vmatprep.subr.mxu0 0.0
      %6163 = vmatpush1.msra.mxu0 0.0
      %6164 = vmatprep.subr.mxu0 0.0
      %6165 = vmatpush1.msra.mxu0 0.0
      %6166 = vmatprep.subr.mxu0 0.0
      %6167 = vmatpush1.msra.mxu0 0.0
      %6168 = vmatprep.subr.mxu0 0.0
      %6169 = vmatpush1.msra.mxu0 0.0
      %6170 = vmatprep.subr.mxu0 0.0
      %6171 = vmatpush1.msra.mxu0 0.0
      %6172 = vmatprep.subr.mxu0 0.0
      %6173 = vmatpush1.msra.mxu0 0.0
      %6174 = vmatprep.subr.mxu0 0.0
      %6175 = vmatpush1.msra.mxu0 0.0
      %6176 = vmatprep.subr.mxu0 0.0
      %6177 = vmatpush1.msra.mxu0 0.0
      %6178 = vmatprep.subr.mxu0 0.0
      %6179 = vmatpush1.msra.mxu0 0.0
      %6180 = vmatprep.subr.mxu0 0.0
      %6181 = vmatpush1.msra.mxu0 0.0
      %6182 = vmatprep.subr.mxu0 0.0
      %6183 = vmatpush1.msra.mxu0 0.0
      %6184 = vmatprep.subr.mxu0 0.0
      %6185 = vmatpush1.msra.mxu0 0.0
      %6186 = vmatprep.subr.mxu0 0.0
      %6187 = vmatpush1.msra.mxu0 0.0
      %6188 = vmatprep.subr.mxu0 0.0
      %6189 = vmatpush1.msra.mxu0 0.0
      %6190 = vmatprep.subr.mxu0 0.0
      %6191 = vmatpush1.msra.mxu0 0.0
      %6192 = vmatprep.subr.mxu0 0.0
      %6193 = vmatpush1.msra.mxu0 0.0
      %6194 = vmatprep.subr.mxu0 0.0
      %6195 = vmatpush1.msra.mxu0 0.0
      %6196 = vmatprep.subr.mxu0 0.0
      %6197 = vmatpush1.msra.mxu0 0.0
      %6198 = vmatprep.subr.mxu0 0.0
      %6199 = vmatpush1.msra.mxu0 0.0
      %6200 = vmatprep.subr.mxu0 0.0
      %6201 = vmatpush1.msra.mxu0 0.0
      %6202 = vmatprep.subr.mxu0 0.0
      %6203 = vmatpush1.msra.mxu0 0.0
      %6204 = vmatprep.subr.mxu0 0.0
      %6205 = vmatpush1.msra.mxu0 0.0
      %6206 = vmatprep.subr.mxu0 0.0
      %6207 = vmatpush1.msra.mxu0 0.0
      %6208 = vmatprep.subr.mxu0 0.0
      %6209 = vmatpush1.msra.mxu0 0.0
      %6210 = vmatprep.subr.mxu0 0.0
      %6211 = vmatpush1.msra.mxu0 0.0
      %6212 = vmatprep.mubr.f32.mxu0 0.0
      %6213 = vmatmul.mubr.f32.gmra.mrb[0].mxu0 %v6140
      %v6214 = vpop.f32.mrb[0].mxu0
      %v6215 = vadd.f32 0.0, %v6214
      %v6216 = vpop.f32.mrb[0].mxu0
      %6217 = vmatprep.mubr.f32.mxu0 0.0
      %6218 = vmatmul.mubr.f32.gmra.mrb[0].mxu0 %v6143
      %v6219 = vpop.f32.mrb[0].mxu0
      %v6220 = vadd.f32 0.0, %v6219
      %v6221 = vpop.f32.mrb[0].mxu0
      %6222 = vdwg.mxu0
      %v6224 = vsel %vm272, %v6131, 0
      %v6227 = vsel %vm272, %v6132, 0
      %v6230 = vsel %vm279, %v6133, 0
      %6232 = vmatprep.subr.mxu0 0.0
      %6233 = vmatpush1.msra.mxu0 %v6230
      %6234 = vmatprep.subr.mxu0 0.0
      %6235 = vmatpush1.msra.mxu0 0.0
      %6236 = vmatprep.subr.mxu0 0.0
      %6237 = vmatpush1.msra.mxu0 0.0
      %6238 = vmatprep.subr.mxu0 0.0
      %6239 = vmatpush1.msra.mxu0 0.0
      %6240 = vmatprep.subr.mxu0 0.0
      %6241 = vmatpush1.msra.mxu0 0.0
      %6242 = vmatprep.subr.mxu0 0.0
      %6243 = vmatpush1.msra.mxu0 0.0
      %6244 = vmatprep.subr.mxu0 0.0
      %6245 = vmatpush1.msra.mxu0 0.0
      %6246 = vmatprep.subr.mxu0 0.0
      %6247 = vmatpush1.msra.mxu0 0.0
      %6248 = vmatprep.subr.mxu0 0.0
      %6249 = vmatpush1.msra.mxu0 0.0
      %6250 = vmatprep.subr.mxu0 0.0
      %6251 = vmatpush1.msra.mxu0 0.0
      %6252 = vmatprep.subr.mxu0 0.0
      %6253 = vmatpush1.msra.mxu0 0.0
      %6254 = vmatprep.subr.mxu0 0.0
      %6255 = vmatpush1.msra.mxu0 0.0
      %6256 = vmatprep.subr.mxu0 0.0
      %6257 = vmatpush1.msra.mxu0 0.0
      %6258 = vmatprep.subr.mxu0 0.0
      %6259 = vmatpush1.msra.mxu0 0.0
      %6260 = vmatprep.subr.mxu0 0.0
      %6261 = vmatpush1.msra.mxu0 0.0
      %6262 = vmatprep.subr.mxu0 0.0
      %6263 = vmatpush1.msra.mxu0 0.0
      %6264 = vmatprep.subr.mxu0 0.0
      %6265 = vmatpush1.msra.mxu0 0.0
      %6266 = vmatprep.subr.mxu0 0.0
      %6267 = vmatpush1.msra.mxu0 0.0
      %6268 = vmatprep.subr.mxu0 0.0
      %6269 = vmatpush1.msra.mxu0 0.0
      %6270 = vmatprep.subr.mxu0 0.0
      %6271 = vmatpush1.msra.mxu0 0.0
      %6272 = vmatprep.subr.mxu0 0.0
      %6273 = vmatpush1.msra.mxu0 0.0
      %6274 = vmatprep.subr.mxu0 0.0
      %6275 = vmatpush1.msra.mxu0 0.0
      %6276 = vmatprep.subr.mxu0 0.0
      %6277 = vmatpush1.msra.mxu0 0.0
      %6278 = vmatprep.subr.mxu0 0.0
      %6279 = vmatpush1.msra.mxu0 0.0
      %6280 = vmatprep.subr.mxu0 0.0
      %6281 = vmatpush1.msra.mxu0 0.0
      %6282 = vmatprep.subr.mxu0 0.0
      %6283 = vmatpush1.msra.mxu0 0.0
      %6284 = vmatprep.subr.mxu0 0.0
      %6285 = vmatpush1.msra.mxu0 0.0
      %6286 = vmatprep.subr.mxu0 0.0
      %6287 = vmatpush1.msra.mxu0 0.0
      %6288 = vmatprep.subr.mxu0 0.0
      %6289 = vmatpush1.msra.mxu0 0.0
      %6290 = vmatprep.subr.mxu0 0.0
      %6291 = vmatpush1.msra.mxu0 0.0
      %6292 = vmatprep.subr.mxu0 0.0
      %6293 = vmatpush1.msra.mxu0 0.0
      %6294 = vmatprep.subr.mxu0 0.0
      %6295 = vmatpush1.msra.mxu0 0.0
      %6296 = vmatprep.mubr.f32.mxu0 0.0
      %6297 = vmatmul.mubr.f32.gmra.mrb[0].mxu0 %v6224
      %v6298 = vpop.f32.mrb[0].mxu0
      %v6299 = vadd.f32 %v6215, %v6298
      %v6300 = vpop.f32.mrb[0].mxu0
      %6301 = vmatprep.mubr.f32.mxu0 0.0
      %6302 = vmatmul.mubr.f32.gmra.mrb[0].mxu0 %v6227
      %v6303 = vpop.f32.mrb[0].mxu0
      %v6304 = vadd.f32 %v6220, %v6303
      %v6305 = vpop.f32.mrb[0].mxu0
      %6306 = vdwg.mxu0
      %s6307 = sadd.s32 %s6129, 2
      %s6308 = scalar_lea.vmem %s234, %s6307
      %v6309 = vld [vmem:[%s6308] sm:$0xff]
      %v6310 = vld [vmem:[%s6308 + $0x8] sm:$0xff]
      %v6311 = vld [vmem:[%s446] sm:$0xf]
      %v6313 = vsel %vm272, %v6309, 0
      %v6316 = vsel %vm272, %v6310, 0
      %v6319 = vsel %vm279, %v6311, 0
      %6321 = vmatprep.subr.mxu0 0.0
      %6322 = vmatpush1.msra.mxu0 %v6319
      %6323 = vmatprep.subr.mxu0 0.0
      %6324 = vmatpush1.msra.mxu0 0.0
      %6325 = vmatprep.subr.mxu0 0.0
      %6326 = vmatpush1.msra.mxu0 0.0
      %6327 = vmatprep.subr.mxu0 0.0
      %6328 = vmatpush1.msra.mxu0 0.0
      %6329 = vmatprep.subr.mxu0 0.0
      %6330 = vmatpush1.msra.mxu0 0.0
      %6331 = vmatprep.subr.mxu0 0.0
      %6332 = vmatpush1.msra.mxu0 0.0
      %6333 = vmatprep.subr.mxu0 0.0
      %6334 = vmatpush1.msra.mxu0 0.0
      %6335 = vmatprep.subr.mxu0 0.0
      %6336 = vmatpush1.msra.mxu0 0.0
      %6337 = vmatprep.subr.mxu0 0.0
      %6338 = vmatpush1.msra.mxu0 0.0
      %6339 = vmatprep.subr.mxu0 0.0
      %6340 = vmatpush1.msra.mxu0 0.0
      %6341 = vmatprep.subr.mxu0 0.0
      %6342 = vmatpush1.msra.mxu0 0.0
      %6343 = vmatprep.subr.mxu0 0.0
      %6344 = vmatpush1.msra.mxu0 0.0
      %6345 = vmatprep.subr.mxu0 0.0
      %6346 = vmatpush1.msra.mxu0 0.0
      %6347 = vmatprep.subr.mxu0 0.0
      %6348 = vmatpush1.msra.mxu0 0.0
      %6349 = vmatprep.subr.mxu0 0.0
      %6350 = vmatpush1.msra.mxu0 0.0
      %6351 = vmatprep.subr.mxu0 0.0
      %6352 = vmatpush1.msra.mxu0 0.0
      %6353 = vmatprep.subr.mxu0 0.0
      %6354 = vmatpush1.msra.mxu0 0.0
      %6355 = vmatprep.subr.mxu0 0.0
      %6356 = vmatpush1.msra.mxu0 0.0
      %6357 = vmatprep.subr.mxu0 0.0
      %6358 = vmatpush1.msra.mxu0 0.0
      %6359 = vmatprep.subr.mxu0 0.0
      %6360 = vmatpush1.msra.mxu0 0.0
      %6361 = vmatprep.subr.mxu0 0.0
      %6362 = vmatpush1.msra.mxu0 0.0
      %6363 = vmatprep.subr.mxu0 0.0
      %6364 = vmatpush1.msra.mxu0 0.0
      %6365 = vmatprep.subr.mxu0 0.0
      %6366 = vmatpush1.msra.mxu0 0.0
      %6367 = vmatprep.subr.mxu0 0.0
      %6368 = vmatpush1.msra.mxu0 0.0
      %6369 = vmatprep.subr.mxu0 0.0
      %6370 = vmatpush1.msra.mxu0 0.0
      %6371 = vmatprep.subr.mxu0 0.0
      %6372 = vmatpush1.msra.mxu0 0.0
      %6373 = vmatprep.subr.mxu0 0.0
      %6374 = vmatpush1.msra.mxu0 0.0
      %6375 = vmatprep.subr.mxu0 0.0
      %6376 = vmatpush1.msra.mxu0 0.0
      %6377 = vmatprep.subr.mxu0 0.0
      %6378 = vmatpush1.msra.mxu0 0.0
      %6379 = vmatprep.subr.mxu0 0.0
      %6380 = vmatpush1.msra.mxu0 0.0
      %6381 = vmatprep.subr.mxu0 0.0
      %6382 = vmatpush1.msra.mxu0 0.0
      %6383 = vmatprep.subr.mxu0 0.0
      %6384 = vmatpush1.msra.mxu0 0.0
      %6385 = vmatprep.mubr.f32.mxu0 0.0
      %6386 = vmatmul.mubr.f32.gmra.mrb[0].mxu0 %v6313
      %v6387 = vpop.f32.mrb[0].mxu0
      %v6388 = vadd.f32 0.0, %v6387
      %v6389 = vpop.f32.mrb[0].mxu0
      %6390 = vmatprep.mubr.f32.mxu0 0.0
      %6391 = vmatmul.mubr.f32.gmra.mrb[0].mxu0 %v6316
      %v6392 = vpop.f32.mrb[0].mxu0
      %v6393 = vadd.f32 0.0, %v6392
      %v6394 = vpop.f32.mrb[0].mxu0
      %6395 = vdwg.mxu0
      %v6396 = vadd.f32 %v6299, %v6388
      %v6397 = vadd.f32 %v6304, %v6393
      %s6398 = sadd.s32 %s6129, 18
      %s6399 = scalar_lea.vmem %s234, %s6398
      %v6400 = vld [vmem:[%s6399] sm:$0xff]
      %v6401 = vld [vmem:[%s6399 + $0x8] sm:$0xff]
      %v6402 = vld [vmem:[%s538] sm:$0xf]
      %v6404 = vsel %vm272, %v6400, 0
      %v6407 = vsel %vm272, %v6401, 0
      %v6410 = vsel %vm279, %v6402, 0
      %6412 = vmatprep.subr.mxu0 0.0
      %6413 = vmatpush1.msra.mxu0 %v6410
      %6414 = vmatprep.subr.mxu0 0.0
      %6415 = vmatpush1.msra.mxu0 0.0
      %6416 = vmatprep.subr.mxu0 0.0
      %6417 = vmatpush1.msra.mxu0 0.0
      %6418 = vmatprep.subr.mxu0 0.0
      %6419 = vmatpush1.msra.mxu0 0.0
      %6420 = vmatprep.subr.mxu0 0.0
      %6421 = vmatpush1.msra.mxu0 0.0
      %6422 = vmatprep.subr.mxu0 0.0
      %6423 = vmatpush1.msra.mxu0 0.0
      %6424 = vmatprep.subr.mxu0 0.0
      %6425 = vmatpush1.msra.mxu0 0.0
      %6426 = vmatprep.subr.mxu0 0.0
      %6427 = vmatpush1.msra.mxu0 0.0
      %6428 = vmatprep.subr.mxu0 0.0
      %6429 = vmatpush1.msra.mxu0 0.0
      %6430 = vmatprep.subr.mxu0 0.0
      %6431 = vmatpush1.msra.mxu0 0.0
      %6432 = vmatprep.subr.mxu0 0.0
      %6433 = vmatpush1.msra.mxu0 0.0
      %6434 = vmatprep.subr.mxu0 0.0
      %6435 = vmatpush1.msra.mxu0 0.0
      %6436 = vmatprep.subr.mxu0 0.0
      %6437 = vmatpush1.msra.mxu0 0.0
      %6438 = vmatprep.subr.mxu0 0.0
      %6439 = vmatpush1.msra.mxu0 0.0
      %6440 = vmatprep.subr.mxu0 0.0
      %6441 = vmatpush1.msra.mxu0 0.0
      %6442 = vmatprep.subr.mxu0 0.0
      %6443 = vmatpush1.msra.mxu0 0.0
      %6444 = vmatprep.subr.mxu0 0.0
      %6445 = vmatpush1.msra.mxu0 0.0
      %6446 = vmatprep.subr.mxu0 0.0
      %6447 = vmatpush1.msra.mxu0 0.0
      %6448 = vmatprep.subr.mxu0 0.0
      %6449 = vmatpush1.msra.mxu0 0.0
      %6450 = vmatprep.subr.mxu0 0.0
      %6451 = vmatpush1.msra.mxu0 0.0
      %6452 = vmatprep.subr.mxu0 0.0
      %6453 = vmatpush1.msra.mxu0 0.0
      %6454 = vmatprep.subr.mxu0 0.0
      %6455 = vmatpush1.msra.mxu0 0.0
      %6456 = vmatprep.subr.mxu0 0.0
      %6457 = vmatpush1.msra.mxu0 0.0
      %6458 = vmatprep.subr.mxu0 0.0
      %6459 = vmatpush1.msra.mxu0 0.0
      %6460 = vmatprep.subr.mxu0 0.0
      %6461 = vmatpush1.msra.mxu0 0.0
      %6462 = vmatprep.subr.mxu0 0.0
      %6463 = vmatpush1.msra.mxu0 0.0
      %6464 = vmatprep.subr.mxu0 0.0
      %6465 = vmatpush1.msra.mxu0 0.0
      %6466 = vmatprep.subr.mxu0 0.0
      %6467 = vmatpush1.msra.mxu0 0.0
      %6468 = vmatprep.subr.mxu0 0.0
      %6469 = vmatpush1.msra.mxu0 0.0
      %6470 = vmatprep.subr.mxu0 0.0
      %6471 = vmatpush1.msra.mxu0 0.0
      %6472 = vmatprep.subr.mxu0 0.0
      %6473 = vmatpush1.msra.mxu0 0.0
      %6474 = vmatprep.subr.mxu0 0.0
      %6475 = vmatpush1.msra.mxu0 0.0
      %6476 = vmatprep.mubr.f32.mxu0 0.0
      %6477 = vmatmul.mubr.f32.gmra.mrb[0].mxu0 %v6404
      %v6478 = vpop.f32.mrb[0].mxu0
      %v6479 = vadd.f32 0.0, %v6478
      %v6480 = vpop.f32.mrb[0].mxu0
      %6481 = vmatprep.mubr.f32.mxu0 0.0
      %6482 = vmatmul.mubr.f32.gmra.mrb[0].mxu0 %v6407
      %v6483 = vpop.f32.mrb[0].mxu0
      %v6484 = vadd.f32 0.0, %v6483
      %v6485 = vpop.f32.mrb[0].mxu0
      %6486 = vdwg.mxu0
      %v6487 = vadd.f32 %v6396, %v6479
      %v6488 = vadd.f32 %v6397, %v6484
      %s6489 = sadd.s32 %s6129, 19
      %s6490 = scalar_lea.vmem %s234, %s6489
      %v6491 = vld [vmem:[%s6490] sm:$0xff]
      %v6492 = vld [vmem:[%s6490 + $0x8] sm:$0xff]
      %v6493 = vld [vmem:[%s630] sm:$0xf]
      %v6495 = vsel %vm272, %v6491, 0
      %v6498 = vsel %vm272, %v6492, 0
      %v6501 = vsel %vm279, %v6493, 0
      %6503 = vmatprep.subr.mxu0 0.0
      %6504 = vmatpush1.msra.mxu0 %v6501
      %6505 = vmatprep.subr.mxu0 0.0
      %6506 = vmatpush1.msra.mxu0 0.0
      %6507 = vmatprep.subr.mxu0 0.0
      %6508 = vmatpush1.msra.mxu0 0.0
      %6509 = vmatprep.subr.mxu0 0.0
      %6510 = vmatpush1.msra.mxu0 0.0
      %6511 = vmatprep.subr.mxu0 0.0
      %6512 = vmatpush1.msra.mxu0 0.0
      %6513 = vmatprep.subr.mxu0 0.0
      %6514 = vmatpush1.msra.mxu0 0.0
      %6515 = vmatprep.subr.mxu0 0.0
      %6516 = vmatpush1.msra.mxu0 0.0
      %6517 = vmatprep.subr.mxu0 0.0
      %6518 = vmatpush1.msra.mxu0 0.0
      %6519 = vmatprep.subr.mxu0 0.0
      %6520 = vmatpush1.msra.mxu0 0.0
      %6521 = vmatprep.subr.mxu0 0.0
      %6522 = vmatpush1.msra.mxu0 0.0
      %6523 = vmatprep.subr.mxu0 0.0
      %6524 = vmatpush1.msra.mxu0 0.0
      %6525 = vmatprep.subr.mxu0 0.0
      %6526 = vmatpush1.msra.mxu0 0.0
      %6527 = vmatprep.subr.mxu0 0.0
      %6528 = vmatpush1.msra.mxu0 0.0
      %6529 = vmatprep.subr.mxu0 0.0
      %6530 = vmatpush1.msra.mxu0 0.0
      %6531 = vmatprep.subr.mxu0 0.0
      %6532 = vmatpush1.msra.mxu0 0.0
      %6533 = vmatprep.subr.mxu0 0.0
      %6534 = vmatpush1.msra.mxu0 0.0
      %6535 = vmatprep.subr.mxu0 0.0
      %6536 = vmatpush1.msra.mxu0 0.0
      %6537 = vmatprep.subr.mxu0 0.0
      %6538 = vmatpush1.msra.mxu0 0.0
      %6539 = vmatprep.subr.mxu0 0.0
      %6540 = vmatpush1.msra.mxu0 0.0
      %6541 = vmatprep.subr.mxu0 0.0
      %6542 = vmatpush1.msra.mxu0 0.0
      %6543 = vmatprep.subr.mxu0 0.0
      %6544 = vmatpush1.msra.mxu0 0.0
      %6545 = vmatprep.subr.mxu0 0.0
      %6546 = vmatpush1.msra.mxu0 0.0
      %6547 = vmatprep.subr.mxu0 0.0
      %6548 = vmatpush1.msra.mxu0 0.0
      %6549 = vmatprep.subr.mxu0 0.0
      %6550 = vmatpush1.msra.mxu0 0.0
      %6551 = vmatprep.subr.mxu0 0.0
      %6552 = vmatpush1.msra.mxu0 0.0
      %6553 = vmatprep.subr.mxu0 0.0
      %6554 = vmatpush1.msra.mxu0 0.0
      %6555 = vmatprep.subr.mxu0 0.0
      %6556 = vmatpush1.msra.mxu0 0.0
      %6557 = vmatprep.subr.mxu0 0.0
      %6558 = vmatpush1.msra.mxu0 0.0
      %6559 = vmatprep.subr.mxu0 0.0
      %6560 = vmatpush1.msra.mxu0 0.0
      %6561 = vmatprep.subr.mxu0 0.0
      %6562 = vmatpush1.msra.mxu0 0.0
      %6563 = vmatprep.subr.mxu0 0.0
      %6564 = vmatpush1.msra.mxu0 0.0
      %6565 = vmatprep.subr.mxu0 0.0
      %6566 = vmatpush1.msra.mxu0 0.0
      %6567 = vmatprep.mubr.f32.mxu0 0.0
      %6568 = vmatmul.mubr.f32.gmra.mrb[0].mxu0 %v6495
      %v6569 = vpop.f32.mrb[0].mxu0
      %v6570 = vadd.f32 0.0, %v6569
      %v6571 = vpop.f32.mrb[0].mxu0
      %6572 = vmatprep.mubr.f32.mxu0 0.0
      %6573 = vmatmul.mubr.f32.gmra.mrb[0].mxu0 %v6498
      %v6574 = vpop.f32.mrb[0].mxu0
      %v6575 = vadd.f32 0.0, %v6574
      %v6576 = vpop.f32.mrb[0].mxu0
      %6577 = vdwg.mxu0
      %v6578 = vadd.f32 %v6487, %v6570
      %v6579 = vadd.f32 %v6488, %v6575
      %s6580 = sadd.s32 %s6129, 20
      %s6581 = scalar_lea.vmem %s234, %s6580
      %v6582 = vld [vmem:[%s6581] sm:$0xff]
      %v6583 = vld [vmem:[%s6581 + $0x8] sm:$0xff]
      %v6584 = vld [vmem:[%s722] sm:$0xf]
      %v6586 = vsel %vm272, %v6582, 0
      %v6589 = vsel %vm272, %v6583, 0
      %v6592 = vsel %vm279, %v6584, 0
      %6594 = vmatprep.subr.mxu0 0.0
      %6595 = vmatpush1.msra.mxu0 %v6592
      %6596 = vmatprep.subr.mxu0 0.0
      %6597 = vmatpush1.msra.mxu0 0.0
      %6598 = vmatprep.subr.mxu0 0.0
      %6599 = vmatpush1.msra.mxu0 0.0
      %6600 = vmatprep.subr.mxu0 0.0
      %6601 = vmatpush1.msra.mxu0 0.0
      %6602 = vmatprep.subr.mxu0 0.0
      %6603 = vmatpush1.msra.mxu0 0.0
      %6604 = vmatprep.subr.mxu0 0.0
      %6605 = vmatpush1.msra.mxu0 0.0
      %6606 = vmatprep.subr.mxu0 0.0
      %6607 = vmatpush1.msra.mxu0 0.0
      %6608 = vmatprep.subr.mxu0 0.0
      %6609 = vmatpush1.msra.mxu0 0.0
      %6610 = vmatprep.subr.mxu0 0.0
      %6611 = vmatpush1.msra.mxu0 0.0
      %6612 = vmatprep.subr.mxu0 0.0
      %6613 = vmatpush1.msra.mxu0 0.0
      %6614 = vmatprep.subr.mxu0 0.0
      %6615 = vmatpush1.msra.mxu0 0.0
      %6616 = vmatprep.subr.mxu0 0.0
      %6617 = vmatpush1.msra.mxu0 0.0
      %6618 = vmatprep.subr.mxu0 0.0
      %6619 = vmatpush1.msra.mxu0 0.0
      %6620 = vmatprep.subr.mxu0 0.0
      %6621 = vmatpush1.msra.mxu0 0.0
      %6622 = vmatprep.subr.mxu0 0.0
      %6623 = vmatpush1.msra.mxu0 0.0
      %6624 = vmatprep.subr.mxu0 0.0
      %6625 = vmatpush1.msra.mxu0 0.0
      %6626 = vmatprep.subr.mxu0 0.0
      %6627 = vmatpush1.msra.mxu0 0.0
      %6628 = vmatprep.subr.mxu0 0.0
      %6629 = vmatpush1.msra.mxu0 0.0
      %6630 = vmatprep.subr.mxu0 0.0
      %6631 = vmatpush1.msra.mxu0 0.0
      %6632 = vmatprep.subr.mxu0 0.0
      %6633 = vmatpush1.msra.mxu0 0.0
      %6634 = vmatprep.subr.mxu0 0.0
      %6635 = vmatpush1.msra.mxu0 0.0
      %6636 = vmatprep.subr.mxu0 0.0
      %6637 = vmatpush1.msra.mxu0 0.0
      %6638 = vmatprep.subr.mxu0 0.0
      %6639 = vmatpush1.msra.mxu0 0.0
      %6640 = vmatprep.subr.mxu0 0.0
      %6641 = vmatpush1.msra.mxu0 0.0
      %6642 = vmatprep.subr.mxu0 0.0
      %6643 = vmatpush1.msra.mxu0 0.0
      %6644 = vmatprep.subr.mxu0 0.0
      %6645 = vmatpush1.msra.mxu0 0.0
      %6646 = vmatprep.subr.mxu0 0.0
      %6647 = vmatpush1.msra.mxu0 0.0
      %6648 = vmatprep.subr.mxu0 0.0
      %6649 = vmatpush1.msra.mxu0 0.0
      %6650 = vmatprep.subr.mxu0 0.0
      %6651 = vmatpush1.msra.mxu0 0.0
      %6652 = vmatprep.subr.mxu0 0.0
      %6653 = vmatpush1.msra.mxu0 0.0
      %6654 = vmatprep.subr.mxu0 0.0
      %6655 = vmatpush1.msra.mxu0 0.0
      %6656 = vmatprep.subr.mxu0 0.0
      %6657 = vmatpush1.msra.mxu0 0.0
      %6658 = vmatprep.mubr.f32.mxu0 0.0
      %6659 = vmatmul.mubr.f32.gmra.mrb[0].mxu0 %v6586
      %v6660 = vpop.f32.mrb[0].mxu0
      %v6661 = vadd.f32 0.0, %v6660
      %v6662 = vpop.f32.mrb[0].mxu0
      %6663 = vmatprep.mubr.f32.mxu0 0.0
      %6664 = vmatmul.mubr.f32.gmra.mrb[0].mxu0 %v6589
      %v6665 = vpop.f32.mrb[0].mxu0
      %v6666 = vadd.f32 0.0, %v6665
      %v6667 = vpop.f32.mrb[0].mxu0
      %6668 = vdwg.mxu0
      %v6669 = vadd.f32 %v6578, %v6661
      %v6670 = vadd.f32 %v6579, %v6666
      %s6671 = sadd.s32 %s6129, 36
      %s6672 = scalar_lea.vmem %s234, %s6671
      %v6673 = vld [vmem:[%s6672] sm:$0xff]
      %v6674 = vld [vmem:[%s6672 + $0x8] sm:$0xff]
      %v6675 = vld [vmem:[%s814] sm:$0xf]
      %v6677 = vsel %vm272, %v6673, 0
      %v6680 = vsel %vm272, %v6674, 0
      %v6683 = vsel %vm279, %v6675, 0
      %6685 = vmatprep.subr.mxu0 0.0
      %6686 = vmatpush1.msra.mxu0 %v6683
      %6687 = vmatprep.subr.mxu0 0.0
      %6688 = vmatpush1.msra.mxu0 0.0
      %6689 = vmatprep.subr.mxu0 0.0
      %6690 = vmatpush1.msra.mxu0 0.0
      %6691 = vmatprep.subr.mxu0 0.0
      %6692 = vmatpush1.msra.mxu0 0.0
      %6693 = vmatprep.subr.mxu0 0.0
      %6694 = vmatpush1.msra.mxu0 0.0
      %6695 = vmatprep.subr.mxu0 0.0
      %6696 = vmatpush1.msra.mxu0 0.0
      %6697 = vmatprep.subr.mxu0 0.0
      %6698 = vmatpush1.msra.mxu0 0.0
      %6699 = vmatprep.subr.mxu0 0.0
      %6700 = vmatpush1.msra.mxu0 0.0
      %6701 = vmatprep.subr.mxu0 0.0
      %6702 = vmatpush1.msra.mxu0 0.0
      %6703 = vmatprep.subr.mxu0 0.0
      %6704 = vmatpush1.msra.mxu0 0.0
      %6705 = vmatprep.subr.mxu0 0.0
      %6706 = vmatpush1.msra.mxu0 0.0
      %6707 = vmatprep.subr.mxu0 0.0
      %6708 = vmatpush1.msra.mxu0 0.0
      %6709 = vmatprep.subr.mxu0 0.0
      %6710 = vmatpush1.msra.mxu0 0.0
      %6711 = vmatprep.subr.mxu0 0.0
      %6712 = vmatpush1.msra.mxu0 0.0
      %6713 = vmatprep.subr.mxu0 0.0
      %6714 = vmatpush1.msra.mxu0 0.0
      %6715 = vmatprep.subr.mxu0 0.0
      %6716 = vmatpush1.msra.mxu0 0.0
      %6717 = vmatprep.subr.mxu0 0.0
      %6718 = vmatpush1.msra.mxu0 0.0
      %6719 = vmatprep.subr.mxu0 0.0
      %6720 = vmatpush1.msra.mxu0 0.0
      %6721 = vmatprep.subr.mxu0 0.0
      %6722 = vmatpush1.msra.mxu0 0.0
      %6723 = vmatprep.subr.mxu0 0.0
      %6724 = vmatpush1.msra.mxu0 0.0
      %6725 = vmatprep.subr.mxu0 0.0
      %6726 = vmatpush1.msra.mxu0 0.0
      %6727 = vmatprep.subr.mxu0 0.0
      %6728 = vmatpush1.msra.mxu0 0.0
      %6729 = vmatprep.subr.mxu0 0.0
      %6730 = vmatpush1.msra.mxu0 0.0
      %6731 = vmatprep.subr.mxu0 0.0
      %6732 = vmatpush1.msra.mxu0 0.0
      %6733 = vmatprep.subr.mxu0 0.0
      %6734 = vmatpush1.msra.mxu0 0.0
      %6735 = vmatprep.subr.mxu0 0.0
      %6736 = vmatpush1.msra.mxu0 0.0
      %6737 = vmatprep.subr.mxu0 0.0
      %6738 = vmatpush1.msra.mxu0 0.0
      %6739 = vmatprep.subr.mxu0 0.0
      %6740 = vmatpush1.msra.mxu0 0.0
      %6741 = vmatprep.subr.mxu0 0.0
      %6742 = vmatpush1.msra.mxu0 0.0
      %6743 = vmatprep.subr.mxu0 0.0
      %6744 = vmatpush1.msra.mxu0 0.0
      %6745 = vmatprep.subr.mxu0 0.0
      %6746 = vmatpush1.msra.mxu0 0.0
      %6747 = vmatprep.subr.mxu0 0.0
      %6748 = vmatpush1.msra.mxu0 0.0
      %6749 = vmatprep.mubr.f32.mxu0 0.0
      %6750 = vmatmul.mubr.f32.gmra.mrb[0].mxu0 %v6677
      %v6751 = vpop.f32.mrb[0].mxu0
      %v6752 = vadd.f32 0.0, %v6751
      %v6753 = vpop.f32.mrb[0].mxu0
      %6754 = vmatprep.mubr.f32.mxu0 0.0
      %6755 = vmatmul.mubr.f32.gmra.mrb[0].mxu0 %v6680
      %v6756 = vpop.f32.mrb[0].mxu0
      %v6757 = vadd.f32 0.0, %v6756
      %v6758 = vpop.f32.mrb[0].mxu0
      %6759 = vdwg.mxu0
      %v6760 = vadd.f32 %v6669, %v6752
      %v6761 = vadd.f32 %v6670, %v6757
      %s6762 = sadd.s32 %s6129, 37
      %s6763 = scalar_lea.vmem %s234, %s6762
      %v6764 = vld [vmem:[%s6763] sm:$0xff]
      %v6765 = vld [vmem:[%s6763 + $0x8] sm:$0xff]
      %v6766 = vld [vmem:[%s906] sm:$0xf]
      %v6768 = vsel %vm272, %v6764, 0
      %v6771 = vsel %vm272, %v6765, 0
      %v6774 = vsel %vm279, %v6766, 0
      %6776 = vmatprep.subr.mxu0 0.0
      %6777 = vmatpush1.msra.mxu0 %v6774
      %6778 = vmatprep.subr.mxu0 0.0
      %6779 = vmatpush1.msra.mxu0 0.0
      %6780 = vmatprep.subr.mxu0 0.0
      %6781 = vmatpush1.msra.mxu0 0.0
      %6782 = vmatprep.subr.mxu0 0.0
      %6783 = vmatpush1.msra.mxu0 0.0
      %6784 = vmatprep.subr.mxu0 0.0
      %6785 = vmatpush1.msra.mxu0 0.0
      %6786 = vmatprep.subr.mxu0 0.0
      %6787 = vmatpush1.msra.mxu0 0.0
      %6788 = vmatprep.subr.mxu0 0.0
      %6789 = vmatpush1.msra.mxu0 0.0
      %6790 = vmatprep.subr.mxu0 0.0
      %6791 = vmatpush1.msra.mxu0 0.0
      %6792 = vmatprep.subr.mxu0 0.0
      %6793 = vmatpush1.msra.mxu0 0.0
      %6794 = vmatprep.subr.mxu0 0.0
      %6795 = vmatpush1.msra.mxu0 0.0
      %6796 = vmatprep.subr.mxu0 0.0
      %6797 = vmatpush1.msra.mxu0 0.0
      %6798 = vmatprep.subr.mxu0 0.0
      %6799 = vmatpush1.msra.mxu0 0.0
      %6800 = vmatprep.subr.mxu0 0.0
      %6801 = vmatpush1.msra.mxu0 0.0
      %6802 = vmatprep.subr.mxu0 0.0
      %6803 = vmatpush1.msra.mxu0 0.0
      %6804 = vmatprep.subr.mxu0 0.0
      %6805 = vmatpush1.msra.mxu0 0.0
      %6806 = vmatprep.subr.mxu0 0.0
      %6807 = vmatpush1.msra.mxu0 0.0
      %6808 = vmatprep.subr.mxu0 0.0
      %6809 = vmatpush1.msra.mxu0 0.0
      %6810 = vmatprep.subr.mxu0 0.0
      %6811 = vmatpush1.msra.mxu0 0.0
      %6812 = vmatprep.subr.mxu0 0.0
      %6813 = vmatpush1.msra.mxu0 0.0
      %6814 = vmatprep.subr.mxu0 0.0
      %6815 = vmatpush1.msra.mxu0 0.0
      %6816 = vmatprep.subr.mxu0 0.0
      %6817 = vmatpush1.msra.mxu0 0.0
      %6818 = vmatprep.subr.mxu0 0.0
      %6819 = vmatpush1.msra.mxu0 0.0
      %6820 = vmatprep.subr.mxu0 0.0
      %6821 = vmatpush1.msra.mxu0 0.0
      %6822 = vmatprep.subr.mxu0 0.0
      %6823 = vmatpush1.msra.mxu0 0.0
      %6824 = vmatprep.subr.mxu0 0.0
      %6825 = vmatpush1.msra.mxu0 0.0
      %6826 = vmatprep.subr.mxu0 0.0
      %6827 = vmatpush1.msra.mxu0 0.0
      %6828 = vmatprep.subr.mxu0 0.0
      %6829 = vmatpush1.msra.mxu0 0.0
      %6830 = vmatprep.subr.mxu0 0.0
      %6831 = vmatpush1.msra.mxu0 0.0
      %6832 = vmatprep.subr.mxu0 0.0
      %6833 = vmatpush1.msra.mxu0 0.0
      %6834 = vmatprep.subr.mxu0 0.0
      %6835 = vmatpush1.msra.mxu0 0.0
      %6836 = vmatprep.subr.mxu0 0.0
      %6837 = vmatpush1.msra.mxu0 0.0
      %6838 = vmatprep.subr.mxu0 0.0
      %6839 = vmatpush1.msra.mxu0 0.0
      %6840 = vmatprep.mubr.f32.mxu0 0.0
      %6841 = vmatmul.mubr.f32.gmra.mrb[0].mxu0 %v6768
      %v6842 = vpop.f32.mrb[0].mxu0
      %v6843 = vadd.f32 0.0, %v6842
      %v6844 = vpop.f32.mrb[0].mxu0
      %6845 = vmatprep.mubr.f32.mxu0 0.0
      %6846 = vmatmul.mubr.f32.gmra.mrb[0].mxu0 %v6771
      %v6847 = vpop.f32.mrb[0].mxu0
      %v6848 = vadd.f32 0.0, %v6847
      %v6849 = vpop.f32.mrb[0].mxu0
      %6850 = vdwg.mxu0
      %v6851 = vadd.f32 %v6760, %v6843
      %v6852 = vadd.f32 %v6761, %v6848
      %s6853 = sadd.s32 %s6129, 38
      %s6854 = scalar_lea.vmem %s234, %s6853
      %v6855 = vld [vmem:[%s6854] sm:$0xff]
      %v6856 = vld [vmem:[%s6854 + $0x8] sm:$0xff]
      %v6857 = vld [vmem:[%s998] sm:$0xf]
      %v6859 = vsel %vm272, %v6855, 0
      %v6862 = vsel %vm272, %v6856, 0
      %v6865 = vsel %vm279, %v6857, 0
      %6867 = vmatprep.subr.mxu0 0.0
      %6868 = vmatpush1.msra.mxu0 %v6865
      %6869 = vmatprep.subr.mxu0 0.0
      %6870 = vmatpush1.msra.mxu0 0.0
      %6871 = vmatprep.subr.mxu0 0.0
      %6872 = vmatpush1.msra.mxu0 0.0
      %6873 = vmatprep.subr.mxu0 0.0
      %6874 = vmatpush1.msra.mxu0 0.0
      %6875 = vmatprep.subr.mxu0 0.0
      %6876 = vmatpush1.msra.mxu0 0.0
      %6877 = vmatprep.subr.mxu0 0.0
      %6878 = vmatpush1.msra.mxu0 0.0
      %6879 = vmatprep.subr.mxu0 0.0
      %6880 = vmatpush1.msra.mxu0 0.0
      %6881 = vmatprep.subr.mxu0 0.0
      %6882 = vmatpush1.msra.mxu0 0.0
      %6883 = vmatprep.subr.mxu0 0.0
      %6884 = vmatpush1.msra.mxu0 0.0
      %6885 = vmatprep.subr.mxu0 0.0
      %6886 = vmatpush1.msra.mxu0 0.0
      %6887 = vmatprep.subr.mxu0 0.0
      %6888 = vmatpush1.msra.mxu0 0.0
      %6889 = vmatprep.subr.mxu0 0.0
      %6890 = vmatpush1.msra.mxu0 0.0
      %6891 = vmatprep.subr.mxu0 0.0
      %6892 = vmatpush1.msra.mxu0 0.0
      %6893 = vmatprep.subr.mxu0 0.0
      %6894 = vmatpush1.msra.mxu0 0.0
      %6895 = vmatprep.subr.mxu0 0.0
      %6896 = vmatpush1.msra.mxu0 0.0
      %6897 = vmatprep.subr.mxu0 0.0
      %6898 = vmatpush1.msra.mxu0 0.0
      %6899 = vmatprep.subr.mxu0 0.0
      %6900 = vmatpush1.msra.mxu0 0.0
      %6901 = vmatprep.subr.mxu0 0.0
      %6902 = vmatpush1.msra.mxu0 0.0
      %6903 = vmatprep.subr.mxu0 0.0
      %6904 = vmatpush1.msra.mxu0 0.0
      %6905 = vmatprep.subr.mxu0 0.0
      %6906 = vmatpush1.msra.mxu0 0.0
      %6907 = vmatprep.subr.mxu0 0.0
      %6908 = vmatpush1.msra.mxu0 0.0
      %6909 = vmatprep.subr.mxu0 0.0
      %6910 = vmatpush1.msra.mxu0 0.0
      %6911 = vmatprep.subr.mxu0 0.0
      %6912 = vmatpush1.msra.mxu0 0.0
      %6913 = vmatprep.subr.mxu0 0.0
      %6914 = vmatpush1.msra.mxu0 0.0
      %6915 = vmatprep.subr.mxu0 0.0
      %6916 = vmatpush1.msra.mxu0 0.0
      %6917 = vmatprep.subr.mxu0 0.0
      %6918 = vmatpush1.msra.mxu0 0.0
      %6919 = vmatprep.subr.mxu0 0.0
      %6920 = vmatpush1.msra.mxu0 0.0
      %6921 = vmatprep.subr.mxu0 0.0
      %6922 = vmatpush1.msra.mxu0 0.0
      %6923 = vmatprep.subr.mxu0 0.0
      %6924 = vmatpush1.msra.mxu0 0.0
      %6925 = vmatprep.subr.mxu0 0.0
      %6926 = vmatpush1.msra.mxu0 0.0
      %6927 = vmatprep.subr.mxu0 0.0
      %6928 = vmatpush1.msra.mxu0 0.0
      %6929 = vmatprep.subr.mxu0 0.0
      %6930 = vmatpush1.msra.mxu0 0.0
      %6931 = vmatprep.mubr.f32.mxu0 0.0
      %6932 = vmatmul.mubr.f32.gmra.mrb[0].mxu0 %v6859
      %v6933 = vpop.f32.mrb[0].mxu0
      %v6934 = vadd.f32 0.0, %v6933
      %v6935 = vpop.f32.mrb[0].mxu0
      %6936 = vmatprep.mubr.f32.mxu0 0.0
      %6937 = vmatmul.mubr.f32.gmra.mrb[0].mxu0 %v6862
      %v6938 = vpop.f32.mrb[0].mxu0
      %v6939 = vadd.f32 0.0, %v6938
      %v6940 = vpop.f32.mrb[0].mxu0
      %6941 = vdwg.mxu0
      %v6942 = vadd.f32 %v6851, %v6934
      %v6943 = vadd.f32 %v6852, %v6939
      %s6944 = scalar_lea.vmem %s244, 112
      %6945 = vst [vmem:[%s6944] sm:$0xff] %v6942
      %6946 = vst [vmem:[%s6944 + $0x8] sm:$0xff] %v6943
      %v6947 = vadd.f32 %v6942, %v6943
      %v6948 = vrot.slane %v6947, 4
      %v6949 = vadd.f32 %v6947, %v6948
      %v6950 = vrot.slane %v6949, 2
      %v6951 = vadd.f32 %v6949, %v6950
      %v6952 = vrot.slane %v6951, 1
      %v6953 = vadd.f32 %v6951, %v6952
      %v6954 = vadd.f32 %v6117, %v6953
      %v6955 = vmul.f32 %v6942, %v6942
      %v6956 = vmul.f32 %v6943, %v6943
      %v6957 = vadd.f32 %v6955, %v6956
      %v6958 = vrot.slane %v6957, 4
      %v6959 = vadd.f32 %v6957, %v6958
      %v6960 = vrot.slane %v6959, 2
      %v6961 = vadd.f32 %v6959, %v6960
      %v6962 = vrot.slane %v6961, 1
      %v6963 = vadd.f32 %v6961, %v6962
      %v6964 = vadd.f32 %v6127, %v6963
      %6965 = vst [vmem:[%s250] sm:$0x1] %v6954
      %6966 = vst [vmem:[%s257] sm:$0x1] %v6964
      %s6967 = smul.u32 8, %s21
      %p6968 = scmp.lt.s32.totalorder %s20, 1
      %s6969 = scalar_select %p6968, %s20, 1
      %p6970 = scmp.lt.s32.totalorder %s6967, 15
      %s6971 = scalar_select %p6970, %s6967, 15
      %s6972 = smul.addr %s6971, 2
      %s6973 = smul.addr %s6969, 32
      %s6974 = sadd.s32 %s6972, %s6973
      %s6975 = smul.addr %s6974, 8
      %s6976 = scalar_lea.vmem %s2, %s6975
      %s6977 = smul.u32 %s20, 2
      %s6978 = sadd.s32 %s6977, %s21
      %p6979 = scmp.lt.s32.totalorder %s6978, 3
      %s6980 = scalar_select %p6979, %s6978, 3
      %s6981 = scalar_lea.vmem %s3, %s6980
      %s6982 = smul.u32 %s20, 2
      %s6983 = sadd.s32 %s6982, %s21
      %p6984 = scmp.lt.s32.totalorder %s6983, 3
      %s6985 = scalar_select %p6984, %s6983, 3
      %s6986 = scalar_lea.vmem %s4, %s6985
      // Predicated region
      $region29: #{conv_bn_leakyrelu.2} parent=27 // pred_check
        %p6987 = pneg %p95
      $region30: #{conv_bn_leakyrelu.2} parent=27 // pred_check_branch
        %6989 = sbr.rel (%p6987) target = $region32
      $region31: #{conv_bn_leakyrelu.2} parent=27 // pred_region
        %s6990 = smul.u32 8, %s21
      $region32: #{conv_bn_leakyrelu.2} parent=27 // pred_fallthru
        _
      // Predicated region
      $region33: #{conv_bn_leakyrelu.2} parent=27 // pred_check
        %p6991 = pneg %p125
      $region34: #{conv_bn_leakyrelu.2} parent=27 // pred_check_branch
        %6993 = sbr.rel (%p6991) target = $region36
      $region35: #{conv_bn_leakyrelu.2} parent=27 // pred_region
        %s6994 = smul.u32 %s20, 2
        %s6995 = sadd.s32 %s6994, %s21
      $region36: #{conv_bn_leakyrelu.2} parent=27 // pred_fallthru
        _
      // Predicated region
      $region37: #{conv_bn_leakyrelu.2} parent=27 // pred_check
        %p6996 = pneg %p155
      $region38: #{conv_bn_leakyrelu.2} parent=27 // pred_check_branch
        %6998 = sbr.rel (%p6996) target = $region40
      $region39: #{conv_bn_leakyrelu.2} parent=27 // pred_region
        %s6999 = smul.u32 %s20, 2
        %s7000 = sadd.s32 %s6999, %s21
      $region40: #{conv_bn_leakyrelu.2} parent=27 // pred_fallthru
        _
    $region28: #{conv_bn_leakyrelu.2} parent=5 // pred_fallthru
      _
    %p7001 = scmp.le.s32.totalorder 2, %s11
    // Predicated region
    $region41: #{conv_bn_leakyrelu.2} parent=5 // pred_check
      %p7002 = pneg %p7001
    $region42: #{conv_bn_leakyrelu.2} parent=5 // pred_check_branch
      %7004 = sbr.rel (%p7002) target = $region44
    $region43: #{conv_bn_leakyrelu.2} parent=5 // pred_region
      %s7005 = ssub.s32 %s11, 2
      // Predicated region
      $region45: #{conv_bn_leakyrelu.2} parent=43 // pred_check
        %p7006 = pneg %p101
      $region46: #{conv_bn_leakyrelu.2} parent=43 // pred_check_branch
        %7008 = sbr.rel (%p7006) target = $region48
      $region47: #{conv_bn_leakyrelu.2} parent=43 // pred_region
        %s7009 = smul.u32 8, %s23
        %p7010 = scmp.lt.s32.totalorder %s22, 1
        %s7011 = scalar_select %p7010, %s22, 1
        %p7012 = scmp.lt.s32.totalorder %s7009, 15
        %s7013 = scalar_select %p7012, %s7009, 15
        %s7014 = smul.addr %s7013, 2
        %s7015 = smul.addr %s7011, 32
        %s7016 = sadd.s32 %s7014, %s7015
        %s7017 = smul.addr %s7016, 8
        %s7018 = scalar_lea.vmem %s2, %s7017
      $region48: #{conv_bn_leakyrelu.2} parent=43 // pred_fallthru
        _
      // Predicated region
      $region49: #{conv_bn_leakyrelu.2} parent=43 // pred_check
        %p7019 = pneg %p131
      $region50: #{conv_bn_leakyrelu.2} parent=43 // pred_check_branch
        %7021 = sbr.rel (%p7019) target = $region52
      $region51: #{conv_bn_leakyrelu.2} parent=43 // pred_region
        %s7022 = smul.u32 %s22, 2
        %s7023 = sadd.s32 %s7022, %s23
        %p7024 = scmp.lt.s32.totalorder %s7023, 3
        %s7025 = scalar_select %p7024, %s7023, 3
        %s7026 = scalar_lea.vmem %s3, %s7025
      $region52: #{conv_bn_leakyrelu.2} parent=43 // pred_fallthru
        _
      // Predicated region
      $region53: #{conv_bn_leakyrelu.2} parent=43 // pred_check
        %p7027 = pneg %p161
      $region54: #{conv_bn_leakyrelu.2} parent=43 // pred_check_branch
        %7029 = sbr.rel (%p7027) target = $region56
      $region55: #{conv_bn_leakyrelu.2} parent=43 // pred_region
        %s7030 = smul.u32 %s22, 2
        %s7031 = sadd.s32 %s7030, %s23
        %p7032 = scmp.lt.s32.totalorder %s7031, 3
        %s7033 = scalar_select %p7032, %s7031, 3
        %s7034 = scalar_lea.vmem %s4, %s7033
      $region56: #{conv_bn_leakyrelu.2} parent=43 // pred_fallthru
        _
    $region44: #{conv_bn_leakyrelu.2} parent=5 // pred_fallthru
      _
  $region6: #{conv_bn_leakyrelu.2} parent=0 // loop_footer
    %s15 = sadd.s32 1, %s11
  $region7: #{conv_bn_leakyrelu.2} parent=0 // loop_footer_branch
    %10 = sbr.rel target = $region3
  $region8: #{conv_bn_leakyrelu.2} parent=0 // loop_exit
    _

</llo_original>
